<compile_context>
chip_gen: v5e
topology: v5e:2x2
jax: 0.10.0
libtpu: 0.0.40
codegen_flags: <defaults>
</compile_context>

<pallas_src>
import functools
import math

import jax
import jax.numpy as jnp
from jax.experimental import pallas as pl
from jax.experimental.pallas import tpu as pltpu


def _strip_height(H, strip_h=None):
    """Row-strip height: divides H, bounded so per-strip VMEM stays small."""
    if strip_h is not None:
        assert H % strip_h == 0, "strip_h must divide H"
        return strip_h
    if H <= 16:
        return H
    for t in range(16, 0, -1):
        if H % t == 0:
            return t
    return H


# ---------------------------------------------------------------------------
# Fused kernel: (v, attn) projections + unfold + softmax + attention + fold
# + output projection, one row-strip of one image per grid step.
# ---------------------------------------------------------------------------
def _outlook_kernel(x_ref, vw_ref, vb_ref, aw_ref, ab_ref, pw_ref, pb_ref,
                    o_ref, vpad_s, xc_s, acc_s,
                    *, H, W, C, nh, hd, K, pad, th, scale):
    K2 = K * K
    G = nh * K2                    # lane width of one q-slab of the logits
    Na = K2 * G
    nc = th + K - 1                # candidate centre rows per strip (w/ halo)
    Wp = W + 2 * pad
    Hv = H + 2 * (K - 1)           # rows of the padded-v scratch
    Hc = H + K - 1                 # rows of the zero-extended x scratch
    off_c = K - 1 - pad            # x row 0 sits at xc_s row off_c

    s = pl.program_id(1)
    r0 = s * th                    # first output row of this strip
    if th % 8 == 0:
        r0 = pl.multiple_of(r0, 8)

    # ---- once per image: v projection into padded VMEM scratch + x halo ---
    @pl.when(s == 0)
    def _init_image():
        xb = x_ref[0].astype(jnp.bfloat16)                       # (H, W, C)
        # zero-extended x (halo rows) feeding the per-strip attn projection
        xc_s[off_c:off_c + H, :, :] = xb
        if off_c > 0:
            xc_s[0:off_c, :, :] = jnp.zeros((off_c, W, C), jnp.bfloat16)
        if Hc - off_c - H > 0:
            xc_s[off_c + H:Hc, :, :] = jnp.zeros((Hc - off_c - H, W, C),
                                                 jnp.bfloat16)
        # v = x @ Wv + bv, stored bf16 into the padded scratch (interior)
        v = jnp.dot(xb.reshape(H * W, C), vw_ref[...],
                    preferred_element_type=jnp.float32) + vb_ref[...]
        vpad_s[K - 1:K - 1 + H, pad:pad + W, :] = (
            v.reshape(H, W, C).astype(vpad_s.dtype))
        # zero only the pad borders (interior was just overwritten)
        if K > 1:
            vpad_s[0:K - 1, :, :] = jnp.zeros((K - 1, Wp, C), vpad_s.dtype)
            vpad_s[K - 1 + H:Hv, :, :] = jnp.zeros((K - 1, Wp, C),
                                                   vpad_s.dtype)
        if pad > 0:
            vpad_s[K - 1:K - 1 + H, 0:pad, :] = jnp.zeros((H, pad, C),
                                                          vpad_s.dtype)
            vpad_s[K - 1:K - 1 + H, pad + W:Wp, :] = jnp.zeros(
                (H, Wp - pad - W, C), vpad_s.dtype)

    # ---- per strip: attn logits for the nc candidate centre rows -----------
    xs = xc_s[pl.ds(r0, nc)]                                 # (nc, W, C) bf16
    a = jnp.dot(xs.reshape(nc * W, C), aw_ref[...],
                preferred_element_type=jnp.float32)
    a = ((a + ab_ref[...]) * scale).reshape(nc, W, Na)

    # softmax over q: columns pre-permuted to (q, head, k) so each q-slab is
    # one contiguous lane group -> lane-dense VPU/EUP work, no lane gathers.
    slabs = [a[:, :, q * G:(q + 1) * G] for q in range(K2)]
    mx = slabs[0]
    for q in range(1, K2):
        mx = jnp.maximum(mx, slabs[q])
    probs = [jnp.exp(sl - mx) for sl in slabs]
    den = probs[0]
    for q in range(1, K2):
        den = den + probs[q]
    # halo centre rows outside the image must contribute nothing to the fold
    t_io = jax.lax.broadcasted_iota(jnp.int32, (nc, 1, 1), 0)
    ci = t_io + (r0 + pad - (K - 1))                         # global centre row
    rowmask = ((ci >= 0) & (ci < H)).astype(jnp.float32)
    inv = pl.reciprocal(den, approx=True) * rowmask          # EUP, not VALU
    probs = [p * inv for p in probs]
    # TODO(synk): attn_drop / proj_drop are eval-mode identity; training-mode
    # dropout is not implemented.

    # ---- hoisted v slabs (built once per strip, reused by all 9 k's) -------
    vrows = [vpad_s[pl.ds(r0 + qi, nc)] for qi in range(K)]  # (nc, Wp, C) bf16
    vq = []                                                  # [q][head]
    for q in range(K2):
        qi, qj = divmod(q, K)
        full = vrows[qi][:, qj:qj + W, :]                    # (nc, W, C)
        vq.append([full[:, :, h0 * hd:(h0 + 1) * hd] for h0 in range(nh)])

    # ---- attention (VPU FMAs, C on lanes) fused with Fold in VMEM ----------
    # TODO(synk): the per-(k,head,q) 1-lane->hd broadcast of the prob column
    # still rides the XLU; an MXU-based replication (probs @ one-hot matrix)
    # was evaluated but the 9..54-wide contraction under-feeds the 256-wide
    # MXU, so it is left as a bundle-dump-verified follow-up experiment.
    acc_s[...] = jnp.zeros_like(acc_s)
    for k in range(K2):
        ki, kj = divmod(k, K)
        houts = []
        for h0 in range(nh):
            c0 = h0 * K2 + k
            oh = None
            for q in range(K2):
                term = probs[q][:, :, c0:c0 + 1] * vq[q][h0]  # lane-dense FMA
                oh = term if oh is None else oh + term
            houts.append(oh)
        out_k = houts[0] if nh == 1 else jnp.concatenate(houts, axis=-1)
        acc_s[ki:ki + nc, kj:kj + W, :] = (
            acc_s[ki:ki + nc, kj:kj + W, :] + out_k)          # fold in VMEM

    # ---- output proj on the folded strip (MXU bf16 inputs, f32 accumulate) -
    folded = acc_s[K - 1:K - 1 + th, pad:pad + W, :]          # (th, W, C) f32
    y = jnp.dot(folded.reshape(th * W, C).astype(jnp.bfloat16), pw_ref[...],
                preferred_element_type=jnp.float32) + pb_ref[...]
    o_ref[0] = y.reshape(th, W, C).astype(o_ref.dtype)


# ---------------------------------------------------------------------------
# OutlookAttention forward
# ---------------------------------------------------------------------------
def outlook_attention(x, params, *, num_heads=1, kernel_size=3, padding=1,
                      stride=1, strip_h=None, out_dtype=None):
    # TODO(synk): stride>1 (AvgPool + coarse attention grid) is not implemented.
    assert stride == 1, "this kernel implements the stride=1 path"
    B, H, W, C = x.shape
    nh, K, pad = num_heads, kernel_size, padding
    assert C % nh == 0
    assert 2 * pad >= K - 1, "unfold window must stay inside the padded image"
    assert pad <= K - 1, "padding must not exceed kernel_size - 1"
    hd = C // nh
    K2 = K * K
    G = nh * K2
    Na = K2 * G
    scale = hd ** (-0.5)
    th = _strip_height(H, strip_h)
    ns = H // th
    Wp = W + 2 * pad
    # out dtype can be bf16 if the consumer accepts it (halves HBM writeback);
    # f32 is kept here so the correctness check against the f32 ref is tight.
    out_dtype = x.dtype if out_dtype is None else out_dtype

    # Permute attn-linear output columns from (head, k, q)[q fastest] to
    # (q, head, k)[k fastest] so the in-kernel softmax over q works on
    # contiguous lane slabs.  One-time tiny weight shuffle.
    heads = jnp.arange(nh)
    ks = jnp.arange(K2)
    qs = jnp.arange(K2)
    old_idx = ((heads[None, :, None] * K2 + ks[None, None, :]) * K2
               + qs[:, None, None]).reshape(-1)
    aw = params["attn_w"][:, old_idx].astype(jnp.bfloat16)
    ab = params["attn_b"][old_idx].reshape(1, Na).astype(jnp.float32)
    vw = params["v_w"].astype(jnp.bfloat16)
    vb = params.get("v_b", None)
    if vb is None:                                   # qkv_bias=False
        vb = jnp.zeros((C,), jnp.float32)
    vb = vb.reshape(1, C).astype(jnp.float32)
    pw = params["proj_w"].astype(jnp.bfloat16)
    pb = params["proj_b"].reshape(1, C).astype(jnp.float32)

    # Explicit scoped-VMEM budget (defaults are only 16/32 MiB on v5e/v6e+v7x);
    # capped well below v7x's 64 MiB physical VMEM.
    nc = th + K - 1
    est = ((H + 2 * (K - 1)) * Wp * C * 2             # padded v scratch (bf16)
           + (H + K - 1) * W * C * 2                  # x halo scratch (bf16)
           + (th + 2 * (K - 1)) * Wp * C * 4          # fold accumulator (f32)
           + 2 * (H * W * C * x.dtype.itemsize + th * W * C * 4)   # blocks
           + 2 * (2 * C * C * 2 + C * Na * 2 + (Na + 2 * C) * 4)   # weights
           + nc * W * (3 * Na * 4 + K2 * C * 2 + 4 * C * 4))       # temporaries
    vmem_limit = int(min(max(2 * est, 16 * 2 ** 20), 40 * 2 ** 20))

    kernel = functools.partial(_outlook_kernel, H=H, W=W, C=C, nh=nh, hd=hd,
                               K=K, pad=pad, th=th, scale=scale)

    y = pl.pallas_call(
        kernel,
        out_shape=jax.ShapeDtypeStruct((B, H, W, C), out_dtype),
        grid=(B, ns),
        in_specs=[
            pl.BlockSpec((1, H, W, C), lambda b, s: (b, 0, 0, 0)),  # x (image)
            pl.BlockSpec((C, C), lambda b, s: (0, 0)),              # v_w
            pl.BlockSpec((1, C), lambda b, s: (0, 0)),              # v_b
            pl.BlockSpec((C, Na), lambda b, s: (0, 0)),             # attn_w
            pl.BlockSpec((1, Na), lambda b, s: (0, 0)),             # attn_b
            pl.BlockSpec((C, C), lambda b, s: (0, 0)),              # proj_w
            pl.BlockSpec((1, C), lambda b, s: (0, 0)),              # proj_b
        ],
        out_specs=pl.BlockSpec((1, th, W, C), lambda b, s: (b, s, 0, 0)),
        scratch_shapes=[
            pltpu.VMEM((H + 2 * (K - 1), Wp, C), jnp.bfloat16),  # padded v
            pltpu.VMEM((H + K - 1, W, C), jnp.bfloat16),         # x + halo rows
            pltpu.VMEM((th + 2 * (K - 1), Wp, C), jnp.float32),  # fold acc
        ],
        compiler_params=pltpu.CompilerParams(
            dimension_semantics=("parallel", "arbitrary"),
            vmem_limit_bytes=vmem_limit),
        cost_estimate=pl.CostEstimate(
            flops=B * H * W * (2 * C * (C + Na) + 2 * K2 * K2 * C + 2 * C * C),
            transcendentals=B * H * W * Na,
            bytes_accessed=(B * H * W * C * 8
                            + 2 * (2 * C * C + C * Na) + 4 * (Na + 3 * C))),
    )(x, vw, vb, aw, ab, pw, pb)
    return y


# Pure-jnp reference (same math, no Pallas) for the correctness sanity check.
def outlook_attention_ref(x, params, *, num_heads=1, kernel_size=3, padding=1,
                          stride=1):
    B, H, W, C = x.shape
    nh = num_heads
    hd = C // nh
    K = kernel_size
    K2 = K * K
    h, w = H, W
    scale = hd ** (-0.5)

    v = (x.reshape(-1, C) @ params["v_w"] + params["v_b"]).reshape(B, H, W, C)
    v_pad = jnp.pad(v, ((0, 0), (padding, padding), (padding, padding), (0, 0)))
    patches = jnp.stack(
        [v_pad[:, ki:ki + h, kj:kj + w, :] for ki in range(K) for kj in range(K)],
        axis=3)
    v_unf = patches.reshape(B, h * w, K2, nh, hd).transpose(0, 3, 1, 2, 4)

    a = x.reshape(-1, C) @ params["attn_w"] + params["attn_b"]
    a = a.reshape(B, h * w, nh, K2, K2).transpose(0, 2, 1, 3, 4)
    p = jax.nn.softmax(a * scale, axis=-1)
    out = jnp.einsum("bnlkq,bnlqd->bnlkd", p, v_unf)         # (B, nh, hw, K2, hd)

    out = out.reshape(B, nh, h, w, K2, hd).transpose(0, 2, 3, 4, 1, 5)
    out = out.reshape(B, h, w, K2, C)
    acc = jnp.zeros((B, H + 2 * padding, W + 2 * padding, C), jnp.float32)
    for ki in range(K):
        for kj in range(K):
            acc = acc.at[:, ki:ki + h, kj:kj + w, :].add(out[:, :, :, ki * K + kj, :])
    folded = acc[:, padding:padding + H, padding:padding + W, :]

    y = folded.reshape(-1, C) @ params["proj_w"] + params["proj_b"]
    return y.reshape(B, H, W, C)


if __name__ == "__main__":
    key = jax.random.PRNGKey(0)

    def make_params(k, C, nh, K):
        k1, k2, k3, k4, k5 = jax.random.split(k, 5)
        return {
            "v_w": jax.random.normal(k1, (C, C), jnp.float32) * 0.05,
            "v_b": jnp.zeros((C,), jnp.float32),             # qkv_bias=False
            "attn_w": jax.random.normal(k2, (C, K ** 4 * nh), jnp.float32) * 0.05,
            "attn_b": jax.random.normal(k3, (K ** 4 * nh,), jnp.float32) * 0.05,
            "proj_w": jax.random.normal(k4, (C, C), jnp.float32) * 0.05,
            "proj_b": jax.random.normal(k5, (C,), jnp.float32) * 0.05,
        }

    B, H, W, C, K = 2, 8, 8, 32, 3
    # config 1: defaults (1 head, single strip); config 2: 2 heads, 2 strips
    # (exercises the row-strip halo / masking path).
    for nh, strip_h in ((1, None), (2, 4)):
        kx, kp, key = jax.random.split(key, 3)
        x = jax.random.normal(kx, (B, H, W, C), jnp.float32)
        params = make_params(kp, C, nh, K)

        y = jax.block_until_ready(
            outlook_attention(x, params, num_heads=nh, kernel_size=K,
                              padding=1, stride=1, strip_h=strip_h))
        y_ref = jax.block_until_ready(
            outlook_attention_ref(x, params, num_heads=nh, kernel_size=K,
                                  padding=1, stride=1))

        assert y.shape == (B, H, W, C)
        # bf16 MXU inputs / bf16 v scratch (f32 accumulate) -> loose tolerance
        # vs the all-f32 reference.
        assert jnp.allclose(y, y_ref, atol=2e-2, rtol=2e-2), \
            f"mismatch vs reference (num_heads={nh}, strip_h={strip_h})"

    print("KERNEL_OK")
</pallas_src>

<mosaic_0001>
module attributes {stable_mosaic.version = 11 : i64} {
  func.func @_outlook_kernel(%arg0: i32, %arg1: i32, %arg2: memref<1x8x8x32xf32, #tpu.memory_space<vmem>>, %arg3: memref<32x32xbf16, #tpu.memory_space<vmem>>, %arg4: memref<1x32xf32, #tpu.memory_space<vmem>>, %arg5: memref<32x81xbf16, #tpu.memory_space<vmem>>, %arg6: memref<1x81xf32, #tpu.memory_space<vmem>>, %arg7: memref<32x32xbf16, #tpu.memory_space<vmem>>, %arg8: memref<1x32xf32, #tpu.memory_space<vmem>>, %arg9: memref<1x8x8x32xf32, #tpu.memory_space<vmem>>, %arg10: memref<12x10x32xbf16, #tpu.memory_space<vmem>>, %arg11: memref<10x8x32xbf16, #tpu.memory_space<vmem>>, %arg12: memref<12x10x32xf32, #tpu.memory_space<vmem>>) attributes {dimension_semantics = [#tpu.dimension_semantics<parallel>, #tpu.dimension_semantics<arbitrary>], iteration_bounds = array<i64: 2, 1>, scalar_prefetch = 0 : i64, scratch_operands = 3 : i64, tpu.core_type = #tpu.core_type<tc>, window_params = [{transform_indices = @transform_0, window_bounds = array<i64: 1, 8, 8, 32>}, {pipeline_mode = #tpu.pipeline_mode<synchronous>, transform_indices = @transform_1, window_bounds = array<i64: 32, 32>}, {pipeline_mode = #tpu.pipeline_mode<synchronous>, transform_indices = @transform_2, window_bounds = array<i64: 1, 32>}, {pipeline_mode = #tpu.pipeline_mode<synchronous>, transform_indices = @transform_3, window_bounds = array<i64: 32, 81>}, {pipeline_mode = #tpu.pipeline_mode<synchronous>, transform_indices = @transform_4, window_bounds = array<i64: 1, 81>}, {pipeline_mode = #tpu.pipeline_mode<synchronous>, transform_indices = @transform_5, window_bounds = array<i64: 32, 32>}, {pipeline_mode = #tpu.pipeline_mode<synchronous>, transform_indices = @transform_6, window_bounds = array<i64: 1, 32>}, {transform_indices = @transform_7, window_bounds = array<i64: 1, 8, 8, 32>}]} {
    %c8_i32 = arith.constant 8 : i32
    %0 = arith.muli %arg1, %c8_i32 : i32
    %1 = tpu.assume_multiple %0, 8 : i32
    %c0_i32 = arith.constant 0 : i32
    %2 = arith.cmpi eq, %arg1, %c0_i32 : i32
    %3 = arith.extui %2 : i1 to i32
    %c0_i32_0 = arith.constant 0 : i32
    %4 = arith.cmpi ne, %3, %c0_i32_0 : i32
    scf.if %4 {
      %c0_86 = arith.constant 0 : index
      %c0_87 = arith.constant 0 : index
      %c0_88 = arith.constant 0 : index
      %c0_89 = arith.constant 0 : index
      %538 = vector.load %arg2[%c0_86, %c0_87, %c0_88, %c0_89] : memref<1x8x8x32xf32, #tpu.memory_space<vmem>>, vector<1x8x8x32xf32>
      %539 = vector.shape_cast %538 : vector<1x8x8x32xf32> to vector<8x8x32xf32>
      %540 = arith.truncf %539 : vector<8x8x32xf32> to vector<8x8x32xbf16>
      %c1_90 = arith.constant 1 : index
      %c0_91 = arith.constant 0 : index
      %c0_92 = arith.constant 0 : index
      %541 = vector.load %arg11[%c1_90, %c0_91, %c0_92] : memref<10x8x32xbf16, #tpu.memory_space<vmem>>, vector<8x8x32xbf16>
      tpu.vector_store %arg11[%c1_90, %c0_91, %c0_92], %540 {strides = array<i32>} : memref<10x8x32xbf16, #tpu.memory_space<vmem>>, vector<8x8x32xbf16>,
      %cst_93 = arith.constant 0.000000e+00 : bf16
      %542 = vector.broadcast %cst_93 : bf16 to vector<1x8x32xbf16>
      %c0_94 = arith.constant 0 : index
      %c0_95 = arith.constant 0 : index
      %c0_96 = arith.constant 0 : index
      %543 = vector.load %arg11[%c0_94, %c0_95, %c0_96] : memref<10x8x32xbf16, #tpu.memory_space<vmem>>, vector<1x8x32xbf16>
      tpu.vector_store %arg11[%c0_94, %c0_95, %c0_96], %542 {strides = array<i32>} : memref<10x8x32xbf16, #tpu.memory_space<vmem>>, vector<1x8x32xbf16>,
      %cst_97 = arith.constant 0.000000e+00 : bf16
      %544 = vector.broadcast %cst_97 : bf16 to vector<1x8x32xbf16>
      %c9 = arith.constant 9 : index
      %c0_98 = arith.constant 0 : index
      %c0_99 = arith.constant 0 : index
      %545 = vector.load %arg11[%c9, %c0_98, %c0_99] : memref<10x8x32xbf16, #tpu.memory_space<vmem>>, vector<1x8x32xbf16>
      tpu.vector_store %arg11[%c9, %c0_98, %c0_99], %544 {strides = array<i32>} : memref<10x8x32xbf16, #tpu.memory_space<vmem>>, vector<1x8x32xbf16>,
      %546 = vector.shape_cast %540 : vector<8x8x32xbf16> to vector<64x32xbf16>
      %c0_100 = arith.constant 0 : index
      %c0_101 = arith.constant 0 : index
      %547 = vector.load %arg3[%c0_100, %c0_101] : memref<32x32xbf16, #tpu.memory_space<vmem>>, vector<32x32xbf16>
      %cst_102 = arith.constant dense<0.000000e+00> : vector<64x32xf32>
      %548 = tpu.matmul %546, %547, %cst_102 {dimension_numbers = #tpu.dot_dimension_numbers<[1], [0], [0], [1], [0, 0, 1, 1], [], []>} : vector<64x32xbf16>, vector<32x32xbf16>, vector<64x32xf32> -> vector<64x32xf32>
      %c0_103 = arith.constant 0 : index
      %c0_104 = arith.constant 0 : index
      %549 = vector.load %arg4[%c0_103, %c0_104] : memref<1x32xf32, #tpu.memory_space<vmem>>, vector<1x32xf32>
      %550 = vector.broadcast %549 : vector<1x32xf32> to vector<64x32xf32>
      %551 = arith.addf %548, %550 : vector<64x32xf32>
      %552 = vector.shape_cast %551 : vector<64x32xf32> to vector<8x8x32xf32>
      %553 = arith.truncf %552 : vector<8x8x32xf32> to vector<8x8x32xbf16>
      %c2_105 = arith.constant 2 : index
      %c1_106 = arith.constant 1 : index
      %c0_107 = arith.constant 0 : index
      %554 = vector.load %arg10[%c2_105, %c1_106, %c0_107] : memref<12x10x32xbf16, #tpu.memory_space<vmem>>, vector<8x8x32xbf16>
      tpu.vector_store %arg10[%c2_105, %c1_106, %c0_107], %553 {strides = array<i32>} : memref<12x10x32xbf16, #tpu.memory_space<vmem>>, vector<8x8x32xbf16>,
      %cst_108 = arith.constant 0.000000e+00 : bf16
      %555 = vector.broadcast %cst_108 : bf16 to vector<2x10x32xbf16>
      %c0_109 = arith.constant 0 : index
      %c0_110 = arith.constant 0 : index
      %c0_111 = arith.constant 0 : index
      %556 = vector.load %arg10[%c0_109, %c0_110, %c0_111] : memref<12x10x32xbf16, #tpu.memory_space<vmem>>, vector<2x10x32xbf16>
      tpu.vector_store %arg10[%c0_109, %c0_110, %c0_111], %555 {strides = array<i32>} : memref<12x10x32xbf16, #tpu.memory_space<vmem>>, vector<2x10x32xbf16>,
      %cst_112 = arith.constant 0.000000e+00 : bf16
      %557 = vector.broadcast %cst_112 : bf16 to vector<2x10x32xbf16>
      %c10 = arith.constant 10 : index
      %c0_113 = arith.constant 0 : index
      %c0_114 = arith.constant 0 : index
      %558 = vector.load %arg10[%c10, %c0_113, %c0_114] : memref<12x10x32xbf16, #tpu.memory_space<vmem>>, vector<2x10x32xbf16>
      tpu.vector_store %arg10[%c10, %c0_113, %c0_114], %557 {strides = array<i32>} : memref<12x10x32xbf16, #tpu.memory_space<vmem>>, vector<2x10x32xbf16>,
      %cst_115 = arith.constant 0.000000e+00 : bf16
      %559 = vector.broadcast %cst_115 : bf16 to vector<8x1x32xbf16>
      %c2_116 = arith.constant 2 : index
      %c0_117 = arith.constant 0 : index
      %c0_118 = arith.constant 0 : index
      %560 = vector.load %arg10[%c2_116, %c0_117, %c0_118] : memref<12x10x32xbf16, #tpu.memory_space<vmem>>, vector<8x1x32xbf16>
      tpu.vector_store %arg10[%c2_116, %c0_117, %c0_118], %559 {strides = array<i32>} : memref<12x10x32xbf16, #tpu.memory_space<vmem>>, vector<8x1x32xbf16>,
      %cst_119 = arith.constant 0.000000e+00 : bf16
      %561 = vector.broadcast %cst_119 : bf16 to vector<8x1x32xbf16>
      %c2_120 = arith.constant 2 : index
      %c9_121 = arith.constant 9 : index
      %c0_122 = arith.constant 0 : index
      %562 = vector.load %arg10[%c2_120, %c9_121, %c0_122] : memref<12x10x32xbf16, #tpu.memory_space<vmem>>, vector<8x1x32xbf16>
      tpu.vector_store %arg10[%c2_120, %c9_121, %c0_122], %561 {strides = array<i32>} : memref<12x10x32xbf16, #tpu.memory_space<vmem>>, vector<8x1x32xbf16>,
    } else {
    }
    %5 = arith.index_cast %1 : i32 to index
    %c0 = arith.constant 0 : index
    %c0_1 = arith.constant 0 : index
    %6 = vector.load %arg11[%5, %c0, %c0_1] : memref<10x8x32xbf16, #tpu.memory_space<vmem>>, vector<10x8x32xbf16>
    %7 = vector.shape_cast %6 : vector<10x8x32xbf16> to vector<80x32xbf16>
    %c0_2 = arith.constant 0 : index
    %c0_3 = arith.constant 0 : index
    %8 = vector.load %arg5[%c0_2, %c0_3] : memref<32x81xbf16, #tpu.memory_space<vmem>>, vector<32x81xbf16>
    %cst = arith.constant dense<0.000000e+00> : vector<80x81xf32>
    %9 = tpu.matmul %7, %8, %cst {dimension_numbers = #tpu.dot_dimension_numbers<[1], [0], [0], [1], [0, 0, 1, 1], [], []>} : vector<80x32xbf16>, vector<32x81xbf16>, vector<80x81xf32> -> vector<80x81xf32>
    %c0_4 = arith.constant 0 : index
    %c0_5 = arith.constant 0 : index
    %10 = vector.load %arg6[%c0_4, %c0_5] : memref<1x81xf32, #tpu.memory_space<vmem>>, vector<1x81xf32>
    %11 = vector.broadcast %10 : vector<1x81xf32> to vector<80x81xf32>
    %12 = arith.addf %9, %11 : vector<80x81xf32>
    %cst_6 = arith.constant 0.176776692 : f32
    %13 = vector.broadcast %cst_6 : f32 to vector<80x81xf32>
    %14 = arith.mulf %12, %13 : vector<80x81xf32>
    %15 = vector.shape_cast %14 : vector<80x81xf32> to vector<10x8x81xf32>
    %16 = vector.extract_strided_slice %15 {offsets = [0, 0, 0], sizes = [10, 8, 9], strides = [1, 1, 1]} : vector<10x8x81xf32> to vector<10x8x9xf32>
    %17 = vector.extract_strided_slice %15 {offsets = [0, 0, 9], sizes = [10, 8, 9], strides = [1, 1, 1]} : vector<10x8x81xf32> to vector<10x8x9xf32>
    %18 = vector.extract_strided_slice %15 {offsets = [0, 0, 18], sizes = [10, 8, 9], strides = [1, 1, 1]} : vector<10x8x81xf32> to vector<10x8x9xf32>
    %19 = vector.extract_strided_slice %15 {offsets = [0, 0, 27], sizes = [10, 8, 9], strides = [1, 1, 1]} : vector<10x8x81xf32> to vector<10x8x9xf32>
    %20 = vector.extract_strided_slice %15 {offsets = [0, 0, 36], sizes = [10, 8, 9], strides = [1, 1, 1]} : vector<10x8x81xf32> to vector<10x8x9xf32>
    %21 = vector.extract_strided_slice %15 {offsets = [0, 0, 45], sizes = [10, 8, 9], strides = [1, 1, 1]} : vector<10x8x81xf32> to vector<10x8x9xf32>
    %22 = vector.extract_strided_slice %15 {offsets = [0, 0, 54], sizes = [10, 8, 9], strides = [1, 1, 1]} : vector<10x8x81xf32> to vector<10x8x9xf32>
    %23 = vector.extract_strided_slice %15 {offsets = [0, 0, 63], sizes = [10, 8, 9], strides = [1, 1, 1]} : vector<10x8x81xf32> to vector<10x8x9xf32>
    %24 = vector.extract_strided_slice %15 {offsets = [0, 0, 72], sizes = [10, 8, 9], strides = [1, 1, 1]} : vector<10x8x81xf32> to vector<10x8x9xf32>
    %25 = arith.maximumf %16, %17 : vector<10x8x9xf32>
    %26 = arith.maximumf %25, %18 : vector<10x8x9xf32>
    %27 = arith.maximumf %26, %19 : vector<10x8x9xf32>
    %28 = arith.maximumf %27, %20 : vector<10x8x9xf32>
    %29 = arith.maximumf %28, %21 : vector<10x8x9xf32>
    %30 = arith.maximumf %29, %22 : vector<10x8x9xf32>
    %31 = arith.maximumf %30, %23 : vector<10x8x9xf32>
    %32 = arith.maximumf %31, %24 : vector<10x8x9xf32>
    %33 = arith.subf %16, %32 : vector<10x8x9xf32>
    %34 = math.exp %33 : vector<10x8x9xf32>
    %35 = arith.subf %17, %32 : vector<10x8x9xf32>
    %36 = math.exp %35 : vector<10x8x9xf32>
    %37 = arith.subf %18, %32 : vector<10x8x9xf32>
    %38 = math.exp %37 : vector<10x8x9xf32>
    %39 = arith.subf %19, %32 : vector<10x8x9xf32>
    %40 = math.exp %39 : vector<10x8x9xf32>
    %41 = arith.subf %20, %32 : vector<10x8x9xf32>
    %42 = math.exp %41 : vector<10x8x9xf32>
    %43 = arith.subf %21, %32 : vector<10x8x9xf32>
    %44 = math.exp %43 : vector<10x8x9xf32>
    %45 = arith.subf %22, %32 : vector<10x8x9xf32>
    %46 = math.exp %45 : vector<10x8x9xf32>
    %47 = arith.subf %23, %32 : vector<10x8x9xf32>
    %48 = math.exp %47 : vector<10x8x9xf32>
    %49 = arith.subf %24, %32 : vector<10x8x9xf32>
    %50 = math.exp %49 : vector<10x8x9xf32>
    %51 = arith.addf %34, %36 : vector<10x8x9xf32>
    %52 = arith.addf %51, %38 : vector<10x8x9xf32>
    %53 = arith.addf %52, %40 : vector<10x8x9xf32>
    %54 = arith.addf %53, %42 : vector<10x8x9xf32>
    %55 = arith.addf %54, %44 : vector<10x8x9xf32>
    %56 = arith.addf %55, %46 : vector<10x8x9xf32>
    %57 = arith.addf %56, %48 : vector<10x8x9xf32>
    %58 = arith.addf %57, %50 : vector<10x8x9xf32>
    %59 = tpu.iota {dimensions = array<i32: 0>} : vector<10x1x1xi32>
    %c1_i32 = arith.constant 1 : i32
    %60 = arith.addi %1, %c1_i32 : i32
    %c2_i32 = arith.constant 2 : i32
    %61 = arith.subi %60, %c2_i32 : i32
    %62 = vector.broadcast %61 : i32 to vector<10x1x1xi32>
    %63 = arith.addi %59, %62 : vector<10x1x1xi32>
    %c0_i32_7 = arith.constant 0 : i32
    %64 = vector.broadcast %c0_i32_7 : i32 to vector<10x1x1xi32>
    %65 = arith.cmpi sge, %63, %64 : vector<10x1x1xi32>
    %c8_i32_8 = arith.constant 8 : i32
    %66 = vector.broadcast %c8_i32_8 : i32 to vector<10x1x1xi32>
    %67 = arith.cmpi slt, %63, %66 : vector<10x1x1xi32>
    %68 = arith.andi %65, %67 : vector<10x1x1xi1>
    %69 = arith.extui %68 : vector<10x1x1xi1> to vector<10x1x1xi32>
    %70 = arith.sitofp %69 : vector<10x1x1xi32> to vector<10x1x1xf32>
    %71 = tpu.reciprocal %58 {approx = true} : vector<10x8x9xf32> -> vector<10x8x9xf32>
    %72 = vector.broadcast %70 : vector<10x1x1xf32> to vector<10x8x9xf32>
    %73 = arith.mulf %71, %72 : vector<10x8x9xf32>
    %74 = arith.mulf %34, %73 : vector<10x8x9xf32>
    %75 = arith.mulf %36, %73 : vector<10x8x9xf32>
    %76 = arith.mulf %38, %73 : vector<10x8x9xf32>
    %77 = arith.mulf %40, %73 : vector<10x8x9xf32>
    %78 = arith.mulf %42, %73 : vector<10x8x9xf32>
    %79 = arith.mulf %44, %73 : vector<10x8x9xf32>
    %80 = arith.mulf %46, %73 : vector<10x8x9xf32>
    %81 = arith.mulf %48, %73 : vector<10x8x9xf32>
    %82 = arith.mulf %50, %73 : vector<10x8x9xf32>
    %c0_i32_9 = arith.constant 0 : i32
    %83 = arith.addi %1, %c0_i32_9 : i32
    %84 = arith.index_cast %83 : i32 to index
    %c0_10 = arith.constant 0 : index
    %c0_11 = arith.constant 0 : index
    %85 = vector.load %arg10[%84, %c0_10, %c0_11] : memref<12x10x32xbf16, #tpu.memory_space<vmem>>, vector<10x10x32xbf16>
    %c1_i32_12 = arith.constant 1 : i32
    %86 = arith.addi %1, %c1_i32_12 : i32
    %87 = arith.index_cast %86 : i32 to index
    %c0_13 = arith.constant 0 : index
    %c0_14 = arith.constant 0 : index
    %88 = vector.load %arg10[%87, %c0_13, %c0_14] : memref<12x10x32xbf16, #tpu.memory_space<vmem>>, vector<10x10x32xbf16>
    %c2_i32_15 = arith.constant 2 : i32
    %89 = arith.addi %1, %c2_i32_15 : i32
    %90 = arith.index_cast %89 : i32 to index
    %c0_16 = arith.constant 0 : index
    %c0_17 = arith.constant 0 : index
    %91 = vector.load %arg10[%90, %c0_16, %c0_17] : memref<12x10x32xbf16, #tpu.memory_space<vmem>>, vector<10x10x32xbf16>
    %92 = vector.extract_strided_slice %85 {offsets = [0, 0, 0], sizes = [10, 8, 32], strides = [1, 1, 1]} : vector<10x10x32xbf16> to vector<10x8x32xbf16>
    %93 = vector.extract_strided_slice %85 {offsets = [0, 1, 0], sizes = [10, 8, 32], strides = [1, 1, 1]} : vector<10x10x32xbf16> to vector<10x8x32xbf16>
    %94 = vector.extract_strided_slice %85 {offsets = [0, 2, 0], sizes = [10, 8, 32], strides = [1, 1, 1]} : vector<10x10x32xbf16> to vector<10x8x32xbf16>
    %95 = vector.extract_strided_slice %88 {offsets = [0, 0, 0], sizes = [10, 8, 32], strides = [1, 1, 1]} : vector<10x10x32xbf16> to vector<10x8x32xbf16>
    %96 = vector.extract_strided_slice %88 {offsets = [0, 1, 0], sizes = [10, 8, 32], strides = [1, 1, 1]} : vector<10x10x32xbf16> to vector<10x8x32xbf16>
    %97 = vector.extract_strided_slice %88 {offsets = [0, 2, 0], sizes = [10, 8, 32], strides = [1, 1, 1]} : vector<10x10x32xbf16> to vector<10x8x32xbf16>
    %98 = vector.extract_strided_slice %91 {offsets = [0, 0, 0], sizes = [10, 8, 32], strides = [1, 1, 1]} : vector<10x10x32xbf16> to vector<10x8x32xbf16>
    %99 = vector.extract_strided_slice %91 {offsets = [0, 1, 0], sizes = [10, 8, 32], strides = [1, 1, 1]} : vector<10x10x32xbf16> to vector<10x8x32xbf16>
    %100 = vector.extract_strided_slice %91 {offsets = [0, 2, 0], sizes = [10, 8, 32], strides = [1, 1, 1]} : vector<10x10x32xbf16> to vector<10x8x32xbf16>
    %cst_18 = arith.constant 0.000000e+00 : f32
    %101 = vector.broadcast %cst_18 : f32 to vector<12x10x32xf32>
    %c0_19 = arith.constant 0 : index
    %c0_20 = arith.constant 0 : index
    %c0_21 = arith.constant 0 : index
    %102 = vector.load %arg12[%c0_19, %c0_20, %c0_21] : memref<12x10x32xf32, #tpu.memory_space<vmem>>, vector<12x10x32xf32>
    tpu.vector_store %arg12[%c0_19, %c0_20, %c0_21], %101 {strides = array<i32>} : memref<12x10x32xf32, #tpu.memory_space<vmem>>, vector<12x10x32xf32>,
    %103 = vector.extract_strided_slice %74 {offsets = [0, 0, 0], sizes = [10, 8, 1], strides = [1, 1, 1]} : vector<10x8x9xf32> to vector<10x8x1xf32>
    %104 = arith.extf %92 : vector<10x8x32xbf16> to vector<10x8x32xf32>
    %105 = vector.broadcast %103 : vector<10x8x1xf32> to vector<10x8x32xf32>
    %106 = arith.mulf %105, %104 : vector<10x8x32xf32>
    %107 = vector.extract_strided_slice %75 {offsets = [0, 0, 0], sizes = [10, 8, 1], strides = [1, 1, 1]} : vector<10x8x9xf32> to vector<10x8x1xf32>
    %108 = arith.extf %93 : vector<10x8x32xbf16> to vector<10x8x32xf32>
    %109 = vector.broadcast %107 : vector<10x8x1xf32> to vector<10x8x32xf32>
    %110 = arith.mulf %109, %108 : vector<10x8x32xf32>
    %111 = arith.addf %106, %110 : vector<10x8x32xf32>
    %112 = vector.extract_strided_slice %76 {offsets = [0, 0, 0], sizes = [10, 8, 1], strides = [1, 1, 1]} : vector<10x8x9xf32> to vector<10x8x1xf32>
    %113 = arith.extf %94 : vector<10x8x32xbf16> to vector<10x8x32xf32>
    %114 = vector.broadcast %112 : vector<10x8x1xf32> to vector<10x8x32xf32>
    %115 = arith.mulf %114, %113 : vector<10x8x32xf32>
    %116 = arith.addf %111, %115 : vector<10x8x32xf32>
    %117 = vector.extract_strided_slice %77 {offsets = [0, 0, 0], sizes = [10, 8, 1], strides = [1, 1, 1]} : vector<10x8x9xf32> to vector<10x8x1xf32>
    %118 = arith.extf %95 : vector<10x8x32xbf16> to vector<10x8x32xf32>
    %119 = vector.broadcast %117 : vector<10x8x1xf32> to vector<10x8x32xf32>
    %120 = arith.mulf %119, %118 : vector<10x8x32xf32>
    %121 = arith.addf %116, %120 : vector<10x8x32xf32>
    %122 = vector.extract_strided_slice %78 {offsets = [0, 0, 0], sizes = [10, 8, 1], strides = [1, 1, 1]} : vector<10x8x9xf32> to vector<10x8x1xf32>
    %123 = arith.extf %96 : vector<10x8x32xbf16> to vector<10x8x32xf32>
    %124 = vector.broadcast %122 : vector<10x8x1xf32> to vector<10x8x32xf32>
    %125 = arith.mulf %124, %123 : vector<10x8x32xf32>
    %126 = arith.addf %121, %125 : vector<10x8x32xf32>
    %127 = vector.extract_strided_slice %79 {offsets = [0, 0, 0], sizes = [10, 8, 1], strides = [1, 1, 1]} : vector<10x8x9xf32> to vector<10x8x1xf32>
    %128 = arith.extf %97 : vector<10x8x32xbf16> to vector<10x8x32xf32>
    %129 = vector.broadcast %127 : vector<10x8x1xf32> to vector<10x8x32xf32>
    %130 = arith.mulf %129, %128 : vector<10x8x32xf32>
    %131 = arith.addf %126, %130 : vector<10x8x32xf32>
    %132 = vector.extract_strided_slice %80 {offsets = [0, 0, 0], sizes = [10, 8, 1], strides = [1, 1, 1]} : vector<10x8x9xf32> to vector<10x8x1xf32>
    %133 = arith.extf %98 : vector<10x8x32xbf16> to vector<10x8x32xf32>
    %134 = vector.broadcast %132 : vector<10x8x1xf32> to vector<10x8x32xf32>
    %135 = arith.mulf %134, %133 : vector<10x8x32xf32>
    %136 = arith.addf %131, %135 : vector<10x8x32xf32>
    %137 = vector.extract_strided_slice %81 {offsets = [0, 0, 0], sizes = [10, 8, 1], strides = [1, 1, 1]} : vector<10x8x9xf32> to vector<10x8x1xf32>
    %138 = arith.extf %99 : vector<10x8x32xbf16> to vector<10x8x32xf32>
    %139 = vector.broadcast %137 : vector<10x8x1xf32> to vector<10x8x32xf32>
    %140 = arith.mulf %139, %138 : vector<10x8x32xf32>
    %141 = arith.addf %136, %140 : vector<10x8x32xf32>
    %142 = vector.extract_strided_slice %82 {offsets = [0, 0, 0], sizes = [10, 8, 1], strides = [1, 1, 1]} : vector<10x8x9xf32> to vector<10x8x1xf32>
    %143 = arith.extf %100 : vector<10x8x32xbf16> to vector<10x8x32xf32>
    %144 = vector.broadcast %142 : vector<10x8x1xf32> to vector<10x8x32xf32>
    %145 = arith.mulf %144, %143 : vector<10x8x32xf32>
    %146 = arith.addf %141, %145 : vector<10x8x32xf32>
    %c0_22 = arith.constant 0 : index
    %c0_23 = arith.constant 0 : index
    %c0_24 = arith.constant 0 : index
    %147 = vector.load %arg12[%c0_22, %c0_23, %c0_24] : memref<12x10x32xf32, #tpu.memory_space<vmem>>, vector<10x8x32xf32>
    %148 = arith.addf %147, %146 : vector<10x8x32xf32>
    %c0_25 = arith.constant 0 : index
    %c0_26 = arith.constant 0 : index
    %c0_27 = arith.constant 0 : index
    %149 = vector.load %arg12[%c0_25, %c0_26, %c0_27] : memref<12x10x32xf32, #tpu.memory_space<vmem>>, vector<10x8x32xf32>
    tpu.vector_store %arg12[%c0_25, %c0_26, %c0_27], %148 {strides = array<i32>} : memref<12x10x32xf32, #tpu.memory_space<vmem>>, vector<10x8x32xf32>,
    %150 = vector.extract_strided_slice %74 {offsets = [0, 0, 1], sizes = [10, 8, 1], strides = [1, 1, 1]} : vector<10x8x9xf32> to vector<10x8x1xf32>
    %151 = arith.extf %92 : vector<10x8x32xbf16> to vector<10x8x32xf32>
    %152 = vector.broadcast %150 : vector<10x8x1xf32> to vector<10x8x32xf32>
    %153 = arith.mulf %152, %151 : vector<10x8x32xf32>
    %154 = vector.extract_strided_slice %75 {offsets = [0, 0, 1], sizes = [10, 8, 1], strides = [1, 1, 1]} : vector<10x8x9xf32> to vector<10x8x1xf32>
    %155 = arith.extf %93 : vector<10x8x32xbf16> to vector<10x8x32xf32>
    %156 = vector.broadcast %154 : vector<10x8x1xf32> to vector<10x8x32xf32>
    %157 = arith.mulf %156, %155 : vector<10x8x32xf32>
    %158 = arith.addf %153, %157 : vector<10x8x32xf32>
    %159 = vector.extract_strided_slice %76 {offsets = [0, 0, 1], sizes = [10, 8, 1], strides = [1, 1, 1]} : vector<10x8x9xf32> to vector<10x8x1xf32>
    %160 = arith.extf %94 : vector<10x8x32xbf16> to vector<10x8x32xf32>
    %161 = vector.broadcast %159 : vector<10x8x1xf32> to vector<10x8x32xf32>
    %162 = arith.mulf %161, %160 : vector<10x8x32xf32>
    %163 = arith.addf %158, %162 : vector<10x8x32xf32>
    %164 = vector.extract_strided_slice %77 {offsets = [0, 0, 1], sizes = [10, 8, 1], strides = [1, 1, 1]} : vector<10x8x9xf32> to vector<10x8x1xf32>
    %165 = arith.extf %95 : vector<10x8x32xbf16> to vector<10x8x32xf32>
    %166 = vector.broadcast %164 : vector<10x8x1xf32> to vector<10x8x32xf32>
    %167 = arith.mulf %166, %165 : vector<10x8x32xf32>
    %168 = arith.addf %163, %167 : vector<10x8x32xf32>
    %169 = vector.extract_strided_slice %78 {offsets = [0, 0, 1], sizes = [10, 8, 1], strides = [1, 1, 1]} : vector<10x8x9xf32> to vector<10x8x1xf32>
    %170 = arith.extf %96 : vector<10x8x32xbf16> to vector<10x8x32xf32>
    %171 = vector.broadcast %169 : vector<10x8x1xf32> to vector<10x8x32xf32>
    %172 = arith.mulf %171, %170 : vector<10x8x32xf32>
    %173 = arith.addf %168, %172 : vector<10x8x32xf32>
    %174 = vector.extract_strided_slice %79 {offsets = [0, 0, 1], sizes = [10, 8, 1], strides = [1, 1, 1]} : vector<10x8x9xf32> to vector<10x8x1xf32>
    %175 = arith.extf %97 : vector<10x8x32xbf16> to vector<10x8x32xf32>
    %176 = vector.broadcast %174 : vector<10x8x1xf32> to vector<10x8x32xf32>
    %177 = arith.mulf %176, %175 : vector<10x8x32xf32>
    %178 = arith.addf %173, %177 : vector<10x8x32xf32>
    %179 = vector.extract_strided_slice %80 {offsets = [0, 0, 1], sizes = [10, 8, 1], strides = [1, 1, 1]} : vector<10x8x9xf32> to vector<10x8x1xf32>
    %180 = arith.extf %98 : vector<10x8x32xbf16> to vector<10x8x32xf32>
    %181 = vector.broadcast %179 : vector<10x8x1xf32> to vector<10x8x32xf32>
    %182 = arith.mulf %181, %180 : vector<10x8x32xf32>
    %183 = arith.addf %178, %182 : vector<10x8x32xf32>
    %184 = vector.extract_strided_slice %81 {offsets = [0, 0, 1], sizes = [10, 8, 1], strides = [1, 1, 1]} : vector<10x8x9xf32> to vector<10x8x1xf32>
    %185 = arith.extf %99 : vector<10x8x32xbf16> to vector<10x8x32xf32>
    %186 = vector.broadcast %184 : vector<10x8x1xf32> to vector<10x8x32xf32>
    %187 = arith.mulf %186, %185 : vector<10x8x32xf32>
    %188 = arith.addf %183, %187 : vector<10x8x32xf32>
    %189 = vector.extract_strided_slice %82 {offsets = [0, 0, 1], sizes = [10, 8, 1], strides = [1, 1, 1]} : vector<10x8x9xf32> to vector<10x8x1xf32>
    %190 = arith.extf %100 : vector<10x8x32xbf16> to vector<10x8x32xf32>
    %191 = vector.broadcast %189 : vector<10x8x1xf32> to vector<10x8x32xf32>
    %192 = arith.mulf %191, %190 : vector<10x8x32xf32>
    %193 = arith.addf %188, %192 : vector<10x8x32xf32>
    %c0_28 = arith.constant 0 : index
    %c1 = arith.constant 1 : index
    %c0_29 = arith.constant 0 : index
    %194 = vector.load %arg12[%c0_28, %c1, %c0_29] : memref<12x10x32xf32, #tpu.memory_space<vmem>>, vector<10x8x32xf32>
    %195 = arith.addf %194, %193 : vector<10x8x32xf32>
    %c0_30 = arith.constant 0 : index
    %c1_31 = arith.constant 1 : index
    %c0_32 = arith.constant 0 : index
    %196 = vector.load %arg12[%c0_30, %c1_31, %c0_32] : memref<12x10x32xf32, #tpu.memory_space<vmem>>, vector<10x8x32xf32>
    tpu.vector_store %arg12[%c0_30, %c1_31, %c0_32], %195 {strides = array<i32>} : memref<12x10x32xf32, #tpu.memory_space<vmem>>, vector<10x8x32xf32>,
    %197 = vector.extract_strided_slice %74 {offsets = [0, 0, 2], sizes = [10, 8, 1], strides = [1, 1, 1]} : vector<10x8x9xf32> to vector<10x8x1xf32>
    %198 = arith.extf %92 : vector<10x8x32xbf16> to vector<10x8x32xf32>
    %199 = vector.broadcast %197 : vector<10x8x1xf32> to vector<10x8x32xf32>
    %200 = arith.mulf %199, %198 : vector<10x8x32xf32>
    %201 = vector.extract_strided_slice %75 {offsets = [0, 0, 2], sizes = [10, 8, 1], strides = [1, 1, 1]} : vector<10x8x9xf32> to vector<10x8x1xf32>
    %202 = arith.extf %93 : vector<10x8x32xbf16> to vector<10x8x32xf32>
    %203 = vector.broadcast %201 : vector<10x8x1xf32> to vector<10x8x32xf32>
    %204 = arith.mulf %203, %202 : vector<10x8x32xf32>
    %205 = arith.addf %200, %204 : vector<10x8x32xf32>
    %206 = vector.extract_strided_slice %76 {offsets = [0, 0, 2], sizes = [10, 8, 1], strides = [1, 1, 1]} : vector<10x8x9xf32> to vector<10x8x1xf32>
    %207 = arith.extf %94 : vector<10x8x32xbf16> to vector<10x8x32xf32>
    %208 = vector.broadcast %206 : vector<10x8x1xf32> to vector<10x8x32xf32>
    %209 = arith.mulf %208, %207 : vector<10x8x32xf32>
    %210 = arith.addf %205, %209 : vector<10x8x32xf32>
    %211 = vector.extract_strided_slice %77 {offsets = [0, 0, 2], sizes = [10, 8, 1], strides = [1, 1, 1]} : vector<10x8x9xf32> to vector<10x8x1xf32>
    %212 = arith.extf %95 : vector<10x8x32xbf16> to vector<10x8x32xf32>
    %213 = vector.broadcast %211 : vector<10x8x1xf32> to vector<10x8x32xf32>
    %214 = arith.mulf %213, %212 : vector<10x8x32xf32>
    %215 = arith.addf %210, %214 : vector<10x8x32xf32>
    %216 = vector.extract_strided_slice %78 {offsets = [0, 0, 2], sizes = [10, 8, 1], strides = [1, 1, 1]} : vector<10x8x9xf32> to vector<10x8x1xf32>
    %217 = arith.extf %96 : vector<10x8x32xbf16> to vector<10x8x32xf32>
    %218 = vector.broadcast %216 : vector<10x8x1xf32> to vector<10x8x32xf32>
    %219 = arith.mulf %218, %217 : vector<10x8x32xf32>
    %220 = arith.addf %215, %219 : vector<10x8x32xf32>
    %221 = vector.extract_strided_slice %79 {offsets = [0, 0, 2], sizes = [10, 8, 1], strides = [1, 1, 1]} : vector<10x8x9xf32> to vector<10x8x1xf32>
    %222 = arith.extf %97 : vector<10x8x32xbf16> to vector<10x8x32xf32>
    %223 = vector.broadcast %221 : vector<10x8x1xf32> to vector<10x8x32xf32>
    %224 = arith.mulf %223, %222 : vector<10x8x32xf32>
    %225 = arith.addf %220, %224 : vector<10x8x32xf32>
    %226 = vector.extract_strided_slice %80 {offsets = [0, 0, 2], sizes = [10, 8, 1], strides = [1, 1, 1]} : vector<10x8x9xf32> to vector<10x8x1xf32>
    %227 = arith.extf %98 : vector<10x8x32xbf16> to vector<10x8x32xf32>
    %228 = vector.broadcast %226 : vector<10x8x1xf32> to vector<10x8x32xf32>
    %229 = arith.mulf %228, %227 : vector<10x8x32xf32>
    %230 = arith.addf %225, %229 : vector<10x8x32xf32>
    %231 = vector.extract_strided_slice %81 {offsets = [0, 0, 2], sizes = [10, 8, 1], strides = [1, 1, 1]} : vector<10x8x9xf32> to vector<10x8x1xf32>
    %232 = arith.extf %99 : vector<10x8x32xbf16> to vector<10x8x32xf32>
    %233 = vector.broadcast %231 : vector<10x8x1xf32> to vector<10x8x32xf32>
    %234 = arith.mulf %233, %232 : vector<10x8x32xf32>
    %235 = arith.addf %230, %234 : vector<10x8x32xf32>
    %236 = vector.extract_strided_slice %82 {offsets = [0, 0, 2], sizes = [10, 8, 1], strides = [1, 1, 1]} : vector<10x8x9xf32> to vector<10x8x1xf32>
    %237 = arith.extf %100 : vector<10x8x32xbf16> to vector<10x8x32xf32>
    %238 = vector.broadcast %236 : vector<10x8x1xf32> to vector<10x8x32xf32>
    %239 = arith.mulf %238, %237 : vector<10x8x32xf32>
    %240 = arith.addf %235, %239 : vector<10x8x32xf32>
    %c0_33 = arith.constant 0 : index
    %c2 = arith.constant 2 : index
    %c0_34 = arith.constant 0 : index
    %241 = vector.load %arg12[%c0_33, %c2, %c0_34] : memref<12x10x32xf32, #tpu.memory_space<vmem>>, vector<10x8x32xf32>
    %242 = arith.addf %241, %240 : vector<10x8x32xf32>
    %c0_35 = arith.constant 0 : index
    %c2_36 = arith.constant 2 : index
    %c0_37 = arith.constant 0 : index
    %243 = vector.load %arg12[%c0_35, %c2_36, %c0_37] : memref<12x10x32xf32, #tpu.memory_space<vmem>>, vector<10x8x32xf32>
    tpu.vector_store %arg12[%c0_35, %c2_36, %c0_37], %242 {strides = array<i32>} : memref<12x10x32xf32, #tpu.memory_space<vmem>>, vector<10x8x32xf32>,
    %244 = vector.extract_strided_slice %74 {offsets = [0, 0, 3], sizes = [10, 8, 1], strides = [1, 1, 1]} : vector<10x8x9xf32> to vector<10x8x1xf32>
    %245 = arith.extf %92 : vector<10x8x32xbf16> to vector<10x8x32xf32>
    %246 = vector.broadcast %244 : vector<10x8x1xf32> to vector<10x8x32xf32>
    %247 = arith.mulf %246, %245 : vector<10x8x32xf32>
    %248 = vector.extract_strided_slice %75 {offsets = [0, 0, 3], sizes = [10, 8, 1], strides = [1, 1, 1]} : vector<10x8x9xf32> to vector<10x8x1xf32>
    %249 = arith.extf %93 : vector<10x8x32xbf16> to vector<10x8x32xf32>
    %250 = vector.broadcast %248 : vector<10x8x1xf32> to vector<10x8x32xf32>
    %251 = arith.mulf %250, %249 : vector<10x8x32xf32>
    %252 = arith.addf %247, %251 : vector<10x8x32xf32>
    %253 = vector.extract_strided_slice %76 {offsets = [0, 0, 3], sizes = [10, 8, 1], strides = [1, 1, 1]} : vector<10x8x9xf32> to vector<10x8x1xf32>
    %254 = arith.extf %94 : vector<10x8x32xbf16> to vector<10x8x32xf32>
    %255 = vector.broadcast %253 : vector<10x8x1xf32> to vector<10x8x32xf32>
    %256 = arith.mulf %255, %254 : vector<10x8x32xf32>
    %257 = arith.addf %252, %256 : vector<10x8x32xf32>
    %258 = vector.extract_strided_slice %77 {offsets = [0, 0, 3], sizes = [10, 8, 1], strides = [1, 1, 1]} : vector<10x8x9xf32> to vector<10x8x1xf32>
    %259 = arith.extf %95 : vector<10x8x32xbf16> to vector<10x8x32xf32>
    %260 = vector.broadcast %258 : vector<10x8x1xf32> to vector<10x8x32xf32>
    %261 = arith.mulf %260, %259 : vector<10x8x32xf32>
    %262 = arith.addf %257, %261 : vector<10x8x32xf32>
    %263 = vector.extract_strided_slice %78 {offsets = [0, 0, 3], sizes = [10, 8, 1], strides = [1, 1, 1]} : vector<10x8x9xf32> to vector<10x8x1xf32>
    %264 = arith.extf %96 : vector<10x8x32xbf16> to vector<10x8x32xf32>
    %265 = vector.broadcast %263 : vector<10x8x1xf32> to vector<10x8x32xf32>
    %266 = arith.mulf %265, %264 : vector<10x8x32xf32>
    %267 = arith.addf %262, %266 : vector<10x8x32xf32>
    %268 = vector.extract_strided_slice %79 {offsets = [0, 0, 3], sizes = [10, 8, 1], strides = [1, 1, 1]} : vector<10x8x9xf32> to vector<10x8x1xf32>
    %269 = arith.extf %97 : vector<10x8x32xbf16> to vector<10x8x32xf32>
    %270 = vector.broadcast %268 : vector<10x8x1xf32> to vector<10x8x32xf32>
    %271 = arith.mulf %270, %269 : vector<10x8x32xf32>
    %272 = arith.addf %267, %271 : vector<10x8x32xf32>
    %273 = vector.extract_strided_slice %80 {offsets = [0, 0, 3], sizes = [10, 8, 1], strides = [1, 1, 1]} : vector<10x8x9xf32> to vector<10x8x1xf32>
    %274 = arith.extf %98 : vector<10x8x32xbf16> to vector<10x8x32xf32>
    %275 = vector.broadcast %273 : vector<10x8x1xf32> to vector<10x8x32xf32>
    %276 = arith.mulf %275, %274 : vector<10x8x32xf32>
    %277 = arith.addf %272, %276 : vector<10x8x32xf32>
    %278 = vector.extract_strided_slice %81 {offsets = [0, 0, 3], sizes = [10, 8, 1], strides = [1, 1, 1]} : vector<10x8x9xf32> to vector<10x8x1xf32>
    %279 = arith.extf %99 : vector<10x8x32xbf16> to vector<10x8x32xf32>
    %280 = vector.broadcast %278 : vector<10x8x1xf32> to vector<10x8x32xf32>
    %281 = arith.mulf %280, %279 : vector<10x8x32xf32>
    %282 = arith.addf %277, %281 : vector<10x8x32xf32>
    %283 = vector.extract_strided_slice %82 {offsets = [0, 0, 3], sizes = [10, 8, 1], strides = [1, 1, 1]} : vector<10x8x9xf32> to vector<10x8x1xf32>
    %284 = arith.extf %100 : vector<10x8x32xbf16> to vector<10x8x32xf32>
    %285 = vector.broadcast %283 : vector<10x8x1xf32> to vector<10x8x32xf32>
    %286 = arith.mulf %285, %284 : vector<10x8x32xf32>
    %287 = arith.addf %282, %286 : vector<10x8x32xf32>
    %c1_38 = arith.constant 1 : index
    %c0_39 = arith.constant 0 : index
    %c0_40 = arith.constant 0 : index
    %288 = vector.load %arg12[%c1_38, %c0_39, %c0_40] : memref<12x10x32xf32, #tpu.memory_space<vmem>>, vector<10x8x32xf32>
    %289 = arith.addf %288, %287 : vector<10x8x32xf32>
    %c1_41 = arith.constant 1 : index
    %c0_42 = arith.constant 0 : index
    %c0_43 = arith.constant 0 : index
    %290 = vector.load %arg12[%c1_41, %c0_42, %c0_43] : memref<12x10x32xf32, #tpu.memory_space<vmem>>, vector<10x8x32xf32>
    tpu.vector_store %arg12[%c1_41, %c0_42, %c0_43], %289 {strides = array<i32>} : memref<12x10x32xf32, #tpu.memory_space<vmem>>, vector<10x8x32xf32>,
    %291 = vector.extract_strided_slice %74 {offsets = [0, 0, 4], sizes = [10, 8, 1], strides = [1, 1, 1]} : vector<10x8x9xf32> to vector<10x8x1xf32>
    %292 = arith.extf %92 : vector<10x8x32xbf16> to vector<10x8x32xf32>
    %293 = vector.broadcast %291 : vector<10x8x1xf32> to vector<10x8x32xf32>
    %294 = arith.mulf %293, %292 : vector<10x8x32xf32>
    %295 = vector.extract_strided_slice %75 {offsets = [0, 0, 4], sizes = [10, 8, 1], strides = [1, 1, 1]} : vector<10x8x9xf32> to vector<10x8x1xf32>
    %296 = arith.extf %93 : vector<10x8x32xbf16> to vector<10x8x32xf32>
    %297 = vector.broadcast %295 : vector<10x8x1xf32> to vector<10x8x32xf32>
    %298 = arith.mulf %297, %296 : vector<10x8x32xf32>
    %299 = arith.addf %294, %298 : vector<10x8x32xf32>
    %300 = vector.extract_strided_slice %76 {offsets = [0, 0, 4], sizes = [10, 8, 1], strides = [1, 1, 1]} : vector<10x8x9xf32> to vector<10x8x1xf32>
    %301 = arith.extf %94 : vector<10x8x32xbf16> to vector<10x8x32xf32>
    %302 = vector.broadcast %300 : vector<10x8x1xf32> to vector<10x8x32xf32>
    %303 = arith.mulf %302, %301 : vector<10x8x32xf32>
    %304 = arith.addf %299, %303 : vector<10x8x32xf32>
    %305 = vector.extract_strided_slice %77 {offsets = [0, 0, 4], sizes = [10, 8, 1], strides = [1, 1, 1]} : vector<10x8x9xf32> to vector<10x8x1xf32>
    %306 = arith.extf %95 : vector<10x8x32xbf16> to vector<10x8x32xf32>
    %307 = vector.broadcast %305 : vector<10x8x1xf32> to vector<10x8x32xf32>
    %308 = arith.mulf %307, %306 : vector<10x8x32xf32>
    %309 = arith.addf %304, %308 : vector<10x8x32xf32>
    %310 = vector.extract_strided_slice %78 {offsets = [0, 0, 4], sizes = [10, 8, 1], strides = [1, 1, 1]} : vector<10x8x9xf32> to vector<10x8x1xf32>
    %311 = arith.extf %96 : vector<10x8x32xbf16> to vector<10x8x32xf32>
    %312 = vector.broadcast %310 : vector<10x8x1xf32> to vector<10x8x32xf32>
    %313 = arith.mulf %312, %311 : vector<10x8x32xf32>
    %314 = arith.addf %309, %313 : vector<10x8x32xf32>
    %315 = vector.extract_strided_slice %79 {offsets = [0, 0, 4], sizes = [10, 8, 1], strides = [1, 1, 1]} : vector<10x8x9xf32> to vector<10x8x1xf32>
    %316 = arith.extf %97 : vector<10x8x32xbf16> to vector<10x8x32xf32>
    %317 = vector.broadcast %315 : vector<10x8x1xf32> to vector<10x8x32xf32>
    %318 = arith.mulf %317, %316 : vector<10x8x32xf32>
    %319 = arith.addf %314, %318 : vector<10x8x32xf32>
    %320 = vector.extract_strided_slice %80 {offsets = [0, 0, 4], sizes = [10, 8, 1], strides = [1, 1, 1]} : vector<10x8x9xf32> to vector<10x8x1xf32>
    %321 = arith.extf %98 : vector<10x8x32xbf16> to vector<10x8x32xf32>
    %322 = vector.broadcast %320 : vector<10x8x1xf32> to vector<10x8x32xf32>
    %323 = arith.mulf %322, %321 : vector<10x8x32xf32>
    %324 = arith.addf %319, %323 : vector<10x8x32xf32>
    %325 = vector.extract_strided_slice %81 {offsets = [0, 0, 4], sizes = [10, 8, 1], strides = [1, 1, 1]} : vector<10x8x9xf32> to vector<10x8x1xf32>
    %326 = arith.extf %99 : vector<10x8x32xbf16> to vector<10x8x32xf32>
    %327 = vector.broadcast %325 : vector<10x8x1xf32> to vector<10x8x32xf32>
    %328 = arith.mulf %327, %326 : vector<10x8x32xf32>
    %329 = arith.addf %324, %328 : vector<10x8x32xf32>
    %330 = vector.extract_strided_slice %82 {offsets = [0, 0, 4], sizes = [10, 8, 1], strides = [1, 1, 1]} : vector<10x8x9xf32> to vector<10x8x1xf32>
    %331 = arith.extf %100 : vector<10x8x32xbf16> to vector<10x8x32xf32>
    %332 = vector.broadcast %330 : vector<10x8x1xf32> to vector<10x8x32xf32>
    %333 = arith.mulf %332, %331 : vector<10x8x32xf32>
    %334 = arith.addf %329, %333 : vector<10x8x32xf32>
    %c1_44 = arith.constant 1 : index
    %c1_45 = arith.constant 1 : index
    %c0_46 = arith.constant 0 : index
    %335 = vector.load %arg12[%c1_44, %c1_45, %c0_46] : memref<12x10x32xf32, #tpu.memory_space<vmem>>, vector<10x8x32xf32>
    %336 = arith.addf %335, %334 : vector<10x8x32xf32>
    %c1_47 = arith.constant 1 : index
    %c1_48 = arith.constant 1 : index
    %c0_49 = arith.constant 0 : index
    %337 = vector.load %arg12[%c1_47, %c1_48, %c0_49] : memref<12x10x32xf32, #tpu.memory_space<vmem>>, vector<10x8x32xf32>
    tpu.vector_store %arg12[%c1_47, %c1_48, %c0_49], %336 {strides = array<i32>} : memref<12x10x32xf32, #tpu.memory_space<vmem>>, vector<10x8x32xf32>,
    %338 = vector.extract_strided_slice %74 {offsets = [0, 0, 5], sizes = [10, 8, 1], strides = [1, 1, 1]} : vector<10x8x9xf32> to vector<10x8x1xf32>
    %339 = arith.extf %92 : vector<10x8x32xbf16> to vector<10x8x32xf32>
    %340 = vector.broadcast %338 : vector<10x8x1xf32> to vector<10x8x32xf32>
    %341 = arith.mulf %340, %339 : vector<10x8x32xf32>
    %342 = vector.extract_strided_slice %75 {offsets = [0, 0, 5], sizes = [10, 8, 1], strides = [1, 1, 1]} : vector<10x8x9xf32> to vector<10x8x1xf32>
    %343 = arith.extf %93 : vector<10x8x32xbf16> to vector<10x8x32xf32>
    %344 = vector.broadcast %342 : vector<10x8x1xf32> to vector<10x8x32xf32>
    %345 = arith.mulf %344, %343 : vector<10x8x32xf32>
    %346 = arith.addf %341, %345 : vector<10x8x32xf32>
    %347 = vector.extract_strided_slice %76 {offsets = [0, 0, 5], sizes = [10, 8, 1], strides = [1, 1, 1]} : vector<10x8x9xf32> to vector<10x8x1xf32>
    %348 = arith.extf %94 : vector<10x8x32xbf16> to vector<10x8x32xf32>
    %349 = vector.broadcast %347 : vector<10x8x1xf32> to vector<10x8x32xf32>
    %350 = arith.mulf %349, %348 : vector<10x8x32xf32>
    %351 = arith.addf %346, %350 : vector<10x8x32xf32>
    %352 = vector.extract_strided_slice %77 {offsets = [0, 0, 5], sizes = [10, 8, 1], strides = [1, 1, 1]} : vector<10x8x9xf32> to vector<10x8x1xf32>
    %353 = arith.extf %95 : vector<10x8x32xbf16> to vector<10x8x32xf32>
    %354 = vector.broadcast %352 : vector<10x8x1xf32> to vector<10x8x32xf32>
    %355 = arith.mulf %354, %353 : vector<10x8x32xf32>
    %356 = arith.addf %351, %355 : vector<10x8x32xf32>
    %357 = vector.extract_strided_slice %78 {offsets = [0, 0, 5], sizes = [10, 8, 1], strides = [1, 1, 1]} : vector<10x8x9xf32> to vector<10x8x1xf32>
    %358 = arith.extf %96 : vector<10x8x32xbf16> to vector<10x8x32xf32>
    %359 = vector.broadcast %357 : vector<10x8x1xf32> to vector<10x8x32xf32>
    %360 = arith.mulf %359, %358 : vector<10x8x32xf32>
    %361 = arith.addf %356, %360 : vector<10x8x32xf32>
    %362 = vector.extract_strided_slice %79 {offsets = [0, 0, 5], sizes = [10, 8, 1], strides = [1, 1, 1]} : vector<10x8x9xf32> to vector<10x8x1xf32>
    %363 = arith.extf %97 : vector<10x8x32xbf16> to vector<10x8x32xf32>
    %364 = vector.broadcast %362 : vector<10x8x1xf32> to vector<10x8x32xf32>
    %365 = arith.mulf %364, %363 : vector<10x8x32xf32>
    %366 = arith.addf %361, %365 : vector<10x8x32xf32>
    %367 = vector.extract_strided_slice %80 {offsets = [0, 0, 5], sizes = [10, 8, 1], strides = [1, 1, 1]} : vector<10x8x9xf32> to vector<10x8x1xf32>
    %368 = arith.extf %98 : vector<10x8x32xbf16> to vector<10x8x32xf32>
    %369 = vector.broadcast %367 : vector<10x8x1xf32> to vector<10x8x32xf32>
    %370 = arith.mulf %369, %368 : vector<10x8x32xf32>
    %371 = arith.addf %366, %370 : vector<10x8x32xf32>
    %372 = vector.extract_strided_slice %81 {offsets = [0, 0, 5], sizes = [10, 8, 1], strides = [1, 1, 1]} : vector<10x8x9xf32> to vector<10x8x1xf32>
    %373 = arith.extf %99 : vector<10x8x32xbf16> to vector<10x8x32xf32>
    %374 = vector.broadcast %372 : vector<10x8x1xf32> to vector<10x8x32xf32>
    %375 = arith.mulf %374, %373 : vector<10x8x32xf32>
    %376 = arith.addf %371, %375 : vector<10x8x32xf32>
    %377 = vector.extract_strided_slice %82 {offsets = [0, 0, 5], sizes = [10, 8, 1], strides = [1, 1, 1]} : vector<10x8x9xf32> to vector<10x8x1xf32>
    %378 = arith.extf %100 : vector<10x8x32xbf16> to vector<10x8x32xf32>
    %379 = vector.broadcast %377 : vector<10x8x1xf32> to vector<10x8x32xf32>
    %380 = arith.mulf %379, %378 : vector<10x8x32xf32>
    %381 = arith.addf %376, %380 : vector<10x8x32xf32>
    %c1_50 = arith.constant 1 : index
    %c2_51 = arith.constant 2 : index
    %c0_52 = arith.constant 0 : index
    %382 = vector.load %arg12[%c1_50, %c2_51, %c0_52] : memref<12x10x32xf32, #tpu.memory_space<vmem>>, vector<10x8x32xf32>
    %383 = arith.addf %382, %381 : vector<10x8x32xf32>
    %c1_53 = arith.constant 1 : index
    %c2_54 = arith.constant 2 : index
    %c0_55 = arith.constant 0 : index
    %384 = vector.load %arg12[%c1_53, %c2_54, %c0_55] : memref<12x10x32xf32, #tpu.memory_space<vmem>>, vector<10x8x32xf32>
    tpu.vector_store %arg12[%c1_53, %c2_54, %c0_55], %383 {strides = array<i32>} : memref<12x10x32xf32, #tpu.memory_space<vmem>>, vector<10x8x32xf32>,
    %385 = vector.extract_strided_slice %74 {offsets = [0, 0, 6], sizes = [10, 8, 1], strides = [1, 1, 1]} : vector<10x8x9xf32> to vector<10x8x1xf32>
    %386 = arith.extf %92 : vector<10x8x32xbf16> to vector<10x8x32xf32>
    %387 = vector.broadcast %385 : vector<10x8x1xf32> to vector<10x8x32xf32>
    %388 = arith.mulf %387, %386 : vector<10x8x32xf32>
    %389 = vector.extract_strided_slice %75 {offsets = [0, 0, 6], sizes = [10, 8, 1], strides = [1, 1, 1]} : vector<10x8x9xf32> to vector<10x8x1xf32>
    %390 = arith.extf %93 : vector<10x8x32xbf16> to vector<10x8x32xf32>
    %391 = vector.broadcast %389 : vector<10x8x1xf32> to vector<10x8x32xf32>
    %392 = arith.mulf %391, %390 : vector<10x8x32xf32>
    %393 = arith.addf %388, %392 : vector<10x8x32xf32>
    %394 = vector.extract_strided_slice %76 {offsets = [0, 0, 6], sizes = [10, 8, 1], strides = [1, 1, 1]} : vector<10x8x9xf32> to vector<10x8x1xf32>
    %395 = arith.extf %94 : vector<10x8x32xbf16> to vector<10x8x32xf32>
    %396 = vector.broadcast %394 : vector<10x8x1xf32> to vector<10x8x32xf32>
    %397 = arith.mulf %396, %395 : vector<10x8x32xf32>
    %398 = arith.addf %393, %397 : vector<10x8x32xf32>
    %399 = vector.extract_strided_slice %77 {offsets = [0, 0, 6], sizes = [10, 8, 1], strides = [1, 1, 1]} : vector<10x8x9xf32> to vector<10x8x1xf32>
    %400 = arith.extf %95 : vector<10x8x32xbf16> to vector<10x8x32xf32>
    %401 = vector.broadcast %399 : vector<10x8x1xf32> to vector<10x8x32xf32>
    %402 = arith.mulf %401, %400 : vector<10x8x32xf32>
    %403 = arith.addf %398, %402 : vector<10x8x32xf32>
    %404 = vector.extract_strided_slice %78 {offsets = [0, 0, 6], sizes = [10, 8, 1], strides = [1, 1, 1]} : vector<10x8x9xf32> to vector<10x8x1xf32>
    %405 = arith.extf %96 : vector<10x8x32xbf16> to vector<10x8x32xf32>
    %406 = vector.broadcast %404 : vector<10x8x1xf32> to vector<10x8x32xf32>
    %407 = arith.mulf %406, %405 : vector<10x8x32xf32>
    %408 = arith.addf %403, %407 : vector<10x8x32xf32>
    %409 = vector.extract_strided_slice %79 {offsets = [0, 0, 6], sizes = [10, 8, 1], strides = [1, 1, 1]} : vector<10x8x9xf32> to vector<10x8x1xf32>
    %410 = arith.extf %97 : vector<10x8x32xbf16> to vector<10x8x32xf32>
    %411 = vector.broadcast %409 : vector<10x8x1xf32> to vector<10x8x32xf32>
    %412 = arith.mulf %411, %410 : vector<10x8x32xf32>
    %413 = arith.addf %408, %412 : vector<10x8x32xf32>
    %414 = vector.extract_strided_slice %80 {offsets = [0, 0, 6], sizes = [10, 8, 1], strides = [1, 1, 1]} : vector<10x8x9xf32> to vector<10x8x1xf32>
    %415 = arith.extf %98 : vector<10x8x32xbf16> to vector<10x8x32xf32>
    %416 = vector.broadcast %414 : vector<10x8x1xf32> to vector<10x8x32xf32>
    %417 = arith.mulf %416, %415 : vector<10x8x32xf32>
    %418 = arith.addf %413, %417 : vector<10x8x32xf32>
    %419 = vector.extract_strided_slice %81 {offsets = [0, 0, 6], sizes = [10, 8, 1], strides = [1, 1, 1]} : vector<10x8x9xf32> to vector<10x8x1xf32>
    %420 = arith.extf %99 : vector<10x8x32xbf16> to vector<10x8x32xf32>
    %421 = vector.broadcast %419 : vector<10x8x1xf32> to vector<10x8x32xf32>
    %422 = arith.mulf %421, %420 : vector<10x8x32xf32>
    %423 = arith.addf %418, %422 : vector<10x8x32xf32>
    %424 = vector.extract_strided_slice %82 {offsets = [0, 0, 6], sizes = [10, 8, 1], strides = [1, 1, 1]} : vector<10x8x9xf32> to vector<10x8x1xf32>
    %425 = arith.extf %100 : vector<10x8x32xbf16> to vector<10x8x32xf32>
    %426 = vector.broadcast %424 : vector<10x8x1xf32> to vector<10x8x32xf32>
    %427 = arith.mulf %426, %425 : vector<10x8x32xf32>
    %428 = arith.addf %423, %427 : vector<10x8x32xf32>
    %c2_56 = arith.constant 2 : index
    %c0_57 = arith.constant 0 : index
    %c0_58 = arith.constant 0 : index
    %429 = vector.load %arg12[%c2_56, %c0_57, %c0_58] : memref<12x10x32xf32, #tpu.memory_space<vmem>>, vector<10x8x32xf32>
    %430 = arith.addf %429, %428 : vector<10x8x32xf32>
    %c2_59 = arith.constant 2 : index
    %c0_60 = arith.constant 0 : index
    %c0_61 = arith.constant 0 : index
    %431 = vector.load %arg12[%c2_59, %c0_60, %c0_61] : memref<12x10x32xf32, #tpu.memory_space<vmem>>, vector<10x8x32xf32>
    tpu.vector_store %arg12[%c2_59, %c0_60, %c0_61], %430 {strides = array<i32>} : memref<12x10x32xf32, #tpu.memory_space<vmem>>, vector<10x8x32xf32>,
    %432 = vector.extract_strided_slice %74 {offsets = [0, 0, 7], sizes = [10, 8, 1], strides = [1, 1, 1]} : vector<10x8x9xf32> to vector<10x8x1xf32>
    %433 = arith.extf %92 : vector<10x8x32xbf16> to vector<10x8x32xf32>
    %434 = vector.broadcast %432 : vector<10x8x1xf32> to vector<10x8x32xf32>
    %435 = arith.mulf %434, %433 : vector<10x8x32xf32>
    %436 = vector.extract_strided_slice %75 {offsets = [0, 0, 7], sizes = [10, 8, 1], strides = [1, 1, 1]} : vector<10x8x9xf32> to vector<10x8x1xf32>
    %437 = arith.extf %93 : vector<10x8x32xbf16> to vector<10x8x32xf32>
    %438 = vector.broadcast %436 : vector<10x8x1xf32> to vector<10x8x32xf32>
    %439 = arith.mulf %438, %437 : vector<10x8x32xf32>
    %440 = arith.addf %435, %439 : vector<10x8x32xf32>
    %441 = vector.extract_strided_slice %76 {offsets = [0, 0, 7], sizes = [10, 8, 1], strides = [1, 1, 1]} : vector<10x8x9xf32> to vector<10x8x1xf32>
    %442 = arith.extf %94 : vector<10x8x32xbf16> to vector<10x8x32xf32>
    %443 = vector.broadcast %441 : vector<10x8x1xf32> to vector<10x8x32xf32>
    %444 = arith.mulf %443, %442 : vector<10x8x32xf32>
    %445 = arith.addf %440, %444 : vector<10x8x32xf32>
    %446 = vector.extract_strided_slice %77 {offsets = [0, 0, 7], sizes = [10, 8, 1], strides = [1, 1, 1]} : vector<10x8x9xf32> to vector<10x8x1xf32>
    %447 = arith.extf %95 : vector<10x8x32xbf16> to vector<10x8x32xf32>
    %448 = vector.broadcast %446 : vector<10x8x1xf32> to vector<10x8x32xf32>
    %449 = arith.mulf %448, %447 : vector<10x8x32xf32>
    %450 = arith.addf %445, %449 : vector<10x8x32xf32>
    %451 = vector.extract_strided_slice %78 {offsets = [0, 0, 7], sizes = [10, 8, 1], strides = [1, 1, 1]} : vector<10x8x9xf32> to vector<10x8x1xf32>
    %452 = arith.extf %96 : vector<10x8x32xbf16> to vector<10x8x32xf32>
    %453 = vector.broadcast %451 : vector<10x8x1xf32> to vector<10x8x32xf32>
    %454 = arith.mulf %453, %452 : vector<10x8x32xf32>
    %455 = arith.addf %450, %454 : vector<10x8x32xf32>
    %456 = vector.extract_strided_slice %79 {offsets = [0, 0, 7], sizes = [10, 8, 1], strides = [1, 1, 1]} : vector<10x8x9xf32> to vector<10x8x1xf32>
    %457 = arith.extf %97 : vector<10x8x32xbf16> to vector<10x8x32xf32>
    %458 = vector.broadcast %456 : vector<10x8x1xf32> to vector<10x8x32xf32>
    %459 = arith.mulf %458, %457 : vector<10x8x32xf32>
    %460 = arith.addf %455, %459 : vector<10x8x32xf32>
    %461 = vector.extract_strided_slice %80 {offsets = [0, 0, 7], sizes = [10, 8, 1], strides = [1, 1, 1]} : vector<10x8x9xf32> to vector<10x8x1xf32>
    %462 = arith.extf %98 : vector<10x8x32xbf16> to vector<10x8x32xf32>
    %463 = vector.broadcast %461 : vector<10x8x1xf32> to vector<10x8x32xf32>
    %464 = arith.mulf %463, %462 : vector<10x8x32xf32>
    %465 = arith.addf %460, %464 : vector<10x8x32xf32>
    %466 = vector.extract_strided_slice %81 {offsets = [0, 0, 7], sizes = [10, 8, 1], strides = [1, 1, 1]} : vector<10x8x9xf32> to vector<10x8x1xf32>
    %467 = arith.extf %99 : vector<10x8x32xbf16> to vector<10x8x32xf32>
    %468 = vector.broadcast %466 : vector<10x8x1xf32> to vector<10x8x32xf32>
    %469 = arith.mulf %468, %467 : vector<10x8x32xf32>
    %470 = arith.addf %465, %469 : vector<10x8x32xf32>
    %471 = vector.extract_strided_slice %82 {offsets = [0, 0, 7], sizes = [10, 8, 1], strides = [1, 1, 1]} : vector<10x8x9xf32> to vector<10x8x1xf32>
    %472 = arith.extf %100 : vector<10x8x32xbf16> to vector<10x8x32xf32>
    %473 = vector.broadcast %471 : vector<10x8x1xf32> to vector<10x8x32xf32>
    %474 = arith.mulf %473, %472 : vector<10x8x32xf32>
    %475 = arith.addf %470, %474 : vector<10x8x32xf32>
    %c2_62 = arith.constant 2 : index
    %c1_63 = arith.constant 1 : index
    %c0_64 = arith.constant 0 : index
    %476 = vector.load %arg12[%c2_62, %c1_63, %c0_64] : memref<12x10x32xf32, #tpu.memory_space<vmem>>, vector<10x8x32xf32>
    %477 = arith.addf %476, %475 : vector<10x8x32xf32>
    %c2_65 = arith.constant 2 : index
    %c1_66 = arith.constant 1 : index
    %c0_67 = arith.constant 0 : index
    %478 = vector.load %arg12[%c2_65, %c1_66, %c0_67] : memref<12x10x32xf32, #tpu.memory_space<vmem>>, vector<10x8x32xf32>
    tpu.vector_store %arg12[%c2_65, %c1_66, %c0_67], %477 {strides = array<i32>} : memref<12x10x32xf32, #tpu.memory_space<vmem>>, vector<10x8x32xf32>,
    %479 = vector.extract_strided_slice %74 {offsets = [0, 0, 8], sizes = [10, 8, 1], strides = [1, 1, 1]} : vector<10x8x9xf32> to vector<10x8x1xf32>
    %480 = arith.extf %92 : vector<10x8x32xbf16> to vector<10x8x32xf32>
    %481 = vector.broadcast %479 : vector<10x8x1xf32> to vector<10x8x32xf32>
    %482 = arith.mulf %481, %480 : vector<10x8x32xf32>
    %483 = vector.extract_strided_slice %75 {offsets = [0, 0, 8], sizes = [10, 8, 1], strides = [1, 1, 1]} : vector<10x8x9xf32> to vector<10x8x1xf32>
    %484 = arith.extf %93 : vector<10x8x32xbf16> to vector<10x8x32xf32>
    %485 = vector.broadcast %483 : vector<10x8x1xf32> to vector<10x8x32xf32>
    %486 = arith.mulf %485, %484 : vector<10x8x32xf32>
    %487 = arith.addf %482, %486 : vector<10x8x32xf32>
    %488 = vector.extract_strided_slice %76 {offsets = [0, 0, 8], sizes = [10, 8, 1], strides = [1, 1, 1]} : vector<10x8x9xf32> to vector<10x8x1xf32>
    %489 = arith.extf %94 : vector<10x8x32xbf16> to vector<10x8x32xf32>
    %490 = vector.broadcast %488 : vector<10x8x1xf32> to vector<10x8x32xf32>
    %491 = arith.mulf %490, %489 : vector<10x8x32xf32>
    %492 = arith.addf %487, %491 : vector<10x8x32xf32>
    %493 = vector.extract_strided_slice %77 {offsets = [0, 0, 8], sizes = [10, 8, 1], strides = [1, 1, 1]} : vector<10x8x9xf32> to vector<10x8x1xf32>
    %494 = arith.extf %95 : vector<10x8x32xbf16> to vector<10x8x32xf32>
    %495 = vector.broadcast %493 : vector<10x8x1xf32> to vector<10x8x32xf32>
    %496 = arith.mulf %495, %494 : vector<10x8x32xf32>
    %497 = arith.addf %492, %496 : vector<10x8x32xf32>
    %498 = vector.extract_strided_slice %78 {offsets = [0, 0, 8], sizes = [10, 8, 1], strides = [1, 1, 1]} : vector<10x8x9xf32> to vector<10x8x1xf32>
    %499 = arith.extf %96 : vector<10x8x32xbf16> to vector<10x8x32xf32>
    %500 = vector.broadcast %498 : vector<10x8x1xf32> to vector<10x8x32xf32>
    %501 = arith.mulf %500, %499 : vector<10x8x32xf32>
    %502 = arith.addf %497, %501 : vector<10x8x32xf32>
    %503 = vector.extract_strided_slice %79 {offsets = [0, 0, 8], sizes = [10, 8, 1], strides = [1, 1, 1]} : vector<10x8x9xf32> to vector<10x8x1xf32>
    %504 = arith.extf %97 : vector<10x8x32xbf16> to vector<10x8x32xf32>
    %505 = vector.broadcast %503 : vector<10x8x1xf32> to vector<10x8x32xf32>
    %506 = arith.mulf %505, %504 : vector<10x8x32xf32>
    %507 = arith.addf %502, %506 : vector<10x8x32xf32>
    %508 = vector.extract_strided_slice %80 {offsets = [0, 0, 8], sizes = [10, 8, 1], strides = [1, 1, 1]} : vector<10x8x9xf32> to vector<10x8x1xf32>
    %509 = arith.extf %98 : vector<10x8x32xbf16> to vector<10x8x32xf32>
    %510 = vector.broadcast %508 : vector<10x8x1xf32> to vector<10x8x32xf32>
    %511 = arith.mulf %510, %509 : vector<10x8x32xf32>
    %512 = arith.addf %507, %511 : vector<10x8x32xf32>
    %513 = vector.extract_strided_slice %81 {offsets = [0, 0, 8], sizes = [10, 8, 1], strides = [1, 1, 1]} : vector<10x8x9xf32> to vector<10x8x1xf32>
    %514 = arith.extf %99 : vector<10x8x32xbf16> to vector<10x8x32xf32>
    %515 = vector.broadcast %513 : vector<10x8x1xf32> to vector<10x8x32xf32>
    %516 = arith.mulf %515, %514 : vector<10x8x32xf32>
    %517 = arith.addf %512, %516 : vector<10x8x32xf32>
    %518 = vector.extract_strided_slice %82 {offsets = [0, 0, 8], sizes = [10, 8, 1], strides = [1, 1, 1]} : vector<10x8x9xf32> to vector<10x8x1xf32>
    %519 = arith.extf %100 : vector<10x8x32xbf16> to vector<10x8x32xf32>
    %520 = vector.broadcast %518 : vector<10x8x1xf32> to vector<10x8x32xf32>
    %521 = arith.mulf %520, %519 : vector<10x8x32xf32>
    %522 = arith.addf %517, %521 : vector<10x8x32xf32>
    %c2_68 = arith.constant 2 : index
    %c2_69 = arith.constant 2 : index
    %c0_70 = arith.constant 0 : index
    %523 = vector.load %arg12[%c2_68, %c2_69, %c0_70] : memref<12x10x32xf32, #tpu.memory_space<vmem>>, vector<10x8x32xf32>
    %524 = arith.addf %523, %522 : vector<10x8x32xf32>
    %c2_71 = arith.constant 2 : index
    %c2_72 = arith.constant 2 : index
    %c0_73 = arith.constant 0 : index
    %525 = vector.load %arg12[%c2_71, %c2_72, %c0_73] : memref<12x10x32xf32, #tpu.memory_space<vmem>>, vector<10x8x32xf32>
    tpu.vector_store %arg12[%c2_71, %c2_72, %c0_73], %524 {strides = array<i32>} : memref<12x10x32xf32, #tpu.memory_space<vmem>>, vector<10x8x32xf32>,
    %c2_74 = arith.constant 2 : index
    %c1_75 = arith.constant 1 : index
    %c0_76 = arith.constant 0 : index
    %526 = vector.load %arg12[%c2_74, %c1_75, %c0_76] : memref<12x10x32xf32, #tpu.memory_space<vmem>>, vector<8x8x32xf32>
    %527 = vector.shape_cast %526 : vector<8x8x32xf32> to vector<64x32xf32>
    %528 = arith.truncf %527 : vector<64x32xf32> to vector<64x32xbf16>
    %c0_77 = arith.constant 0 : index
    %c0_78 = arith.constant 0 : index
    %529 = vector.load %arg7[%c0_77, %c0_78] : memref<32x32xbf16, #tpu.memory_space<vmem>>, vector<32x32xbf16>
    %cst_79 = arith.constant dense<0.000000e+00> : vector<64x32xf32>
    %530 = tpu.matmul %528, %529, %cst_79 {dimension_numbers = #tpu.dot_dimension_numbers<[1], [0], [0], [1], [0, 0, 1, 1], [], []>} : vector<64x32xbf16>, vector<32x32xbf16>, vector<64x32xf32> -> vector<64x32xf32>
    %c0_80 = arith.constant 0 : index
    %c0_81 = arith.constant 0 : index
    %531 = vector.load %arg8[%c0_80, %c0_81] : memref<1x32xf32, #tpu.memory_space<vmem>>, vector<1x32xf32>
    %532 = vector.broadcast %531 : vector<1x32xf32> to vector<64x32xf32>
    %533 = arith.addf %530, %532 : vector<64x32xf32>
    %534 = vector.shape_cast %533 : vector<64x32xf32> to vector<8x8x32xf32>
    %c0_82 = arith.constant 0 : index
    %c0_83 = arith.constant 0 : index
    %c0_84 = arith.constant 0 : index
    %c0_85 = arith.constant 0 : index
    %535 = vector.load %arg9[%c0_82, %c0_83, %c0_84, %c0_85] : memref<1x8x8x32xf32, #tpu.memory_space<vmem>>, vector<1x8x8x32xf32>
    %536 = vector.shape_cast %535 : vector<1x8x8x32xf32> to vector<8x8x32xf32>
    %537 = vector.shape_cast %534 : vector<8x8x32xf32> to vector<1x8x8x32xf32>
    tpu.vector_store %arg9[%c0_82, %c0_83, %c0_84, %c0_85], %537 {strides = array<i32>} : memref<1x8x8x32xf32, #tpu.memory_space<vmem>>, vector<1x8x8x32xf32>,
    return
  }
  func.func @transform_0(%arg0: i32, %arg1: i32) -> (i32, i32, i32, i32) {
    %c0_i32 = arith.constant 0 : i32
    %c0_i32_0 = arith.constant 0 : i32
    %c0_i32_1 = arith.constant 0 : i32
    %c0_i32_2 = arith.constant 0 : i32
    return %arg0, %c0_i32, %c0_i32_0, %c0_i32_1 : i32, i32, i32, i32
  }
  func.func @transform_1(%arg0: i32, %arg1: i32) -> (i32, i32) {
    %c0_i32 = arith.constant 0 : i32
    %c0_i32_0 = arith.constant 0 : i32
    %c0_i32_1 = arith.constant 0 : i32
    return %c0_i32, %c0_i32_0 : i32, i32
  }
  func.func @transform_2(%arg0: i32, %arg1: i32) -> (i32, i32) {
    %c0_i32 = arith.constant 0 : i32
    %c0_i32_0 = arith.constant 0 : i32
    %c0_i32_1 = arith.constant 0 : i32
    return %c0_i32, %c0_i32_0 : i32, i32
  }
  func.func @transform_3(%arg0: i32, %arg1: i32) -> (i32, i32) {
    %c0_i32 = arith.constant 0 : i32
    %c0_i32_0 = arith.constant 0 : i32
    %c0_i32_1 = arith.constant 0 : i32
    return %c0_i32, %c0_i32_0 : i32, i32
  }
  func.func @transform_4(%arg0: i32, %arg1: i32) -> (i32, i32) {
    %c0_i32 = arith.constant 0 : i32
    %c0_i32_0 = arith.constant 0 : i32
    %c0_i32_1 = arith.constant 0 : i32
    return %c0_i32, %c0_i32_0 : i32, i32
  }
  func.func @transform_5(%arg0: i32, %arg1: i32) -> (i32, i32) {
    %c0_i32 = arith.constant 0 : i32
    %c0_i32_0 = arith.constant 0 : i32
    %c0_i32_1 = arith.constant 0 : i32
    return %c0_i32, %c0_i32_0 : i32, i32
  }
  func.func @transform_6(%arg0: i32, %arg1: i32) -> (i32, i32) {
    %c0_i32 = arith.constant 0 : i32
    %c0_i32_0 = arith.constant 0 : i32
    %c0_i32_1 = arith.constant 0 : i32
    return %c0_i32, %c0_i32_0 : i32, i32
  }
  func.func @transform_7(%arg0: i32, %arg1: i32) -> (i32, i32, i32, i32) {
    %c0_i32 = arith.constant 0 : i32
    %c0_i32_0 = arith.constant 0 : i32
    %c0_i32_1 = arith.constant 0 : i32
    return %arg0, %arg1, %c0_i32, %c0_i32_0 : i32, i32, i32, i32
  }
}

</mosaic_0001>

<llo_original>
// kernel: tpu_custom_call.1
$region0: #{tpu_custom_call.1}
  #allocation0 [shape = 'u32[]', space=smem, size = 0x4, offset = 0x4, fixed_abs, tag = 'smem constant byte address 0x4 - core index']
  #allocation1 [shape = 'u32[72,128]{1,0:T(1,128)}', space=vmem, size = 0x9000, scoped, tag = 'internal scratch']
  #allocation2 [shape = 'bf16[12,10,32]{2,1,0:T(8,128)(2,1)}', space=vmem, size = 0xc000, scoped, tag = 'scratch operand']
  #allocation3 [shape = 'bf16[10,8,32]{2,1,0:T(8,128)(2,1)}', space=vmem, size = 0x5000, scoped, tag = 'scratch operand']
  #allocation4 [shape = 'f32[12,10,32]{2,1,0:T(8,128)}', space=vmem, size = 0x18000, scoped, tag = 'scratch operand']
  %s0 = inlined_call_operand.hbm [shape: f32[2,8,8,32], index: 0, kind: input, shape index: {}]
  %s1 = inlined_call_operand.hbm [shape: bf16[32,32], index: 1, kind: input, shape index: {}]
  %s2 = inlined_call_operand.vmem [shape: f32[1,32], index: 2, kind: input, shape index: {}]
  %s3 = inlined_call_operand.hbm [shape: bf16[32,81], index: 3, kind: input, shape index: {}]
  %s4 = inlined_call_operand.vmem [shape: f32[1,81], index: 4, kind: input, shape index: {}]
  %s5 = inlined_call_operand.hbm [shape: bf16[32,32], index: 5, kind: input, shape index: {}]
  %s6 = inlined_call_operand.vmem [shape: f32[1,32], index: 6, kind: input, shape index: {}]
  %s7 = inlined_call_operand.hbm [shape: f32[2,8,8,32], index: 7, kind: output, shape index: {}]
  %s8 = sld [smem:[#allocation0]]
  $region81: #{tpu_custom_call.1} parent=0
    _
  %s10 = ssub.s32 1, %s8
  %s11 = scalar_select 0, %s10, %s8
  $region1: #{tpu_custom_call.1} parent=0
    #allocation5 [shape = 'u8[65536]{0}', space=vmem, size = 0x10000, scoped, tag = 'input window, operand 0']
    #allocation6 [shape = 's32[2]{0}', space=sflag, size = 0x8, scoped, tag = 'scoped memory for tpu_custom_call.1']
    #allocation7 [shape = 's32[2]{0}', space=sflag, size = 0x8, scoped, tag = 'scoped memory for tpu_custom_call.1']
    #allocation8 [shape = 'u8[8192]{0}', space=vmem, size = 0x2000, scoped, tag = 'input window, operand 1, single buffered']
    #allocation9 [shape = 's32[1]{0}', space=sflag, size = 0x4, scoped, tag = 'scoped memory for tpu_custom_call.1']
    #allocation10 [shape = 'u8[8192]{0}', space=vmem, size = 0x2000, scoped, tag = 'input window, operand 3, single buffered']
    #allocation11 [shape = 'u8[8192]{0}', space=vmem, size = 0x2000, scoped, tag = 'input window, operand 5, single buffered']
    #allocation12 [shape = 's32[1]{0}', space=sflag, size = 0x4, scoped, tag = 'scoped memory for tpu_custom_call.1']
    #allocation13 [shape = 'u8[65536]{0}', space=vmem, size = 0x10000, scoped, tag = 'output window, operand 0']
    %12 = vsyncpa [#allocation6], 0
    %s13 = scalar_lea.sflag [#allocation6], 1
    %14 = vsyncpa %s13, 0
    %15 = vsyncpa [#allocation9], 0
    %16 = vsyncpa [#allocation12], 0
    %17 = vsyncpa [#allocation7], 0
    %s18 = scalar_lea.sflag [#allocation7], 1
    %19 = vsyncpa %s18, 0
    loop: start=0, step=1, limit=4
    $region2: #{tpu_custom_call.1} parent=1 // loop_pre_header
      _
    $region3: #{tpu_custom_call.1} parent=1 // loop_header
      %s21 = sphi 0, %s25
      %p22 = scmp.ge.s32.totalorder %s21, 4
      %s28 = sphi 0, %s40
      %s29 = sphi 0, %s36
      %s30 = sphi 0, %s28
      %s31 = sphi 0, %s29
      %s32 = sphi 0, %s30
      %s33 = sphi 0, %s31
      %s43 = sphi 0, %s45
      %s46 = sphi 0, %s43
      %s47 = sphi 0, %s46
      %s63 = sphi 0, %s47
      %s67 = sphi 0, %s67
      %s69 = sphi 0, %s67
      %s70 = sphi 0, %s69
      %s84 = sphi 0, %s70
      %s88 = sphi 0, %s88
      %s90 = sphi 0, %s88
      %s91 = sphi 0, %s90
      %s105 = sphi 0, %s91
      %s109 = sphi 0, %s109
      %s111 = sphi 0, %s109
      %s112 = sphi 0, %s111
      %s126 = sphi 0, %s112
      %s130 = sphi 0, %s130
      %s132 = sphi 0, %s130
      %s133 = sphi 0, %s132
      %s147 = sphi 0, %s133
      %s151 = sphi 0, %s151
      %s153 = sphi 0, %s151
      %s154 = sphi 0, %s153
      %s168 = sphi 0, %s154
      %s172 = sphi 0, %s172
      %s174 = sphi 0, %s172
      %s175 = sphi 0, %s174
      %s189 = sphi 0, %s175
      %s197 = sphi 0, %s199
      %s200 = sphi 0, %s197
      %s201 = sphi 0, %s200
      %s217 = sphi 0, %s201
    $region4: #{tpu_custom_call.1} parent=1 // loop_header_branch
      %24 = sbr.rel (%p22) target = $region8
    $region5: #{tpu_custom_call.1} parent=1 // loop_body
      %s26 = ssub.s32 %s21, 1
      %s27 = ssub.s32 %s21, 2
      %s34 = sadd.s32 1, %s29
      %p35 = scmp.ge.s32.totalorder %s34, 1
      %s36 = scalar_select %p35, 0, %s34
      %s37 = sadd.s32 1, %s28
      %s38 = scalar_select %p35, %s37, %s28
      %p39 = scmp.ge.s32.totalorder %s38, 2
      %s40 = scalar_select %p39, 0, %s38
      %s41 = ssub.s32 %s28, %s40
      %p42 = scmp.eq.s32.totalorder %s41, 0
      %s44 = sadd.s32 %s43, 1
      %s45 = scalar_select %p42, %s43, %s44
      %p48 = pneg %p42
      %p49 = scmp.eq.s32.totalorder %s21, 1
      %p50 = por %p48, %p49
      %p51 = scmp.ne.s32.totalorder %s43, %s46
      %p52 = scmp.eq.s32.totalorder %s21, 0
      %p53 = por %p51, %p52
      %p54 = scmp.ne.s32.totalorder %s43, %s46
      %p55 = scmp.eq.s32.totalorder %s26, 1
      %p56 = por %p54, %p55
      %p57 = scmp.ne.s32.totalorder %s46, %s47
      %p58 = scmp.eq.s32.totalorder %s26, 0
      %p59 = por %p57, %p58
      %p60 = scmp.ne.s32.totalorder %s46, %s47
      %p61 = scmp.eq.s32.totalorder %s27, 1
      %p62 = por %p60, %p61
      %p64 = scmp.ne.s32.totalorder %s47, %s63
      %p65 = scmp.eq.s32.totalorder %s27, 0
      %p66 = por %p64, %p65
      %s68 = sadd.s32 %s67, 1
      %p71 = scmp.eq.s32.totalorder %s21, 1
      %p72 = scmp.ne.s32.totalorder %s67, %s69
      %p73 = scmp.eq.s32.totalorder %s21, 0
      %p74 = por %p72, %p73
      %p75 = scmp.ne.s32.totalorder %s67, %s69
      %p76 = scmp.eq.s32.totalorder %s26, 1
      %p77 = por %p75, %p76
      %p78 = scmp.ne.s32.totalorder %s69, %s70
      %p79 = scmp.eq.s32.totalorder %s26, 0
      %p80 = por %p78, %p79
      %p81 = scmp.ne.s32.totalorder %s69, %s70
      %p82 = scmp.eq.s32.totalorder %s27, 1
      %p83 = por %p81, %p82
      %p85 = scmp.ne.s32.totalorder %s70, %s84
      %p86 = scmp.eq.s32.totalorder %s27, 0
      %p87 = por %p85, %p86
      %s89 = sadd.s32 %s88, 1
      %p92 = scmp.eq.s32.totalorder %s21, 1
      %p93 = scmp.ne.s32.totalorder %s88, %s90
      %p94 = scmp.eq.s32.totalorder %s21, 0
      %p95 = por %p93, %p94
      %p96 = scmp.ne.s32.totalorder %s88, %s90
      %p97 = scmp.eq.s32.totalorder %s26, 1
      %p98 = por %p96, %p97
      %p99 = scmp.ne.s32.totalorder %s90, %s91
      %p100 = scmp.eq.s32.totalorder %s26, 0
      %p101 = por %p99, %p100
      %p102 = scmp.ne.s32.totalorder %s90, %s91
      %p103 = scmp.eq.s32.totalorder %s27, 1
      %p104 = por %p102, %p103
      %p106 = scmp.ne.s32.totalorder %s91, %s105
      %p107 = scmp.eq.s32.totalorder %s27, 0
      %p108 = por %p106, %p107
      %s110 = sadd.s32 %s109, 1
      %p113 = scmp.eq.s32.totalorder %s21, 1
      %p114 = scmp.ne.s32.totalorder %s109, %s111
      %p115 = scmp.eq.s32.totalorder %s21, 0
      %p116 = por %p114, %p115
      %p117 = scmp.ne.s32.totalorder %s109, %s111
      %p118 = scmp.eq.s32.totalorder %s26, 1
      %p119 = por %p117, %p118
      %p120 = scmp.ne.s32.totalorder %s111, %s112
      %p121 = scmp.eq.s32.totalorder %s26, 0
      %p122 = por %p120, %p121
      %p123 = scmp.ne.s32.totalorder %s111, %s112
      %p124 = scmp.eq.s32.totalorder %s27, 1
      %p125 = por %p123, %p124
      %p127 = scmp.ne.s32.totalorder %s112, %s126
      %p128 = scmp.eq.s32.totalorder %s27, 0
      %p129 = por %p127, %p128
      %s131 = sadd.s32 %s130, 1
      %p134 = scmp.eq.s32.totalorder %s21, 1
      %p135 = scmp.ne.s32.totalorder %s130, %s132
      %p136 = scmp.eq.s32.totalorder %s21, 0
      %p137 = por %p135, %p136
      %p138 = scmp.ne.s32.totalorder %s130, %s132
      %p139 = scmp.eq.s32.totalorder %s26, 1
      %p140 = por %p138, %p139
      %p141 = scmp.ne.s32.totalorder %s132, %s133
      %p142 = scmp.eq.s32.totalorder %s26, 0
      %p143 = por %p141, %p142
      %p144 = scmp.ne.s32.totalorder %s132, %s133
      %p145 = scmp.eq.s32.totalorder %s27, 1
      %p146 = por %p144, %p145
      %p148 = scmp.ne.s32.totalorder %s133, %s147
      %p149 = scmp.eq.s32.totalorder %s27, 0
      %p150 = por %p148, %p149
      %s152 = sadd.s32 %s151, 1
      %p155 = scmp.eq.s32.totalorder %s21, 1
      %p156 = scmp.ne.s32.totalorder %s151, %s153
      %p157 = scmp.eq.s32.totalorder %s21, 0
      %p158 = por %p156, %p157
      %p159 = scmp.ne.s32.totalorder %s151, %s153
      %p160 = scmp.eq.s32.totalorder %s26, 1
      %p161 = por %p159, %p160
      %p162 = scmp.ne.s32.totalorder %s153, %s154
      %p163 = scmp.eq.s32.totalorder %s26, 0
      %p164 = por %p162, %p163
      %p165 = scmp.ne.s32.totalorder %s153, %s154
      %p166 = scmp.eq.s32.totalorder %s27, 1
      %p167 = por %p165, %p166
      %p169 = scmp.ne.s32.totalorder %s154, %s168
      %p170 = scmp.eq.s32.totalorder %s27, 0
      %p171 = por %p169, %p170
      %s173 = sadd.s32 %s172, 1
      %p176 = scmp.eq.s32.totalorder %s21, 1
      %p177 = scmp.ne.s32.totalorder %s172, %s174
      %p178 = scmp.eq.s32.totalorder %s21, 0
      %p179 = por %p177, %p178
      %p180 = scmp.ne.s32.totalorder %s172, %s174
      %p181 = scmp.eq.s32.totalorder %s26, 1
      %p182 = por %p180, %p181
      %p183 = scmp.ne.s32.totalorder %s174, %s175
      %p184 = scmp.eq.s32.totalorder %s26, 0
      %p185 = por %p183, %p184
      %p186 = scmp.ne.s32.totalorder %s174, %s175
      %p187 = scmp.eq.s32.totalorder %s27, 1
      %p188 = por %p186, %p187
      %p190 = scmp.ne.s32.totalorder %s175, %s189
      %p191 = scmp.eq.s32.totalorder %s27, 0
      %p192 = por %p190, %p191
      %s193 = ssub.s32 %s28, %s40
      %s194 = ssub.s32 %s29, %s36
      %s195 = sor.u32 %s193, %s194
      %p196 = scmp.eq.s32.totalorder %s195, 0
      %s198 = sadd.s32 %s197, 1
      %s199 = scalar_select %p196, %s197, %s198
      %p202 = pneg %p196
      %p203 = scmp.eq.s32.totalorder %s21, 1
      %p204 = por %p202, %p203
      %p205 = scmp.ne.s32.totalorder %s197, %s200
      %p206 = scmp.eq.s32.totalorder %s21, 0
      %p207 = por %p205, %p206
      %p208 = scmp.ne.s32.totalorder %s197, %s200
      %p209 = scmp.eq.s32.totalorder %s26, 1
      %p210 = por %p208, %p209
      %p211 = scmp.ne.s32.totalorder %s200, %s201
      %p212 = scmp.eq.s32.totalorder %s26, 0
      %p213 = por %p211, %p212
      %p214 = scmp.ne.s32.totalorder %s200, %s201
      %p215 = scmp.eq.s32.totalorder %s27, 1
      %p216 = por %p214, %p215
      %p218 = scmp.ne.s32.totalorder %s201, %s217
      %p219 = scmp.eq.s32.totalorder %s27, 0
      %p220 = por %p218, %p219
      %p221 = scmp.le.s32.totalorder 1, %s21
      %p222 = scmp.lt.s32.totalorder %s21, 3
      %p223 = pnand %p221, %p222
      %p224 = pneg %p223
      // Predicated region
      $region9: #{tpu_custom_call.1} parent=5 // pred_check
        _
      $region10: #{tpu_custom_call.1} parent=5 // pred_check_branch
        %226 = sbr.rel (%p223) target = $region12
      $region11: #{tpu_custom_call.1} parent=5 // pred_region
        %s227 = ssub.s32 %s21, 1
        // Predicated region
        $region13: #{tpu_custom_call.1} parent=11 // pred_check
          %p228 = pneg %p80
        $region14: #{tpu_custom_call.1} parent=11 // pred_check_branch
          %230 = sbr.rel (%p228) target = $region16
        $region15: #{tpu_custom_call.1} parent=11 // pred_region
          %232 = vsyncadd [#allocation9], 0
          %s233 = sshll.u32 %s1, 4
          %s234 = int_to_ptr.hbm [resolvable:$true] %s233
          %s235 = sshll.u32 [#allocation8], 4
          %s236 = int_to_ptr.vmem [resolvable:$true] %s235
          %241 = dma.hbm_to_vmem [thread:$0]  %s234, 256, %s236, [#allocation9], 64, 64, 4
        $region16: #{tpu_custom_call.1} parent=11 // pred_fallthru
          _
        // Predicated region
        $region17: #{tpu_custom_call.1} parent=11 // pred_check
          %p242 = pneg %p101
        $region18: #{tpu_custom_call.1} parent=11 // pred_check_branch
          %244 = sbr.rel (%p242) target = $region20
        $region19: #{tpu_custom_call.1} parent=11 // pred_region
          _
        $region20: #{tpu_custom_call.1} parent=11 // pred_fallthru
          _
        // Predicated region
        $region21: #{tpu_custom_call.1} parent=11 // pred_check
          %p245 = pneg %p122
        $region22: #{tpu_custom_call.1} parent=11 // pred_check_branch
          %247 = sbr.rel (%p245) target = $region24
        $region23: #{tpu_custom_call.1} parent=11 // pred_region
          %249 = vsyncadd [#allocation9], 0
          %s250 = sshll.u32 %s3, 4
          %s251 = int_to_ptr.hbm [resolvable:$true] %s250
          %s252 = sshll.u32 [#allocation10], 4
          %s253 = int_to_ptr.vmem [resolvable:$true] %s252
          %258 = dma.hbm_to_vmem [thread:$0]  %s251, 256, %s253, [#allocation9], 64, 64, 4
        $region24: #{tpu_custom_call.1} parent=11 // pred_fallthru
          _
        // Predicated region
        $region25: #{tpu_custom_call.1} parent=11 // pred_check
          %p259 = pneg %p143
        $region26: #{tpu_custom_call.1} parent=11 // pred_check_branch
          %261 = sbr.rel (%p259) target = $region28
        $region27: #{tpu_custom_call.1} parent=11 // pred_region
          _
        $region28: #{tpu_custom_call.1} parent=11 // pred_fallthru
          _
        // Predicated region
        $region29: #{tpu_custom_call.1} parent=11 // pred_check
          %p262 = pneg %p164
        $region30: #{tpu_custom_call.1} parent=11 // pred_check_branch
          %264 = sbr.rel (%p262) target = $region32
        $region31: #{tpu_custom_call.1} parent=11 // pred_region
          %266 = vsyncadd [#allocation12], 0
          %s267 = sshll.u32 %s5, 4
          %s268 = int_to_ptr.hbm [resolvable:$true] %s267
          %s269 = sshll.u32 [#allocation11], 4
          %s270 = int_to_ptr.vmem [resolvable:$true] %s269
          %275 = dma.hbm_to_vmem [thread:$0]  %s268, 256, %s270, [#allocation12], 64, 64, 4
        $region32: #{tpu_custom_call.1} parent=11 // pred_fallthru
          _
        // Predicated region
        $region33: #{tpu_custom_call.1} parent=11 // pred_check
          %p276 = pneg %p185
        $region34: #{tpu_custom_call.1} parent=11 // pred_check_branch
          %278 = sbr.rel (%p276) target = $region36
        $region35: #{tpu_custom_call.1} parent=11 // pred_region
          _
        $region36: #{tpu_custom_call.1} parent=11 // pred_fallthru
          _
      $region12: #{tpu_custom_call.1} parent=5 // pred_fallthru
        _
      %p279 = scmp.lt.s32.totalorder %s21, 2
      // Predicated region
      $region37: #{tpu_custom_call.1} parent=5 // pred_check
        %p280 = pneg %p279
      $region38: #{tpu_custom_call.1} parent=5 // pred_check_branch
        %282 = sbr.rel (%p280) target = $region40
      $region39: #{tpu_custom_call.1} parent=5 // pred_region
        // Predicated region
        $region41: #{tpu_custom_call.1} parent=39 // pred_check
          %p283 = pneg %p53
        $region42: #{tpu_custom_call.1} parent=39 // pred_check_branch
          %285 = sbr.rel (%p283) target = $region44
        $region43: #{tpu_custom_call.1} parent=39 // pred_region
          %s286 = sand.u32 %s43, 1
          %s287 = scalar_lea.sflag [#allocation6], %s286
          %s288 = sand.u32 %s43, 1
          %s289 = smul.addr %s288, 64
          %s290 = scalar_lea.vmem [#allocation5], %s289
          %292 = vsyncadd %s287, 0
          %s293 = smul.addr %s28, 8
          %s294 = smul.addr %s293, 8
          %s295 = scalar_lea.hbm %s0, %s294
          %s296 = sshll.u32 %s295, 4
          %s297 = int_to_ptr.hbm [resolvable:$true] %s296
          %s298 = sshll.u32 %s290, 4
          %s299 = int_to_ptr.vmem [resolvable:$true] %s298
          %304 = dma.hbm_to_vmem [thread:$0]  %s297, 1024, %s299, %s287, 128, 128, 8
        $region44: #{tpu_custom_call.1} parent=39 // pred_fallthru
          _
      $region40: #{tpu_custom_call.1} parent=5 // pred_fallthru
        _
      %p305 = scmp.le.s32.totalorder 1, %s21
      %p306 = scmp.lt.s32.totalorder %s21, 3
      %p307 = pnand %p305, %p306
      %p308 = pneg %p307
      // Predicated region
      $region45: #{tpu_custom_call.1} parent=5 // pred_check
        _
      $region46: #{tpu_custom_call.1} parent=5 // pred_check_branch
        %310 = sbr.rel (%p307) target = $region48
      $region47: #{tpu_custom_call.1} parent=5 // pred_region
        %s311 = ssub.s32 %s21, 1
        %s312 = sand.u32 %s46, 1
        %s313 = scalar_lea.sflag [#allocation6], %s312
        %s314 = sand.u32 %s46, 1
        %s315 = smul.addr %s314, 64
        %s316 = scalar_lea.vmem [#allocation5], %s315
        // Predicated region
        $region49: #{tpu_custom_call.1} parent=47 // pred_check
          %p317 = pneg %p59
        $region50: #{tpu_custom_call.1} parent=47 // pred_check_branch
          %319 = sbr.rel (%p317) target = $region52
        $region51: #{tpu_custom_call.1} parent=47 // pred_region
          %321 = dma.done %s313, 1024
        $region52: #{tpu_custom_call.1} parent=47 // pred_fallthru
          _
        // Predicated region
        $region53: #{tpu_custom_call.1} parent=47 // pred_check
          %p322 = pneg %p80
        $region54: #{tpu_custom_call.1} parent=47 // pred_check_branch
          %324 = sbr.rel (%p322) target = $region56
        $region55: #{tpu_custom_call.1} parent=47 // pred_region
          %326 = dma.done [#allocation9], 256
        $region56: #{tpu_custom_call.1} parent=47 // pred_fallthru
          _
        // Predicated region
        $region57: #{tpu_custom_call.1} parent=47 // pred_check
          %p327 = pneg %p122
        $region58: #{tpu_custom_call.1} parent=47 // pred_check_branch
          %329 = sbr.rel (%p327) target = $region60
        $region59: #{tpu_custom_call.1} parent=47 // pred_region
          %331 = dma.done [#allocation9], 256
        $region60: #{tpu_custom_call.1} parent=47 // pred_fallthru
          _
        // Predicated region
        $region61: #{tpu_custom_call.1} parent=47 // pred_check
          %p332 = pneg %p164
        $region62: #{tpu_custom_call.1} parent=47 // pred_check_branch
          %334 = sbr.rel (%p332) target = $region64
        $region63: #{tpu_custom_call.1} parent=47 // pred_region
          %336 = dma.done [#allocation12], 256
        $region64: #{tpu_custom_call.1} parent=47 // pred_fallthru
          _
        %s337 = sand.u32 %s46, 1
        %s338 = scalar_lea.sflag [#allocation6], %s337
        %s339 = sand.u32 %s46, 1
        %s340 = smul.addr %s339, 64
        %s341 = scalar_lea.vmem [#allocation5], %s340
        %p342 = pneg %p59
        %p343 = pneg %p56
        %p344 = pneg %p80
        %p345 = pneg %p77
        %p346 = pneg %p101
        %p347 = pneg %p98
        %p348 = pneg %p122
        %p349 = pneg %p119
        %p350 = pneg %p143
        %p351 = pneg %p140
        %p352 = pneg %p164
        %p353 = pneg %p161
        %p354 = pneg %p185
        %p355 = pneg %p182
        %p356 = pneg %p213
        %p357 = pneg %p210
        %s358 = sand.u32 %s200, 1
        %s359 = scalar_lea.sflag [#allocation7], %s358
        %s360 = sand.u32 %s200, 1
        %s361 = smul.addr %s360, 64
        %s362 = scalar_lea.vmem [#allocation13], %s361
        %s363 = smul.u32 8, %s31
        %s365 = smul.u32 %s31, 8
        %p366 = scmp.eq.s32.totalorder %s31, 0
        // Predicated region
        $region65: #{tpu_custom_call.1} parent=47 // pred_check
          %p367 = pneg %p366
        $region66: #{tpu_custom_call.1} parent=47 // pred_check_branch
          %369 = sbr.rel (%p367) target = $region68
        $region67: #{tpu_custom_call.1} parent=47 // pred_region
          %v370 = vld [vmem:[%s316] sm:$0xff]
          %v371 = vld [vmem:[%s316 + $0x8] sm:$0xff]
          %v372 = vld [vmem:[%s316 + $0x10] sm:$0xff]
          %v373 = vld [vmem:[%s316 + $0x18] sm:$0xff]
          %v374 = vld [vmem:[%s316 + $0x20] sm:$0xff]
          %v375 = vld [vmem:[%s316 + $0x28] sm:$0xff]
          %v376 = vld [vmem:[%s316 + $0x30] sm:$0xff]
          %v377 = vld [vmem:[%s316 + $0x38] sm:$0xff]
          %v378 = vpack.c.bf16 %v370, %v370
          %v379 = vpack.c.bf16 %v371, %v371
          %v380 = vpack.c.bf16 %v372, %v372
          %v381 = vpack.c.bf16 %v373, %v373
          %v382 = vpack.c.bf16 %v374, %v374
          %v383 = vpack.c.bf16 %v375, %v375
          %v384 = vpack.c.bf16 %v376, %v376
          %v385 = vpack.c.bf16 %v377, %v377
          %s386 = scalar_lea.vmem [#allocation3], 4
          %vm387 = vcmask 257024
          %388 = vst.msk [vmem:[%s386] sm:$0xf] %vm387, %v378
          %389 = vst.msk [vmem:[%s386 + $0x4] sm:$0xf] %vm387, %v379
          %390 = vst.msk [vmem:[%s386 + $0x8] sm:$0xf] %vm387, %v380
          %391 = vst.msk [vmem:[%s386 + $0xc] sm:$0xf] %vm387, %v381
          %392 = vst.msk [vmem:[%s386 + $0x10] sm:$0xf] %vm387, %v382
          %393 = vst.msk [vmem:[%s386 + $0x14] sm:$0xf] %vm387, %v383
          %394 = vst.msk [vmem:[%s386 + $0x18] sm:$0xf] %vm387, %v384
          %395 = vst.msk [vmem:[%s386 + $0x1c] sm:$0xf] %vm387, %v385
          %396 = vst.msk [vmem:[#allocation3] sm:$0xf] %vm387, 0
          %s397 = scalar_lea.vmem [#allocation3], 36
          %398 = vst.msk [vmem:[%s397] sm:$0xf] %vm387, 0
          %v399 = vld [vmem:[#allocation8] sm:$0xf]
          %v400 = vld [vmem:[#allocation8 + $0x4] sm:$0xf]
          %v401 = vld [vmem:[#allocation8 + $0x8] sm:$0xf]
          %v402 = vld [vmem:[#allocation8 + $0xc] sm:$0xf]
          %v403 = vld [vmem:[%s2] sm:$0x1]
          %v405 = vperm.slane %v403, 0
          %v415 = vunpack.c.l.b16 %v378
          %v416 = vunpack.c.l.b16 %v379
          %v417 = vunpack.c.l.b16 %v380
          %v418 = vunpack.c.l.b16 %v381
          %v419 = vunpack.c.l.b16 %v382
          %v420 = vunpack.c.l.b16 %v383
          %v421 = vunpack.c.l.b16 %v384
          %v422 = vunpack.c.l.b16 %v385
          %v423 = vpack.c.b16 %v416, %v415
          %v424 = vpack.c.b16 %v418, %v417
          %v425 = vpack.c.b16 %v420, %v419
          %v426 = vpack.c.b16 %v422, %v421
          %v431 = vunpack.c.l.b16 %v399
          %v432 = vunpack.c.l.b16 %v400
          %v433 = vunpack.c.l.b16 %v401
          %v434 = vunpack.c.l.b16 %v402
          %v435 = vpack.c.b16 %v432, %v431
          %v436 = vpack.c.b16 %v434, %v433
          %vm439 = vcmask 261120
          %v441 = vsel %vm439, %v423, 0
          %v444 = vsel %vm439, %v424, 0
          %v447 = vsel %vm439, %v425, 0
          %v450 = vsel %vm439, %v426, 0
          %452 = vmatpush.bf16.msra.mxu0 0
          %453 = vmatpush.bf16.msra.mxu0 0
          %454 = vmatpush.bf16.msra.mxu0 0
          %455 = vmatpush.bf16.msra.mxu0 0
          %456 = vmatpush.bf16.msra.mxu0 0
          %457 = vmatpush.bf16.msra.mxu0 0
          %458 = vmatpush.bf16.msra.mxu0 %v436
          %459 = vmatpush.bf16.msra.mxu0 %v435
          %460 = vmatmul.bf16.gmra.mxu0 %v441
          %v461 = vpop.f32.mrf.mxu0
          %v462 = vadd.f32 %v405, %v461
          %v463 = vpop.f32.mrf.mxu0
          %v464 = vadd.f32 %v405, %v463
          %465 = vmatmul.bf16.gmra.mxu0 %v444
          %v466 = vpop.f32.mrf.mxu0
          %v467 = vadd.f32 %v405, %v466
          %v468 = vpop.f32.mrf.mxu0
          %v469 = vadd.f32 %v405, %v468
          %470 = vmatmul.bf16.gmra.mxu0 %v447
          %v471 = vpop.f32.mrf.mxu0
          %v472 = vadd.f32 %v405, %v471
          %v473 = vpop.f32.mrf.mxu0
          %v474 = vadd.f32 %v405, %v473
          %475 = vmatmul.bf16.gmra.mxu0 %v450
          %v476 = vpop.f32.mrf.mxu0
          %v477 = vadd.f32 %v405, %v476
          %v478 = vpop.f32.mrf.mxu0
          %v479 = vadd.f32 %v405, %v478
          %480 = vdwg.mxu0
          %v481 = vpack.c.bf16 %v462, %v462
          %v482 = vpack.c.bf16 %v464, %v464
          %v483 = vpack.c.bf16 %v467, %v467
          %v484 = vpack.c.bf16 %v469, %v469
          %v485 = vpack.c.bf16 %v472, %v472
          %v486 = vpack.c.bf16 %v474, %v474
          %v487 = vpack.c.bf16 %v477, %v477
          %v488 = vpack.c.bf16 %v479, %v479
          %v490 = vshrl.u32 %v481, 16
          %v492 = vrot.slane %v490, 7
          %v493 = vshll.u32 %v481, 16
          %v495 = vor.u32 %v492, %v493
          %v496 = vrot.slane %v492, 4
          %v498 = vshrl.u32 %v482, 16
          %v500 = vrot.slane %v498, 7
          %v501 = vshll.u32 %v482, 16
          %v503 = vor.u32 %v500, %v501
          %v504 = vrot.slane %v500, 4
          %v506 = vshrl.u32 %v483, 16
          %v508 = vrot.slane %v506, 7
          %v509 = vshll.u32 %v483, 16
          %v511 = vor.u32 %v508, %v509
          %v512 = vrot.slane %v508, 4
          %v514 = vshrl.u32 %v484, 16
          %v516 = vrot.slane %v514, 7
          %v517 = vshll.u32 %v484, 16
          %v519 = vor.u32 %v516, %v517
          %v520 = vrot.slane %v516, 4
          %v522 = vshrl.u32 %v485, 16
          %v524 = vrot.slane %v522, 7
          %v525 = vshll.u32 %v485, 16
          %v527 = vor.u32 %v524, %v525
          %v528 = vrot.slane %v524, 4
          %v530 = vshrl.u32 %v486, 16
          %v532 = vrot.slane %v530, 7
          %v533 = vshll.u32 %v486, 16
          %v535 = vor.u32 %v532, %v533
          %v536 = vrot.slane %v532, 4
          %v538 = vshrl.u32 %v487, 16
          %v540 = vrot.slane %v538, 7
          %v541 = vshll.u32 %v487, 16
          %v543 = vor.u32 %v540, %v541
          %v544 = vrot.slane %v540, 4
          %v546 = vshrl.u32 %v488, 16
          %v548 = vrot.slane %v546, 7
          %v549 = vshll.u32 %v488, 16
          %v551 = vor.u32 %v548, %v549
          %v552 = vrot.slane %v548, 4
          %s569 = scalar_lea.vmem [#allocation2], 16
          %vm570 = vcmask 257024
          %vm571 = vsmask.f32 7938
          %vm572 = vmand %vm570, %vm571
          %v573 = vld [vmem:[%s569] sm:$0xf]
          %v574 = vsel %vm572, %v495, %v573
          %575 = vst [vmem:[%s569] sm:$0xf] %v574
          %vm576 = vcmask 253952
          %vm577 = vsmask.f32 256
          %vm578 = vmand %vm576, %vm577
          %v579 = vld [vmem:[%s569 + $0x4] sm:$0x1]
          %v580 = vsel %vm578, %v496, %v579
          %581 = vst [vmem:[%s569 + $0x4] sm:$0x1] %v580
          %v582 = vld [vmem:[%s569 + $0x8] sm:$0xf]
          %v583 = vsel %vm572, %v503, %v582
          %584 = vst [vmem:[%s569 + $0x8] sm:$0xf] %v583
          %v585 = vld [vmem:[%s569 + $0xc] sm:$0x1]
          %v586 = vsel %vm578, %v504, %v585
          %587 = vst [vmem:[%s569 + $0xc] sm:$0x1] %v586
          %v588 = vld [vmem:[%s569 + $0x10] sm:$0xf]
          %v589 = vsel %vm572, %v511, %v588
          %590 = vst [vmem:[%s569 + $0x10] sm:$0xf] %v589
          %v591 = vld [vmem:[%s569 + $0x14] sm:$0x1]
          %v592 = vsel %vm578, %v512, %v591
          %593 = vst [vmem:[%s569 + $0x14] sm:$0x1] %v592
          %v594 = vld [vmem:[%s569 + $0x18] sm:$0xf]
          %v595 = vsel %vm572, %v519, %v594
          %596 = vst [vmem:[%s569 + $0x18] sm:$0xf] %v595
          %v597 = vld [vmem:[%s569 + $0x1c] sm:$0x1]
          %v598 = vsel %vm578, %v520, %v597
          %599 = vst [vmem:[%s569 + $0x1c] sm:$0x1] %v598
          %v600 = vld [vmem:[%s569 + $0x20] sm:$0xf]
          %v601 = vsel %vm572, %v527, %v600
          %602 = vst [vmem:[%s569 + $0x20] sm:$0xf] %v601
          %v603 = vld [vmem:[%s569 + $0x24] sm:$0x1]
          %v604 = vsel %vm578, %v528, %v603
          %605 = vst [vmem:[%s569 + $0x24] sm:$0x1] %v604
          %v606 = vld [vmem:[%s569 + $0x28] sm:$0xf]
          %v607 = vsel %vm572, %v535, %v606
          %608 = vst [vmem:[%s569 + $0x28] sm:$0xf] %v607
          %v609 = vld [vmem:[%s569 + $0x2c] sm:$0x1]
          %v610 = vsel %vm578, %v536, %v609
          %611 = vst [vmem:[%s569 + $0x2c] sm:$0x1] %v610
          %v612 = vld [vmem:[%s569 + $0x30] sm:$0xf]
          %v613 = vsel %vm572, %v543, %v612
          %614 = vst [vmem:[%s569 + $0x30] sm:$0xf] %v613
          %v615 = vld [vmem:[%s569 + $0x34] sm:$0x1]
          %v616 = vsel %vm578, %v544, %v615
          %617 = vst [vmem:[%s569 + $0x34] sm:$0x1] %v616
          %v618 = vld [vmem:[%s569 + $0x38] sm:$0xf]
          %v619 = vsel %vm572, %v551, %v618
          %620 = vst [vmem:[%s569 + $0x38] sm:$0xf] %v619
          %v621 = vld [vmem:[%s569 + $0x3c] sm:$0x1]
          %v622 = vsel %vm578, %v552, %v621
          %623 = vst [vmem:[%s569 + $0x3c] sm:$0x1] %v622
          %624 = vst.msk [vmem:[#allocation2] sm:$0xf] %vm387, 0
          %vm625 = vcmask 253952
          %626 = vst.msk [vmem:[#allocation2 + $0x4] sm:$0x1] %vm625, 0
          %627 = vst.msk [vmem:[#allocation2 + $0x8] sm:$0xf] %vm387, 0
          %628 = vst.msk [vmem:[#allocation2 + $0xc] sm:$0x1] %vm625, 0
          %s629 = scalar_lea.vmem [#allocation2], 80
          %630 = vst.msk [vmem:[%s629] sm:$0xf] %vm387, 0
          %631 = vst.msk [vmem:[%s629 + $0x4] sm:$0x1] %vm625, 0
          %632 = vst.msk [vmem:[%s629 + $0x8] sm:$0xf] %vm387, 0
          %633 = vst.msk [vmem:[%s629 + $0xc] sm:$0x1] %vm625, 0
          %v634 = vld [vmem:[%s569] sm:$0x1]
          %v635 = vsel %vm578, 0, %v634
          %636 = vst [vmem:[%s569] sm:$0x1] %v635
          %v637 = vld [vmem:[%s569 + $0x8] sm:$0x1]
          %v638 = vsel %vm578, 0, %v637
          %639 = vst [vmem:[%s569 + $0x8] sm:$0x1] %v638
          %v640 = vld [vmem:[%s569 + $0x10] sm:$0x1]
          %v641 = vsel %vm578, 0, %v640
          %642 = vst [vmem:[%s569 + $0x10] sm:$0x1] %v641
          %v643 = vld [vmem:[%s569 + $0x18] sm:$0x1]
          %v644 = vsel %vm578, 0, %v643
          %645 = vst [vmem:[%s569 + $0x18] sm:$0x1] %v644
          %v646 = vld [vmem:[%s569 + $0x20] sm:$0x1]
          %v647 = vsel %vm578, 0, %v646
          %648 = vst [vmem:[%s569 + $0x20] sm:$0x1] %v647
          %v649 = vld [vmem:[%s569 + $0x28] sm:$0x1]
          %v650 = vsel %vm578, 0, %v649
          %651 = vst [vmem:[%s569 + $0x28] sm:$0x1] %v650
          %v652 = vld [vmem:[%s569 + $0x30] sm:$0x1]
          %v653 = vsel %vm578, 0, %v652
          %654 = vst [vmem:[%s569 + $0x30] sm:$0x1] %v653
          %v655 = vld [vmem:[%s569 + $0x38] sm:$0x1]
          %v656 = vsel %vm578, 0, %v655
          %657 = vst [vmem:[%s569 + $0x38] sm:$0x1] %v656
          %vm658 = vmand %vm576, %vm571
          %v659 = vld [vmem:[%s569 + $0x4] sm:$0x1]
          %v660 = vsel %vm658, 0, %v659
          %661 = vst [vmem:[%s569 + $0x4] sm:$0x1] %v660
          %v662 = vld [vmem:[%s569 + $0xc] sm:$0x1]
          %v663 = vsel %vm658, 0, %v662
          %664 = vst [vmem:[%s569 + $0xc] sm:$0x1] %v663
          %v665 = vld [vmem:[%s569 + $0x14] sm:$0x1]
          %v666 = vsel %vm658, 0, %v665
          %667 = vst [vmem:[%s569 + $0x14] sm:$0x1] %v666
          %v668 = vld [vmem:[%s569 + $0x1c] sm:$0x1]
          %v669 = vsel %vm658, 0, %v668
          %670 = vst [vmem:[%s569 + $0x1c] sm:$0x1] %v669
          %v671 = vld [vmem:[%s569 + $0x24] sm:$0x1]
          %v672 = vsel %vm658, 0, %v671
          %673 = vst [vmem:[%s569 + $0x24] sm:$0x1] %v672
          %v674 = vld [vmem:[%s569 + $0x2c] sm:$0x1]
          %v675 = vsel %vm658, 0, %v674
          %676 = vst [vmem:[%s569 + $0x2c] sm:$0x1] %v675
          %v677 = vld [vmem:[%s569 + $0x34] sm:$0x1]
          %v678 = vsel %vm658, 0, %v677
          %679 = vst [vmem:[%s569 + $0x34] sm:$0x1] %v678
          %v680 = vld [vmem:[%s569 + $0x3c] sm:$0x1]
          %v681 = vsel %vm658, 0, %v680
          %682 = vst [vmem:[%s569 + $0x3c] sm:$0x1] %v681
        $region68: #{tpu_custom_call.1} parent=47 // pred_fallthru
          _
        %s683 = smul.addr %s365, 4
        %s684 = scalar_lea.vmem [#allocation3], %s683
        %v685 = vld [vmem:[%s684] sm:$0xf]
        %v686 = vld [vmem:[%s684 + $0x4] sm:$0xf]
        %v687 = vld [vmem:[%s684 + $0x8] sm:$0xf]
        %v688 = vld [vmem:[%s684 + $0xc] sm:$0xf]
        %v689 = vld [vmem:[%s684 + $0x10] sm:$0xf]
        %v690 = vld [vmem:[%s684 + $0x14] sm:$0xf]
        %v691 = vld [vmem:[%s684 + $0x18] sm:$0xf]
        %v692 = vld [vmem:[%s684 + $0x1c] sm:$0xf]
        %v693 = vld [vmem:[%s684 + $0x20] sm:$0xf]
        %v694 = vld [vmem:[%s684 + $0x24] sm:$0xf]
        %v695 = vld [vmem:[#allocation10] sm:$0xf]
        %v696 = vld [vmem:[#allocation10 + $0x4] sm:$0xf]
        %v697 = vld [vmem:[#allocation10 + $0x8] sm:$0xf]
        %v698 = vld [vmem:[#allocation10 + $0xc] sm:$0xf]
        %v699 = vld [vmem:[%s4] sm:$0x1]
        %v701 = vperm.slane %v699, 0
        %v713 = vunpack.c.l.b16 %v685
        %v714 = vunpack.c.l.b16 %v686
        %v715 = vunpack.c.l.b16 %v687
        %v716 = vunpack.c.l.b16 %v688
        %v717 = vunpack.c.l.b16 %v689
        %v718 = vunpack.c.l.b16 %v690
        %v719 = vunpack.c.l.b16 %v691
        %v720 = vunpack.c.l.b16 %v692
        %v721 = vunpack.c.l.b16 %v693
        %v722 = vunpack.c.l.b16 %v694
        %v723 = vpack.c.b16 %v714, %v713
        %v724 = vpack.c.b16 %v716, %v715
        %v725 = vpack.c.b16 %v718, %v717
        %v726 = vpack.c.b16 %v720, %v719
        %v727 = vpack.c.b16 %v722, %v721
        %v732 = vunpack.c.l.b16 %v695
        %v733 = vunpack.c.l.b16 %v696
        %v734 = vunpack.c.l.b16 %v697
        %v735 = vunpack.c.l.b16 %v698
        %v736 = vpack.c.b16 %v733, %v732
        %v737 = vpack.c.b16 %v735, %v734
        %vm740 = vcmask 261120
        %v742 = vsel %vm740, %v723, 0
        %v745 = vsel %vm740, %v724, 0
        %v748 = vsel %vm740, %v725, 0
        %v751 = vsel %vm740, %v726, 0
        %v754 = vsel %vm740, %v727, 0
        %756 = vmatpush.bf16.msra.mxu0 0
        %757 = vmatpush.bf16.msra.mxu0 0
        %758 = vmatpush.bf16.msra.mxu0 0
        %759 = vmatpush.bf16.msra.mxu0 0
        %760 = vmatpush.bf16.msra.mxu0 0
        %761 = vmatpush.bf16.msra.mxu0 0
        %762 = vmatpush.bf16.msra.mxu0 %v737
        %763 = vmatpush.bf16.msra.mxu0 %v736
        %764 = vmatmul.bf16.gmra.mxu0 %v742
        %v765 = vpop.f32.mrf.mxu0
        %v766 = vadd.f32 %v701, %v765
        %v767 = vpop.f32.mrf.mxu0
        %v768 = vadd.f32 %v701, %v767
        %769 = vmatmul.bf16.gmra.mxu0 %v745
        %v770 = vpop.f32.mrf.mxu0
        %v771 = vadd.f32 %v701, %v770
        %v772 = vpop.f32.mrf.mxu0
        %v773 = vadd.f32 %v701, %v772
        %774 = vmatmul.bf16.gmra.mxu0 %v748
        %v775 = vpop.f32.mrf.mxu0
        %v776 = vadd.f32 %v701, %v775
        %v777 = vpop.f32.mrf.mxu0
        %v778 = vadd.f32 %v701, %v777
        %779 = vmatmul.bf16.gmra.mxu0 %v751
        %v780 = vpop.f32.mrf.mxu0
        %v781 = vadd.f32 %v701, %v780
        %v782 = vpop.f32.mrf.mxu0
        %v783 = vadd.f32 %v701, %v782
        %784 = vmatmul.bf16.gmra.mxu0 %v754
        %v785 = vpop.f32.mrf.mxu0
        %v786 = vadd.f32 %v701, %v785
        %v787 = vpop.f32.mrf.mxu0
        %v788 = vadd.f32 %v701, %v787
        %789 = vdwg.mxu0
        %v790 = vmul.f32 %v766, 0.17677669
        %v791 = vmul.f32 %v768, 0.17677669
        %v792 = vmul.f32 %v771, 0.17677669
        %v793 = vmul.f32 %v773, 0.17677669
        %v794 = vmul.f32 %v776, 0.17677669
        %v795 = vmul.f32 %v778, 0.17677669
        %v796 = vmul.f32 %v781, 0.17677669
        %v797 = vmul.f32 %v783, 0.17677669
        %v798 = vmul.f32 %v786, 0.17677669
        %v799 = vmul.f32 %v788, 0.17677669
        %810 = vrot.lane.b32.xlu0 %v790, 119
        %v811 = vpop.permute.xlu0 %810
        %812 = vrot.lane.b32.xlu0 %v791, 119
        %v813 = vpop.permute.xlu0 %812
        %814 = vrot.lane.b32.xlu0 %v792, 119
        %v815 = vpop.permute.xlu0 %814
        %816 = vrot.lane.b32.xlu0 %v793, 119
        %v817 = vpop.permute.xlu0 %816
        %818 = vrot.lane.b32.xlu0 %v794, 119
        %v819 = vpop.permute.xlu0 %818
        %820 = vrot.lane.b32.xlu0 %v795, 119
        %v821 = vpop.permute.xlu0 %820
        %822 = vrot.lane.b32.xlu0 %v796, 119
        %v823 = vpop.permute.xlu0 %822
        %824 = vrot.lane.b32.xlu0 %v797, 119
        %v825 = vpop.permute.xlu0 %824
        %826 = vrot.lane.b32.xlu0 %v798, 119
        %v827 = vpop.permute.xlu0 %826
        %828 = vrot.lane.b32.xlu0 %v799, 119
        %v829 = vpop.permute.xlu0 %828
        %v840 = vmax.f32 %v790, %v811
        %v841 = vmax.f32 %v791, %v813
        %v842 = vmax.f32 %v792, %v815
        %v843 = vmax.f32 %v793, %v817
        %v844 = vmax.f32 %v794, %v819
        %v845 = vmax.f32 %v795, %v821
        %v846 = vmax.f32 %v796, %v823
        %v847 = vmax.f32 %v797, %v825
        %v848 = vmax.f32 %v798, %v827
        %v849 = vmax.f32 %v799, %v829
        %850 = vrot.lane.b32.xlu0 %v790, 110
        %v851 = vpop.permute.xlu0 %850
        %852 = vrot.lane.b32.xlu0 %v791, 110
        %v853 = vpop.permute.xlu0 %852
        %854 = vrot.lane.b32.xlu0 %v792, 110
        %v855 = vpop.permute.xlu0 %854
        %856 = vrot.lane.b32.xlu0 %v793, 110
        %v857 = vpop.permute.xlu0 %856
        %858 = vrot.lane.b32.xlu0 %v794, 110
        %v859 = vpop.permute.xlu0 %858
        %860 = vrot.lane.b32.xlu0 %v795, 110
        %v861 = vpop.permute.xlu0 %860
        %862 = vrot.lane.b32.xlu0 %v796, 110
        %v863 = vpop.permute.xlu0 %862
        %864 = vrot.lane.b32.xlu0 %v797, 110
        %v865 = vpop.permute.xlu0 %864
        %866 = vrot.lane.b32.xlu0 %v798, 110
        %v867 = vpop.permute.xlu0 %866
        %868 = vrot.lane.b32.xlu0 %v799, 110
        %v869 = vpop.permute.xlu0 %868
        %v880 = vmax.f32 %v840, %v851
        %v881 = vmax.f32 %v841, %v853
        %v882 = vmax.f32 %v842, %v855
        %v883 = vmax.f32 %v843, %v857
        %v884 = vmax.f32 %v844, %v859
        %v885 = vmax.f32 %v845, %v861
        %v886 = vmax.f32 %v846, %v863
        %v887 = vmax.f32 %v847, %v865
        %v888 = vmax.f32 %v848, %v867
        %v889 = vmax.f32 %v849, %v869
        %890 = vrot.lane.b32.xlu0 %v790, 101
        %v891 = vpop.permute.xlu0 %890
        %892 = vrot.lane.b32.xlu0 %v791, 101
        %v893 = vpop.permute.xlu0 %892
        %894 = vrot.lane.b32.xlu0 %v792, 101
        %v895 = vpop.permute.xlu0 %894
        %896 = vrot.lane.b32.xlu0 %v793, 101
        %v897 = vpop.permute.xlu0 %896
        %898 = vrot.lane.b32.xlu0 %v794, 101
        %v899 = vpop.permute.xlu0 %898
        %900 = vrot.lane.b32.xlu0 %v795, 101
        %v901 = vpop.permute.xlu0 %900
        %902 = vrot.lane.b32.xlu0 %v796, 101
        %v903 = vpop.permute.xlu0 %902
        %904 = vrot.lane.b32.xlu0 %v797, 101
        %v905 = vpop.permute.xlu0 %904
        %906 = vrot.lane.b32.xlu0 %v798, 101
        %v907 = vpop.permute.xlu0 %906
        %908 = vrot.lane.b32.xlu0 %v799, 101
        %v909 = vpop.permute.xlu0 %908
        %v920 = vmax.f32 %v880, %v891
        %v921 = vmax.f32 %v881, %v893
        %v922 = vmax.f32 %v882, %v895
        %v923 = vmax.f32 %v883, %v897
        %v924 = vmax.f32 %v884, %v899
        %v925 = vmax.f32 %v885, %v901
        %v926 = vmax.f32 %v886, %v903
        %v927 = vmax.f32 %v887, %v905
        %v928 = vmax.f32 %v888, %v907
        %v929 = vmax.f32 %v889, %v909
        %930 = vrot.lane.b32.xlu0 %v790, 92
        %v931 = vpop.permute.xlu0 %930
        %932 = vrot.lane.b32.xlu0 %v791, 92
        %v933 = vpop.permute.xlu0 %932
        %934 = vrot.lane.b32.xlu0 %v792, 92
        %v935 = vpop.permute.xlu0 %934
        %936 = vrot.lane.b32.xlu0 %v793, 92
        %v937 = vpop.permute.xlu0 %936
        %938 = vrot.lane.b32.xlu0 %v794, 92
        %v939 = vpop.permute.xlu0 %938
        %940 = vrot.lane.b32.xlu0 %v795, 92
        %v941 = vpop.permute.xlu0 %940
        %942 = vrot.lane.b32.xlu0 %v796, 92
        %v943 = vpop.permute.xlu0 %942
        %944 = vrot.lane.b32.xlu0 %v797, 92
        %v945 = vpop.permute.xlu0 %944
        %946 = vrot.lane.b32.xlu0 %v798, 92
        %v947 = vpop.permute.xlu0 %946
        %948 = vrot.lane.b32.xlu0 %v799, 92
        %v949 = vpop.permute.xlu0 %948
        %v960 = vmax.f32 %v920, %v931
        %v961 = vmax.f32 %v921, %v933
        %v962 = vmax.f32 %v922, %v935
        %v963 = vmax.f32 %v923, %v937
        %v964 = vmax.f32 %v924, %v939
        %v965 = vmax.f32 %v925, %v941
        %v966 = vmax.f32 %v926, %v943
        %v967 = vmax.f32 %v927, %v945
        %v968 = vmax.f32 %v928, %v947
        %v969 = vmax.f32 %v929, %v949
        %970 = vrot.lane.b32.xlu0 %v790, 83
        %v971 = vpop.permute.xlu0 %970
        %972 = vrot.lane.b32.xlu0 %v791, 83
        %v973 = vpop.permute.xlu0 %972
        %974 = vrot.lane.b32.xlu0 %v792, 83
        %v975 = vpop.permute.xlu0 %974
        %976 = vrot.lane.b32.xlu0 %v793, 83
        %v977 = vpop.permute.xlu0 %976
        %978 = vrot.lane.b32.xlu0 %v794, 83
        %v979 = vpop.permute.xlu0 %978
        %980 = vrot.lane.b32.xlu0 %v795, 83
        %v981 = vpop.permute.xlu0 %980
        %982 = vrot.lane.b32.xlu0 %v796, 83
        %v983 = vpop.permute.xlu0 %982
        %984 = vrot.lane.b32.xlu0 %v797, 83
        %v985 = vpop.permute.xlu0 %984
        %986 = vrot.lane.b32.xlu0 %v798, 83
        %v987 = vpop.permute.xlu0 %986
        %988 = vrot.lane.b32.xlu0 %v799, 83
        %v989 = vpop.permute.xlu0 %988
        %v1000 = vmax.f32 %v960, %v971
        %v1001 = vmax.f32 %v961, %v973
        %v1002 = vmax.f32 %v962, %v975
        %v1003 = vmax.f32 %v963, %v977
        %v1004 = vmax.f32 %v964, %v979
        %v1005 = vmax.f32 %v965, %v981
        %v1006 = vmax.f32 %v966, %v983
        %v1007 = vmax.f32 %v967, %v985
        %v1008 = vmax.f32 %v968, %v987
        %v1009 = vmax.f32 %v969, %v989
        %1010 = vrot.lane.b32.xlu0 %v790, 74
        %v1011 = vpop.permute.xlu0 %1010
        %1012 = vrot.lane.b32.xlu0 %v791, 74
        %v1013 = vpop.permute.xlu0 %1012
        %1014 = vrot.lane.b32.xlu0 %v792, 74
        %v1015 = vpop.permute.xlu0 %1014
        %1016 = vrot.lane.b32.xlu0 %v793, 74
        %v1017 = vpop.permute.xlu0 %1016
        %1018 = vrot.lane.b32.xlu0 %v794, 74
        %v1019 = vpop.permute.xlu0 %1018
        %1020 = vrot.lane.b32.xlu0 %v795, 74
        %v1021 = vpop.permute.xlu0 %1020
        %1022 = vrot.lane.b32.xlu0 %v796, 74
        %v1023 = vpop.permute.xlu0 %1022
        %1024 = vrot.lane.b32.xlu0 %v797, 74
        %v1025 = vpop.permute.xlu0 %1024
        %1026 = vrot.lane.b32.xlu0 %v798, 74
        %v1027 = vpop.permute.xlu0 %1026
        %1028 = vrot.lane.b32.xlu0 %v799, 74
        %v1029 = vpop.permute.xlu0 %1028
        %v1040 = vmax.f32 %v1000, %v1011
        %v1041 = vmax.f32 %v1001, %v1013
        %v1042 = vmax.f32 %v1002, %v1015
        %v1043 = vmax.f32 %v1003, %v1017
        %v1044 = vmax.f32 %v1004, %v1019
        %v1045 = vmax.f32 %v1005, %v1021
        %v1046 = vmax.f32 %v1006, %v1023
        %v1047 = vmax.f32 %v1007, %v1025
        %v1048 = vmax.f32 %v1008, %v1027
        %v1049 = vmax.f32 %v1009, %v1029
        %1050 = vrot.lane.b32.xlu0 %v790, 65
        %v1051 = vpop.permute.xlu0 %1050
        %1052 = vrot.lane.b32.xlu0 %v791, 65
        %v1053 = vpop.permute.xlu0 %1052
        %1054 = vrot.lane.b32.xlu0 %v792, 65
        %v1055 = vpop.permute.xlu0 %1054
        %1056 = vrot.lane.b32.xlu0 %v793, 65
        %v1057 = vpop.permute.xlu0 %1056
        %1058 = vrot.lane.b32.xlu0 %v794, 65
        %v1059 = vpop.permute.xlu0 %1058
        %1060 = vrot.lane.b32.xlu0 %v795, 65
        %v1061 = vpop.permute.xlu0 %1060
        %1062 = vrot.lane.b32.xlu0 %v796, 65
        %v1063 = vpop.permute.xlu0 %1062
        %1064 = vrot.lane.b32.xlu0 %v797, 65
        %v1065 = vpop.permute.xlu0 %1064
        %1066 = vrot.lane.b32.xlu0 %v798, 65
        %v1067 = vpop.permute.xlu0 %1066
        %1068 = vrot.lane.b32.xlu0 %v799, 65
        %v1069 = vpop.permute.xlu0 %1068
        %v1080 = vmax.f32 %v1040, %v1051
        %v1081 = vmax.f32 %v1041, %v1053
        %v1082 = vmax.f32 %v1042, %v1055
        %v1083 = vmax.f32 %v1043, %v1057
        %v1084 = vmax.f32 %v1044, %v1059
        %v1085 = vmax.f32 %v1045, %v1061
        %v1086 = vmax.f32 %v1046, %v1063
        %v1087 = vmax.f32 %v1047, %v1065
        %v1088 = vmax.f32 %v1048, %v1067
        %v1089 = vmax.f32 %v1049, %v1069
        %1090 = vrot.lane.b32.xlu0 %v790, 56
        %v1091 = vpop.permute.xlu0 %1090
        %1092 = vrot.lane.b32.xlu0 %v791, 56
        %v1093 = vpop.permute.xlu0 %1092
        %1094 = vrot.lane.b32.xlu0 %v792, 56
        %v1095 = vpop.permute.xlu0 %1094
        %1096 = vrot.lane.b32.xlu0 %v793, 56
        %v1097 = vpop.permute.xlu0 %1096
        %1098 = vrot.lane.b32.xlu0 %v794, 56
        %v1099 = vpop.permute.xlu0 %1098
        %1100 = vrot.lane.b32.xlu0 %v795, 56
        %v1101 = vpop.permute.xlu0 %1100
        %1102 = vrot.lane.b32.xlu0 %v796, 56
        %v1103 = vpop.permute.xlu0 %1102
        %1104 = vrot.lane.b32.xlu0 %v797, 56
        %v1105 = vpop.permute.xlu0 %1104
        %1106 = vrot.lane.b32.xlu0 %v798, 56
        %v1107 = vpop.permute.xlu0 %1106
        %1108 = vrot.lane.b32.xlu0 %v799, 56
        %v1109 = vpop.permute.xlu0 %1108
        %v1120 = vmax.f32 %v1080, %v1091
        %v1121 = vmax.f32 %v1081, %v1093
        %v1122 = vmax.f32 %v1082, %v1095
        %v1123 = vmax.f32 %v1083, %v1097
        %v1124 = vmax.f32 %v1084, %v1099
        %v1125 = vmax.f32 %v1085, %v1101
        %v1126 = vmax.f32 %v1086, %v1103
        %v1127 = vmax.f32 %v1087, %v1105
        %v1128 = vmax.f32 %v1088, %v1107
        %v1129 = vmax.f32 %v1089, %v1109
        %v1130 = vsub.f32 %v790, %v1120
        %v1131 = vsub.f32 %v791, %v1121
        %v1132 = vsub.f32 %v792, %v1122
        %v1133 = vsub.f32 %v793, %v1123
        %v1134 = vsub.f32 %v794, %v1124
        %v1135 = vsub.f32 %v795, %v1125
        %v1136 = vsub.f32 %v796, %v1126
        %v1137 = vsub.f32 %v797, %v1127
        %v1138 = vsub.f32 %v798, %v1128
        %v1139 = vsub.f32 %v799, %v1129
        %v1140 = vmul.f32 %v1130, 1.442695
        %v1141 = vpow.pop %v1140
        %v1142 = vmul.f32 %v1131, 1.442695
        %v1143 = vpow.pop %v1142
        %v1144 = vmul.f32 %v1132, 1.442695
        %v1145 = vpow.pop %v1144
        %v1146 = vmul.f32 %v1133, 1.442695
        %v1147 = vpow.pop %v1146
        %v1148 = vmul.f32 %v1134, 1.442695
        %v1149 = vpow.pop %v1148
        %v1150 = vmul.f32 %v1135, 1.442695
        %v1151 = vpow.pop %v1150
        %v1152 = vmul.f32 %v1136, 1.442695
        %v1153 = vpow.pop %v1152
        %v1154 = vmul.f32 %v1137, 1.442695
        %v1155 = vpow.pop %v1154
        %v1156 = vmul.f32 %v1138, 1.442695
        %v1157 = vpow.pop %v1156
        %v1158 = vmul.f32 %v1139, 1.442695
        %v1159 = vpow.pop %v1158
        %1170 = vrot.lane.b32.xlu0 %v1120, 9
        %v1171 = vpop.permute.xlu0 %1170
        %1172 = vrot.lane.b32.xlu0 %v1121, 9
        %v1173 = vpop.permute.xlu0 %1172
        %1174 = vrot.lane.b32.xlu0 %v1122, 9
        %v1175 = vpop.permute.xlu0 %1174
        %1176 = vrot.lane.b32.xlu0 %v1123, 9
        %v1177 = vpop.permute.xlu0 %1176
        %1178 = vrot.lane.b32.xlu0 %v1124, 9
        %v1179 = vpop.permute.xlu0 %1178
        %1180 = vrot.lane.b32.xlu0 %v1125, 9
        %v1181 = vpop.permute.xlu0 %1180
        %1182 = vrot.lane.b32.xlu0 %v1126, 9
        %v1183 = vpop.permute.xlu0 %1182
        %1184 = vrot.lane.b32.xlu0 %v1127, 9
        %v1185 = vpop.permute.xlu0 %1184
        %1186 = vrot.lane.b32.xlu0 %v1128, 9
        %v1187 = vpop.permute.xlu0 %1186
        %1188 = vrot.lane.b32.xlu0 %v1129, 9
        %v1189 = vpop.permute.xlu0 %1188
        %v1200 = vsub.f32 %v790, %v1171
        %v1201 = vsub.f32 %v791, %v1173
        %v1202 = vsub.f32 %v792, %v1175
        %v1203 = vsub.f32 %v793, %v1177
        %v1204 = vsub.f32 %v794, %v1179
        %v1205 = vsub.f32 %v795, %v1181
        %v1206 = vsub.f32 %v796, %v1183
        %v1207 = vsub.f32 %v797, %v1185
        %v1208 = vsub.f32 %v798, %v1187
        %v1209 = vsub.f32 %v799, %v1189
        %v1210 = vmul.f32 %v1200, 1.442695
        %v1211 = vpow.pop %v1210
        %v1212 = vmul.f32 %v1201, 1.442695
        %v1213 = vpow.pop %v1212
        %v1214 = vmul.f32 %v1202, 1.442695
        %v1215 = vpow.pop %v1214
        %v1216 = vmul.f32 %v1203, 1.442695
        %v1217 = vpow.pop %v1216
        %v1218 = vmul.f32 %v1204, 1.442695
        %v1219 = vpow.pop %v1218
        %v1220 = vmul.f32 %v1205, 1.442695
        %v1221 = vpow.pop %v1220
        %v1222 = vmul.f32 %v1206, 1.442695
        %v1223 = vpow.pop %v1222
        %v1224 = vmul.f32 %v1207, 1.442695
        %v1225 = vpow.pop %v1224
        %v1226 = vmul.f32 %v1208, 1.442695
        %v1227 = vpow.pop %v1226
        %v1228 = vmul.f32 %v1209, 1.442695
        %v1229 = vpow.pop %v1228
        %1230 = vrot.lane.b32.xlu0 %v1120, 18
        %v1231 = vpop.permute.xlu0 %1230
        %1232 = vrot.lane.b32.xlu0 %v1121, 18
        %v1233 = vpop.permute.xlu0 %1232
        %1234 = vrot.lane.b32.xlu0 %v1122, 18
        %v1235 = vpop.permute.xlu0 %1234
        %1236 = vrot.lane.b32.xlu0 %v1123, 18
        %v1237 = vpop.permute.xlu0 %1236
        %1238 = vrot.lane.b32.xlu0 %v1124, 18
        %v1239 = vpop.permute.xlu0 %1238
        %1240 = vrot.lane.b32.xlu0 %v1125, 18
        %v1241 = vpop.permute.xlu0 %1240
        %1242 = vrot.lane.b32.xlu0 %v1126, 18
        %v1243 = vpop.permute.xlu0 %1242
        %1244 = vrot.lane.b32.xlu0 %v1127, 18
        %v1245 = vpop.permute.xlu0 %1244
        %1246 = vrot.lane.b32.xlu0 %v1128, 18
        %v1247 = vpop.permute.xlu0 %1246
        %1248 = vrot.lane.b32.xlu0 %v1129, 18
        %v1249 = vpop.permute.xlu0 %1248
        %v1260 = vsub.f32 %v790, %v1231
        %v1261 = vsub.f32 %v791, %v1233
        %v1262 = vsub.f32 %v792, %v1235
        %v1263 = vsub.f32 %v793, %v1237
        %v1264 = vsub.f32 %v794, %v1239
        %v1265 = vsub.f32 %v795, %v1241
        %v1266 = vsub.f32 %v796, %v1243
        %v1267 = vsub.f32 %v797, %v1245
        %v1268 = vsub.f32 %v798, %v1247
        %v1269 = vsub.f32 %v799, %v1249
        %v1270 = vmul.f32 %v1260, 1.442695
        %v1271 = vpow.pop %v1270
        %v1272 = vmul.f32 %v1261, 1.442695
        %v1273 = vpow.pop %v1272
        %v1274 = vmul.f32 %v1262, 1.442695
        %v1275 = vpow.pop %v1274
        %v1276 = vmul.f32 %v1263, 1.442695
        %v1277 = vpow.pop %v1276
        %v1278 = vmul.f32 %v1264, 1.442695
        %v1279 = vpow.pop %v1278
        %v1280 = vmul.f32 %v1265, 1.442695
        %v1281 = vpow.pop %v1280
        %v1282 = vmul.f32 %v1266, 1.442695
        %v1283 = vpow.pop %v1282
        %v1284 = vmul.f32 %v1267, 1.442695
        %v1285 = vpow.pop %v1284
        %v1286 = vmul.f32 %v1268, 1.442695
        %v1287 = vpow.pop %v1286
        %v1288 = vmul.f32 %v1269, 1.442695
        %v1289 = vpow.pop %v1288
        %1290 = vrot.lane.b32.xlu0 %v1120, 27
        %v1291 = vpop.permute.xlu0 %1290
        %1292 = vrot.lane.b32.xlu0 %v1121, 27
        %v1293 = vpop.permute.xlu0 %1292
        %1294 = vrot.lane.b32.xlu0 %v1122, 27
        %v1295 = vpop.permute.xlu0 %1294
        %1296 = vrot.lane.b32.xlu0 %v1123, 27
        %v1297 = vpop.permute.xlu0 %1296
        %1298 = vrot.lane.b32.xlu0 %v1124, 27
        %v1299 = vpop.permute.xlu0 %1298
        %1300 = vrot.lane.b32.xlu0 %v1125, 27
        %v1301 = vpop.permute.xlu0 %1300
        %1302 = vrot.lane.b32.xlu0 %v1126, 27
        %v1303 = vpop.permute.xlu0 %1302
        %1304 = vrot.lane.b32.xlu0 %v1127, 27
        %v1305 = vpop.permute.xlu0 %1304
        %1306 = vrot.lane.b32.xlu0 %v1128, 27
        %v1307 = vpop.permute.xlu0 %1306
        %1308 = vrot.lane.b32.xlu0 %v1129, 27
        %v1309 = vpop.permute.xlu0 %1308
        %v1320 = vsub.f32 %v790, %v1291
        %v1321 = vsub.f32 %v791, %v1293
        %v1322 = vsub.f32 %v792, %v1295
        %v1323 = vsub.f32 %v793, %v1297
        %v1324 = vsub.f32 %v794, %v1299
        %v1325 = vsub.f32 %v795, %v1301
        %v1326 = vsub.f32 %v796, %v1303
        %v1327 = vsub.f32 %v797, %v1305
        %v1328 = vsub.f32 %v798, %v1307
        %v1329 = vsub.f32 %v799, %v1309
        %v1330 = vmul.f32 %v1320, 1.442695
        %v1331 = vpow.pop %v1330
        %v1332 = vmul.f32 %v1321, 1.442695
        %v1333 = vpow.pop %v1332
        %v1334 = vmul.f32 %v1322, 1.442695
        %v1335 = vpow.pop %v1334
        %v1336 = vmul.f32 %v1323, 1.442695
        %v1337 = vpow.pop %v1336
        %v1338 = vmul.f32 %v1324, 1.442695
        %v1339 = vpow.pop %v1338
        %v1340 = vmul.f32 %v1325, 1.442695
        %v1341 = vpow.pop %v1340
        %v1342 = vmul.f32 %v1326, 1.442695
        %v1343 = vpow.pop %v1342
        %v1344 = vmul.f32 %v1327, 1.442695
        %v1345 = vpow.pop %v1344
        %v1346 = vmul.f32 %v1328, 1.442695
        %v1347 = vpow.pop %v1346
        %v1348 = vmul.f32 %v1329, 1.442695
        %v1349 = vpow.pop %v1348
        %1350 = vrot.lane.b32.xlu0 %v1120, 36
        %v1351 = vpop.permute.xlu0 %1350
        %1352 = vrot.lane.b32.xlu0 %v1121, 36
        %v1353 = vpop.permute.xlu0 %1352
        %1354 = vrot.lane.b32.xlu0 %v1122, 36
        %v1355 = vpop.permute.xlu0 %1354
        %1356 = vrot.lane.b32.xlu0 %v1123, 36
        %v1357 = vpop.permute.xlu0 %1356
        %1358 = vrot.lane.b32.xlu0 %v1124, 36
        %v1359 = vpop.permute.xlu0 %1358
        %1360 = vrot.lane.b32.xlu0 %v1125, 36
        %v1361 = vpop.permute.xlu0 %1360
        %1362 = vrot.lane.b32.xlu0 %v1126, 36
        %v1363 = vpop.permute.xlu0 %1362
        %1364 = vrot.lane.b32.xlu0 %v1127, 36
        %v1365 = vpop.permute.xlu0 %1364
        %1366 = vrot.lane.b32.xlu0 %v1128, 36
        %v1367 = vpop.permute.xlu0 %1366
        %1368 = vrot.lane.b32.xlu0 %v1129, 36
        %v1369 = vpop.permute.xlu0 %1368
        %v1380 = vsub.f32 %v790, %v1351
        %v1381 = vsub.f32 %v791, %v1353
        %v1382 = vsub.f32 %v792, %v1355
        %v1383 = vsub.f32 %v793, %v1357
        %v1384 = vsub.f32 %v794, %v1359
        %v1385 = vsub.f32 %v795, %v1361
        %v1386 = vsub.f32 %v796, %v1363
        %v1387 = vsub.f32 %v797, %v1365
        %v1388 = vsub.f32 %v798, %v1367
        %v1389 = vsub.f32 %v799, %v1369
        %v1390 = vmul.f32 %v1380, 1.442695
        %v1391 = vpow.pop %v1390
        %v1392 = vmul.f32 %v1381, 1.442695
        %v1393 = vpow.pop %v1392
        %v1394 = vmul.f32 %v1382, 1.442695
        %v1395 = vpow.pop %v1394
        %v1396 = vmul.f32 %v1383, 1.442695
        %v1397 = vpow.pop %v1396
        %v1398 = vmul.f32 %v1384, 1.442695
        %v1399 = vpow.pop %v1398
        %v1400 = vmul.f32 %v1385, 1.442695
        %v1401 = vpow.pop %v1400
        %v1402 = vmul.f32 %v1386, 1.442695
        %v1403 = vpow.pop %v1402
        %v1404 = vmul.f32 %v1387, 1.442695
        %v1405 = vpow.pop %v1404
        %v1406 = vmul.f32 %v1388, 1.442695
        %v1407 = vpow.pop %v1406
        %v1408 = vmul.f32 %v1389, 1.442695
        %v1409 = vpow.pop %v1408
        %1410 = vrot.lane.b32.xlu0 %v1120, 45
        %v1411 = vpop.permute.xlu0 %1410
        %1412 = vrot.lane.b32.xlu0 %v1121, 45
        %v1413 = vpop.permute.xlu0 %1412
        %1414 = vrot.lane.b32.xlu0 %v1122, 45
        %v1415 = vpop.permute.xlu0 %1414
        %1416 = vrot.lane.b32.xlu0 %v1123, 45
        %v1417 = vpop.permute.xlu0 %1416
        %1418 = vrot.lane.b32.xlu0 %v1124, 45
        %v1419 = vpop.permute.xlu0 %1418
        %1420 = vrot.lane.b32.xlu0 %v1125, 45
        %v1421 = vpop.permute.xlu0 %1420
        %1422 = vrot.lane.b32.xlu0 %v1126, 45
        %v1423 = vpop.permute.xlu0 %1422
        %1424 = vrot.lane.b32.xlu0 %v1127, 45
        %v1425 = vpop.permute.xlu0 %1424
        %1426 = vrot.lane.b32.xlu0 %v1128, 45
        %v1427 = vpop.permute.xlu0 %1426
        %1428 = vrot.lane.b32.xlu0 %v1129, 45
        %v1429 = vpop.permute.xlu0 %1428
        %v1440 = vsub.f32 %v790, %v1411
        %v1441 = vsub.f32 %v791, %v1413
        %v1442 = vsub.f32 %v792, %v1415
        %v1443 = vsub.f32 %v793, %v1417
        %v1444 = vsub.f32 %v794, %v1419
        %v1445 = vsub.f32 %v795, %v1421
        %v1446 = vsub.f32 %v796, %v1423
        %v1447 = vsub.f32 %v797, %v1425
        %v1448 = vsub.f32 %v798, %v1427
        %v1449 = vsub.f32 %v799, %v1429
        %v1450 = vmul.f32 %v1440, 1.442695
        %v1451 = vpow.pop %v1450
        %v1452 = vmul.f32 %v1441, 1.442695
        %v1453 = vpow.pop %v1452
        %v1454 = vmul.f32 %v1442, 1.442695
        %v1455 = vpow.pop %v1454
        %v1456 = vmul.f32 %v1443, 1.442695
        %v1457 = vpow.pop %v1456
        %v1458 = vmul.f32 %v1444, 1.442695
        %v1459 = vpow.pop %v1458
        %v1460 = vmul.f32 %v1445, 1.442695
        %v1461 = vpow.pop %v1460
        %v1462 = vmul.f32 %v1446, 1.442695
        %v1463 = vpow.pop %v1462
        %v1464 = vmul.f32 %v1447, 1.442695
        %v1465 = vpow.pop %v1464
        %v1466 = vmul.f32 %v1448, 1.442695
        %v1467 = vpow.pop %v1466
        %v1468 = vmul.f32 %v1449, 1.442695
        %v1469 = vpow.pop %v1468
        %1470 = vrot.lane.b32.xlu0 %v1120, 54
        %v1471 = vpop.permute.xlu0 %1470
        %1472 = vrot.lane.b32.xlu0 %v1121, 54
        %v1473 = vpop.permute.xlu0 %1472
        %1474 = vrot.lane.b32.xlu0 %v1122, 54
        %v1475 = vpop.permute.xlu0 %1474
        %1476 = vrot.lane.b32.xlu0 %v1123, 54
        %v1477 = vpop.permute.xlu0 %1476
        %1478 = vrot.lane.b32.xlu0 %v1124, 54
        %v1479 = vpop.permute.xlu0 %1478
        %1480 = vrot.lane.b32.xlu0 %v1125, 54
        %v1481 = vpop.permute.xlu0 %1480
        %1482 = vrot.lane.b32.xlu0 %v1126, 54
        %v1483 = vpop.permute.xlu0 %1482
        %1484 = vrot.lane.b32.xlu0 %v1127, 54
        %v1485 = vpop.permute.xlu0 %1484
        %1486 = vrot.lane.b32.xlu0 %v1128, 54
        %v1487 = vpop.permute.xlu0 %1486
        %1488 = vrot.lane.b32.xlu0 %v1129, 54
        %v1489 = vpop.permute.xlu0 %1488
        %v1500 = vsub.f32 %v790, %v1471
        %v1501 = vsub.f32 %v791, %v1473
        %v1502 = vsub.f32 %v792, %v1475
        %v1503 = vsub.f32 %v793, %v1477
        %v1504 = vsub.f32 %v794, %v1479
        %v1505 = vsub.f32 %v795, %v1481
        %v1506 = vsub.f32 %v796, %v1483
        %v1507 = vsub.f32 %v797, %v1485
        %v1508 = vsub.f32 %v798, %v1487
        %v1509 = vsub.f32 %v799, %v1489
        %v1510 = vmul.f32 %v1500, 1.442695
        %v1511 = vpow.pop %v1510
        %v1512 = vmul.f32 %v1501, 1.442695
        %v1513 = vpow.pop %v1512
        %v1514 = vmul.f32 %v1502, 1.442695
        %v1515 = vpow.pop %v1514
        %v1516 = vmul.f32 %v1503, 1.442695
        %v1517 = vpow.pop %v1516
        %v1518 = vmul.f32 %v1504, 1.442695
        %v1519 = vpow.pop %v1518
        %v1520 = vmul.f32 %v1505, 1.442695
        %v1521 = vpow.pop %v1520
        %v1522 = vmul.f32 %v1506, 1.442695
        %v1523 = vpow.pop %v1522
        %v1524 = vmul.f32 %v1507, 1.442695
        %v1525 = vpow.pop %v1524
        %v1526 = vmul.f32 %v1508, 1.442695
        %v1527 = vpow.pop %v1526
        %v1528 = vmul.f32 %v1509, 1.442695
        %v1529 = vpow.pop %v1528
        %1530 = vrot.lane.b32.xlu0 %v1120, 63
        %v1531 = vpop.permute.xlu0 %1530
        %1532 = vrot.lane.b32.xlu0 %v1121, 63
        %v1533 = vpop.permute.xlu0 %1532
        %1534 = vrot.lane.b32.xlu0 %v1122, 63
        %v1535 = vpop.permute.xlu0 %1534
        %1536 = vrot.lane.b32.xlu0 %v1123, 63
        %v1537 = vpop.permute.xlu0 %1536
        %1538 = vrot.lane.b32.xlu0 %v1124, 63
        %v1539 = vpop.permute.xlu0 %1538
        %1540 = vrot.lane.b32.xlu0 %v1125, 63
        %v1541 = vpop.permute.xlu0 %1540
        %1542 = vrot.lane.b32.xlu0 %v1126, 63
        %v1543 = vpop.permute.xlu0 %1542
        %1544 = vrot.lane.b32.xlu0 %v1127, 63
        %v1545 = vpop.permute.xlu0 %1544
        %1546 = vrot.lane.b32.xlu0 %v1128, 63
        %v1547 = vpop.permute.xlu0 %1546
        %1548 = vrot.lane.b32.xlu0 %v1129, 63
        %v1549 = vpop.permute.xlu0 %1548
        %v1560 = vsub.f32 %v790, %v1531
        %v1561 = vsub.f32 %v791, %v1533
        %v1562 = vsub.f32 %v792, %v1535
        %v1563 = vsub.f32 %v793, %v1537
        %v1564 = vsub.f32 %v794, %v1539
        %v1565 = vsub.f32 %v795, %v1541
        %v1566 = vsub.f32 %v796, %v1543
        %v1567 = vsub.f32 %v797, %v1545
        %v1568 = vsub.f32 %v798, %v1547
        %v1569 = vsub.f32 %v799, %v1549
        %v1570 = vmul.f32 %v1560, 1.442695
        %v1571 = vpow.pop %v1570
        %v1572 = vmul.f32 %v1561, 1.442695
        %v1573 = vpow.pop %v1572
        %v1574 = vmul.f32 %v1562, 1.442695
        %v1575 = vpow.pop %v1574
        %v1576 = vmul.f32 %v1563, 1.442695
        %v1577 = vpow.pop %v1576
        %v1578 = vmul.f32 %v1564, 1.442695
        %v1579 = vpow.pop %v1578
        %v1580 = vmul.f32 %v1565, 1.442695
        %v1581 = vpow.pop %v1580
        %v1582 = vmul.f32 %v1566, 1.442695
        %v1583 = vpow.pop %v1582
        %v1584 = vmul.f32 %v1567, 1.442695
        %v1585 = vpow.pop %v1584
        %v1586 = vmul.f32 %v1568, 1.442695
        %v1587 = vpow.pop %v1586
        %v1588 = vmul.f32 %v1569, 1.442695
        %v1589 = vpow.pop %v1588
        %1590 = vrot.lane.b32.xlu0 %v1120, 72
        %v1591 = vpop.permute.xlu0 %1590
        %1592 = vrot.lane.b32.xlu0 %v1121, 72
        %v1593 = vpop.permute.xlu0 %1592
        %1594 = vrot.lane.b32.xlu0 %v1122, 72
        %v1595 = vpop.permute.xlu0 %1594
        %1596 = vrot.lane.b32.xlu0 %v1123, 72
        %v1597 = vpop.permute.xlu0 %1596
        %1598 = vrot.lane.b32.xlu0 %v1124, 72
        %v1599 = vpop.permute.xlu0 %1598
        %1600 = vrot.lane.b32.xlu0 %v1125, 72
        %v1601 = vpop.permute.xlu0 %1600
        %1602 = vrot.lane.b32.xlu0 %v1126, 72
        %v1603 = vpop.permute.xlu0 %1602
        %1604 = vrot.lane.b32.xlu0 %v1127, 72
        %v1605 = vpop.permute.xlu0 %1604
        %1606 = vrot.lane.b32.xlu0 %v1128, 72
        %v1607 = vpop.permute.xlu0 %1606
        %1608 = vrot.lane.b32.xlu0 %v1129, 72
        %v1609 = vpop.permute.xlu0 %1608
        %v1620 = vsub.f32 %v790, %v1591
        %v1621 = vsub.f32 %v791, %v1593
        %v1622 = vsub.f32 %v792, %v1595
        %v1623 = vsub.f32 %v793, %v1597
        %v1624 = vsub.f32 %v794, %v1599
        %v1625 = vsub.f32 %v795, %v1601
        %v1626 = vsub.f32 %v796, %v1603
        %v1627 = vsub.f32 %v797, %v1605
        %v1628 = vsub.f32 %v798, %v1607
        %v1629 = vsub.f32 %v799, %v1609
        %v1630 = vmul.f32 %v1620, 1.442695
        %v1631 = vpow.pop %v1630
        %v1632 = vmul.f32 %v1621, 1.442695
        %v1633 = vpow.pop %v1632
        %v1634 = vmul.f32 %v1622, 1.442695
        %v1635 = vpow.pop %v1634
        %v1636 = vmul.f32 %v1623, 1.442695
        %v1637 = vpow.pop %v1636
        %v1638 = vmul.f32 %v1624, 1.442695
        %v1639 = vpow.pop %v1638
        %v1640 = vmul.f32 %v1625, 1.442695
        %v1641 = vpow.pop %v1640
        %v1642 = vmul.f32 %v1626, 1.442695
        %v1643 = vpow.pop %v1642
        %v1644 = vmul.f32 %v1627, 1.442695
        %v1645 = vpow.pop %v1644
        %v1646 = vmul.f32 %v1628, 1.442695
        %v1647 = vpow.pop %v1646
        %v1648 = vmul.f32 %v1629, 1.442695
        %v1649 = vpow.pop %v1648
        %1660 = vrot.lane.b32.xlu0 %v1211, 119
        %v1661 = vpop.permute.xlu0 %1660
        %1662 = vrot.lane.b32.xlu0 %v1213, 119
        %v1663 = vpop.permute.xlu0 %1662
        %1664 = vrot.lane.b32.xlu0 %v1215, 119
        %v1665 = vpop.permute.xlu0 %1664
        %1666 = vrot.lane.b32.xlu0 %v1217, 119
        %v1667 = vpop.permute.xlu0 %1666
        %1668 = vrot.lane.b32.xlu0 %v1219, 119
        %v1669 = vpop.permute.xlu0 %1668
        %1670 = vrot.lane.b32.xlu0 %v1221, 119
        %v1671 = vpop.permute.xlu0 %1670
        %1672 = vrot.lane.b32.xlu0 %v1223, 119
        %v1673 = vpop.permute.xlu0 %1672
        %1674 = vrot.lane.b32.xlu0 %v1225, 119
        %v1675 = vpop.permute.xlu0 %1674
        %1676 = vrot.lane.b32.xlu0 %v1227, 119
        %v1677 = vpop.permute.xlu0 %1676
        %1678 = vrot.lane.b32.xlu0 %v1229, 119
        %v1679 = vpop.permute.xlu0 %1678
        %v1690 = vadd.f32 %v1141, %v1661
        %v1691 = vadd.f32 %v1143, %v1663
        %v1692 = vadd.f32 %v1145, %v1665
        %v1693 = vadd.f32 %v1147, %v1667
        %v1694 = vadd.f32 %v1149, %v1669
        %v1695 = vadd.f32 %v1151, %v1671
        %v1696 = vadd.f32 %v1153, %v1673
        %v1697 = vadd.f32 %v1155, %v1675
        %v1698 = vadd.f32 %v1157, %v1677
        %v1699 = vadd.f32 %v1159, %v1679
        %1710 = vrot.lane.b32.xlu0 %v1271, 110
        %v1711 = vpop.permute.xlu0 %1710
        %1712 = vrot.lane.b32.xlu0 %v1273, 110
        %v1713 = vpop.permute.xlu0 %1712
        %1714 = vrot.lane.b32.xlu0 %v1275, 110
        %v1715 = vpop.permute.xlu0 %1714
        %1716 = vrot.lane.b32.xlu0 %v1277, 110
        %v1717 = vpop.permute.xlu0 %1716
        %1718 = vrot.lane.b32.xlu0 %v1279, 110
        %v1719 = vpop.permute.xlu0 %1718
        %1720 = vrot.lane.b32.xlu0 %v1281, 110
        %v1721 = vpop.permute.xlu0 %1720
        %1722 = vrot.lane.b32.xlu0 %v1283, 110
        %v1723 = vpop.permute.xlu0 %1722
        %1724 = vrot.lane.b32.xlu0 %v1285, 110
        %v1725 = vpop.permute.xlu0 %1724
        %1726 = vrot.lane.b32.xlu0 %v1287, 110
        %v1727 = vpop.permute.xlu0 %1726
        %1728 = vrot.lane.b32.xlu0 %v1289, 110
        %v1729 = vpop.permute.xlu0 %1728
        %v1740 = vadd.f32 %v1690, %v1711
        %v1741 = vadd.f32 %v1691, %v1713
        %v1742 = vadd.f32 %v1692, %v1715
        %v1743 = vadd.f32 %v1693, %v1717
        %v1744 = vadd.f32 %v1694, %v1719
        %v1745 = vadd.f32 %v1695, %v1721
        %v1746 = vadd.f32 %v1696, %v1723
        %v1747 = vadd.f32 %v1697, %v1725
        %v1748 = vadd.f32 %v1698, %v1727
        %v1749 = vadd.f32 %v1699, %v1729
        %1760 = vrot.lane.b32.xlu0 %v1331, 101
        %v1761 = vpop.permute.xlu0 %1760
        %1762 = vrot.lane.b32.xlu0 %v1333, 101
        %v1763 = vpop.permute.xlu0 %1762
        %1764 = vrot.lane.b32.xlu0 %v1335, 101
        %v1765 = vpop.permute.xlu0 %1764
        %1766 = vrot.lane.b32.xlu0 %v1337, 101
        %v1767 = vpop.permute.xlu0 %1766
        %1768 = vrot.lane.b32.xlu0 %v1339, 101
        %v1769 = vpop.permute.xlu0 %1768
        %1770 = vrot.lane.b32.xlu0 %v1341, 101
        %v1771 = vpop.permute.xlu0 %1770
        %1772 = vrot.lane.b32.xlu0 %v1343, 101
        %v1773 = vpop.permute.xlu0 %1772
        %1774 = vrot.lane.b32.xlu0 %v1345, 101
        %v1775 = vpop.permute.xlu0 %1774
        %1776 = vrot.lane.b32.xlu0 %v1347, 101
        %v1777 = vpop.permute.xlu0 %1776
        %1778 = vrot.lane.b32.xlu0 %v1349, 101
        %v1779 = vpop.permute.xlu0 %1778
        %v1790 = vadd.f32 %v1740, %v1761
        %v1791 = vadd.f32 %v1741, %v1763
        %v1792 = vadd.f32 %v1742, %v1765
        %v1793 = vadd.f32 %v1743, %v1767
        %v1794 = vadd.f32 %v1744, %v1769
        %v1795 = vadd.f32 %v1745, %v1771
        %v1796 = vadd.f32 %v1746, %v1773
        %v1797 = vadd.f32 %v1747, %v1775
        %v1798 = vadd.f32 %v1748, %v1777
        %v1799 = vadd.f32 %v1749, %v1779
        %1810 = vrot.lane.b32.xlu0 %v1391, 92
        %v1811 = vpop.permute.xlu0 %1810
        %1812 = vrot.lane.b32.xlu0 %v1393, 92
        %v1813 = vpop.permute.xlu0 %1812
        %1814 = vrot.lane.b32.xlu0 %v1395, 92
        %v1815 = vpop.permute.xlu0 %1814
        %1816 = vrot.lane.b32.xlu0 %v1397, 92
        %v1817 = vpop.permute.xlu0 %1816
        %1818 = vrot.lane.b32.xlu0 %v1399, 92
        %v1819 = vpop.permute.xlu0 %1818
        %1820 = vrot.lane.b32.xlu0 %v1401, 92
        %v1821 = vpop.permute.xlu0 %1820
        %1822 = vrot.lane.b32.xlu0 %v1403, 92
        %v1823 = vpop.permute.xlu0 %1822
        %1824 = vrot.lane.b32.xlu0 %v1405, 92
        %v1825 = vpop.permute.xlu0 %1824
        %1826 = vrot.lane.b32.xlu0 %v1407, 92
        %v1827 = vpop.permute.xlu0 %1826
        %1828 = vrot.lane.b32.xlu0 %v1409, 92
        %v1829 = vpop.permute.xlu0 %1828
        %v1840 = vadd.f32 %v1790, %v1811
        %v1841 = vadd.f32 %v1791, %v1813
        %v1842 = vadd.f32 %v1792, %v1815
        %v1843 = vadd.f32 %v1793, %v1817
        %v1844 = vadd.f32 %v1794, %v1819
        %v1845 = vadd.f32 %v1795, %v1821
        %v1846 = vadd.f32 %v1796, %v1823
        %v1847 = vadd.f32 %v1797, %v1825
        %v1848 = vadd.f32 %v1798, %v1827
        %v1849 = vadd.f32 %v1799, %v1829
        %1860 = vrot.lane.b32.xlu0 %v1451, 83
        %v1861 = vpop.permute.xlu0 %1860
        %1862 = vrot.lane.b32.xlu0 %v1453, 83
        %v1863 = vpop.permute.xlu0 %1862
        %1864 = vrot.lane.b32.xlu0 %v1455, 83
        %v1865 = vpop.permute.xlu0 %1864
        %1866 = vrot.lane.b32.xlu0 %v1457, 83
        %v1867 = vpop.permute.xlu0 %1866
        %1868 = vrot.lane.b32.xlu0 %v1459, 83
        %v1869 = vpop.permute.xlu0 %1868
        %1870 = vrot.lane.b32.xlu0 %v1461, 83
        %v1871 = vpop.permute.xlu0 %1870
        %1872 = vrot.lane.b32.xlu0 %v1463, 83
        %v1873 = vpop.permute.xlu0 %1872
        %1874 = vrot.lane.b32.xlu0 %v1465, 83
        %v1875 = vpop.permute.xlu0 %1874
        %1876 = vrot.lane.b32.xlu0 %v1467, 83
        %v1877 = vpop.permute.xlu0 %1876
        %1878 = vrot.lane.b32.xlu0 %v1469, 83
        %v1879 = vpop.permute.xlu0 %1878
        %v1890 = vadd.f32 %v1840, %v1861
        %v1891 = vadd.f32 %v1841, %v1863
        %v1892 = vadd.f32 %v1842, %v1865
        %v1893 = vadd.f32 %v1843, %v1867
        %v1894 = vadd.f32 %v1844, %v1869
        %v1895 = vadd.f32 %v1845, %v1871
        %v1896 = vadd.f32 %v1846, %v1873
        %v1897 = vadd.f32 %v1847, %v1875
        %v1898 = vadd.f32 %v1848, %v1877
        %v1899 = vadd.f32 %v1849, %v1879
        %1910 = vrot.lane.b32.xlu0 %v1511, 74
        %v1911 = vpop.permute.xlu0 %1910
        %1912 = vrot.lane.b32.xlu0 %v1513, 74
        %v1913 = vpop.permute.xlu0 %1912
        %1914 = vrot.lane.b32.xlu0 %v1515, 74
        %v1915 = vpop.permute.xlu0 %1914
        %1916 = vrot.lane.b32.xlu0 %v1517, 74
        %v1917 = vpop.permute.xlu0 %1916
        %1918 = vrot.lane.b32.xlu0 %v1519, 74
        %v1919 = vpop.permute.xlu0 %1918
        %1920 = vrot.lane.b32.xlu0 %v1521, 74
        %v1921 = vpop.permute.xlu0 %1920
        %1922 = vrot.lane.b32.xlu0 %v1523, 74
        %v1923 = vpop.permute.xlu0 %1922
        %1924 = vrot.lane.b32.xlu0 %v1525, 74
        %v1925 = vpop.permute.xlu0 %1924
        %1926 = vrot.lane.b32.xlu0 %v1527, 74
        %v1927 = vpop.permute.xlu0 %1926
        %1928 = vrot.lane.b32.xlu0 %v1529, 74
        %v1929 = vpop.permute.xlu0 %1928
        %v1940 = vadd.f32 %v1890, %v1911
        %v1941 = vadd.f32 %v1891, %v1913
        %v1942 = vadd.f32 %v1892, %v1915
        %v1943 = vadd.f32 %v1893, %v1917
        %v1944 = vadd.f32 %v1894, %v1919
        %v1945 = vadd.f32 %v1895, %v1921
        %v1946 = vadd.f32 %v1896, %v1923
        %v1947 = vadd.f32 %v1897, %v1925
        %v1948 = vadd.f32 %v1898, %v1927
        %v1949 = vadd.f32 %v1899, %v1929
        %1960 = vrot.lane.b32.xlu0 %v1571, 65
        %v1961 = vpop.permute.xlu0 %1960
        %1962 = vrot.lane.b32.xlu0 %v1573, 65
        %v1963 = vpop.permute.xlu0 %1962
        %1964 = vrot.lane.b32.xlu0 %v1575, 65
        %v1965 = vpop.permute.xlu0 %1964
        %1966 = vrot.lane.b32.xlu0 %v1577, 65
        %v1967 = vpop.permute.xlu0 %1966
        %1968 = vrot.lane.b32.xlu0 %v1579, 65
        %v1969 = vpop.permute.xlu0 %1968
        %1970 = vrot.lane.b32.xlu0 %v1581, 65
        %v1971 = vpop.permute.xlu0 %1970
        %1972 = vrot.lane.b32.xlu0 %v1583, 65
        %v1973 = vpop.permute.xlu0 %1972
        %1974 = vrot.lane.b32.xlu0 %v1585, 65
        %v1975 = vpop.permute.xlu0 %1974
        %1976 = vrot.lane.b32.xlu0 %v1587, 65
        %v1977 = vpop.permute.xlu0 %1976
        %1978 = vrot.lane.b32.xlu0 %v1589, 65
        %v1979 = vpop.permute.xlu0 %1978
        %v1990 = vadd.f32 %v1940, %v1961
        %v1991 = vadd.f32 %v1941, %v1963
        %v1992 = vadd.f32 %v1942, %v1965
        %v1993 = vadd.f32 %v1943, %v1967
        %v1994 = vadd.f32 %v1944, %v1969
        %v1995 = vadd.f32 %v1945, %v1971
        %v1996 = vadd.f32 %v1946, %v1973
        %v1997 = vadd.f32 %v1947, %v1975
        %v1998 = vadd.f32 %v1948, %v1977
        %v1999 = vadd.f32 %v1949, %v1979
        %2010 = vrot.lane.b32.xlu0 %v1631, 56
        %v2011 = vpop.permute.xlu0 %2010
        %2012 = vrot.lane.b32.xlu0 %v1633, 56
        %v2013 = vpop.permute.xlu0 %2012
        %2014 = vrot.lane.b32.xlu0 %v1635, 56
        %v2015 = vpop.permute.xlu0 %2014
        %2016 = vrot.lane.b32.xlu0 %v1637, 56
        %v2017 = vpop.permute.xlu0 %2016
        %2018 = vrot.lane.b32.xlu0 %v1639, 56
        %v2019 = vpop.permute.xlu0 %2018
        %2020 = vrot.lane.b32.xlu0 %v1641, 56
        %v2021 = vpop.permute.xlu0 %2020
        %2022 = vrot.lane.b32.xlu0 %v1643, 56
        %v2023 = vpop.permute.xlu0 %2022
        %2024 = vrot.lane.b32.xlu0 %v1645, 56
        %v2025 = vpop.permute.xlu0 %2024
        %2026 = vrot.lane.b32.xlu0 %v1647, 56
        %v2027 = vpop.permute.xlu0 %2026
        %2028 = vrot.lane.b32.xlu0 %v1649, 56
        %v2029 = vpop.permute.xlu0 %2028
        %v2040 = vadd.f32 %v1990, %v2011
        %v2041 = vadd.f32 %v1991, %v2013
        %v2042 = vadd.f32 %v1992, %v2015
        %v2043 = vadd.f32 %v1993, %v2017
        %v2044 = vadd.f32 %v1994, %v2019
        %v2045 = vadd.f32 %v1995, %v2021
        %v2046 = vadd.f32 %v1996, %v2023
        %v2047 = vadd.f32 %v1997, %v2025
        %v2048 = vadd.f32 %v1998, %v2027
        %v2049 = vadd.f32 %v1999, %v2029
        %s2050 = sadd.s32 %s365, 4294967295
        %v2051 = vstv %s2050
        %v2052 = vadd.s32 %v2051, 1
        %v2053 = vadd.s32 %v2051, 2
        %v2054 = vadd.s32 %v2051, 3
        %v2055 = vadd.s32 %v2051, 4
        %v2056 = vadd.s32 %v2051, 5
        %v2057 = vadd.s32 %v2051, 6
        %v2058 = vadd.s32 %v2051, 7
        %v2059 = vadd.s32 %v2051, 8
        %v2060 = vadd.s32 %v2051, 9
        %vm2061 = vcmp.ge.s32.totalorder %v2051, 0
        %vm2062 = vcmp.ge.s32.totalorder %v2052, 0
        %vm2063 = vcmp.ge.s32.totalorder %v2053, 0
        %vm2064 = vcmp.ge.s32.totalorder %v2054, 0
        %vm2065 = vcmp.ge.s32.totalorder %v2055, 0
        %vm2066 = vcmp.ge.s32.totalorder %v2056, 0
        %vm2067 = vcmp.ge.s32.totalorder %v2057, 0
        %vm2068 = vcmp.ge.s32.totalorder %v2058, 0
        %vm2069 = vcmp.ge.s32.totalorder %v2059, 0
        %vm2070 = vcmp.ge.s32.totalorder %v2060, 0
        %vm2071 = vcmp.lt.s32.totalorder %v2051, 8
        %vm2072 = vcmp.lt.s32.totalorder %v2052, 8
        %vm2073 = vcmp.lt.s32.totalorder %v2053, 8
        %vm2074 = vcmp.lt.s32.totalorder %v2054, 8
        %vm2075 = vcmp.lt.s32.totalorder %v2055, 8
        %vm2076 = vcmp.lt.s32.totalorder %v2056, 8
        %vm2077 = vcmp.lt.s32.totalorder %v2057, 8
        %vm2078 = vcmp.lt.s32.totalorder %v2058, 8
        %vm2079 = vcmp.lt.s32.totalorder %v2059, 8
        %vm2080 = vcmp.lt.s32.totalorder %v2060, 8
        %vm2081 = vmand %vm2061, %vm2071
        %vm2082 = vmand %vm2062, %vm2072
        %vm2083 = vmand %vm2063, %vm2073
        %vm2084 = vmand %vm2064, %vm2074
        %vm2085 = vmand %vm2065, %vm2075
        %vm2086 = vmand %vm2066, %vm2076
        %vm2087 = vmand %vm2067, %vm2077
        %vm2088 = vmand %vm2068, %vm2078
        %vm2089 = vmand %vm2069, %vm2079
        %vm2090 = vmand %vm2070, %vm2080
        %v2091 = vsel %vm2081, 1, 0
        %v2092 = vsel %vm2082, 1, 0
        %v2093 = vsel %vm2083, 1, 0
        %v2094 = vsel %vm2084, 1, 0
        %v2095 = vsel %vm2085, 1, 0
        %v2096 = vsel %vm2086, 1, 0
        %v2097 = vsel %vm2087, 1, 0
        %v2098 = vsel %vm2088, 1, 0
        %v2099 = vsel %vm2089, 1, 0
        %v2100 = vsel %vm2090, 1, 0
        %v2101 = vcvt.s32.f32 %v2091
        %v2102 = vcvt.s32.f32 %v2092
        %v2103 = vcvt.s32.f32 %v2093
        %v2104 = vcvt.s32.f32 %v2094
        %v2105 = vcvt.s32.f32 %v2095
        %v2106 = vcvt.s32.f32 %v2096
        %v2107 = vcvt.s32.f32 %v2097
        %v2108 = vcvt.s32.f32 %v2098
        %v2109 = vcvt.s32.f32 %v2099
        %v2110 = vcvt.s32.f32 %v2100
        %v2111 = vrcp.pop %v2040
        %v2112 = vrcp.pop %v2041
        %v2113 = vrcp.pop %v2042
        %v2114 = vrcp.pop %v2043
        %v2115 = vrcp.pop %v2044
        %v2116 = vrcp.pop %v2045
        %v2117 = vrcp.pop %v2046
        %v2118 = vrcp.pop %v2047
        %v2119 = vrcp.pop %v2048
        %v2120 = vrcp.pop %v2049
        %v2121 = vmul.f32 %v2111, %v2101
        %v2122 = vmul.f32 %v2112, %v2102
        %v2123 = vmul.f32 %v2113, %v2103
        %v2124 = vmul.f32 %v2114, %v2104
        %v2125 = vmul.f32 %v2115, %v2105
        %v2126 = vmul.f32 %v2116, %v2106
        %v2127 = vmul.f32 %v2117, %v2107
        %v2128 = vmul.f32 %v2118, %v2108
        %v2129 = vmul.f32 %v2119, %v2109
        %v2130 = vmul.f32 %v2120, %v2110
        %v2131 = vmul.f32 %v1141, %v2121
        %v2132 = vmul.f32 %v1143, %v2122
        %v2133 = vmul.f32 %v1145, %v2123
        %v2134 = vmul.f32 %v1147, %v2124
        %v2135 = vmul.f32 %v1149, %v2125
        %v2136 = vmul.f32 %v1151, %v2126
        %v2137 = vmul.f32 %v1153, %v2127
        %v2138 = vmul.f32 %v1155, %v2128
        %v2139 = vmul.f32 %v1157, %v2129
        %v2140 = vmul.f32 %v1159, %v2130
        %2151 = vrot.lane.b32.xlu0 %v2121, 9
        %v2152 = vpop.permute.xlu0 %2151
        %2153 = vrot.lane.b32.xlu0 %v2122, 9
        %v2154 = vpop.permute.xlu0 %2153
        %2155 = vrot.lane.b32.xlu0 %v2123, 9
        %v2156 = vpop.permute.xlu0 %2155
        %2157 = vrot.lane.b32.xlu0 %v2124, 9
        %v2158 = vpop.permute.xlu0 %2157
        %2159 = vrot.lane.b32.xlu0 %v2125, 9
        %v2160 = vpop.permute.xlu0 %2159
        %2161 = vrot.lane.b32.xlu0 %v2126, 9
        %v2162 = vpop.permute.xlu0 %2161
        %2163 = vrot.lane.b32.xlu0 %v2127, 9
        %v2164 = vpop.permute.xlu0 %2163
        %2165 = vrot.lane.b32.xlu0 %v2128, 9
        %v2166 = vpop.permute.xlu0 %2165
        %2167 = vrot.lane.b32.xlu0 %v2129, 9
        %v2168 = vpop.permute.xlu0 %2167
        %2169 = vrot.lane.b32.xlu0 %v2130, 9
        %v2170 = vpop.permute.xlu0 %2169
        %v2181 = vmul.f32 %v1211, %v2152
        %v2182 = vmul.f32 %v1213, %v2154
        %v2183 = vmul.f32 %v1215, %v2156
        %v2184 = vmul.f32 %v1217, %v2158
        %v2185 = vmul.f32 %v1219, %v2160
        %v2186 = vmul.f32 %v1221, %v2162
        %v2187 = vmul.f32 %v1223, %v2164
        %v2188 = vmul.f32 %v1225, %v2166
        %v2189 = vmul.f32 %v1227, %v2168
        %v2190 = vmul.f32 %v1229, %v2170
        %2191 = vrot.lane.b32.xlu0 %v2121, 18
        %v2192 = vpop.permute.xlu0 %2191
        %2193 = vrot.lane.b32.xlu0 %v2122, 18
        %v2194 = vpop.permute.xlu0 %2193
        %2195 = vrot.lane.b32.xlu0 %v2123, 18
        %v2196 = vpop.permute.xlu0 %2195
        %2197 = vrot.lane.b32.xlu0 %v2124, 18
        %v2198 = vpop.permute.xlu0 %2197
        %2199 = vrot.lane.b32.xlu0 %v2125, 18
        %v2200 = vpop.permute.xlu0 %2199
        %2201 = vrot.lane.b32.xlu0 %v2126, 18
        %v2202 = vpop.permute.xlu0 %2201
        %2203 = vrot.lane.b32.xlu0 %v2127, 18
        %v2204 = vpop.permute.xlu0 %2203
        %2205 = vrot.lane.b32.xlu0 %v2128, 18
        %v2206 = vpop.permute.xlu0 %2205
        %2207 = vrot.lane.b32.xlu0 %v2129, 18
        %v2208 = vpop.permute.xlu0 %2207
        %2209 = vrot.lane.b32.xlu0 %v2130, 18
        %v2210 = vpop.permute.xlu0 %2209
        %v2221 = vmul.f32 %v1271, %v2192
        %v2222 = vmul.f32 %v1273, %v2194
        %v2223 = vmul.f32 %v1275, %v2196
        %v2224 = vmul.f32 %v1277, %v2198
        %v2225 = vmul.f32 %v1279, %v2200
        %v2226 = vmul.f32 %v1281, %v2202
        %v2227 = vmul.f32 %v1283, %v2204
        %v2228 = vmul.f32 %v1285, %v2206
        %v2229 = vmul.f32 %v1287, %v2208
        %v2230 = vmul.f32 %v1289, %v2210
        %2231 = vrot.lane.b32.xlu0 %v2121, 27
        %v2232 = vpop.permute.xlu0 %2231
        %2233 = vrot.lane.b32.xlu0 %v2122, 27
        %v2234 = vpop.permute.xlu0 %2233
        %2235 = vrot.lane.b32.xlu0 %v2123, 27
        %v2236 = vpop.permute.xlu0 %2235
        %2237 = vrot.lane.b32.xlu0 %v2124, 27
        %v2238 = vpop.permute.xlu0 %2237
        %2239 = vrot.lane.b32.xlu0 %v2125, 27
        %v2240 = vpop.permute.xlu0 %2239
        %2241 = vrot.lane.b32.xlu0 %v2126, 27
        %v2242 = vpop.permute.xlu0 %2241
        %2243 = vrot.lane.b32.xlu0 %v2127, 27
        %v2244 = vpop.permute.xlu0 %2243
        %2245 = vrot.lane.b32.xlu0 %v2128, 27
        %v2246 = vpop.permute.xlu0 %2245
        %2247 = vrot.lane.b32.xlu0 %v2129, 27
        %v2248 = vpop.permute.xlu0 %2247
        %2249 = vrot.lane.b32.xlu0 %v2130, 27
        %v2250 = vpop.permute.xlu0 %2249
        %v2261 = vmul.f32 %v1331, %v2232
        %v2262 = vmul.f32 %v1333, %v2234
        %v2263 = vmul.f32 %v1335, %v2236
        %v2264 = vmul.f32 %v1337, %v2238
        %v2265 = vmul.f32 %v1339, %v2240
        %v2266 = vmul.f32 %v1341, %v2242
        %v2267 = vmul.f32 %v1343, %v2244
        %v2268 = vmul.f32 %v1345, %v2246
        %v2269 = vmul.f32 %v1347, %v2248
        %v2270 = vmul.f32 %v1349, %v2250
        %2271 = vrot.lane.b32.xlu0 %v2121, 36
        %v2272 = vpop.permute.xlu0 %2271
        %2273 = vrot.lane.b32.xlu0 %v2122, 36
        %v2274 = vpop.permute.xlu0 %2273
        %2275 = vrot.lane.b32.xlu0 %v2123, 36
        %v2276 = vpop.permute.xlu0 %2275
        %2277 = vrot.lane.b32.xlu0 %v2124, 36
        %v2278 = vpop.permute.xlu0 %2277
        %2279 = vrot.lane.b32.xlu0 %v2125, 36
        %v2280 = vpop.permute.xlu0 %2279
        %2281 = vrot.lane.b32.xlu0 %v2126, 36
        %v2282 = vpop.permute.xlu0 %2281
        %2283 = vrot.lane.b32.xlu0 %v2127, 36
        %v2284 = vpop.permute.xlu0 %2283
        %2285 = vrot.lane.b32.xlu0 %v2128, 36
        %v2286 = vpop.permute.xlu0 %2285
        %2287 = vrot.lane.b32.xlu0 %v2129, 36
        %v2288 = vpop.permute.xlu0 %2287
        %2289 = vrot.lane.b32.xlu0 %v2130, 36
        %v2290 = vpop.permute.xlu0 %2289
        %v2301 = vmul.f32 %v1391, %v2272
        %v2302 = vmul.f32 %v1393, %v2274
        %v2303 = vmul.f32 %v1395, %v2276
        %v2304 = vmul.f32 %v1397, %v2278
        %v2305 = vmul.f32 %v1399, %v2280
        %v2306 = vmul.f32 %v1401, %v2282
        %v2307 = vmul.f32 %v1403, %v2284
        %v2308 = vmul.f32 %v1405, %v2286
        %v2309 = vmul.f32 %v1407, %v2288
        %v2310 = vmul.f32 %v1409, %v2290
        %2311 = vrot.lane.b32.xlu0 %v2121, 45
        %v2312 = vpop.permute.xlu0 %2311
        %2313 = vrot.lane.b32.xlu0 %v2122, 45
        %v2314 = vpop.permute.xlu0 %2313
        %2315 = vrot.lane.b32.xlu0 %v2123, 45
        %v2316 = vpop.permute.xlu0 %2315
        %2317 = vrot.lane.b32.xlu0 %v2124, 45
        %v2318 = vpop.permute.xlu0 %2317
        %2319 = vrot.lane.b32.xlu0 %v2125, 45
        %v2320 = vpop.permute.xlu0 %2319
        %2321 = vrot.lane.b32.xlu0 %v2126, 45
        %v2322 = vpop.permute.xlu0 %2321
        %2323 = vrot.lane.b32.xlu0 %v2127, 45
        %v2324 = vpop.permute.xlu0 %2323
        %2325 = vrot.lane.b32.xlu0 %v2128, 45
        %v2326 = vpop.permute.xlu0 %2325
        %2327 = vrot.lane.b32.xlu0 %v2129, 45
        %v2328 = vpop.permute.xlu0 %2327
        %2329 = vrot.lane.b32.xlu0 %v2130, 45
        %v2330 = vpop.permute.xlu0 %2329
        %v2341 = vmul.f32 %v1451, %v2312
        %v2342 = vmul.f32 %v1453, %v2314
        %v2343 = vmul.f32 %v1455, %v2316
        %v2344 = vmul.f32 %v1457, %v2318
        %v2345 = vmul.f32 %v1459, %v2320
        %v2346 = vmul.f32 %v1461, %v2322
        %v2347 = vmul.f32 %v1463, %v2324
        %v2348 = vmul.f32 %v1465, %v2326
        %v2349 = vmul.f32 %v1467, %v2328
        %v2350 = vmul.f32 %v1469, %v2330
        %2351 = vrot.lane.b32.xlu0 %v2121, 54
        %v2352 = vpop.permute.xlu0 %2351
        %2353 = vrot.lane.b32.xlu0 %v2122, 54
        %v2354 = vpop.permute.xlu0 %2353
        %2355 = vrot.lane.b32.xlu0 %v2123, 54
        %v2356 = vpop.permute.xlu0 %2355
        %2357 = vrot.lane.b32.xlu0 %v2124, 54
        %v2358 = vpop.permute.xlu0 %2357
        %2359 = vrot.lane.b32.xlu0 %v2125, 54
        %v2360 = vpop.permute.xlu0 %2359
        %2361 = vrot.lane.b32.xlu0 %v2126, 54
        %v2362 = vpop.permute.xlu0 %2361
        %2363 = vrot.lane.b32.xlu0 %v2127, 54
        %v2364 = vpop.permute.xlu0 %2363
        %2365 = vrot.lane.b32.xlu0 %v2128, 54
        %v2366 = vpop.permute.xlu0 %2365
        %2367 = vrot.lane.b32.xlu0 %v2129, 54
        %v2368 = vpop.permute.xlu0 %2367
        %2369 = vrot.lane.b32.xlu0 %v2130, 54
        %v2370 = vpop.permute.xlu0 %2369
        %v2381 = vmul.f32 %v1511, %v2352
        %v2382 = vmul.f32 %v1513, %v2354
        %v2383 = vmul.f32 %v1515, %v2356
        %v2384 = vmul.f32 %v1517, %v2358
        %v2385 = vmul.f32 %v1519, %v2360
        %v2386 = vmul.f32 %v1521, %v2362
        %v2387 = vmul.f32 %v1523, %v2364
        %v2388 = vmul.f32 %v1525, %v2366
        %v2389 = vmul.f32 %v1527, %v2368
        %v2390 = vmul.f32 %v1529, %v2370
        %2391 = vrot.lane.b32.xlu0 %v2121, 63
        %v2392 = vpop.permute.xlu0 %2391
        %2393 = vrot.lane.b32.xlu0 %v2122, 63
        %v2394 = vpop.permute.xlu0 %2393
        %2395 = vrot.lane.b32.xlu0 %v2123, 63
        %v2396 = vpop.permute.xlu0 %2395
        %2397 = vrot.lane.b32.xlu0 %v2124, 63
        %v2398 = vpop.permute.xlu0 %2397
        %2399 = vrot.lane.b32.xlu0 %v2125, 63
        %v2400 = vpop.permute.xlu0 %2399
        %2401 = vrot.lane.b32.xlu0 %v2126, 63
        %v2402 = vpop.permute.xlu0 %2401
        %2403 = vrot.lane.b32.xlu0 %v2127, 63
        %v2404 = vpop.permute.xlu0 %2403
        %2405 = vrot.lane.b32.xlu0 %v2128, 63
        %v2406 = vpop.permute.xlu0 %2405
        %2407 = vrot.lane.b32.xlu0 %v2129, 63
        %v2408 = vpop.permute.xlu0 %2407
        %2409 = vrot.lane.b32.xlu0 %v2130, 63
        %v2410 = vpop.permute.xlu0 %2409
        %v2421 = vmul.f32 %v1571, %v2392
        %v2422 = vmul.f32 %v1573, %v2394
        %v2423 = vmul.f32 %v1575, %v2396
        %v2424 = vmul.f32 %v1577, %v2398
        %v2425 = vmul.f32 %v1579, %v2400
        %v2426 = vmul.f32 %v1581, %v2402
        %v2427 = vmul.f32 %v1583, %v2404
        %v2428 = vmul.f32 %v1585, %v2406
        %v2429 = vmul.f32 %v1587, %v2408
        %v2430 = vmul.f32 %v1589, %v2410
        %2431 = vrot.lane.b32.xlu0 %v2121, 72
        %v2432 = vpop.permute.xlu0 %2431
        %2433 = vrot.lane.b32.xlu0 %v2122, 72
        %v2434 = vpop.permute.xlu0 %2433
        %2435 = vrot.lane.b32.xlu0 %v2123, 72
        %v2436 = vpop.permute.xlu0 %2435
        %2437 = vrot.lane.b32.xlu0 %v2124, 72
        %v2438 = vpop.permute.xlu0 %2437
        %2439 = vrot.lane.b32.xlu0 %v2125, 72
        %v2440 = vpop.permute.xlu0 %2439
        %2441 = vrot.lane.b32.xlu0 %v2126, 72
        %v2442 = vpop.permute.xlu0 %2441
        %2443 = vrot.lane.b32.xlu0 %v2127, 72
        %v2444 = vpop.permute.xlu0 %2443
        %2445 = vrot.lane.b32.xlu0 %v2128, 72
        %v2446 = vpop.permute.xlu0 %2445
        %2447 = vrot.lane.b32.xlu0 %v2129, 72
        %v2448 = vpop.permute.xlu0 %2447
        %2449 = vrot.lane.b32.xlu0 %v2130, 72
        %v2450 = vpop.permute.xlu0 %2449
        %v2461 = vmul.f32 %v1631, %v2432
        %v2462 = vmul.f32 %v1633, %v2434
        %v2463 = vmul.f32 %v1635, %v2436
        %v2464 = vmul.f32 %v1637, %v2438
        %v2465 = vmul.f32 %v1639, %v2440
        %v2466 = vmul.f32 %v1641, %v2442
        %v2467 = vmul.f32 %v1643, %v2444
        %v2468 = vmul.f32 %v1645, %v2446
        %v2469 = vmul.f32 %v1647, %v2448
        %v2470 = vmul.f32 %v1649, %v2450
        %s2471 = smul.u32 %s365, 2
        %s2472 = smul.addr %s2471, 4
        %s2473 = scalar_lea.vmem [#allocation2], %s2472
        %v2474 = vld [vmem:[%s2473] sm:$0xf]
        %v2475 = vld [vmem:[%s2473 + $0x4] sm:$0x1]
        %v2476 = vld [vmem:[%s2473 + $0x8] sm:$0xf]
        %v2477 = vld [vmem:[%s2473 + $0xc] sm:$0x1]
        %v2478 = vld [vmem:[%s2473 + $0x10] sm:$0xf]
        %v2479 = vld [vmem:[%s2473 + $0x14] sm:$0x1]
        %v2480 = vld [vmem:[%s2473 + $0x18] sm:$0xf]
        %v2481 = vld [vmem:[%s2473 + $0x1c] sm:$0x1]
        %v2482 = vld [vmem:[%s2473 + $0x20] sm:$0xf]
        %v2483 = vld [vmem:[%s2473 + $0x24] sm:$0x1]
        %v2484 = vld [vmem:[%s2473 + $0x28] sm:$0xf]
        %v2485 = vld [vmem:[%s2473 + $0x2c] sm:$0x1]
        %v2486 = vld [vmem:[%s2473 + $0x30] sm:$0xf]
        %v2487 = vld [vmem:[%s2473 + $0x34] sm:$0x1]
        %v2488 = vld [vmem:[%s2473 + $0x38] sm:$0xf]
        %v2489 = vld [vmem:[%s2473 + $0x3c] sm:$0x1]
        %v2490 = vld [vmem:[%s2473 + $0x40] sm:$0xf]
        %v2491 = vld [vmem:[%s2473 + $0x44] sm:$0x1]
        %v2492 = vld [vmem:[%s2473 + $0x48] sm:$0xf]
        %v2493 = vld [vmem:[%s2473 + $0x4c] sm:$0x1]
        %s2494 = sadd.s32 %s365, 1
        %s2495 = smul.u32 %s2494, 2
        %s2496 = smul.addr %s2495, 4
        %s2497 = scalar_lea.vmem [#allocation2], %s2496
        %v2498 = vld [vmem:[%s2497] sm:$0xf]
        %v2499 = vld [vmem:[%s2497 + $0x4] sm:$0x1]
        %v2500 = vld [vmem:[%s2497 + $0x8] sm:$0xf]
        %v2501 = vld [vmem:[%s2497 + $0xc] sm:$0x1]
        %v2502 = vld [vmem:[%s2497 + $0x10] sm:$0xf]
        %v2503 = vld [vmem:[%s2497 + $0x14] sm:$0x1]
        %v2504 = vld [vmem:[%s2497 + $0x18] sm:$0xf]
        %v2505 = vld [vmem:[%s2497 + $0x1c] sm:$0x1]
        %v2506 = vld [vmem:[%s2497 + $0x20] sm:$0xf]
        %v2507 = vld [vmem:[%s2497 + $0x24] sm:$0x1]
        %v2508 = vld [vmem:[%s2497 + $0x28] sm:$0xf]
        %v2509 = vld [vmem:[%s2497 + $0x2c] sm:$0x1]
        %v2510 = vld [vmem:[%s2497 + $0x30] sm:$0xf]
        %v2511 = vld [vmem:[%s2497 + $0x34] sm:$0x1]
        %v2512 = vld [vmem:[%s2497 + $0x38] sm:$0xf]
        %v2513 = vld [vmem:[%s2497 + $0x3c] sm:$0x1]
        %v2514 = vld [vmem:[%s2497 + $0x40] sm:$0xf]
        %v2515 = vld [vmem:[%s2497 + $0x44] sm:$0x1]
        %v2516 = vld [vmem:[%s2497 + $0x48] sm:$0xf]
        %v2517 = vld [vmem:[%s2497 + $0x4c] sm:$0x1]
        %s2518 = sadd.s32 %s365, 2
        %s2519 = smul.u32 %s2518, 2
        %s2520 = smul.addr %s2519, 4
        %s2521 = scalar_lea.vmem [#allocation2], %s2520
        %v2522 = vld [vmem:[%s2521] sm:$0xf]
        %v2523 = vld [vmem:[%s2521 + $0x4] sm:$0x1]
        %v2524 = vld [vmem:[%s2521 + $0x8] sm:$0xf]
        %v2525 = vld [vmem:[%s2521 + $0xc] sm:$0x1]
        %v2526 = vld [vmem:[%s2521 + $0x10] sm:$0xf]
        %v2527 = vld [vmem:[%s2521 + $0x14] sm:$0x1]
        %v2528 = vld [vmem:[%s2521 + $0x18] sm:$0xf]
        %v2529 = vld [vmem:[%s2521 + $0x1c] sm:$0x1]
        %v2530 = vld [vmem:[%s2521 + $0x20] sm:$0xf]
        %v2531 = vld [vmem:[%s2521 + $0x24] sm:$0x1]
        %v2532 = vld [vmem:[%s2521 + $0x28] sm:$0xf]
        %v2533 = vld [vmem:[%s2521 + $0x2c] sm:$0x1]
        %v2534 = vld [vmem:[%s2521 + $0x30] sm:$0xf]
        %v2535 = vld [vmem:[%s2521 + $0x34] sm:$0x1]
        %v2536 = vld [vmem:[%s2521 + $0x38] sm:$0xf]
        %v2537 = vld [vmem:[%s2521 + $0x3c] sm:$0x1]
        %v2538 = vld [vmem:[%s2521 + $0x40] sm:$0xf]
        %v2539 = vld [vmem:[%s2521 + $0x44] sm:$0x1]
        %v2540 = vld [vmem:[%s2521 + $0x48] sm:$0xf]
        %v2541 = vld [vmem:[%s2521 + $0x4c] sm:$0x1]
        %2542 = vst.msk [vmem:[#allocation4] sm:$0xff] %vm740, 0.0
        %vm2543 = vcmask 254976
        %2544 = vst.msk [vmem:[#allocation4 + $0x8] sm:$0x3] %vm2543, 0.0
        %2545 = vst.msk [vmem:[#allocation4 + $0x10] sm:$0xff] %vm740, 0.0
        %2546 = vst.msk [vmem:[#allocation4 + $0x18] sm:$0x3] %vm2543, 0.0
        %2547 = vst.msk [vmem:[#allocation4 + $0x20] sm:$0xff] %vm740, 0.0
        %2548 = vst.msk [vmem:[#allocation4 + $0x28] sm:$0x3] %vm2543, 0.0
        %2549 = vst.msk [vmem:[#allocation4 + $0x30] sm:$0xff] %vm740, 0.0
        %2550 = vst.msk [vmem:[#allocation4 + $0x38] sm:$0x3] %vm2543, 0.0
        %2551 = vst.msk [vmem:[#allocation4 + $0x40] sm:$0xff] %vm740, 0.0
        %2552 = vst.msk [vmem:[#allocation4 + $0x48] sm:$0x3] %vm2543, 0.0
        %2553 = vst.msk [vmem:[#allocation4 + $0x50] sm:$0xff] %vm740, 0.0
        %2554 = vst.msk [vmem:[#allocation4 + $0x58] sm:$0x3] %vm2543, 0.0
        %2555 = vst.msk [vmem:[#allocation4 + $0x60] sm:$0xff] %vm740, 0.0
        %2556 = vst.msk [vmem:[#allocation4 + $0x68] sm:$0x3] %vm2543, 0.0
        %2557 = vst.msk [vmem:[#allocation4 + $0x70] sm:$0xff] %vm740, 0.0
        %2558 = vst.msk [vmem:[#allocation4 + $0x78] sm:$0x3] %vm2543, 0.0
        %2559 = vst.msk [vmem:[#allocation4 + $0x80] sm:$0xff] %vm740, 0.0
        %2560 = vst.msk [vmem:[#allocation4 + $0x88] sm:$0x3] %vm2543, 0.0
        %2561 = vst.msk [vmem:[#allocation4 + $0x90] sm:$0xff] %vm740, 0.0
        %2562 = vst.msk [vmem:[#allocation4 + $0x98] sm:$0x3] %vm2543, 0.0
        %2563 = vst.msk [vmem:[#allocation4 + $0xa0] sm:$0xff] %vm740, 0.0
        %2564 = vst.msk [vmem:[#allocation4 + $0xa8] sm:$0x3] %vm2543, 0.0
        %2565 = vst.msk [vmem:[#allocation4 + $0xb0] sm:$0xff] %vm740, 0.0
        %2566 = vst.msk [vmem:[#allocation4 + $0xb8] sm:$0x3] %vm2543, 0.0
        %v2567 = vunpack.c.l.bf16 %v2474
        %v2568 = vunpack.c.l.bf16 %v2476
        %v2569 = vunpack.c.l.bf16 %v2478
        %v2570 = vunpack.c.l.bf16 %v2480
        %v2571 = vunpack.c.l.bf16 %v2482
        %v2572 = vunpack.c.l.bf16 %v2484
        %v2573 = vunpack.c.l.bf16 %v2486
        %v2574 = vunpack.c.l.bf16 %v2488
        %v2575 = vunpack.c.l.bf16 %v2490
        %v2576 = vunpack.c.l.bf16 %v2492
        %2578 = vset.pattern.permute.xlu0 0
        %2579 = vperm.xlu0 %2578, %v2131
        %v2580 = vpop.permute.xlu0 %2579
        %2583 = vset.pattern.permute.xlu0 0
        %2584 = vperm.xlu0 %2583, %v2132
        %v2585 = vpop.permute.xlu0 %2584
        %2588 = vset.pattern.permute.xlu0 0
        %2589 = vperm.xlu0 %2588, %v2133
        %v2590 = vpop.permute.xlu0 %2589
        %2593 = vset.pattern.permute.xlu0 0
        %2594 = vperm.xlu0 %2593, %v2134
        %v2595 = vpop.permute.xlu0 %2594
        %2598 = vset.pattern.permute.xlu0 0
        %2599 = vperm.xlu0 %2598, %v2135
        %v2600 = vpop.permute.xlu0 %2599
        %2603 = vset.pattern.permute.xlu0 0
        %2604 = vperm.xlu0 %2603, %v2136
        %v2605 = vpop.permute.xlu0 %2604
        %2608 = vset.pattern.permute.xlu0 0
        %2609 = vperm.xlu0 %2608, %v2137
        %v2610 = vpop.permute.xlu0 %2609
        %2613 = vset.pattern.permute.xlu0 0
        %2614 = vperm.xlu0 %2613, %v2138
        %v2615 = vpop.permute.xlu0 %2614
        %2618 = vset.pattern.permute.xlu0 0
        %2619 = vperm.xlu0 %2618, %v2139
        %v2620 = vpop.permute.xlu0 %2619
        %2623 = vset.pattern.permute.xlu0 0
        %2624 = vperm.xlu0 %2623, %v2140
        %v2625 = vpop.permute.xlu0 %2624
        %v2627 = vmul.f32 %v2580, %v2567
        %v2628 = vmul.f32 %v2585, %v2568
        %v2629 = vmul.f32 %v2590, %v2569
        %v2630 = vmul.f32 %v2595, %v2570
        %v2631 = vmul.f32 %v2600, %v2571
        %v2632 = vmul.f32 %v2605, %v2572
        %v2633 = vmul.f32 %v2610, %v2573
        %v2634 = vmul.f32 %v2615, %v2574
        %v2635 = vmul.f32 %v2620, %v2575
        %v2636 = vmul.f32 %v2625, %v2576
        %v2637 = vunpack.c.l.bf16 %v2475
        %v2638 = vunpack.c.l.bf16 %v2477
        %v2639 = vunpack.c.l.bf16 %v2479
        %v2640 = vunpack.c.l.bf16 %v2481
        %v2641 = vunpack.c.l.bf16 %v2483
        %v2642 = vunpack.c.l.bf16 %v2485
        %v2643 = vunpack.c.l.bf16 %v2487
        %v2644 = vunpack.c.l.bf16 %v2489
        %v2645 = vunpack.c.l.bf16 %v2491
        %v2646 = vunpack.c.l.bf16 %v2493
        %2648 = vset.pattern.permute.xlu0 9
        %2649 = vperm.xlu0 %2648, %v2181
        %v2650 = vpop.permute.xlu0 %2649
        %2653 = vset.pattern.permute.xlu0 9
        %2654 = vperm.xlu0 %2653, %v2182
        %v2655 = vpop.permute.xlu0 %2654
        %2658 = vset.pattern.permute.xlu0 9
        %2659 = vperm.xlu0 %2658, %v2183
        %v2660 = vpop.permute.xlu0 %2659
        %2663 = vset.pattern.permute.xlu0 9
        %2664 = vperm.xlu0 %2663, %v2184
        %v2665 = vpop.permute.xlu0 %2664
        %2668 = vset.pattern.permute.xlu0 9
        %2669 = vperm.xlu0 %2668, %v2185
        %v2670 = vpop.permute.xlu0 %2669
        %2673 = vset.pattern.permute.xlu0 9
        %2674 = vperm.xlu0 %2673, %v2186
        %v2675 = vpop.permute.xlu0 %2674
        %2678 = vset.pattern.permute.xlu0 9
        %2679 = vperm.xlu0 %2678, %v2187
        %v2680 = vpop.permute.xlu0 %2679
        %2683 = vset.pattern.permute.xlu0 9
        %2684 = vperm.xlu0 %2683, %v2188
        %v2685 = vpop.permute.xlu0 %2684
        %2688 = vset.pattern.permute.xlu0 9
        %2689 = vperm.xlu0 %2688, %v2189
        %v2690 = vpop.permute.xlu0 %2689
        %2693 = vset.pattern.permute.xlu0 9
        %2694 = vperm.xlu0 %2693, %v2190
        %v2695 = vpop.permute.xlu0 %2694
        %vm2717 = vcmask 1046528
        %v2718 = vrot.slane %v2567, 1
        %v2719 = vrot.slane %v2637, 1
        %v2720 = vsel %vm2717, %v2718, %v2719
        %v2721 = vrot.slane %v2568, 1
        %v2722 = vrot.slane %v2638, 1
        %v2723 = vsel %vm2717, %v2721, %v2722
        %v2724 = vrot.slane %v2569, 1
        %v2725 = vrot.slane %v2639, 1
        %v2726 = vsel %vm2717, %v2724, %v2725
        %v2727 = vrot.slane %v2570, 1
        %v2728 = vrot.slane %v2640, 1
        %v2729 = vsel %vm2717, %v2727, %v2728
        %v2730 = vrot.slane %v2571, 1
        %v2731 = vrot.slane %v2641, 1
        %v2732 = vsel %vm2717, %v2730, %v2731
        %v2733 = vrot.slane %v2572, 1
        %v2734 = vrot.slane %v2642, 1
        %v2735 = vsel %vm2717, %v2733, %v2734
        %v2736 = vrot.slane %v2573, 1
        %v2737 = vrot.slane %v2643, 1
        %v2738 = vsel %vm2717, %v2736, %v2737
        %v2739 = vrot.slane %v2574, 1
        %v2740 = vrot.slane %v2644, 1
        %v2741 = vsel %vm2717, %v2739, %v2740
        %v2742 = vrot.slane %v2575, 1
        %v2743 = vrot.slane %v2645, 1
        %v2744 = vsel %vm2717, %v2742, %v2743
        %v2745 = vrot.slane %v2576, 1
        %v2746 = vrot.slane %v2646, 1
        %v2747 = vsel %vm2717, %v2745, %v2746
        %v2758 = vmul.f32 %v2650, %v2720
        %v2759 = vmul.f32 %v2655, %v2723
        %v2760 = vmul.f32 %v2660, %v2726
        %v2761 = vmul.f32 %v2665, %v2729
        %v2762 = vmul.f32 %v2670, %v2732
        %v2763 = vmul.f32 %v2675, %v2735
        %v2764 = vmul.f32 %v2680, %v2738
        %v2765 = vmul.f32 %v2685, %v2741
        %v2766 = vmul.f32 %v2690, %v2744
        %v2767 = vmul.f32 %v2695, %v2747
        %v2768 = vadd.f32 %v2627, %v2758
        %v2769 = vadd.f32 %v2628, %v2759
        %v2770 = vadd.f32 %v2629, %v2760
        %v2771 = vadd.f32 %v2630, %v2761
        %v2772 = vadd.f32 %v2631, %v2762
        %v2773 = vadd.f32 %v2632, %v2763
        %v2774 = vadd.f32 %v2633, %v2764
        %v2775 = vadd.f32 %v2634, %v2765
        %v2776 = vadd.f32 %v2635, %v2766
        %v2777 = vadd.f32 %v2636, %v2767
        %2779 = vset.pattern.permute.xlu0 18
        %2780 = vperm.xlu0 %2779, %v2221
        %v2781 = vpop.permute.xlu0 %2780
        %2784 = vset.pattern.permute.xlu0 18
        %2785 = vperm.xlu0 %2784, %v2222
        %v2786 = vpop.permute.xlu0 %2785
        %2789 = vset.pattern.permute.xlu0 18
        %2790 = vperm.xlu0 %2789, %v2223
        %v2791 = vpop.permute.xlu0 %2790
        %2794 = vset.pattern.permute.xlu0 18
        %2795 = vperm.xlu0 %2794, %v2224
        %v2796 = vpop.permute.xlu0 %2795
        %2799 = vset.pattern.permute.xlu0 18
        %2800 = vperm.xlu0 %2799, %v2225
        %v2801 = vpop.permute.xlu0 %2800
        %2804 = vset.pattern.permute.xlu0 18
        %2805 = vperm.xlu0 %2804, %v2226
        %v2806 = vpop.permute.xlu0 %2805
        %2809 = vset.pattern.permute.xlu0 18
        %2810 = vperm.xlu0 %2809, %v2227
        %v2811 = vpop.permute.xlu0 %2810
        %2814 = vset.pattern.permute.xlu0 18
        %2815 = vperm.xlu0 %2814, %v2228
        %v2816 = vpop.permute.xlu0 %2815
        %2819 = vset.pattern.permute.xlu0 18
        %2820 = vperm.xlu0 %2819, %v2229
        %v2821 = vpop.permute.xlu0 %2820
        %2824 = vset.pattern.permute.xlu0 18
        %2825 = vperm.xlu0 %2824, %v2230
        %v2826 = vpop.permute.xlu0 %2825
        %vm2828 = vcmask 1045504
        %v2829 = vrot.slane %v2567, 2
        %v2830 = vrot.slane %v2637, 2
        %v2831 = vsel %vm2828, %v2829, %v2830
        %v2832 = vrot.slane %v2568, 2
        %v2833 = vrot.slane %v2638, 2
        %v2834 = vsel %vm2828, %v2832, %v2833
        %v2835 = vrot.slane %v2569, 2
        %v2836 = vrot.slane %v2639, 2
        %v2837 = vsel %vm2828, %v2835, %v2836
        %v2838 = vrot.slane %v2570, 2
        %v2839 = vrot.slane %v2640, 2
        %v2840 = vsel %vm2828, %v2838, %v2839
        %v2841 = vrot.slane %v2571, 2
        %v2842 = vrot.slane %v2641, 2
        %v2843 = vsel %vm2828, %v2841, %v2842
        %v2844 = vrot.slane %v2572, 2
        %v2845 = vrot.slane %v2642, 2
        %v2846 = vsel %vm2828, %v2844, %v2845
        %v2847 = vrot.slane %v2573, 2
        %v2848 = vrot.slane %v2643, 2
        %v2849 = vsel %vm2828, %v2847, %v2848
        %v2850 = vrot.slane %v2574, 2
        %v2851 = vrot.slane %v2644, 2
        %v2852 = vsel %vm2828, %v2850, %v2851
        %v2853 = vrot.slane %v2575, 2
        %v2854 = vrot.slane %v2645, 2
        %v2855 = vsel %vm2828, %v2853, %v2854
        %v2856 = vrot.slane %v2576, 2
        %v2857 = vrot.slane %v2646, 2
        %v2858 = vsel %vm2828, %v2856, %v2857
        %v2869 = vmul.f32 %v2781, %v2831
        %v2870 = vmul.f32 %v2786, %v2834
        %v2871 = vmul.f32 %v2791, %v2837
        %v2872 = vmul.f32 %v2796, %v2840
        %v2873 = vmul.f32 %v2801, %v2843
        %v2874 = vmul.f32 %v2806, %v2846
        %v2875 = vmul.f32 %v2811, %v2849
        %v2876 = vmul.f32 %v2816, %v2852
        %v2877 = vmul.f32 %v2821, %v2855
        %v2878 = vmul.f32 %v2826, %v2858
        %v2879 = vadd.f32 %v2768, %v2869
        %v2880 = vadd.f32 %v2769, %v2870
        %v2881 = vadd.f32 %v2770, %v2871
        %v2882 = vadd.f32 %v2771, %v2872
        %v2883 = vadd.f32 %v2772, %v2873
        %v2884 = vadd.f32 %v2773, %v2874
        %v2885 = vadd.f32 %v2774, %v2875
        %v2886 = vadd.f32 %v2775, %v2876
        %v2887 = vadd.f32 %v2776, %v2877
        %v2888 = vadd.f32 %v2777, %v2878
        %v2889 = vunpack.c.l.bf16 %v2498
        %v2890 = vunpack.c.l.bf16 %v2500
        %v2891 = vunpack.c.l.bf16 %v2502
        %v2892 = vunpack.c.l.bf16 %v2504
        %v2893 = vunpack.c.l.bf16 %v2506
        %v2894 = vunpack.c.l.bf16 %v2508
        %v2895 = vunpack.c.l.bf16 %v2510
        %v2896 = vunpack.c.l.bf16 %v2512
        %v2897 = vunpack.c.l.bf16 %v2514
        %v2898 = vunpack.c.l.bf16 %v2516
        %2900 = vset.pattern.permute.xlu0 27
        %2901 = vperm.xlu0 %2900, %v2261
        %v2902 = vpop.permute.xlu0 %2901
        %2905 = vset.pattern.permute.xlu0 27
        %2906 = vperm.xlu0 %2905, %v2262
        %v2907 = vpop.permute.xlu0 %2906
        %2910 = vset.pattern.permute.xlu0 27
        %2911 = vperm.xlu0 %2910, %v2263
        %v2912 = vpop.permute.xlu0 %2911
        %2915 = vset.pattern.permute.xlu0 27
        %2916 = vperm.xlu0 %2915, %v2264
        %v2917 = vpop.permute.xlu0 %2916
        %2920 = vset.pattern.permute.xlu0 27
        %2921 = vperm.xlu0 %2920, %v2265
        %v2922 = vpop.permute.xlu0 %2921
        %2925 = vset.pattern.permute.xlu0 27
        %2926 = vperm.xlu0 %2925, %v2266
        %v2927 = vpop.permute.xlu0 %2926
        %2930 = vset.pattern.permute.xlu0 27
        %2931 = vperm.xlu0 %2930, %v2267
        %v2932 = vpop.permute.xlu0 %2931
        %2935 = vset.pattern.permute.xlu0 27
        %2936 = vperm.xlu0 %2935, %v2268
        %v2937 = vpop.permute.xlu0 %2936
        %2940 = vset.pattern.permute.xlu0 27
        %2941 = vperm.xlu0 %2940, %v2269
        %v2942 = vpop.permute.xlu0 %2941
        %2945 = vset.pattern.permute.xlu0 27
        %2946 = vperm.xlu0 %2945, %v2270
        %v2947 = vpop.permute.xlu0 %2946
        %v2949 = vmul.f32 %v2902, %v2889
        %v2950 = vmul.f32 %v2907, %v2890
        %v2951 = vmul.f32 %v2912, %v2891
        %v2952 = vmul.f32 %v2917, %v2892
        %v2953 = vmul.f32 %v2922, %v2893
        %v2954 = vmul.f32 %v2927, %v2894
        %v2955 = vmul.f32 %v2932, %v2895
        %v2956 = vmul.f32 %v2937, %v2896
        %v2957 = vmul.f32 %v2942, %v2897
        %v2958 = vmul.f32 %v2947, %v2898
        %v2959 = vadd.f32 %v2879, %v2949
        %v2960 = vadd.f32 %v2880, %v2950
        %v2961 = vadd.f32 %v2881, %v2951
        %v2962 = vadd.f32 %v2882, %v2952
        %v2963 = vadd.f32 %v2883, %v2953
        %v2964 = vadd.f32 %v2884, %v2954
        %v2965 = vadd.f32 %v2885, %v2955
        %v2966 = vadd.f32 %v2886, %v2956
        %v2967 = vadd.f32 %v2887, %v2957
        %v2968 = vadd.f32 %v2888, %v2958
        %v2969 = vunpack.c.l.bf16 %v2499
        %v2970 = vunpack.c.l.bf16 %v2501
        %v2971 = vunpack.c.l.bf16 %v2503
        %v2972 = vunpack.c.l.bf16 %v2505
        %v2973 = vunpack.c.l.bf16 %v2507
        %v2974 = vunpack.c.l.bf16 %v2509
        %v2975 = vunpack.c.l.bf16 %v2511
        %v2976 = vunpack.c.l.bf16 %v2513
        %v2977 = vunpack.c.l.bf16 %v2515
        %v2978 = vunpack.c.l.bf16 %v2517
        %2980 = vset.pattern.permute.xlu0 36
        %2981 = vperm.xlu0 %2980, %v2301
        %v2982 = vpop.permute.xlu0 %2981
        %2985 = vset.pattern.permute.xlu0 36
        %2986 = vperm.xlu0 %2985, %v2302
        %v2987 = vpop.permute.xlu0 %2986
        %2990 = vset.pattern.permute.xlu0 36
        %2991 = vperm.xlu0 %2990, %v2303
        %v2992 = vpop.permute.xlu0 %2991
        %2995 = vset.pattern.permute.xlu0 36
        %2996 = vperm.xlu0 %2995, %v2304
        %v2997 = vpop.permute.xlu0 %2996
        %3000 = vset.pattern.permute.xlu0 36
        %3001 = vperm.xlu0 %3000, %v2305
        %v3002 = vpop.permute.xlu0 %3001
        %3005 = vset.pattern.permute.xlu0 36
        %3006 = vperm.xlu0 %3005, %v2306
        %v3007 = vpop.permute.xlu0 %3006
        %3010 = vset.pattern.permute.xlu0 36
        %3011 = vperm.xlu0 %3010, %v2307
        %v3012 = vpop.permute.xlu0 %3011
        %3015 = vset.pattern.permute.xlu0 36
        %3016 = vperm.xlu0 %3015, %v2308
        %v3017 = vpop.permute.xlu0 %3016
        %3020 = vset.pattern.permute.xlu0 36
        %3021 = vperm.xlu0 %3020, %v2309
        %v3022 = vpop.permute.xlu0 %3021
        %3025 = vset.pattern.permute.xlu0 36
        %3026 = vperm.xlu0 %3025, %v2310
        %v3027 = vpop.permute.xlu0 %3026
        %v3049 = vrot.slane %v2889, 1
        %v3050 = vrot.slane %v2969, 1
        %v3051 = vsel %vm2717, %v3049, %v3050
        %v3052 = vrot.slane %v2890, 1
        %v3053 = vrot.slane %v2970, 1
        %v3054 = vsel %vm2717, %v3052, %v3053
        %v3055 = vrot.slane %v2891, 1
        %v3056 = vrot.slane %v2971, 1
        %v3057 = vsel %vm2717, %v3055, %v3056
        %v3058 = vrot.slane %v2892, 1
        %v3059 = vrot.slane %v2972, 1
        %v3060 = vsel %vm2717, %v3058, %v3059
        %v3061 = vrot.slane %v2893, 1
        %v3062 = vrot.slane %v2973, 1
        %v3063 = vsel %vm2717, %v3061, %v3062
        %v3064 = vrot.slane %v2894, 1
        %v3065 = vrot.slane %v2974, 1
        %v3066 = vsel %vm2717, %v3064, %v3065
        %v3067 = vrot.slane %v2895, 1
        %v3068 = vrot.slane %v2975, 1
        %v3069 = vsel %vm2717, %v3067, %v3068
        %v3070 = vrot.slane %v2896, 1
        %v3071 = vrot.slane %v2976, 1
        %v3072 = vsel %vm2717, %v3070, %v3071
        %v3073 = vrot.slane %v2897, 1
        %v3074 = vrot.slane %v2977, 1
        %v3075 = vsel %vm2717, %v3073, %v3074
        %v3076 = vrot.slane %v2898, 1
        %v3077 = vrot.slane %v2978, 1
        %v3078 = vsel %vm2717, %v3076, %v3077
        %v3089 = vmul.f32 %v2982, %v3051
        %v3090 = vmul.f32 %v2987, %v3054
        %v3091 = vmul.f32 %v2992, %v3057
        %v3092 = vmul.f32 %v2997, %v3060
        %v3093 = vmul.f32 %v3002, %v3063
        %v3094 = vmul.f32 %v3007, %v3066
        %v3095 = vmul.f32 %v3012, %v3069
        %v3096 = vmul.f32 %v3017, %v3072
        %v3097 = vmul.f32 %v3022, %v3075
        %v3098 = vmul.f32 %v3027, %v3078
        %v3099 = vadd.f32 %v2959, %v3089
        %v3100 = vadd.f32 %v2960, %v3090
        %v3101 = vadd.f32 %v2961, %v3091
        %v3102 = vadd.f32 %v2962, %v3092
        %v3103 = vadd.f32 %v2963, %v3093
        %v3104 = vadd.f32 %v2964, %v3094
        %v3105 = vadd.f32 %v2965, %v3095
        %v3106 = vadd.f32 %v2966, %v3096
        %v3107 = vadd.f32 %v2967, %v3097
        %v3108 = vadd.f32 %v2968, %v3098
        %3110 = vset.pattern.permute.xlu0 45
        %3111 = vperm.xlu0 %3110, %v2341
        %v3112 = vpop.permute.xlu0 %3111
        %3115 = vset.pattern.permute.xlu0 45
        %3116 = vperm.xlu0 %3115, %v2342
        %v3117 = vpop.permute.xlu0 %3116
        %3120 = vset.pattern.permute.xlu0 45
        %3121 = vperm.xlu0 %3120, %v2343
        %v3122 = vpop.permute.xlu0 %3121
        %3125 = vset.pattern.permute.xlu0 45
        %3126 = vperm.xlu0 %3125, %v2344
        %v3127 = vpop.permute.xlu0 %3126
        %3130 = vset.pattern.permute.xlu0 45
        %3131 = vperm.xlu0 %3130, %v2345
        %v3132 = vpop.permute.xlu0 %3131
        %3135 = vset.pattern.permute.xlu0 45
        %3136 = vperm.xlu0 %3135, %v2346
        %v3137 = vpop.permute.xlu0 %3136
        %3140 = vset.pattern.permute.xlu0 45
        %3141 = vperm.xlu0 %3140, %v2347
        %v3142 = vpop.permute.xlu0 %3141
        %3145 = vset.pattern.permute.xlu0 45
        %3146 = vperm.xlu0 %3145, %v2348
        %v3147 = vpop.permute.xlu0 %3146
        %3150 = vset.pattern.permute.xlu0 45
        %3151 = vperm.xlu0 %3150, %v2349
        %v3152 = vpop.permute.xlu0 %3151
        %3155 = vset.pattern.permute.xlu0 45
        %3156 = vperm.xlu0 %3155, %v2350
        %v3157 = vpop.permute.xlu0 %3156
        %v3159 = vrot.slane %v2889, 2
        %v3160 = vrot.slane %v2969, 2
        %v3161 = vsel %vm2828, %v3159, %v3160
        %v3162 = vrot.slane %v2890, 2
        %v3163 = vrot.slane %v2970, 2
        %v3164 = vsel %vm2828, %v3162, %v3163
        %v3165 = vrot.slane %v2891, 2
        %v3166 = vrot.slane %v2971, 2
        %v3167 = vsel %vm2828, %v3165, %v3166
        %v3168 = vrot.slane %v2892, 2
        %v3169 = vrot.slane %v2972, 2
        %v3170 = vsel %vm2828, %v3168, %v3169
        %v3171 = vrot.slane %v2893, 2
        %v3172 = vrot.slane %v2973, 2
        %v3173 = vsel %vm2828, %v3171, %v3172
        %v3174 = vrot.slane %v2894, 2
        %v3175 = vrot.slane %v2974, 2
        %v3176 = vsel %vm2828, %v3174, %v3175
        %v3177 = vrot.slane %v2895, 2
        %v3178 = vrot.slane %v2975, 2
        %v3179 = vsel %vm2828, %v3177, %v3178
        %v3180 = vrot.slane %v2896, 2
        %v3181 = vrot.slane %v2976, 2
        %v3182 = vsel %vm2828, %v3180, %v3181
        %v3183 = vrot.slane %v2897, 2
        %v3184 = vrot.slane %v2977, 2
        %v3185 = vsel %vm2828, %v3183, %v3184
        %v3186 = vrot.slane %v2898, 2
        %v3187 = vrot.slane %v2978, 2
        %v3188 = vsel %vm2828, %v3186, %v3187
        %v3199 = vmul.f32 %v3112, %v3161
        %v3200 = vmul.f32 %v3117, %v3164
        %v3201 = vmul.f32 %v3122, %v3167
        %v3202 = vmul.f32 %v3127, %v3170
        %v3203 = vmul.f32 %v3132, %v3173
        %v3204 = vmul.f32 %v3137, %v3176
        %v3205 = vmul.f32 %v3142, %v3179
        %v3206 = vmul.f32 %v3147, %v3182
        %v3207 = vmul.f32 %v3152, %v3185
        %v3208 = vmul.f32 %v3157, %v3188
        %v3209 = vadd.f32 %v3099, %v3199
        %v3210 = vadd.f32 %v3100, %v3200
        %v3211 = vadd.f32 %v3101, %v3201
        %v3212 = vadd.f32 %v3102, %v3202
        %v3213 = vadd.f32 %v3103, %v3203
        %v3214 = vadd.f32 %v3104, %v3204
        %v3215 = vadd.f32 %v3105, %v3205
        %v3216 = vadd.f32 %v3106, %v3206
        %v3217 = vadd.f32 %v3107, %v3207
        %v3218 = vadd.f32 %v3108, %v3208
        %v3219 = vunpack.c.l.bf16 %v2522
        %v3220 = vunpack.c.l.bf16 %v2524
        %v3221 = vunpack.c.l.bf16 %v2526
        %v3222 = vunpack.c.l.bf16 %v2528
        %v3223 = vunpack.c.l.bf16 %v2530
        %v3224 = vunpack.c.l.bf16 %v2532
        %v3225 = vunpack.c.l.bf16 %v2534
        %v3226 = vunpack.c.l.bf16 %v2536
        %v3227 = vunpack.c.l.bf16 %v2538
        %v3228 = vunpack.c.l.bf16 %v2540
        %3230 = vset.pattern.permute.xlu0 54
        %3231 = vperm.xlu0 %3230, %v2381
        %v3232 = vpop.permute.xlu0 %3231
        %3235 = vset.pattern.permute.xlu0 54
        %3236 = vperm.xlu0 %3235, %v2382
        %v3237 = vpop.permute.xlu0 %3236
        %3240 = vset.pattern.permute.xlu0 54
        %3241 = vperm.xlu0 %3240, %v2383
        %v3242 = vpop.permute.xlu0 %3241
        %3245 = vset.pattern.permute.xlu0 54
        %3246 = vperm.xlu0 %3245, %v2384
        %v3247 = vpop.permute.xlu0 %3246
        %3250 = vset.pattern.permute.xlu0 54
        %3251 = vperm.xlu0 %3250, %v2385
        %v3252 = vpop.permute.xlu0 %3251
        %3255 = vset.pattern.permute.xlu0 54
        %3256 = vperm.xlu0 %3255, %v2386
        %v3257 = vpop.permute.xlu0 %3256
        %3260 = vset.pattern.permute.xlu0 54
        %3261 = vperm.xlu0 %3260, %v2387
        %v3262 = vpop.permute.xlu0 %3261
        %3265 = vset.pattern.permute.xlu0 54
        %3266 = vperm.xlu0 %3265, %v2388
        %v3267 = vpop.permute.xlu0 %3266
        %3270 = vset.pattern.permute.xlu0 54
        %3271 = vperm.xlu0 %3270, %v2389
        %v3272 = vpop.permute.xlu0 %3271
        %3275 = vset.pattern.permute.xlu0 54
        %3276 = vperm.xlu0 %3275, %v2390
        %v3277 = vpop.permute.xlu0 %3276
        %v3279 = vmul.f32 %v3232, %v3219
        %v3280 = vmul.f32 %v3237, %v3220
        %v3281 = vmul.f32 %v3242, %v3221
        %v3282 = vmul.f32 %v3247, %v3222
        %v3283 = vmul.f32 %v3252, %v3223
        %v3284 = vmul.f32 %v3257, %v3224
        %v3285 = vmul.f32 %v3262, %v3225
        %v3286 = vmul.f32 %v3267, %v3226
        %v3287 = vmul.f32 %v3272, %v3227
        %v3288 = vmul.f32 %v3277, %v3228
        %v3289 = vadd.f32 %v3209, %v3279
        %v3290 = vadd.f32 %v3210, %v3280
        %v3291 = vadd.f32 %v3211, %v3281
        %v3292 = vadd.f32 %v3212, %v3282
        %v3293 = vadd.f32 %v3213, %v3283
        %v3294 = vadd.f32 %v3214, %v3284
        %v3295 = vadd.f32 %v3215, %v3285
        %v3296 = vadd.f32 %v3216, %v3286
        %v3297 = vadd.f32 %v3217, %v3287
        %v3298 = vadd.f32 %v3218, %v3288
        %v3299 = vunpack.c.l.bf16 %v2523
        %v3300 = vunpack.c.l.bf16 %v2525
        %v3301 = vunpack.c.l.bf16 %v2527
        %v3302 = vunpack.c.l.bf16 %v2529
        %v3303 = vunpack.c.l.bf16 %v2531
        %v3304 = vunpack.c.l.bf16 %v2533
        %v3305 = vunpack.c.l.bf16 %v2535
        %v3306 = vunpack.c.l.bf16 %v2537
        %v3307 = vunpack.c.l.bf16 %v2539
        %v3308 = vunpack.c.l.bf16 %v2541
        %3310 = vset.pattern.permute.xlu0 63
        %3311 = vperm.xlu0 %3310, %v2421
        %v3312 = vpop.permute.xlu0 %3311
        %3315 = vset.pattern.permute.xlu0 63
        %3316 = vperm.xlu0 %3315, %v2422
        %v3317 = vpop.permute.xlu0 %3316
        %3320 = vset.pattern.permute.xlu0 63
        %3321 = vperm.xlu0 %3320, %v2423
        %v3322 = vpop.permute.xlu0 %3321
        %3325 = vset.pattern.permute.xlu0 63
        %3326 = vperm.xlu0 %3325, %v2424
        %v3327 = vpop.permute.xlu0 %3326
        %3330 = vset.pattern.permute.xlu0 63
        %3331 = vperm.xlu0 %3330, %v2425
        %v3332 = vpop.permute.xlu0 %3331
        %3335 = vset.pattern.permute.xlu0 63
        %3336 = vperm.xlu0 %3335, %v2426
        %v3337 = vpop.permute.xlu0 %3336
        %3340 = vset.pattern.permute.xlu0 63
        %3341 = vperm.xlu0 %3340, %v2427
        %v3342 = vpop.permute.xlu0 %3341
        %3345 = vset.pattern.permute.xlu0 63
        %3346 = vperm.xlu0 %3345, %v2428
        %v3347 = vpop.permute.xlu0 %3346
        %3350 = vset.pattern.permute.xlu0 63
        %3351 = vperm.xlu0 %3350, %v2429
        %v3352 = vpop.permute.xlu0 %3351
        %3355 = vset.pattern.permute.xlu0 63
        %3356 = vperm.xlu0 %3355, %v2430
        %v3357 = vpop.permute.xlu0 %3356
        %v3379 = vrot.slane %v3219, 1
        %v3380 = vrot.slane %v3299, 1
        %v3381 = vsel %vm2717, %v3379, %v3380
        %v3382 = vrot.slane %v3220, 1
        %v3383 = vrot.slane %v3300, 1
        %v3384 = vsel %vm2717, %v3382, %v3383
        %v3385 = vrot.slane %v3221, 1
        %v3386 = vrot.slane %v3301, 1
        %v3387 = vsel %vm2717, %v3385, %v3386
        %v3388 = vrot.slane %v3222, 1
        %v3389 = vrot.slane %v3302, 1
        %v3390 = vsel %vm2717, %v3388, %v3389
        %v3391 = vrot.slane %v3223, 1
        %v3392 = vrot.slane %v3303, 1
        %v3393 = vsel %vm2717, %v3391, %v3392
        %v3394 = vrot.slane %v3224, 1
        %v3395 = vrot.slane %v3304, 1
        %v3396 = vsel %vm2717, %v3394, %v3395
        %v3397 = vrot.slane %v3225, 1
        %v3398 = vrot.slane %v3305, 1
        %v3399 = vsel %vm2717, %v3397, %v3398
        %v3400 = vrot.slane %v3226, 1
        %v3401 = vrot.slane %v3306, 1
        %v3402 = vsel %vm2717, %v3400, %v3401
        %v3403 = vrot.slane %v3227, 1
        %v3404 = vrot.slane %v3307, 1
        %v3405 = vsel %vm2717, %v3403, %v3404
        %v3406 = vrot.slane %v3228, 1
        %v3407 = vrot.slane %v3308, 1
        %v3408 = vsel %vm2717, %v3406, %v3407
        %v3419 = vmul.f32 %v3312, %v3381
        %v3420 = vmul.f32 %v3317, %v3384
        %v3421 = vmul.f32 %v3322, %v3387
        %v3422 = vmul.f32 %v3327, %v3390
        %v3423 = vmul.f32 %v3332, %v3393
        %v3424 = vmul.f32 %v3337, %v3396
        %v3425 = vmul.f32 %v3342, %v3399
        %v3426 = vmul.f32 %v3347, %v3402
        %v3427 = vmul.f32 %v3352, %v3405
        %v3428 = vmul.f32 %v3357, %v3408
        %v3429 = vadd.f32 %v3289, %v3419
        %v3430 = vadd.f32 %v3290, %v3420
        %v3431 = vadd.f32 %v3291, %v3421
        %v3432 = vadd.f32 %v3292, %v3422
        %v3433 = vadd.f32 %v3293, %v3423
        %v3434 = vadd.f32 %v3294, %v3424
        %v3435 = vadd.f32 %v3295, %v3425
        %v3436 = vadd.f32 %v3296, %v3426
        %v3437 = vadd.f32 %v3297, %v3427
        %v3438 = vadd.f32 %v3298, %v3428
        %3440 = vset.pattern.permute.xlu0 72
        %3441 = vperm.xlu0 %3440, %v2461
        %v3442 = vpop.permute.xlu0 %3441
        %3445 = vset.pattern.permute.xlu0 72
        %3446 = vperm.xlu0 %3445, %v2462
        %v3447 = vpop.permute.xlu0 %3446
        %3450 = vset.pattern.permute.xlu0 72
        %3451 = vperm.xlu0 %3450, %v2463
        %v3452 = vpop.permute.xlu0 %3451
        %3455 = vset.pattern.permute.xlu0 72
        %3456 = vperm.xlu0 %3455, %v2464
        %v3457 = vpop.permute.xlu0 %3456
        %3460 = vset.pattern.permute.xlu0 72
        %3461 = vperm.xlu0 %3460, %v2465
        %v3462 = vpop.permute.xlu0 %3461
        %3465 = vset.pattern.permute.xlu0 72
        %3466 = vperm.xlu0 %3465, %v2466
        %v3467 = vpop.permute.xlu0 %3466
        %3470 = vset.pattern.permute.xlu0 72
        %3471 = vperm.xlu0 %3470, %v2467
        %v3472 = vpop.permute.xlu0 %3471
        %3475 = vset.pattern.permute.xlu0 72
        %3476 = vperm.xlu0 %3475, %v2468
        %v3477 = vpop.permute.xlu0 %3476
        %3480 = vset.pattern.permute.xlu0 72
        %3481 = vperm.xlu0 %3480, %v2469
        %v3482 = vpop.permute.xlu0 %3481
        %3485 = vset.pattern.permute.xlu0 72
        %3486 = vperm.xlu0 %3485, %v2470
        %v3487 = vpop.permute.xlu0 %3486
        %v3489 = vrot.slane %v3219, 2
        %v3490 = vrot.slane %v3299, 2
        %v3491 = vsel %vm2828, %v3489, %v3490
        %v3492 = vrot.slane %v3220, 2
        %v3493 = vrot.slane %v3300, 2
        %v3494 = vsel %vm2828, %v3492, %v3493
        %v3495 = vrot.slane %v3221, 2
        %v3496 = vrot.slane %v3301, 2
        %v3497 = vsel %vm2828, %v3495, %v3496
        %v3498 = vrot.slane %v3222, 2
        %v3499 = vrot.slane %v3302, 2
        %v3500 = vsel %vm2828, %v3498, %v3499
        %v3501 = vrot.slane %v3223, 2
        %v3502 = vrot.slane %v3303, 2
        %v3503 = vsel %vm2828, %v3501, %v3502
        %v3504 = vrot.slane %v3224, 2
        %v3505 = vrot.slane %v3304, 2
        %v3506 = vsel %vm2828, %v3504, %v3505
        %v3507 = vrot.slane %v3225, 2
        %v3508 = vrot.slane %v3305, 2
        %v3509 = vsel %vm2828, %v3507, %v3508
        %v3510 = vrot.slane %v3226, 2
        %v3511 = vrot.slane %v3306, 2
        %v3512 = vsel %vm2828, %v3510, %v3511
        %v3513 = vrot.slane %v3227, 2
        %v3514 = vrot.slane %v3307, 2
        %v3515 = vsel %vm2828, %v3513, %v3514
        %v3516 = vrot.slane %v3228, 2
        %v3517 = vrot.slane %v3308, 2
        %v3518 = vsel %vm2828, %v3516, %v3517
        %v3529 = vmul.f32 %v3442, %v3491
        %v3530 = vmul.f32 %v3447, %v3494
        %v3531 = vmul.f32 %v3452, %v3497
        %v3532 = vmul.f32 %v3457, %v3500
        %v3533 = vmul.f32 %v3462, %v3503
        %v3534 = vmul.f32 %v3467, %v3506
        %v3535 = vmul.f32 %v3472, %v3509
        %v3536 = vmul.f32 %v3477, %v3512
        %v3537 = vmul.f32 %v3482, %v3515
        %v3538 = vmul.f32 %v3487, %v3518
        %v3539 = vadd.f32 %v3429, %v3529
        %v3540 = vadd.f32 %v3430, %v3530
        %v3541 = vadd.f32 %v3431, %v3531
        %v3542 = vadd.f32 %v3432, %v3532
        %v3543 = vadd.f32 %v3433, %v3533
        %v3544 = vadd.f32 %v3434, %v3534
        %v3545 = vadd.f32 %v3435, %v3535
        %v3546 = vadd.f32 %v3436, %v3536
        %v3547 = vadd.f32 %v3437, %v3537
        %v3548 = vadd.f32 %v3438, %v3538
        %v3549 = vld [vmem:[#allocation4] sm:$0xff]
        %v3550 = vld [vmem:[#allocation4 + $0x10] sm:$0xff]
        %v3551 = vld [vmem:[#allocation4 + $0x20] sm:$0xff]
        %v3552 = vld [vmem:[#allocation4 + $0x30] sm:$0xff]
        %v3553 = vld [vmem:[#allocation4 + $0x40] sm:$0xff]
        %v3554 = vld [vmem:[#allocation4 + $0x50] sm:$0xff]
        %v3555 = vld [vmem:[#allocation4 + $0x60] sm:$0xff]
        %v3556 = vld [vmem:[#allocation4 + $0x70] sm:$0xff]
        %v3557 = vld [vmem:[#allocation4 + $0x80] sm:$0xff]
        %v3558 = vld [vmem:[#allocation4 + $0x90] sm:$0xff]
        %v3559 = vadd.f32 %v3549, %v3539
        %v3560 = vadd.f32 %v3550, %v3540
        %v3561 = vadd.f32 %v3551, %v3541
        %v3562 = vadd.f32 %v3552, %v3542
        %v3563 = vadd.f32 %v3553, %v3543
        %v3564 = vadd.f32 %v3554, %v3544
        %v3565 = vadd.f32 %v3555, %v3545
        %v3566 = vadd.f32 %v3556, %v3546
        %v3567 = vadd.f32 %v3557, %v3547
        %v3568 = vadd.f32 %v3558, %v3548
        %3569 = vst.msk [vmem:[#allocation4] sm:$0xff] %vm740, %v3559
        %3570 = vst.msk [vmem:[#allocation4 + $0x10] sm:$0xff] %vm740, %v3560
        %3571 = vst.msk [vmem:[#allocation4 + $0x20] sm:$0xff] %vm740, %v3561
        %3572 = vst.msk [vmem:[#allocation4 + $0x30] sm:$0xff] %vm740, %v3562
        %3573 = vst.msk [vmem:[#allocation4 + $0x40] sm:$0xff] %vm740, %v3563
        %3574 = vst.msk [vmem:[#allocation4 + $0x50] sm:$0xff] %vm740, %v3564
        %3575 = vst.msk [vmem:[#allocation4 + $0x60] sm:$0xff] %vm740, %v3565
        %3576 = vst.msk [vmem:[#allocation4 + $0x70] sm:$0xff] %vm740, %v3566
        %3577 = vst.msk [vmem:[#allocation4 + $0x80] sm:$0xff] %vm740, %v3567
        %3578 = vst.msk [vmem:[#allocation4 + $0x90] sm:$0xff] %vm740, %v3568
        %3579 = vset.pattern.permute.xlu0 1
        %3580 = vperm.xlu0 %3579, %v2131
        %v3581 = vpop.permute.xlu0 %3580
        %3583 = vset.pattern.permute.xlu0 1
        %3584 = vperm.xlu0 %3583, %v2132
        %v3585 = vpop.permute.xlu0 %3584
        %3587 = vset.pattern.permute.xlu0 1
        %3588 = vperm.xlu0 %3587, %v2133
        %v3589 = vpop.permute.xlu0 %3588
        %3591 = vset.pattern.permute.xlu0 1
        %3592 = vperm.xlu0 %3591, %v2134
        %v3593 = vpop.permute.xlu0 %3592
        %3595 = vset.pattern.permute.xlu0 1
        %3596 = vperm.xlu0 %3595, %v2135
        %v3597 = vpop.permute.xlu0 %3596
        %3599 = vset.pattern.permute.xlu0 1
        %3600 = vperm.xlu0 %3599, %v2136
        %v3601 = vpop.permute.xlu0 %3600
        %3603 = vset.pattern.permute.xlu0 1
        %3604 = vperm.xlu0 %3603, %v2137
        %v3605 = vpop.permute.xlu0 %3604
        %3607 = vset.pattern.permute.xlu0 1
        %3608 = vperm.xlu0 %3607, %v2138
        %v3609 = vpop.permute.xlu0 %3608
        %3611 = vset.pattern.permute.xlu0 1
        %3612 = vperm.xlu0 %3611, %v2139
        %v3613 = vpop.permute.xlu0 %3612
        %3615 = vset.pattern.permute.xlu0 1
        %3616 = vperm.xlu0 %3615, %v2140
        %v3617 = vpop.permute.xlu0 %3616
        %v3619 = vmul.f32 %v3581, %v2567
        %v3620 = vmul.f32 %v3585, %v2568
        %v3621 = vmul.f32 %v3589, %v2569
        %v3622 = vmul.f32 %v3593, %v2570
        %v3623 = vmul.f32 %v3597, %v2571
        %v3624 = vmul.f32 %v3601, %v2572
        %v3625 = vmul.f32 %v3605, %v2573
        %v3626 = vmul.f32 %v3609, %v2574
        %v3627 = vmul.f32 %v3613, %v2575
        %v3628 = vmul.f32 %v3617, %v2576
        %3629 = vset.pattern.permute.xlu0 10
        %3630 = vperm.xlu0 %3629, %v2181
        %v3631 = vpop.permute.xlu0 %3630
        %3633 = vset.pattern.permute.xlu0 10
        %3634 = vperm.xlu0 %3633, %v2182
        %v3635 = vpop.permute.xlu0 %3634
        %3637 = vset.pattern.permute.xlu0 10
        %3638 = vperm.xlu0 %3637, %v2183
        %v3639 = vpop.permute.xlu0 %3638
        %3641 = vset.pattern.permute.xlu0 10
        %3642 = vperm.xlu0 %3641, %v2184
        %v3643 = vpop.permute.xlu0 %3642
        %3645 = vset.pattern.permute.xlu0 10
        %3646 = vperm.xlu0 %3645, %v2185
        %v3647 = vpop.permute.xlu0 %3646
        %3649 = vset.pattern.permute.xlu0 10
        %3650 = vperm.xlu0 %3649, %v2186
        %v3651 = vpop.permute.xlu0 %3650
        %3653 = vset.pattern.permute.xlu0 10
        %3654 = vperm.xlu0 %3653, %v2187
        %v3655 = vpop.permute.xlu0 %3654
        %3657 = vset.pattern.permute.xlu0 10
        %3658 = vperm.xlu0 %3657, %v2188
        %v3659 = vpop.permute.xlu0 %3658
        %3661 = vset.pattern.permute.xlu0 10
        %3662 = vperm.xlu0 %3661, %v2189
        %v3663 = vpop.permute.xlu0 %3662
        %3665 = vset.pattern.permute.xlu0 10
        %3666 = vperm.xlu0 %3665, %v2190
        %v3667 = vpop.permute.xlu0 %3666
        %v3669 = vmul.f32 %v3631, %v2720
        %v3670 = vmul.f32 %v3635, %v2723
        %v3671 = vmul.f32 %v3639, %v2726
        %v3672 = vmul.f32 %v3643, %v2729
        %v3673 = vmul.f32 %v3647, %v2732
        %v3674 = vmul.f32 %v3651, %v2735
        %v3675 = vmul.f32 %v3655, %v2738
        %v3676 = vmul.f32 %v3659, %v2741
        %v3677 = vmul.f32 %v3663, %v2744
        %v3678 = vmul.f32 %v3667, %v2747
        %v3679 = vadd.f32 %v3619, %v3669
        %v3680 = vadd.f32 %v3620, %v3670
        %v3681 = vadd.f32 %v3621, %v3671
        %v3682 = vadd.f32 %v3622, %v3672
        %v3683 = vadd.f32 %v3623, %v3673
        %v3684 = vadd.f32 %v3624, %v3674
        %v3685 = vadd.f32 %v3625, %v3675
        %v3686 = vadd.f32 %v3626, %v3676
        %v3687 = vadd.f32 %v3627, %v3677
        %v3688 = vadd.f32 %v3628, %v3678
        %3689 = vset.pattern.permute.xlu0 19
        %3690 = vperm.xlu0 %3689, %v2221
        %v3691 = vpop.permute.xlu0 %3690
        %3693 = vset.pattern.permute.xlu0 19
        %3694 = vperm.xlu0 %3693, %v2222
        %v3695 = vpop.permute.xlu0 %3694
        %3697 = vset.pattern.permute.xlu0 19
        %3698 = vperm.xlu0 %3697, %v2223
        %v3699 = vpop.permute.xlu0 %3698
        %3701 = vset.pattern.permute.xlu0 19
        %3702 = vperm.xlu0 %3701, %v2224
        %v3703 = vpop.permute.xlu0 %3702
        %3705 = vset.pattern.permute.xlu0 19
        %3706 = vperm.xlu0 %3705, %v2225
        %v3707 = vpop.permute.xlu0 %3706
        %3709 = vset.pattern.permute.xlu0 19
        %3710 = vperm.xlu0 %3709, %v2226
        %v3711 = vpop.permute.xlu0 %3710
        %3713 = vset.pattern.permute.xlu0 19
        %3714 = vperm.xlu0 %3713, %v2227
        %v3715 = vpop.permute.xlu0 %3714
        %3717 = vset.pattern.permute.xlu0 19
        %3718 = vperm.xlu0 %3717, %v2228
        %v3719 = vpop.permute.xlu0 %3718
        %3721 = vset.pattern.permute.xlu0 19
        %3722 = vperm.xlu0 %3721, %v2229
        %v3723 = vpop.permute.xlu0 %3722
        %3725 = vset.pattern.permute.xlu0 19
        %3726 = vperm.xlu0 %3725, %v2230
        %v3727 = vpop.permute.xlu0 %3726
        %v3729 = vmul.f32 %v3691, %v2831
        %v3730 = vmul.f32 %v3695, %v2834
        %v3731 = vmul.f32 %v3699, %v2837
        %v3732 = vmul.f32 %v3703, %v2840
        %v3733 = vmul.f32 %v3707, %v2843
        %v3734 = vmul.f32 %v3711, %v2846
        %v3735 = vmul.f32 %v3715, %v2849
        %v3736 = vmul.f32 %v3719, %v2852
        %v3737 = vmul.f32 %v3723, %v2855
        %v3738 = vmul.f32 %v3727, %v2858
        %v3739 = vadd.f32 %v3679, %v3729
        %v3740 = vadd.f32 %v3680, %v3730
        %v3741 = vadd.f32 %v3681, %v3731
        %v3742 = vadd.f32 %v3682, %v3732
        %v3743 = vadd.f32 %v3683, %v3733
        %v3744 = vadd.f32 %v3684, %v3734
        %v3745 = vadd.f32 %v3685, %v3735
        %v3746 = vadd.f32 %v3686, %v3736
        %v3747 = vadd.f32 %v3687, %v3737
        %v3748 = vadd.f32 %v3688, %v3738
        %3749 = vset.pattern.permute.xlu0 28
        %3750 = vperm.xlu0 %3749, %v2261
        %v3751 = vpop.permute.xlu0 %3750
        %3753 = vset.pattern.permute.xlu0 28
        %3754 = vperm.xlu0 %3753, %v2262
        %v3755 = vpop.permute.xlu0 %3754
        %3757 = vset.pattern.permute.xlu0 28
        %3758 = vperm.xlu0 %3757, %v2263
        %v3759 = vpop.permute.xlu0 %3758
        %3761 = vset.pattern.permute.xlu0 28
        %3762 = vperm.xlu0 %3761, %v2264
        %v3763 = vpop.permute.xlu0 %3762
        %3765 = vset.pattern.permute.xlu0 28
        %3766 = vperm.xlu0 %3765, %v2265
        %v3767 = vpop.permute.xlu0 %3766
        %3769 = vset.pattern.permute.xlu0 28
        %3770 = vperm.xlu0 %3769, %v2266
        %v3771 = vpop.permute.xlu0 %3770
        %3773 = vset.pattern.permute.xlu0 28
        %3774 = vperm.xlu0 %3773, %v2267
        %v3775 = vpop.permute.xlu0 %3774
        %3777 = vset.pattern.permute.xlu0 28
        %3778 = vperm.xlu0 %3777, %v2268
        %v3779 = vpop.permute.xlu0 %3778
        %3781 = vset.pattern.permute.xlu0 28
        %3782 = vperm.xlu0 %3781, %v2269
        %v3783 = vpop.permute.xlu0 %3782
        %3785 = vset.pattern.permute.xlu0 28
        %3786 = vperm.xlu0 %3785, %v2270
        %v3787 = vpop.permute.xlu0 %3786
        %v3789 = vmul.f32 %v3751, %v2889
        %v3790 = vmul.f32 %v3755, %v2890
        %v3791 = vmul.f32 %v3759, %v2891
        %v3792 = vmul.f32 %v3763, %v2892
        %v3793 = vmul.f32 %v3767, %v2893
        %v3794 = vmul.f32 %v3771, %v2894
        %v3795 = vmul.f32 %v3775, %v2895
        %v3796 = vmul.f32 %v3779, %v2896
        %v3797 = vmul.f32 %v3783, %v2897
        %v3798 = vmul.f32 %v3787, %v2898
        %v3799 = vadd.f32 %v3739, %v3789
        %v3800 = vadd.f32 %v3740, %v3790
        %v3801 = vadd.f32 %v3741, %v3791
        %v3802 = vadd.f32 %v3742, %v3792
        %v3803 = vadd.f32 %v3743, %v3793
        %v3804 = vadd.f32 %v3744, %v3794
        %v3805 = vadd.f32 %v3745, %v3795
        %v3806 = vadd.f32 %v3746, %v3796
        %v3807 = vadd.f32 %v3747, %v3797
        %v3808 = vadd.f32 %v3748, %v3798
        %3809 = vset.pattern.permute.xlu0 37
        %3810 = vperm.xlu0 %3809, %v2301
        %v3811 = vpop.permute.xlu0 %3810
        %3813 = vset.pattern.permute.xlu0 37
        %3814 = vperm.xlu0 %3813, %v2302
        %v3815 = vpop.permute.xlu0 %3814
        %3817 = vset.pattern.permute.xlu0 37
        %3818 = vperm.xlu0 %3817, %v2303
        %v3819 = vpop.permute.xlu0 %3818
        %3821 = vset.pattern.permute.xlu0 37
        %3822 = vperm.xlu0 %3821, %v2304
        %v3823 = vpop.permute.xlu0 %3822
        %3825 = vset.pattern.permute.xlu0 37
        %3826 = vperm.xlu0 %3825, %v2305
        %v3827 = vpop.permute.xlu0 %3826
        %3829 = vset.pattern.permute.xlu0 37
        %3830 = vperm.xlu0 %3829, %v2306
        %v3831 = vpop.permute.xlu0 %3830
        %3833 = vset.pattern.permute.xlu0 37
        %3834 = vperm.xlu0 %3833, %v2307
        %v3835 = vpop.permute.xlu0 %3834
        %3837 = vset.pattern.permute.xlu0 37
        %3838 = vperm.xlu0 %3837, %v2308
        %v3839 = vpop.permute.xlu0 %3838
        %3841 = vset.pattern.permute.xlu0 37
        %3842 = vperm.xlu0 %3841, %v2309
        %v3843 = vpop.permute.xlu0 %3842
        %3845 = vset.pattern.permute.xlu0 37
        %3846 = vperm.xlu0 %3845, %v2310
        %v3847 = vpop.permute.xlu0 %3846
        %v3849 = vmul.f32 %v3811, %v3051
        %v3850 = vmul.f32 %v3815, %v3054
        %v3851 = vmul.f32 %v3819, %v3057
        %v3852 = vmul.f32 %v3823, %v3060
        %v3853 = vmul.f32 %v3827, %v3063
        %v3854 = vmul.f32 %v3831, %v3066
        %v3855 = vmul.f32 %v3835, %v3069
        %v3856 = vmul.f32 %v3839, %v3072
        %v3857 = vmul.f32 %v3843, %v3075
        %v3858 = vmul.f32 %v3847, %v3078
        %v3859 = vadd.f32 %v3799, %v3849
        %v3860 = vadd.f32 %v3800, %v3850
        %v3861 = vadd.f32 %v3801, %v3851
        %v3862 = vadd.f32 %v3802, %v3852
        %v3863 = vadd.f32 %v3803, %v3853
        %v3864 = vadd.f32 %v3804, %v3854
        %v3865 = vadd.f32 %v3805, %v3855
        %v3866 = vadd.f32 %v3806, %v3856
        %v3867 = vadd.f32 %v3807, %v3857
        %v3868 = vadd.f32 %v3808, %v3858
        %3869 = vset.pattern.permute.xlu0 46
        %3870 = vperm.xlu0 %3869, %v2341
        %v3871 = vpop.permute.xlu0 %3870
        %3873 = vset.pattern.permute.xlu0 46
        %3874 = vperm.xlu0 %3873, %v2342
        %v3875 = vpop.permute.xlu0 %3874
        %3877 = vset.pattern.permute.xlu0 46
        %3878 = vperm.xlu0 %3877, %v2343
        %v3879 = vpop.permute.xlu0 %3878
        %3881 = vset.pattern.permute.xlu0 46
        %3882 = vperm.xlu0 %3881, %v2344
        %v3883 = vpop.permute.xlu0 %3882
        %3885 = vset.pattern.permute.xlu0 46
        %3886 = vperm.xlu0 %3885, %v2345
        %v3887 = vpop.permute.xlu0 %3886
        %3889 = vset.pattern.permute.xlu0 46
        %3890 = vperm.xlu0 %3889, %v2346
        %v3891 = vpop.permute.xlu0 %3890
        %3893 = vset.pattern.permute.xlu0 46
        %3894 = vperm.xlu0 %3893, %v2347
        %v3895 = vpop.permute.xlu0 %3894
        %3897 = vset.pattern.permute.xlu0 46
        %3898 = vperm.xlu0 %3897, %v2348
        %v3899 = vpop.permute.xlu0 %3898
        %3901 = vset.pattern.permute.xlu0 46
        %3902 = vperm.xlu0 %3901, %v2349
        %v3903 = vpop.permute.xlu0 %3902
        %3905 = vset.pattern.permute.xlu0 46
        %3906 = vperm.xlu0 %3905, %v2350
        %v3907 = vpop.permute.xlu0 %3906
        %v3909 = vmul.f32 %v3871, %v3161
        %v3910 = vmul.f32 %v3875, %v3164
        %v3911 = vmul.f32 %v3879, %v3167
        %v3912 = vmul.f32 %v3883, %v3170
        %v3913 = vmul.f32 %v3887, %v3173
        %v3914 = vmul.f32 %v3891, %v3176
        %v3915 = vmul.f32 %v3895, %v3179
        %v3916 = vmul.f32 %v3899, %v3182
        %v3917 = vmul.f32 %v3903, %v3185
        %v3918 = vmul.f32 %v3907, %v3188
        %v3919 = vadd.f32 %v3859, %v3909
        %v3920 = vadd.f32 %v3860, %v3910
        %v3921 = vadd.f32 %v3861, %v3911
        %v3922 = vadd.f32 %v3862, %v3912
        %v3923 = vadd.f32 %v3863, %v3913
        %v3924 = vadd.f32 %v3864, %v3914
        %v3925 = vadd.f32 %v3865, %v3915
        %v3926 = vadd.f32 %v3866, %v3916
        %v3927 = vadd.f32 %v3867, %v3917
        %v3928 = vadd.f32 %v3868, %v3918
        %3929 = vset.pattern.permute.xlu0 55
        %3930 = vperm.xlu0 %3929, %v2381
        %v3931 = vpop.permute.xlu0 %3930
        %3933 = vset.pattern.permute.xlu0 55
        %3934 = vperm.xlu0 %3933, %v2382
        %v3935 = vpop.permute.xlu0 %3934
        %3937 = vset.pattern.permute.xlu0 55
        %3938 = vperm.xlu0 %3937, %v2383
        %v3939 = vpop.permute.xlu0 %3938
        %3941 = vset.pattern.permute.xlu0 55
        %3942 = vperm.xlu0 %3941, %v2384
        %v3943 = vpop.permute.xlu0 %3942
        %3945 = vset.pattern.permute.xlu0 55
        %3946 = vperm.xlu0 %3945, %v2385
        %v3947 = vpop.permute.xlu0 %3946
        %3949 = vset.pattern.permute.xlu0 55
        %3950 = vperm.xlu0 %3949, %v2386
        %v3951 = vpop.permute.xlu0 %3950
        %3953 = vset.pattern.permute.xlu0 55
        %3954 = vperm.xlu0 %3953, %v2387
        %v3955 = vpop.permute.xlu0 %3954
        %3957 = vset.pattern.permute.xlu0 55
        %3958 = vperm.xlu0 %3957, %v2388
        %v3959 = vpop.permute.xlu0 %3958
        %3961 = vset.pattern.permute.xlu0 55
        %3962 = vperm.xlu0 %3961, %v2389
        %v3963 = vpop.permute.xlu0 %3962
        %3965 = vset.pattern.permute.xlu0 55
        %3966 = vperm.xlu0 %3965, %v2390
        %v3967 = vpop.permute.xlu0 %3966
        %v3969 = vmul.f32 %v3931, %v3219
        %v3970 = vmul.f32 %v3935, %v3220
        %v3971 = vmul.f32 %v3939, %v3221
        %v3972 = vmul.f32 %v3943, %v3222
        %v3973 = vmul.f32 %v3947, %v3223
        %v3974 = vmul.f32 %v3951, %v3224
        %v3975 = vmul.f32 %v3955, %v3225
        %v3976 = vmul.f32 %v3959, %v3226
        %v3977 = vmul.f32 %v3963, %v3227
        %v3978 = vmul.f32 %v3967, %v3228
        %v3979 = vadd.f32 %v3919, %v3969
        %v3980 = vadd.f32 %v3920, %v3970
        %v3981 = vadd.f32 %v3921, %v3971
        %v3982 = vadd.f32 %v3922, %v3972
        %v3983 = vadd.f32 %v3923, %v3973
        %v3984 = vadd.f32 %v3924, %v3974
        %v3985 = vadd.f32 %v3925, %v3975
        %v3986 = vadd.f32 %v3926, %v3976
        %v3987 = vadd.f32 %v3927, %v3977
        %v3988 = vadd.f32 %v3928, %v3978
        %3989 = vset.pattern.permute.xlu0 64
        %3990 = vperm.xlu0 %3989, %v2421
        %v3991 = vpop.permute.xlu0 %3990
        %3993 = vset.pattern.permute.xlu0 64
        %3994 = vperm.xlu0 %3993, %v2422
        %v3995 = vpop.permute.xlu0 %3994
        %3997 = vset.pattern.permute.xlu0 64
        %3998 = vperm.xlu0 %3997, %v2423
        %v3999 = vpop.permute.xlu0 %3998
        %4001 = vset.pattern.permute.xlu0 64
        %4002 = vperm.xlu0 %4001, %v2424
        %v4003 = vpop.permute.xlu0 %4002
        %4005 = vset.pattern.permute.xlu0 64
        %4006 = vperm.xlu0 %4005, %v2425
        %v4007 = vpop.permute.xlu0 %4006
        %4009 = vset.pattern.permute.xlu0 64
        %4010 = vperm.xlu0 %4009, %v2426
        %v4011 = vpop.permute.xlu0 %4010
        %4013 = vset.pattern.permute.xlu0 64
        %4014 = vperm.xlu0 %4013, %v2427
        %v4015 = vpop.permute.xlu0 %4014
        %4017 = vset.pattern.permute.xlu0 64
        %4018 = vperm.xlu0 %4017, %v2428
        %v4019 = vpop.permute.xlu0 %4018
        %4021 = vset.pattern.permute.xlu0 64
        %4022 = vperm.xlu0 %4021, %v2429
        %v4023 = vpop.permute.xlu0 %4022
        %4025 = vset.pattern.permute.xlu0 64
        %4026 = vperm.xlu0 %4025, %v2430
        %v4027 = vpop.permute.xlu0 %4026
        %v4029 = vmul.f32 %v3991, %v3381
        %v4030 = vmul.f32 %v3995, %v3384
        %v4031 = vmul.f32 %v3999, %v3387
        %v4032 = vmul.f32 %v4003, %v3390
        %v4033 = vmul.f32 %v4007, %v3393
        %v4034 = vmul.f32 %v4011, %v3396
        %v4035 = vmul.f32 %v4015, %v3399
        %v4036 = vmul.f32 %v4019, %v3402
        %v4037 = vmul.f32 %v4023, %v3405
        %v4038 = vmul.f32 %v4027, %v3408
        %v4039 = vadd.f32 %v3979, %v4029
        %v4040 = vadd.f32 %v3980, %v4030
        %v4041 = vadd.f32 %v3981, %v4031
        %v4042 = vadd.f32 %v3982, %v4032
        %v4043 = vadd.f32 %v3983, %v4033
        %v4044 = vadd.f32 %v3984, %v4034
        %v4045 = vadd.f32 %v3985, %v4035
        %v4046 = vadd.f32 %v3986, %v4036
        %v4047 = vadd.f32 %v3987, %v4037
        %v4048 = vadd.f32 %v3988, %v4038
        %4049 = vset.pattern.permute.xlu0 73
        %4050 = vperm.xlu0 %4049, %v2461
        %v4051 = vpop.permute.xlu0 %4050
        %4053 = vset.pattern.permute.xlu0 73
        %4054 = vperm.xlu0 %4053, %v2462
        %v4055 = vpop.permute.xlu0 %4054
        %4057 = vset.pattern.permute.xlu0 73
        %4058 = vperm.xlu0 %4057, %v2463
        %v4059 = vpop.permute.xlu0 %4058
        %4061 = vset.pattern.permute.xlu0 73
        %4062 = vperm.xlu0 %4061, %v2464
        %v4063 = vpop.permute.xlu0 %4062
        %4065 = vset.pattern.permute.xlu0 73
        %4066 = vperm.xlu0 %4065, %v2465
        %v4067 = vpop.permute.xlu0 %4066
        %4069 = vset.pattern.permute.xlu0 73
        %4070 = vperm.xlu0 %4069, %v2466
        %v4071 = vpop.permute.xlu0 %4070
        %4073 = vset.pattern.permute.xlu0 73
        %4074 = vperm.xlu0 %4073, %v2467
        %v4075 = vpop.permute.xlu0 %4074
        %4077 = vset.pattern.permute.xlu0 73
        %4078 = vperm.xlu0 %4077, %v2468
        %v4079 = vpop.permute.xlu0 %4078
        %4081 = vset.pattern.permute.xlu0 73
        %4082 = vperm.xlu0 %4081, %v2469
        %v4083 = vpop.permute.xlu0 %4082
        %4085 = vset.pattern.permute.xlu0 73
        %4086 = vperm.xlu0 %4085, %v2470
        %v4087 = vpop.permute.xlu0 %4086
        %v4089 = vmul.f32 %v4051, %v3491
        %v4090 = vmul.f32 %v4055, %v3494
        %v4091 = vmul.f32 %v4059, %v3497
        %v4092 = vmul.f32 %v4063, %v3500
        %v4093 = vmul.f32 %v4067, %v3503
        %v4094 = vmul.f32 %v4071, %v3506
        %v4095 = vmul.f32 %v4075, %v3509
        %v4096 = vmul.f32 %v4079, %v3512
        %v4097 = vmul.f32 %v4083, %v3515
        %v4098 = vmul.f32 %v4087, %v3518
        %v4099 = vadd.f32 %v4039, %v4089
        %v4100 = vadd.f32 %v4040, %v4090
        %v4101 = vadd.f32 %v4041, %v4091
        %v4102 = vadd.f32 %v4042, %v4092
        %v4103 = vadd.f32 %v4043, %v4093
        %v4104 = vadd.f32 %v4044, %v4094
        %v4105 = vadd.f32 %v4045, %v4095
        %v4106 = vadd.f32 %v4046, %v4096
        %v4107 = vadd.f32 %v4047, %v4097
        %v4108 = vadd.f32 %v4048, %v4098
        %v4109 = vld [vmem:[#allocation4 + $0x1] sm:$0xff]
        %v4110 = vld [vmem:[#allocation4 + $0x11] sm:$0xff]
        %v4111 = vld [vmem:[#allocation4 + $0x21] sm:$0xff]
        %v4112 = vld [vmem:[#allocation4 + $0x31] sm:$0xff]
        %v4113 = vld [vmem:[#allocation4 + $0x41] sm:$0xff]
        %v4114 = vld [vmem:[#allocation4 + $0x51] sm:$0xff]
        %v4115 = vld [vmem:[#allocation4 + $0x61] sm:$0xff]
        %v4116 = vld [vmem:[#allocation4 + $0x71] sm:$0xff]
        %v4117 = vld [vmem:[#allocation4 + $0x81] sm:$0xff]
        %v4118 = vld [vmem:[#allocation4 + $0x91] sm:$0xff]
        %v4119 = vadd.f32 %v4109, %v4099
        %v4120 = vadd.f32 %v4110, %v4100
        %v4121 = vadd.f32 %v4111, %v4101
        %v4122 = vadd.f32 %v4112, %v4102
        %v4123 = vadd.f32 %v4113, %v4103
        %v4124 = vadd.f32 %v4114, %v4104
        %v4125 = vadd.f32 %v4115, %v4105
        %v4126 = vadd.f32 %v4116, %v4106
        %v4127 = vadd.f32 %v4117, %v4107
        %v4128 = vadd.f32 %v4118, %v4108
        %4129 = vst.msk [vmem:[#allocation4 + $0x1] sm:$0xff] %vm740, %v4119
        %4130 = vst.msk [vmem:[#allocation4 + $0x11] sm:$0xff] %vm740, %v4120
        %4131 = vst.msk [vmem:[#allocation4 + $0x21] sm:$0xff] %vm740, %v4121
        %4132 = vst.msk [vmem:[#allocation4 + $0x31] sm:$0xff] %vm740, %v4122
        %4133 = vst.msk [vmem:[#allocation4 + $0x41] sm:$0xff] %vm740, %v4123
        %4134 = vst.msk [vmem:[#allocation4 + $0x51] sm:$0xff] %vm740, %v4124
        %4135 = vst.msk [vmem:[#allocation4 + $0x61] sm:$0xff] %vm740, %v4125
        %4136 = vst.msk [vmem:[#allocation4 + $0x71] sm:$0xff] %vm740, %v4126
        %4137 = vst.msk [vmem:[#allocation4 + $0x81] sm:$0xff] %vm740, %v4127
        %4138 = vst.msk [vmem:[#allocation4 + $0x91] sm:$0xff] %vm740, %v4128
        %4139 = vset.pattern.permute.xlu0 2
        %4140 = vperm.xlu0 %4139, %v2131
        %v4141 = vpop.permute.xlu0 %4140
        %4143 = vset.pattern.permute.xlu0 2
        %4144 = vperm.xlu0 %4143, %v2132
        %v4145 = vpop.permute.xlu0 %4144
        %4147 = vset.pattern.permute.xlu0 2
        %4148 = vperm.xlu0 %4147, %v2133
        %v4149 = vpop.permute.xlu0 %4148
        %4151 = vset.pattern.permute.xlu0 2
        %4152 = vperm.xlu0 %4151, %v2134
        %v4153 = vpop.permute.xlu0 %4152
        %4155 = vset.pattern.permute.xlu0 2
        %4156 = vperm.xlu0 %4155, %v2135
        %v4157 = vpop.permute.xlu0 %4156
        %4159 = vset.pattern.permute.xlu0 2
        %4160 = vperm.xlu0 %4159, %v2136
        %v4161 = vpop.permute.xlu0 %4160
        %4163 = vset.pattern.permute.xlu0 2
        %4164 = vperm.xlu0 %4163, %v2137
        %v4165 = vpop.permute.xlu0 %4164
        %4167 = vset.pattern.permute.xlu0 2
        %4168 = vperm.xlu0 %4167, %v2138
        %v4169 = vpop.permute.xlu0 %4168
        %4171 = vset.pattern.permute.xlu0 2
        %4172 = vperm.xlu0 %4171, %v2139
        %v4173 = vpop.permute.xlu0 %4172
        %4175 = vset.pattern.permute.xlu0 2
        %4176 = vperm.xlu0 %4175, %v2140
        %v4177 = vpop.permute.xlu0 %4176
        %v4179 = vmul.f32 %v4141, %v2567
        %v4180 = vmul.f32 %v4145, %v2568
        %v4181 = vmul.f32 %v4149, %v2569
        %v4182 = vmul.f32 %v4153, %v2570
        %v4183 = vmul.f32 %v4157, %v2571
        %v4184 = vmul.f32 %v4161, %v2572
        %v4185 = vmul.f32 %v4165, %v2573
        %v4186 = vmul.f32 %v4169, %v2574
        %v4187 = vmul.f32 %v4173, %v2575
        %v4188 = vmul.f32 %v4177, %v2576
        %4189 = vset.pattern.permute.xlu0 11
        %4190 = vperm.xlu0 %4189, %v2181
        %v4191 = vpop.permute.xlu0 %4190
        %4193 = vset.pattern.permute.xlu0 11
        %4194 = vperm.xlu0 %4193, %v2182
        %v4195 = vpop.permute.xlu0 %4194
        %4197 = vset.pattern.permute.xlu0 11
        %4198 = vperm.xlu0 %4197, %v2183
        %v4199 = vpop.permute.xlu0 %4198
        %4201 = vset.pattern.permute.xlu0 11
        %4202 = vperm.xlu0 %4201, %v2184
        %v4203 = vpop.permute.xlu0 %4202
        %4205 = vset.pattern.permute.xlu0 11
        %4206 = vperm.xlu0 %4205, %v2185
        %v4207 = vpop.permute.xlu0 %4206
        %4209 = vset.pattern.permute.xlu0 11
        %4210 = vperm.xlu0 %4209, %v2186
        %v4211 = vpop.permute.xlu0 %4210
        %4213 = vset.pattern.permute.xlu0 11
        %4214 = vperm.xlu0 %4213, %v2187
        %v4215 = vpop.permute.xlu0 %4214
        %4217 = vset.pattern.permute.xlu0 11
        %4218 = vperm.xlu0 %4217, %v2188
        %v4219 = vpop.permute.xlu0 %4218
        %4221 = vset.pattern.permute.xlu0 11
        %4222 = vperm.xlu0 %4221, %v2189
        %v4223 = vpop.permute.xlu0 %4222
        %4225 = vset.pattern.permute.xlu0 11
        %4226 = vperm.xlu0 %4225, %v2190
        %v4227 = vpop.permute.xlu0 %4226
        %v4229 = vmul.f32 %v4191, %v2720
        %v4230 = vmul.f32 %v4195, %v2723
        %v4231 = vmul.f32 %v4199, %v2726
        %v4232 = vmul.f32 %v4203, %v2729
        %v4233 = vmul.f32 %v4207, %v2732
        %v4234 = vmul.f32 %v4211, %v2735
        %v4235 = vmul.f32 %v4215, %v2738
        %v4236 = vmul.f32 %v4219, %v2741
        %v4237 = vmul.f32 %v4223, %v2744
        %v4238 = vmul.f32 %v4227, %v2747
        %v4239 = vadd.f32 %v4179, %v4229
        %v4240 = vadd.f32 %v4180, %v4230
        %v4241 = vadd.f32 %v4181, %v4231
        %v4242 = vadd.f32 %v4182, %v4232
        %v4243 = vadd.f32 %v4183, %v4233
        %v4244 = vadd.f32 %v4184, %v4234
        %v4245 = vadd.f32 %v4185, %v4235
        %v4246 = vadd.f32 %v4186, %v4236
        %v4247 = vadd.f32 %v4187, %v4237
        %v4248 = vadd.f32 %v4188, %v4238
        %4249 = vset.pattern.permute.xlu0 20
        %4250 = vperm.xlu0 %4249, %v2221
        %v4251 = vpop.permute.xlu0 %4250
        %4253 = vset.pattern.permute.xlu0 20
        %4254 = vperm.xlu0 %4253, %v2222
        %v4255 = vpop.permute.xlu0 %4254
        %4257 = vset.pattern.permute.xlu0 20
        %4258 = vperm.xlu0 %4257, %v2223
        %v4259 = vpop.permute.xlu0 %4258
        %4261 = vset.pattern.permute.xlu0 20
        %4262 = vperm.xlu0 %4261, %v2224
        %v4263 = vpop.permute.xlu0 %4262
        %4265 = vset.pattern.permute.xlu0 20
        %4266 = vperm.xlu0 %4265, %v2225
        %v4267 = vpop.permute.xlu0 %4266
        %4269 = vset.pattern.permute.xlu0 20
        %4270 = vperm.xlu0 %4269, %v2226
        %v4271 = vpop.permute.xlu0 %4270
        %4273 = vset.pattern.permute.xlu0 20
        %4274 = vperm.xlu0 %4273, %v2227
        %v4275 = vpop.permute.xlu0 %4274
        %4277 = vset.pattern.permute.xlu0 20
        %4278 = vperm.xlu0 %4277, %v2228
        %v4279 = vpop.permute.xlu0 %4278
        %4281 = vset.pattern.permute.xlu0 20
        %4282 = vperm.xlu0 %4281, %v2229
        %v4283 = vpop.permute.xlu0 %4282
        %4285 = vset.pattern.permute.xlu0 20
        %4286 = vperm.xlu0 %4285, %v2230
        %v4287 = vpop.permute.xlu0 %4286
        %v4289 = vmul.f32 %v4251, %v2831
        %v4290 = vmul.f32 %v4255, %v2834
        %v4291 = vmul.f32 %v4259, %v2837
        %v4292 = vmul.f32 %v4263, %v2840
        %v4293 = vmul.f32 %v4267, %v2843
        %v4294 = vmul.f32 %v4271, %v2846
        %v4295 = vmul.f32 %v4275, %v2849
        %v4296 = vmul.f32 %v4279, %v2852
        %v4297 = vmul.f32 %v4283, %v2855
        %v4298 = vmul.f32 %v4287, %v2858
        %v4299 = vadd.f32 %v4239, %v4289
        %v4300 = vadd.f32 %v4240, %v4290
        %v4301 = vadd.f32 %v4241, %v4291
        %v4302 = vadd.f32 %v4242, %v4292
        %v4303 = vadd.f32 %v4243, %v4293
        %v4304 = vadd.f32 %v4244, %v4294
        %v4305 = vadd.f32 %v4245, %v4295
        %v4306 = vadd.f32 %v4246, %v4296
        %v4307 = vadd.f32 %v4247, %v4297
        %v4308 = vadd.f32 %v4248, %v4298
        %4309 = vset.pattern.permute.xlu0 29
        %4310 = vperm.xlu0 %4309, %v2261
        %v4311 = vpop.permute.xlu0 %4310
        %4313 = vset.pattern.permute.xlu0 29
        %4314 = vperm.xlu0 %4313, %v2262
        %v4315 = vpop.permute.xlu0 %4314
        %4317 = vset.pattern.permute.xlu0 29
        %4318 = vperm.xlu0 %4317, %v2263
        %v4319 = vpop.permute.xlu0 %4318
        %4321 = vset.pattern.permute.xlu0 29
        %4322 = vperm.xlu0 %4321, %v2264
        %v4323 = vpop.permute.xlu0 %4322
        %4325 = vset.pattern.permute.xlu0 29
        %4326 = vperm.xlu0 %4325, %v2265
        %v4327 = vpop.permute.xlu0 %4326
        %4329 = vset.pattern.permute.xlu0 29
        %4330 = vperm.xlu0 %4329, %v2266
        %v4331 = vpop.permute.xlu0 %4330
        %4333 = vset.pattern.permute.xlu0 29
        %4334 = vperm.xlu0 %4333, %v2267
        %v4335 = vpop.permute.xlu0 %4334
        %4337 = vset.pattern.permute.xlu0 29
        %4338 = vperm.xlu0 %4337, %v2268
        %v4339 = vpop.permute.xlu0 %4338
        %4341 = vset.pattern.permute.xlu0 29
        %4342 = vperm.xlu0 %4341, %v2269
        %v4343 = vpop.permute.xlu0 %4342
        %4345 = vset.pattern.permute.xlu0 29
        %4346 = vperm.xlu0 %4345, %v2270
        %v4347 = vpop.permute.xlu0 %4346
        %v4349 = vmul.f32 %v4311, %v2889
        %v4350 = vmul.f32 %v4315, %v2890
        %v4351 = vmul.f32 %v4319, %v2891
        %v4352 = vmul.f32 %v4323, %v2892
        %v4353 = vmul.f32 %v4327, %v2893
        %v4354 = vmul.f32 %v4331, %v2894
        %v4355 = vmul.f32 %v4335, %v2895
        %v4356 = vmul.f32 %v4339, %v2896
        %v4357 = vmul.f32 %v4343, %v2897
        %v4358 = vmul.f32 %v4347, %v2898
        %v4359 = vadd.f32 %v4299, %v4349
        %v4360 = vadd.f32 %v4300, %v4350
        %v4361 = vadd.f32 %v4301, %v4351
        %v4362 = vadd.f32 %v4302, %v4352
        %v4363 = vadd.f32 %v4303, %v4353
        %v4364 = vadd.f32 %v4304, %v4354
        %v4365 = vadd.f32 %v4305, %v4355
        %v4366 = vadd.f32 %v4306, %v4356
        %v4367 = vadd.f32 %v4307, %v4357
        %v4368 = vadd.f32 %v4308, %v4358
        %4369 = vset.pattern.permute.xlu0 38
        %4370 = vperm.xlu0 %4369, %v2301
        %v4371 = vpop.permute.xlu0 %4370
        %4373 = vset.pattern.permute.xlu0 38
        %4374 = vperm.xlu0 %4373, %v2302
        %v4375 = vpop.permute.xlu0 %4374
        %4377 = vset.pattern.permute.xlu0 38
        %4378 = vperm.xlu0 %4377, %v2303
        %v4379 = vpop.permute.xlu0 %4378
        %4381 = vset.pattern.permute.xlu0 38
        %4382 = vperm.xlu0 %4381, %v2304
        %v4383 = vpop.permute.xlu0 %4382
        %4385 = vset.pattern.permute.xlu0 38
        %4386 = vperm.xlu0 %4385, %v2305
        %v4387 = vpop.permute.xlu0 %4386
        %4389 = vset.pattern.permute.xlu0 38
        %4390 = vperm.xlu0 %4389, %v2306
        %v4391 = vpop.permute.xlu0 %4390
        %4393 = vset.pattern.permute.xlu0 38
        %4394 = vperm.xlu0 %4393, %v2307
        %v4395 = vpop.permute.xlu0 %4394
        %4397 = vset.pattern.permute.xlu0 38
        %4398 = vperm.xlu0 %4397, %v2308
        %v4399 = vpop.permute.xlu0 %4398
        %4401 = vset.pattern.permute.xlu0 38
        %4402 = vperm.xlu0 %4401, %v2309
        %v4403 = vpop.permute.xlu0 %4402
        %4405 = vset.pattern.permute.xlu0 38
        %4406 = vperm.xlu0 %4405, %v2310
        %v4407 = vpop.permute.xlu0 %4406
        %v4409 = vmul.f32 %v4371, %v3051
        %v4410 = vmul.f32 %v4375, %v3054
        %v4411 = vmul.f32 %v4379, %v3057
        %v4412 = vmul.f32 %v4383, %v3060
        %v4413 = vmul.f32 %v4387, %v3063
        %v4414 = vmul.f32 %v4391, %v3066
        %v4415 = vmul.f32 %v4395, %v3069
        %v4416 = vmul.f32 %v4399, %v3072
        %v4417 = vmul.f32 %v4403, %v3075
        %v4418 = vmul.f32 %v4407, %v3078
        %v4419 = vadd.f32 %v4359, %v4409
        %v4420 = vadd.f32 %v4360, %v4410
        %v4421 = vadd.f32 %v4361, %v4411
        %v4422 = vadd.f32 %v4362, %v4412
        %v4423 = vadd.f32 %v4363, %v4413
        %v4424 = vadd.f32 %v4364, %v4414
        %v4425 = vadd.f32 %v4365, %v4415
        %v4426 = vadd.f32 %v4366, %v4416
        %v4427 = vadd.f32 %v4367, %v4417
        %v4428 = vadd.f32 %v4368, %v4418
        %4429 = vset.pattern.permute.xlu0 47
        %4430 = vperm.xlu0 %4429, %v2341
        %v4431 = vpop.permute.xlu0 %4430
        %4433 = vset.pattern.permute.xlu0 47
        %4434 = vperm.xlu0 %4433, %v2342
        %v4435 = vpop.permute.xlu0 %4434
        %4437 = vset.pattern.permute.xlu0 47
        %4438 = vperm.xlu0 %4437, %v2343
        %v4439 = vpop.permute.xlu0 %4438
        %4441 = vset.pattern.permute.xlu0 47
        %4442 = vperm.xlu0 %4441, %v2344
        %v4443 = vpop.permute.xlu0 %4442
        %4445 = vset.pattern.permute.xlu0 47
        %4446 = vperm.xlu0 %4445, %v2345
        %v4447 = vpop.permute.xlu0 %4446
        %4449 = vset.pattern.permute.xlu0 47
        %4450 = vperm.xlu0 %4449, %v2346
        %v4451 = vpop.permute.xlu0 %4450
        %4453 = vset.pattern.permute.xlu0 47
        %4454 = vperm.xlu0 %4453, %v2347
        %v4455 = vpop.permute.xlu0 %4454
        %4457 = vset.pattern.permute.xlu0 47
        %4458 = vperm.xlu0 %4457, %v2348
        %v4459 = vpop.permute.xlu0 %4458
        %4461 = vset.pattern.permute.xlu0 47
        %4462 = vperm.xlu0 %4461, %v2349
        %v4463 = vpop.permute.xlu0 %4462
        %4465 = vset.pattern.permute.xlu0 47
        %4466 = vperm.xlu0 %4465, %v2350
        %v4467 = vpop.permute.xlu0 %4466
        %v4469 = vmul.f32 %v4431, %v3161
        %v4470 = vmul.f32 %v4435, %v3164
        %v4471 = vmul.f32 %v4439, %v3167
        %v4472 = vmul.f32 %v4443, %v3170
        %v4473 = vmul.f32 %v4447, %v3173
        %v4474 = vmul.f32 %v4451, %v3176
        %v4475 = vmul.f32 %v4455, %v3179
        %v4476 = vmul.f32 %v4459, %v3182
        %v4477 = vmul.f32 %v4463, %v3185
        %v4478 = vmul.f32 %v4467, %v3188
        %v4479 = vadd.f32 %v4419, %v4469
        %v4480 = vadd.f32 %v4420, %v4470
        %v4481 = vadd.f32 %v4421, %v4471
        %v4482 = vadd.f32 %v4422, %v4472
        %v4483 = vadd.f32 %v4423, %v4473
        %v4484 = vadd.f32 %v4424, %v4474
        %v4485 = vadd.f32 %v4425, %v4475
        %v4486 = vadd.f32 %v4426, %v4476
        %v4487 = vadd.f32 %v4427, %v4477
        %v4488 = vadd.f32 %v4428, %v4478
        %4489 = vset.pattern.permute.xlu0 56
        %4490 = vperm.xlu0 %4489, %v2381
        %v4491 = vpop.permute.xlu0 %4490
        %4493 = vset.pattern.permute.xlu0 56
        %4494 = vperm.xlu0 %4493, %v2382
        %v4495 = vpop.permute.xlu0 %4494
        %4497 = vset.pattern.permute.xlu0 56
        %4498 = vperm.xlu0 %4497, %v2383
        %v4499 = vpop.permute.xlu0 %4498
        %4501 = vset.pattern.permute.xlu0 56
        %4502 = vperm.xlu0 %4501, %v2384
        %v4503 = vpop.permute.xlu0 %4502
        %4505 = vset.pattern.permute.xlu0 56
        %4506 = vperm.xlu0 %4505, %v2385
        %v4507 = vpop.permute.xlu0 %4506
        %4509 = vset.pattern.permute.xlu0 56
        %4510 = vperm.xlu0 %4509, %v2386
        %v4511 = vpop.permute.xlu0 %4510
        %4513 = vset.pattern.permute.xlu0 56
        %4514 = vperm.xlu0 %4513, %v2387
        %v4515 = vpop.permute.xlu0 %4514
        %4517 = vset.pattern.permute.xlu0 56
        %4518 = vperm.xlu0 %4517, %v2388
        %v4519 = vpop.permute.xlu0 %4518
        %4521 = vset.pattern.permute.xlu0 56
        %4522 = vperm.xlu0 %4521, %v2389
        %v4523 = vpop.permute.xlu0 %4522
        %4525 = vset.pattern.permute.xlu0 56
        %4526 = vperm.xlu0 %4525, %v2390
        %v4527 = vpop.permute.xlu0 %4526
        %v4529 = vmul.f32 %v4491, %v3219
        %v4530 = vmul.f32 %v4495, %v3220
        %v4531 = vmul.f32 %v4499, %v3221
        %v4532 = vmul.f32 %v4503, %v3222
        %v4533 = vmul.f32 %v4507, %v3223
        %v4534 = vmul.f32 %v4511, %v3224
        %v4535 = vmul.f32 %v4515, %v3225
        %v4536 = vmul.f32 %v4519, %v3226
        %v4537 = vmul.f32 %v4523, %v3227
        %v4538 = vmul.f32 %v4527, %v3228
        %v4539 = vadd.f32 %v4479, %v4529
        %v4540 = vadd.f32 %v4480, %v4530
        %v4541 = vadd.f32 %v4481, %v4531
        %v4542 = vadd.f32 %v4482, %v4532
        %v4543 = vadd.f32 %v4483, %v4533
        %v4544 = vadd.f32 %v4484, %v4534
        %v4545 = vadd.f32 %v4485, %v4535
        %v4546 = vadd.f32 %v4486, %v4536
        %v4547 = vadd.f32 %v4487, %v4537
        %v4548 = vadd.f32 %v4488, %v4538
        %4549 = vset.pattern.permute.xlu0 65
        %4550 = vperm.xlu0 %4549, %v2421
        %v4551 = vpop.permute.xlu0 %4550
        %4553 = vset.pattern.permute.xlu0 65
        %4554 = vperm.xlu0 %4553, %v2422
        %v4555 = vpop.permute.xlu0 %4554
        %4557 = vset.pattern.permute.xlu0 65
        %4558 = vperm.xlu0 %4557, %v2423
        %v4559 = vpop.permute.xlu0 %4558
        %4561 = vset.pattern.permute.xlu0 65
        %4562 = vperm.xlu0 %4561, %v2424
        %v4563 = vpop.permute.xlu0 %4562
        %4565 = vset.pattern.permute.xlu0 65
        %4566 = vperm.xlu0 %4565, %v2425
        %v4567 = vpop.permute.xlu0 %4566
        %4569 = vset.pattern.permute.xlu0 65
        %4570 = vperm.xlu0 %4569, %v2426
        %v4571 = vpop.permute.xlu0 %4570
        %4573 = vset.pattern.permute.xlu0 65
        %4574 = vperm.xlu0 %4573, %v2427
        %v4575 = vpop.permute.xlu0 %4574
        %4577 = vset.pattern.permute.xlu0 65
        %4578 = vperm.xlu0 %4577, %v2428
        %v4579 = vpop.permute.xlu0 %4578
        %4581 = vset.pattern.permute.xlu0 65
        %4582 = vperm.xlu0 %4581, %v2429
        %v4583 = vpop.permute.xlu0 %4582
        %4585 = vset.pattern.permute.xlu0 65
        %4586 = vperm.xlu0 %4585, %v2430
        %v4587 = vpop.permute.xlu0 %4586
        %v4589 = vmul.f32 %v4551, %v3381
        %v4590 = vmul.f32 %v4555, %v3384
        %v4591 = vmul.f32 %v4559, %v3387
        %v4592 = vmul.f32 %v4563, %v3390
        %v4593 = vmul.f32 %v4567, %v3393
        %v4594 = vmul.f32 %v4571, %v3396
        %v4595 = vmul.f32 %v4575, %v3399
        %v4596 = vmul.f32 %v4579, %v3402
        %v4597 = vmul.f32 %v4583, %v3405
        %v4598 = vmul.f32 %v4587, %v3408
        %v4599 = vadd.f32 %v4539, %v4589
        %v4600 = vadd.f32 %v4540, %v4590
        %v4601 = vadd.f32 %v4541, %v4591
        %v4602 = vadd.f32 %v4542, %v4592
        %v4603 = vadd.f32 %v4543, %v4593
        %v4604 = vadd.f32 %v4544, %v4594
        %v4605 = vadd.f32 %v4545, %v4595
        %v4606 = vadd.f32 %v4546, %v4596
        %v4607 = vadd.f32 %v4547, %v4597
        %v4608 = vadd.f32 %v4548, %v4598
        %4609 = vset.pattern.permute.xlu0 74
        %4610 = vperm.xlu0 %4609, %v2461
        %v4611 = vpop.permute.xlu0 %4610
        %4613 = vset.pattern.permute.xlu0 74
        %4614 = vperm.xlu0 %4613, %v2462
        %v4615 = vpop.permute.xlu0 %4614
        %4617 = vset.pattern.permute.xlu0 74
        %4618 = vperm.xlu0 %4617, %v2463
        %v4619 = vpop.permute.xlu0 %4618
        %4621 = vset.pattern.permute.xlu0 74
        %4622 = vperm.xlu0 %4621, %v2464
        %v4623 = vpop.permute.xlu0 %4622
        %4625 = vset.pattern.permute.xlu0 74
        %4626 = vperm.xlu0 %4625, %v2465
        %v4627 = vpop.permute.xlu0 %4626
        %4629 = vset.pattern.permute.xlu0 74
        %4630 = vperm.xlu0 %4629, %v2466
        %v4631 = vpop.permute.xlu0 %4630
        %4633 = vset.pattern.permute.xlu0 74
        %4634 = vperm.xlu0 %4633, %v2467
        %v4635 = vpop.permute.xlu0 %4634
        %4637 = vset.pattern.permute.xlu0 74
        %4638 = vperm.xlu0 %4637, %v2468
        %v4639 = vpop.permute.xlu0 %4638
        %4641 = vset.pattern.permute.xlu0 74
        %4642 = vperm.xlu0 %4641, %v2469
        %v4643 = vpop.permute.xlu0 %4642
        %4645 = vset.pattern.permute.xlu0 74
        %4646 = vperm.xlu0 %4645, %v2470
        %v4647 = vpop.permute.xlu0 %4646
        %v4649 = vmul.f32 %v4611, %v3491
        %v4650 = vmul.f32 %v4615, %v3494
        %v4651 = vmul.f32 %v4619, %v3497
        %v4652 = vmul.f32 %v4623, %v3500
        %v4653 = vmul.f32 %v4627, %v3503
        %v4654 = vmul.f32 %v4631, %v3506
        %v4655 = vmul.f32 %v4635, %v3509
        %v4656 = vmul.f32 %v4639, %v3512
        %v4657 = vmul.f32 %v4643, %v3515
        %v4658 = vmul.f32 %v4647, %v3518
        %v4659 = vadd.f32 %v4599, %v4649
        %v4660 = vadd.f32 %v4600, %v4650
        %v4661 = vadd.f32 %v4601, %v4651
        %v4662 = vadd.f32 %v4602, %v4652
        %v4663 = vadd.f32 %v4603, %v4653
        %v4664 = vadd.f32 %v4604, %v4654
        %v4665 = vadd.f32 %v4605, %v4655
        %v4666 = vadd.f32 %v4606, %v4656
        %v4667 = vadd.f32 %v4607, %v4657
        %v4668 = vadd.f32 %v4608, %v4658
        %v4669 = vld [vmem:[#allocation4 + $0x2] sm:$0xff]
        %v4670 = vld [vmem:[#allocation4 + $0x12] sm:$0xff]
        %v4671 = vld [vmem:[#allocation4 + $0x22] sm:$0xff]
        %v4672 = vld [vmem:[#allocation4 + $0x32] sm:$0xff]
        %v4673 = vld [vmem:[#allocation4 + $0x42] sm:$0xff]
        %v4674 = vld [vmem:[#allocation4 + $0x52] sm:$0xff]
        %v4675 = vld [vmem:[#allocation4 + $0x62] sm:$0xff]
        %v4676 = vld [vmem:[#allocation4 + $0x72] sm:$0xff]
        %v4677 = vld [vmem:[#allocation4 + $0x82] sm:$0xff]
        %v4678 = vld [vmem:[#allocation4 + $0x92] sm:$0xff]
        %v4679 = vadd.f32 %v4669, %v4659
        %v4680 = vadd.f32 %v4670, %v4660
        %v4681 = vadd.f32 %v4671, %v4661
        %v4682 = vadd.f32 %v4672, %v4662
        %v4683 = vadd.f32 %v4673, %v4663
        %v4684 = vadd.f32 %v4674, %v4664
        %v4685 = vadd.f32 %v4675, %v4665
        %v4686 = vadd.f32 %v4676, %v4666
        %v4687 = vadd.f32 %v4677, %v4667
        %v4688 = vadd.f32 %v4678, %v4668
        %4689 = vst.msk [vmem:[#allocation4 + $0x2] sm:$0xff] %vm740, %v4679
        %4690 = vst.msk [vmem:[#allocation4 + $0x12] sm:$0xff] %vm740, %v4680
        %4691 = vst.msk [vmem:[#allocation4 + $0x22] sm:$0xff] %vm740, %v4681
        %4692 = vst.msk [vmem:[#allocation4 + $0x32] sm:$0xff] %vm740, %v4682
        %4693 = vst.msk [vmem:[#allocation4 + $0x42] sm:$0xff] %vm740, %v4683
        %4694 = vst.msk [vmem:[#allocation4 + $0x52] sm:$0xff] %vm740, %v4684
        %4695 = vst.msk [vmem:[#allocation4 + $0x62] sm:$0xff] %vm740, %v4685
        %4696 = vst.msk [vmem:[#allocation4 + $0x72] sm:$0xff] %vm740, %v4686
        %4697 = vst.msk [vmem:[#allocation4 + $0x82] sm:$0xff] %vm740, %v4687
        %4698 = vst.msk [vmem:[#allocation4 + $0x92] sm:$0xff] %vm740, %v4688
        %4699 = vset.pattern.permute.xlu0 3
        %4700 = vperm.xlu0 %4699, %v2131
        %v4701 = vpop.permute.xlu0 %4700
        %4703 = vset.pattern.permute.xlu0 3
        %4704 = vperm.xlu0 %4703, %v2132
        %v4705 = vpop.permute.xlu0 %4704
        %4707 = vset.pattern.permute.xlu0 3
        %4708 = vperm.xlu0 %4707, %v2133
        %v4709 = vpop.permute.xlu0 %4708
        %4711 = vset.pattern.permute.xlu0 3
        %4712 = vperm.xlu0 %4711, %v2134
        %v4713 = vpop.permute.xlu0 %4712
        %4715 = vset.pattern.permute.xlu0 3
        %4716 = vperm.xlu0 %4715, %v2135
        %v4717 = vpop.permute.xlu0 %4716
        %4719 = vset.pattern.permute.xlu0 3
        %4720 = vperm.xlu0 %4719, %v2136
        %v4721 = vpop.permute.xlu0 %4720
        %4723 = vset.pattern.permute.xlu0 3
        %4724 = vperm.xlu0 %4723, %v2137
        %v4725 = vpop.permute.xlu0 %4724
        %4727 = vset.pattern.permute.xlu0 3
        %4728 = vperm.xlu0 %4727, %v2138
        %v4729 = vpop.permute.xlu0 %4728
        %4731 = vset.pattern.permute.xlu0 3
        %4732 = vperm.xlu0 %4731, %v2139
        %v4733 = vpop.permute.xlu0 %4732
        %4735 = vset.pattern.permute.xlu0 3
        %4736 = vperm.xlu0 %4735, %v2140
        %v4737 = vpop.permute.xlu0 %4736
        %v4739 = vmul.f32 %v4701, %v2567
        %v4740 = vmul.f32 %v4705, %v2568
        %v4741 = vmul.f32 %v4709, %v2569
        %v4742 = vmul.f32 %v4713, %v2570
        %v4743 = vmul.f32 %v4717, %v2571
        %v4744 = vmul.f32 %v4721, %v2572
        %v4745 = vmul.f32 %v4725, %v2573
        %v4746 = vmul.f32 %v4729, %v2574
        %v4747 = vmul.f32 %v4733, %v2575
        %v4748 = vmul.f32 %v4737, %v2576
        %4749 = vset.pattern.permute.xlu0 12
        %4750 = vperm.xlu0 %4749, %v2181
        %v4751 = vpop.permute.xlu0 %4750
        %4753 = vset.pattern.permute.xlu0 12
        %4754 = vperm.xlu0 %4753, %v2182
        %v4755 = vpop.permute.xlu0 %4754
        %4757 = vset.pattern.permute.xlu0 12
        %4758 = vperm.xlu0 %4757, %v2183
        %v4759 = vpop.permute.xlu0 %4758
        %4761 = vset.pattern.permute.xlu0 12
        %4762 = vperm.xlu0 %4761, %v2184
        %v4763 = vpop.permute.xlu0 %4762
        %4765 = vset.pattern.permute.xlu0 12
        %4766 = vperm.xlu0 %4765, %v2185
        %v4767 = vpop.permute.xlu0 %4766
        %4769 = vset.pattern.permute.xlu0 12
        %4770 = vperm.xlu0 %4769, %v2186
        %v4771 = vpop.permute.xlu0 %4770
        %4773 = vset.pattern.permute.xlu0 12
        %4774 = vperm.xlu0 %4773, %v2187
        %v4775 = vpop.permute.xlu0 %4774
        %4777 = vset.pattern.permute.xlu0 12
        %4778 = vperm.xlu0 %4777, %v2188
        %v4779 = vpop.permute.xlu0 %4778
        %4781 = vset.pattern.permute.xlu0 12
        %4782 = vperm.xlu0 %4781, %v2189
        %v4783 = vpop.permute.xlu0 %4782
        %4785 = vset.pattern.permute.xlu0 12
        %4786 = vperm.xlu0 %4785, %v2190
        %v4787 = vpop.permute.xlu0 %4786
        %v4789 = vmul.f32 %v4751, %v2720
        %v4790 = vmul.f32 %v4755, %v2723
        %v4791 = vmul.f32 %v4759, %v2726
        %v4792 = vmul.f32 %v4763, %v2729
        %v4793 = vmul.f32 %v4767, %v2732
        %v4794 = vmul.f32 %v4771, %v2735
        %v4795 = vmul.f32 %v4775, %v2738
        %v4796 = vmul.f32 %v4779, %v2741
        %v4797 = vmul.f32 %v4783, %v2744
        %v4798 = vmul.f32 %v4787, %v2747
        %v4799 = vadd.f32 %v4739, %v4789
        %v4800 = vadd.f32 %v4740, %v4790
        %v4801 = vadd.f32 %v4741, %v4791
        %v4802 = vadd.f32 %v4742, %v4792
        %v4803 = vadd.f32 %v4743, %v4793
        %v4804 = vadd.f32 %v4744, %v4794
        %v4805 = vadd.f32 %v4745, %v4795
        %v4806 = vadd.f32 %v4746, %v4796
        %v4807 = vadd.f32 %v4747, %v4797
        %v4808 = vadd.f32 %v4748, %v4798
        %4809 = vset.pattern.permute.xlu0 21
        %4810 = vperm.xlu0 %4809, %v2221
        %v4811 = vpop.permute.xlu0 %4810
        %4813 = vset.pattern.permute.xlu0 21
        %4814 = vperm.xlu0 %4813, %v2222
        %v4815 = vpop.permute.xlu0 %4814
        %4817 = vset.pattern.permute.xlu0 21
        %4818 = vperm.xlu0 %4817, %v2223
        %v4819 = vpop.permute.xlu0 %4818
        %4821 = vset.pattern.permute.xlu0 21
        %4822 = vperm.xlu0 %4821, %v2224
        %v4823 = vpop.permute.xlu0 %4822
        %4825 = vset.pattern.permute.xlu0 21
        %4826 = vperm.xlu0 %4825, %v2225
        %v4827 = vpop.permute.xlu0 %4826
        %4829 = vset.pattern.permute.xlu0 21
        %4830 = vperm.xlu0 %4829, %v2226
        %v4831 = vpop.permute.xlu0 %4830
        %4833 = vset.pattern.permute.xlu0 21
        %4834 = vperm.xlu0 %4833, %v2227
        %v4835 = vpop.permute.xlu0 %4834
        %4837 = vset.pattern.permute.xlu0 21
        %4838 = vperm.xlu0 %4837, %v2228
        %v4839 = vpop.permute.xlu0 %4838
        %4841 = vset.pattern.permute.xlu0 21
        %4842 = vperm.xlu0 %4841, %v2229
        %v4843 = vpop.permute.xlu0 %4842
        %4845 = vset.pattern.permute.xlu0 21
        %4846 = vperm.xlu0 %4845, %v2230
        %v4847 = vpop.permute.xlu0 %4846
        %v4849 = vmul.f32 %v4811, %v2831
        %v4850 = vmul.f32 %v4815, %v2834
        %v4851 = vmul.f32 %v4819, %v2837
        %v4852 = vmul.f32 %v4823, %v2840
        %v4853 = vmul.f32 %v4827, %v2843
        %v4854 = vmul.f32 %v4831, %v2846
        %v4855 = vmul.f32 %v4835, %v2849
        %v4856 = vmul.f32 %v4839, %v2852
        %v4857 = vmul.f32 %v4843, %v2855
        %v4858 = vmul.f32 %v4847, %v2858
        %v4859 = vadd.f32 %v4799, %v4849
        %v4860 = vadd.f32 %v4800, %v4850
        %v4861 = vadd.f32 %v4801, %v4851
        %v4862 = vadd.f32 %v4802, %v4852
        %v4863 = vadd.f32 %v4803, %v4853
        %v4864 = vadd.f32 %v4804, %v4854
        %v4865 = vadd.f32 %v4805, %v4855
        %v4866 = vadd.f32 %v4806, %v4856
        %v4867 = vadd.f32 %v4807, %v4857
        %v4868 = vadd.f32 %v4808, %v4858
        %4869 = vset.pattern.permute.xlu0 30
        %4870 = vperm.xlu0 %4869, %v2261
        %v4871 = vpop.permute.xlu0 %4870
        %4873 = vset.pattern.permute.xlu0 30
        %4874 = vperm.xlu0 %4873, %v2262
        %v4875 = vpop.permute.xlu0 %4874
        %4877 = vset.pattern.permute.xlu0 30
        %4878 = vperm.xlu0 %4877, %v2263
        %v4879 = vpop.permute.xlu0 %4878
        %4881 = vset.pattern.permute.xlu0 30
        %4882 = vperm.xlu0 %4881, %v2264
        %v4883 = vpop.permute.xlu0 %4882
        %4885 = vset.pattern.permute.xlu0 30
        %4886 = vperm.xlu0 %4885, %v2265
        %v4887 = vpop.permute.xlu0 %4886
        %4889 = vset.pattern.permute.xlu0 30
        %4890 = vperm.xlu0 %4889, %v2266
        %v4891 = vpop.permute.xlu0 %4890
        %4893 = vset.pattern.permute.xlu0 30
        %4894 = vperm.xlu0 %4893, %v2267
        %v4895 = vpop.permute.xlu0 %4894
        %4897 = vset.pattern.permute.xlu0 30
        %4898 = vperm.xlu0 %4897, %v2268
        %v4899 = vpop.permute.xlu0 %4898
        %4901 = vset.pattern.permute.xlu0 30
        %4902 = vperm.xlu0 %4901, %v2269
        %v4903 = vpop.permute.xlu0 %4902
        %4905 = vset.pattern.permute.xlu0 30
        %4906 = vperm.xlu0 %4905, %v2270
        %v4907 = vpop.permute.xlu0 %4906
        %v4909 = vmul.f32 %v4871, %v2889
        %v4910 = vmul.f32 %v4875, %v2890
        %v4911 = vmul.f32 %v4879, %v2891
        %v4912 = vmul.f32 %v4883, %v2892
        %v4913 = vmul.f32 %v4887, %v2893
        %v4914 = vmul.f32 %v4891, %v2894
        %v4915 = vmul.f32 %v4895, %v2895
        %v4916 = vmul.f32 %v4899, %v2896
        %v4917 = vmul.f32 %v4903, %v2897
        %v4918 = vmul.f32 %v4907, %v2898
        %v4919 = vadd.f32 %v4859, %v4909
        %v4920 = vadd.f32 %v4860, %v4910
        %v4921 = vadd.f32 %v4861, %v4911
        %v4922 = vadd.f32 %v4862, %v4912
        %v4923 = vadd.f32 %v4863, %v4913
        %v4924 = vadd.f32 %v4864, %v4914
        %v4925 = vadd.f32 %v4865, %v4915
        %v4926 = vadd.f32 %v4866, %v4916
        %v4927 = vadd.f32 %v4867, %v4917
        %v4928 = vadd.f32 %v4868, %v4918
        %4929 = vset.pattern.permute.xlu0 39
        %4930 = vperm.xlu0 %4929, %v2301
        %v4931 = vpop.permute.xlu0 %4930
        %4933 = vset.pattern.permute.xlu0 39
        %4934 = vperm.xlu0 %4933, %v2302
        %v4935 = vpop.permute.xlu0 %4934
        %4937 = vset.pattern.permute.xlu0 39
        %4938 = vperm.xlu0 %4937, %v2303
        %v4939 = vpop.permute.xlu0 %4938
        %4941 = vset.pattern.permute.xlu0 39
        %4942 = vperm.xlu0 %4941, %v2304
        %v4943 = vpop.permute.xlu0 %4942
        %4945 = vset.pattern.permute.xlu0 39
        %4946 = vperm.xlu0 %4945, %v2305
        %v4947 = vpop.permute.xlu0 %4946
        %4949 = vset.pattern.permute.xlu0 39
        %4950 = vperm.xlu0 %4949, %v2306
        %v4951 = vpop.permute.xlu0 %4950
        %4953 = vset.pattern.permute.xlu0 39
        %4954 = vperm.xlu0 %4953, %v2307
        %v4955 = vpop.permute.xlu0 %4954
        %4957 = vset.pattern.permute.xlu0 39
        %4958 = vperm.xlu0 %4957, %v2308
        %v4959 = vpop.permute.xlu0 %4958
        %4961 = vset.pattern.permute.xlu0 39
        %4962 = vperm.xlu0 %4961, %v2309
        %v4963 = vpop.permute.xlu0 %4962
        %4965 = vset.pattern.permute.xlu0 39
        %4966 = vperm.xlu0 %4965, %v2310
        %v4967 = vpop.permute.xlu0 %4966
        %v4969 = vmul.f32 %v4931, %v3051
        %v4970 = vmul.f32 %v4935, %v3054
        %v4971 = vmul.f32 %v4939, %v3057
        %v4972 = vmul.f32 %v4943, %v3060
        %v4973 = vmul.f32 %v4947, %v3063
        %v4974 = vmul.f32 %v4951, %v3066
        %v4975 = vmul.f32 %v4955, %v3069
        %v4976 = vmul.f32 %v4959, %v3072
        %v4977 = vmul.f32 %v4963, %v3075
        %v4978 = vmul.f32 %v4967, %v3078
        %v4979 = vadd.f32 %v4919, %v4969
        %v4980 = vadd.f32 %v4920, %v4970
        %v4981 = vadd.f32 %v4921, %v4971
        %v4982 = vadd.f32 %v4922, %v4972
        %v4983 = vadd.f32 %v4923, %v4973
        %v4984 = vadd.f32 %v4924, %v4974
        %v4985 = vadd.f32 %v4925, %v4975
        %v4986 = vadd.f32 %v4926, %v4976
        %v4987 = vadd.f32 %v4927, %v4977
        %v4988 = vadd.f32 %v4928, %v4978
        %4989 = vset.pattern.permute.xlu0 48
        %4990 = vperm.xlu0 %4989, %v2341
        %v4991 = vpop.permute.xlu0 %4990
        %4993 = vset.pattern.permute.xlu0 48
        %4994 = vperm.xlu0 %4993, %v2342
        %v4995 = vpop.permute.xlu0 %4994
        %4997 = vset.pattern.permute.xlu0 48
        %4998 = vperm.xlu0 %4997, %v2343
        %v4999 = vpop.permute.xlu0 %4998
        %5001 = vset.pattern.permute.xlu0 48
        %5002 = vperm.xlu0 %5001, %v2344
        %v5003 = vpop.permute.xlu0 %5002
        %5005 = vset.pattern.permute.xlu0 48
        %5006 = vperm.xlu0 %5005, %v2345
        %v5007 = vpop.permute.xlu0 %5006
        %5009 = vset.pattern.permute.xlu0 48
        %5010 = vperm.xlu0 %5009, %v2346
        %v5011 = vpop.permute.xlu0 %5010
        %5013 = vset.pattern.permute.xlu0 48
        %5014 = vperm.xlu0 %5013, %v2347
        %v5015 = vpop.permute.xlu0 %5014
        %5017 = vset.pattern.permute.xlu0 48
        %5018 = vperm.xlu0 %5017, %v2348
        %v5019 = vpop.permute.xlu0 %5018
        %5021 = vset.pattern.permute.xlu0 48
        %5022 = vperm.xlu0 %5021, %v2349
        %v5023 = vpop.permute.xlu0 %5022
        %5025 = vset.pattern.permute.xlu0 48
        %5026 = vperm.xlu0 %5025, %v2350
        %v5027 = vpop.permute.xlu0 %5026
        %v5029 = vmul.f32 %v4991, %v3161
        %v5030 = vmul.f32 %v4995, %v3164
        %v5031 = vmul.f32 %v4999, %v3167
        %v5032 = vmul.f32 %v5003, %v3170
        %v5033 = vmul.f32 %v5007, %v3173
        %v5034 = vmul.f32 %v5011, %v3176
        %v5035 = vmul.f32 %v5015, %v3179
        %v5036 = vmul.f32 %v5019, %v3182
        %v5037 = vmul.f32 %v5023, %v3185
        %v5038 = vmul.f32 %v5027, %v3188
        %v5039 = vadd.f32 %v4979, %v5029
        %v5040 = vadd.f32 %v4980, %v5030
        %v5041 = vadd.f32 %v4981, %v5031
        %v5042 = vadd.f32 %v4982, %v5032
        %v5043 = vadd.f32 %v4983, %v5033
        %v5044 = vadd.f32 %v4984, %v5034
        %v5045 = vadd.f32 %v4985, %v5035
        %v5046 = vadd.f32 %v4986, %v5036
        %v5047 = vadd.f32 %v4987, %v5037
        %v5048 = vadd.f32 %v4988, %v5038
        %5049 = vset.pattern.permute.xlu0 57
        %5050 = vperm.xlu0 %5049, %v2381
        %v5051 = vpop.permute.xlu0 %5050
        %5053 = vset.pattern.permute.xlu0 57
        %5054 = vperm.xlu0 %5053, %v2382
        %v5055 = vpop.permute.xlu0 %5054
        %5057 = vset.pattern.permute.xlu0 57
        %5058 = vperm.xlu0 %5057, %v2383
        %v5059 = vpop.permute.xlu0 %5058
        %5061 = vset.pattern.permute.xlu0 57
        %5062 = vperm.xlu0 %5061, %v2384
        %v5063 = vpop.permute.xlu0 %5062
        %5065 = vset.pattern.permute.xlu0 57
        %5066 = vperm.xlu0 %5065, %v2385
        %v5067 = vpop.permute.xlu0 %5066
        %5069 = vset.pattern.permute.xlu0 57
        %5070 = vperm.xlu0 %5069, %v2386
        %v5071 = vpop.permute.xlu0 %5070
        %5073 = vset.pattern.permute.xlu0 57
        %5074 = vperm.xlu0 %5073, %v2387
        %v5075 = vpop.permute.xlu0 %5074
        %5077 = vset.pattern.permute.xlu0 57
        %5078 = vperm.xlu0 %5077, %v2388
        %v5079 = vpop.permute.xlu0 %5078
        %5081 = vset.pattern.permute.xlu0 57
        %5082 = vperm.xlu0 %5081, %v2389
        %v5083 = vpop.permute.xlu0 %5082
        %5085 = vset.pattern.permute.xlu0 57
        %5086 = vperm.xlu0 %5085, %v2390
        %v5087 = vpop.permute.xlu0 %5086
        %v5089 = vmul.f32 %v5051, %v3219
        %v5090 = vmul.f32 %v5055, %v3220
        %v5091 = vmul.f32 %v5059, %v3221
        %v5092 = vmul.f32 %v5063, %v3222
        %v5093 = vmul.f32 %v5067, %v3223
        %v5094 = vmul.f32 %v5071, %v3224
        %v5095 = vmul.f32 %v5075, %v3225
        %v5096 = vmul.f32 %v5079, %v3226
        %v5097 = vmul.f32 %v5083, %v3227
        %v5098 = vmul.f32 %v5087, %v3228
        %v5099 = vadd.f32 %v5039, %v5089
        %v5100 = vadd.f32 %v5040, %v5090
        %v5101 = vadd.f32 %v5041, %v5091
        %v5102 = vadd.f32 %v5042, %v5092
        %v5103 = vadd.f32 %v5043, %v5093
        %v5104 = vadd.f32 %v5044, %v5094
        %v5105 = vadd.f32 %v5045, %v5095
        %v5106 = vadd.f32 %v5046, %v5096
        %v5107 = vadd.f32 %v5047, %v5097
        %v5108 = vadd.f32 %v5048, %v5098
        %5109 = vset.pattern.permute.xlu0 66
        %5110 = vperm.xlu0 %5109, %v2421
        %v5111 = vpop.permute.xlu0 %5110
        %5113 = vset.pattern.permute.xlu0 66
        %5114 = vperm.xlu0 %5113, %v2422
        %v5115 = vpop.permute.xlu0 %5114
        %5117 = vset.pattern.permute.xlu0 66
        %5118 = vperm.xlu0 %5117, %v2423
        %v5119 = vpop.permute.xlu0 %5118
        %5121 = vset.pattern.permute.xlu0 66
        %5122 = vperm.xlu0 %5121, %v2424
        %v5123 = vpop.permute.xlu0 %5122
        %5125 = vset.pattern.permute.xlu0 66
        %5126 = vperm.xlu0 %5125, %v2425
        %v5127 = vpop.permute.xlu0 %5126
        %5129 = vset.pattern.permute.xlu0 66
        %5130 = vperm.xlu0 %5129, %v2426
        %v5131 = vpop.permute.xlu0 %5130
        %5133 = vset.pattern.permute.xlu0 66
        %5134 = vperm.xlu0 %5133, %v2427
        %v5135 = vpop.permute.xlu0 %5134
        %5137 = vset.pattern.permute.xlu0 66
        %5138 = vperm.xlu0 %5137, %v2428
        %v5139 = vpop.permute.xlu0 %5138
        %5141 = vset.pattern.permute.xlu0 66
        %5142 = vperm.xlu0 %5141, %v2429
        %v5143 = vpop.permute.xlu0 %5142
        %5145 = vset.pattern.permute.xlu0 66
        %5146 = vperm.xlu0 %5145, %v2430
        %v5147 = vpop.permute.xlu0 %5146
        %v5149 = vmul.f32 %v5111, %v3381
        %v5150 = vmul.f32 %v5115, %v3384
        %v5151 = vmul.f32 %v5119, %v3387
        %v5152 = vmul.f32 %v5123, %v3390
        %v5153 = vmul.f32 %v5127, %v3393
        %v5154 = vmul.f32 %v5131, %v3396
        %v5155 = vmul.f32 %v5135, %v3399
        %v5156 = vmul.f32 %v5139, %v3402
        %v5157 = vmul.f32 %v5143, %v3405
        %v5158 = vmul.f32 %v5147, %v3408
        %v5159 = vadd.f32 %v5099, %v5149
        %v5160 = vadd.f32 %v5100, %v5150
        %v5161 = vadd.f32 %v5101, %v5151
        %v5162 = vadd.f32 %v5102, %v5152
        %v5163 = vadd.f32 %v5103, %v5153
        %v5164 = vadd.f32 %v5104, %v5154
        %v5165 = vadd.f32 %v5105, %v5155
        %v5166 = vadd.f32 %v5106, %v5156
        %v5167 = vadd.f32 %v5107, %v5157
        %v5168 = vadd.f32 %v5108, %v5158
        %5169 = vset.pattern.permute.xlu0 75
        %5170 = vperm.xlu0 %5169, %v2461
        %v5171 = vpop.permute.xlu0 %5170
        %5173 = vset.pattern.permute.xlu0 75
        %5174 = vperm.xlu0 %5173, %v2462
        %v5175 = vpop.permute.xlu0 %5174
        %5177 = vset.pattern.permute.xlu0 75
        %5178 = vperm.xlu0 %5177, %v2463
        %v5179 = vpop.permute.xlu0 %5178
        %5181 = vset.pattern.permute.xlu0 75
        %5182 = vperm.xlu0 %5181, %v2464
        %v5183 = vpop.permute.xlu0 %5182
        %5185 = vset.pattern.permute.xlu0 75
        %5186 = vperm.xlu0 %5185, %v2465
        %v5187 = vpop.permute.xlu0 %5186
        %5189 = vset.pattern.permute.xlu0 75
        %5190 = vperm.xlu0 %5189, %v2466
        %v5191 = vpop.permute.xlu0 %5190
        %5193 = vset.pattern.permute.xlu0 75
        %5194 = vperm.xlu0 %5193, %v2467
        %v5195 = vpop.permute.xlu0 %5194
        %5197 = vset.pattern.permute.xlu0 75
        %5198 = vperm.xlu0 %5197, %v2468
        %v5199 = vpop.permute.xlu0 %5198
        %5201 = vset.pattern.permute.xlu0 75
        %5202 = vperm.xlu0 %5201, %v2469
        %v5203 = vpop.permute.xlu0 %5202
        %5205 = vset.pattern.permute.xlu0 75
        %5206 = vperm.xlu0 %5205, %v2470
        %v5207 = vpop.permute.xlu0 %5206
        %v5209 = vmul.f32 %v5171, %v3491
        %v5210 = vmul.f32 %v5175, %v3494
        %v5211 = vmul.f32 %v5179, %v3497
        %v5212 = vmul.f32 %v5183, %v3500
        %v5213 = vmul.f32 %v5187, %v3503
        %v5214 = vmul.f32 %v5191, %v3506
        %v5215 = vmul.f32 %v5195, %v3509
        %v5216 = vmul.f32 %v5199, %v3512
        %v5217 = vmul.f32 %v5203, %v3515
        %v5218 = vmul.f32 %v5207, %v3518
        %v5219 = vadd.f32 %v5159, %v5209
        %v5220 = vadd.f32 %v5160, %v5210
        %v5221 = vadd.f32 %v5161, %v5211
        %v5222 = vadd.f32 %v5162, %v5212
        %v5223 = vadd.f32 %v5163, %v5213
        %v5224 = vadd.f32 %v5164, %v5214
        %v5225 = vadd.f32 %v5165, %v5215
        %v5226 = vadd.f32 %v5166, %v5216
        %v5227 = vadd.f32 %v5167, %v5217
        %v5228 = vadd.f32 %v5168, %v5218
        %s5229 = scalar_lea.vmem [#allocation4], 16
        %v5230 = vld [vmem:[%s5229] sm:$0xff]
        %v5231 = vld [vmem:[%s5229 + $0x10] sm:$0xff]
        %v5232 = vld [vmem:[%s5229 + $0x20] sm:$0xff]
        %v5233 = vld [vmem:[%s5229 + $0x30] sm:$0xff]
        %v5234 = vld [vmem:[%s5229 + $0x40] sm:$0xff]
        %v5235 = vld [vmem:[%s5229 + $0x50] sm:$0xff]
        %v5236 = vld [vmem:[%s5229 + $0x60] sm:$0xff]
        %v5237 = vld [vmem:[%s5229 + $0x70] sm:$0xff]
        %v5238 = vld [vmem:[%s5229 + $0x80] sm:$0xff]
        %v5239 = vld [vmem:[%s5229 + $0x90] sm:$0xff]
        %v5240 = vadd.f32 %v5230, %v5219
        %v5241 = vadd.f32 %v5231, %v5220
        %v5242 = vadd.f32 %v5232, %v5221
        %v5243 = vadd.f32 %v5233, %v5222
        %v5244 = vadd.f32 %v5234, %v5223
        %v5245 = vadd.f32 %v5235, %v5224
        %v5246 = vadd.f32 %v5236, %v5225
        %v5247 = vadd.f32 %v5237, %v5226
        %v5248 = vadd.f32 %v5238, %v5227
        %v5249 = vadd.f32 %v5239, %v5228
        %5250 = vst.msk [vmem:[%s5229] sm:$0xff] %vm740, %v5240
        %5251 = vst.msk [vmem:[%s5229 + $0x10] sm:$0xff] %vm740, %v5241
        %5252 = vst.msk [vmem:[%s5229 + $0x20] sm:$0xff] %vm740, %v5242
        %5253 = vst.msk [vmem:[%s5229 + $0x30] sm:$0xff] %vm740, %v5243
        %5254 = vst.msk [vmem:[%s5229 + $0x40] sm:$0xff] %vm740, %v5244
        %5255 = vst.msk [vmem:[%s5229 + $0x50] sm:$0xff] %vm740, %v5245
        %5256 = vst.msk [vmem:[%s5229 + $0x60] sm:$0xff] %vm740, %v5246
        %5257 = vst.msk [vmem:[%s5229 + $0x70] sm:$0xff] %vm740, %v5247
        %5258 = vst.msk [vmem:[%s5229 + $0x80] sm:$0xff] %vm740, %v5248
        %5259 = vst.msk [vmem:[%s5229 + $0x90] sm:$0xff] %vm740, %v5249
        %5260 = vset.pattern.permute.xlu0 4
        %5261 = vperm.xlu0 %5260, %v2131
        %v5262 = vpop.permute.xlu0 %5261
        %5264 = vset.pattern.permute.xlu0 4
        %5265 = vperm.xlu0 %5264, %v2132
        %v5266 = vpop.permute.xlu0 %5265
        %5268 = vset.pattern.permute.xlu0 4
        %5269 = vperm.xlu0 %5268, %v2133
        %v5270 = vpop.permute.xlu0 %5269
        %5272 = vset.pattern.permute.xlu0 4
        %5273 = vperm.xlu0 %5272, %v2134
        %v5274 = vpop.permute.xlu0 %5273
        %5276 = vset.pattern.permute.xlu0 4
        %5277 = vperm.xlu0 %5276, %v2135
        %v5278 = vpop.permute.xlu0 %5277
        %5280 = vset.pattern.permute.xlu0 4
        %5281 = vperm.xlu0 %5280, %v2136
        %v5282 = vpop.permute.xlu0 %5281
        %5284 = vset.pattern.permute.xlu0 4
        %5285 = vperm.xlu0 %5284, %v2137
        %v5286 = vpop.permute.xlu0 %5285
        %5288 = vset.pattern.permute.xlu0 4
        %5289 = vperm.xlu0 %5288, %v2138
        %v5290 = vpop.permute.xlu0 %5289
        %5292 = vset.pattern.permute.xlu0 4
        %5293 = vperm.xlu0 %5292, %v2139
        %v5294 = vpop.permute.xlu0 %5293
        %5296 = vset.pattern.permute.xlu0 4
        %5297 = vperm.xlu0 %5296, %v2140
        %v5298 = vpop.permute.xlu0 %5297
        %v5300 = vmul.f32 %v5262, %v2567
        %v5301 = vmul.f32 %v5266, %v2568
        %v5302 = vmul.f32 %v5270, %v2569
        %v5303 = vmul.f32 %v5274, %v2570
        %v5304 = vmul.f32 %v5278, %v2571
        %v5305 = vmul.f32 %v5282, %v2572
        %v5306 = vmul.f32 %v5286, %v2573
        %v5307 = vmul.f32 %v5290, %v2574
        %v5308 = vmul.f32 %v5294, %v2575
        %v5309 = vmul.f32 %v5298, %v2576
        %5310 = vset.pattern.permute.xlu0 13
        %5311 = vperm.xlu0 %5310, %v2181
        %v5312 = vpop.permute.xlu0 %5311
        %5314 = vset.pattern.permute.xlu0 13
        %5315 = vperm.xlu0 %5314, %v2182
        %v5316 = vpop.permute.xlu0 %5315
        %5318 = vset.pattern.permute.xlu0 13
        %5319 = vperm.xlu0 %5318, %v2183
        %v5320 = vpop.permute.xlu0 %5319
        %5322 = vset.pattern.permute.xlu0 13
        %5323 = vperm.xlu0 %5322, %v2184
        %v5324 = vpop.permute.xlu0 %5323
        %5326 = vset.pattern.permute.xlu0 13
        %5327 = vperm.xlu0 %5326, %v2185
        %v5328 = vpop.permute.xlu0 %5327
        %5330 = vset.pattern.permute.xlu0 13
        %5331 = vperm.xlu0 %5330, %v2186
        %v5332 = vpop.permute.xlu0 %5331
        %5334 = vset.pattern.permute.xlu0 13
        %5335 = vperm.xlu0 %5334, %v2187
        %v5336 = vpop.permute.xlu0 %5335
        %5338 = vset.pattern.permute.xlu0 13
        %5339 = vperm.xlu0 %5338, %v2188
        %v5340 = vpop.permute.xlu0 %5339
        %5342 = vset.pattern.permute.xlu0 13
        %5343 = vperm.xlu0 %5342, %v2189
        %v5344 = vpop.permute.xlu0 %5343
        %5346 = vset.pattern.permute.xlu0 13
        %5347 = vperm.xlu0 %5346, %v2190
        %v5348 = vpop.permute.xlu0 %5347
        %v5350 = vmul.f32 %v5312, %v2720
        %v5351 = vmul.f32 %v5316, %v2723
        %v5352 = vmul.f32 %v5320, %v2726
        %v5353 = vmul.f32 %v5324, %v2729
        %v5354 = vmul.f32 %v5328, %v2732
        %v5355 = vmul.f32 %v5332, %v2735
        %v5356 = vmul.f32 %v5336, %v2738
        %v5357 = vmul.f32 %v5340, %v2741
        %v5358 = vmul.f32 %v5344, %v2744
        %v5359 = vmul.f32 %v5348, %v2747
        %v5360 = vadd.f32 %v5300, %v5350
        %v5361 = vadd.f32 %v5301, %v5351
        %v5362 = vadd.f32 %v5302, %v5352
        %v5363 = vadd.f32 %v5303, %v5353
        %v5364 = vadd.f32 %v5304, %v5354
        %v5365 = vadd.f32 %v5305, %v5355
        %v5366 = vadd.f32 %v5306, %v5356
        %v5367 = vadd.f32 %v5307, %v5357
        %v5368 = vadd.f32 %v5308, %v5358
        %v5369 = vadd.f32 %v5309, %v5359
        %5370 = vset.pattern.permute.xlu0 22
        %5371 = vperm.xlu0 %5370, %v2221
        %v5372 = vpop.permute.xlu0 %5371
        %5374 = vset.pattern.permute.xlu0 22
        %5375 = vperm.xlu0 %5374, %v2222
        %v5376 = vpop.permute.xlu0 %5375
        %5378 = vset.pattern.permute.xlu0 22
        %5379 = vperm.xlu0 %5378, %v2223
        %v5380 = vpop.permute.xlu0 %5379
        %5382 = vset.pattern.permute.xlu0 22
        %5383 = vperm.xlu0 %5382, %v2224
        %v5384 = vpop.permute.xlu0 %5383
        %5386 = vset.pattern.permute.xlu0 22
        %5387 = vperm.xlu0 %5386, %v2225
        %v5388 = vpop.permute.xlu0 %5387
        %5390 = vset.pattern.permute.xlu0 22
        %5391 = vperm.xlu0 %5390, %v2226
        %v5392 = vpop.permute.xlu0 %5391
        %5394 = vset.pattern.permute.xlu0 22
        %5395 = vperm.xlu0 %5394, %v2227
        %v5396 = vpop.permute.xlu0 %5395
        %5398 = vset.pattern.permute.xlu0 22
        %5399 = vperm.xlu0 %5398, %v2228
        %v5400 = vpop.permute.xlu0 %5399
        %5402 = vset.pattern.permute.xlu0 22
        %5403 = vperm.xlu0 %5402, %v2229
        %v5404 = vpop.permute.xlu0 %5403
        %5406 = vset.pattern.permute.xlu0 22
        %5407 = vperm.xlu0 %5406, %v2230
        %v5408 = vpop.permute.xlu0 %5407
        %v5410 = vmul.f32 %v5372, %v2831
        %v5411 = vmul.f32 %v5376, %v2834
        %v5412 = vmul.f32 %v5380, %v2837
        %v5413 = vmul.f32 %v5384, %v2840
        %v5414 = vmul.f32 %v5388, %v2843
        %v5415 = vmul.f32 %v5392, %v2846
        %v5416 = vmul.f32 %v5396, %v2849
        %v5417 = vmul.f32 %v5400, %v2852
        %v5418 = vmul.f32 %v5404, %v2855
        %v5419 = vmul.f32 %v5408, %v2858
        %v5420 = vadd.f32 %v5360, %v5410
        %v5421 = vadd.f32 %v5361, %v5411
        %v5422 = vadd.f32 %v5362, %v5412
        %v5423 = vadd.f32 %v5363, %v5413
        %v5424 = vadd.f32 %v5364, %v5414
        %v5425 = vadd.f32 %v5365, %v5415
        %v5426 = vadd.f32 %v5366, %v5416
        %v5427 = vadd.f32 %v5367, %v5417
        %v5428 = vadd.f32 %v5368, %v5418
        %v5429 = vadd.f32 %v5369, %v5419
        %5430 = vset.pattern.permute.xlu0 31
        %5431 = vperm.xlu0 %5430, %v2261
        %v5432 = vpop.permute.xlu0 %5431
        %5434 = vset.pattern.permute.xlu0 31
        %5435 = vperm.xlu0 %5434, %v2262
        %v5436 = vpop.permute.xlu0 %5435
        %5438 = vset.pattern.permute.xlu0 31
        %5439 = vperm.xlu0 %5438, %v2263
        %v5440 = vpop.permute.xlu0 %5439
        %5442 = vset.pattern.permute.xlu0 31
        %5443 = vperm.xlu0 %5442, %v2264
        %v5444 = vpop.permute.xlu0 %5443
        %5446 = vset.pattern.permute.xlu0 31
        %5447 = vperm.xlu0 %5446, %v2265
        %v5448 = vpop.permute.xlu0 %5447
        %5450 = vset.pattern.permute.xlu0 31
        %5451 = vperm.xlu0 %5450, %v2266
        %v5452 = vpop.permute.xlu0 %5451
        %5454 = vset.pattern.permute.xlu0 31
        %5455 = vperm.xlu0 %5454, %v2267
        %v5456 = vpop.permute.xlu0 %5455
        %5458 = vset.pattern.permute.xlu0 31
        %5459 = vperm.xlu0 %5458, %v2268
        %v5460 = vpop.permute.xlu0 %5459
        %5462 = vset.pattern.permute.xlu0 31
        %5463 = vperm.xlu0 %5462, %v2269
        %v5464 = vpop.permute.xlu0 %5463
        %5466 = vset.pattern.permute.xlu0 31
        %5467 = vperm.xlu0 %5466, %v2270
        %v5468 = vpop.permute.xlu0 %5467
        %v5470 = vmul.f32 %v5432, %v2889
        %v5471 = vmul.f32 %v5436, %v2890
        %v5472 = vmul.f32 %v5440, %v2891
        %v5473 = vmul.f32 %v5444, %v2892
        %v5474 = vmul.f32 %v5448, %v2893
        %v5475 = vmul.f32 %v5452, %v2894
        %v5476 = vmul.f32 %v5456, %v2895
        %v5477 = vmul.f32 %v5460, %v2896
        %v5478 = vmul.f32 %v5464, %v2897
        %v5479 = vmul.f32 %v5468, %v2898
        %v5480 = vadd.f32 %v5420, %v5470
        %v5481 = vadd.f32 %v5421, %v5471
        %v5482 = vadd.f32 %v5422, %v5472
        %v5483 = vadd.f32 %v5423, %v5473
        %v5484 = vadd.f32 %v5424, %v5474
        %v5485 = vadd.f32 %v5425, %v5475
        %v5486 = vadd.f32 %v5426, %v5476
        %v5487 = vadd.f32 %v5427, %v5477
        %v5488 = vadd.f32 %v5428, %v5478
        %v5489 = vadd.f32 %v5429, %v5479
        %5490 = vset.pattern.permute.xlu0 40
        %5491 = vperm.xlu0 %5490, %v2301
        %v5492 = vpop.permute.xlu0 %5491
        %5494 = vset.pattern.permute.xlu0 40
        %5495 = vperm.xlu0 %5494, %v2302
        %v5496 = vpop.permute.xlu0 %5495
        %5498 = vset.pattern.permute.xlu0 40
        %5499 = vperm.xlu0 %5498, %v2303
        %v5500 = vpop.permute.xlu0 %5499
        %5502 = vset.pattern.permute.xlu0 40
        %5503 = vperm.xlu0 %5502, %v2304
        %v5504 = vpop.permute.xlu0 %5503
        %5506 = vset.pattern.permute.xlu0 40
        %5507 = vperm.xlu0 %5506, %v2305
        %v5508 = vpop.permute.xlu0 %5507
        %5510 = vset.pattern.permute.xlu0 40
        %5511 = vperm.xlu0 %5510, %v2306
        %v5512 = vpop.permute.xlu0 %5511
        %5514 = vset.pattern.permute.xlu0 40
        %5515 = vperm.xlu0 %5514, %v2307
        %v5516 = vpop.permute.xlu0 %5515
        %5518 = vset.pattern.permute.xlu0 40
        %5519 = vperm.xlu0 %5518, %v2308
        %v5520 = vpop.permute.xlu0 %5519
        %5522 = vset.pattern.permute.xlu0 40
        %5523 = vperm.xlu0 %5522, %v2309
        %v5524 = vpop.permute.xlu0 %5523
        %5526 = vset.pattern.permute.xlu0 40
        %5527 = vperm.xlu0 %5526, %v2310
        %v5528 = vpop.permute.xlu0 %5527
        %v5530 = vmul.f32 %v5492, %v3051
        %v5531 = vmul.f32 %v5496, %v3054
        %v5532 = vmul.f32 %v5500, %v3057
        %v5533 = vmul.f32 %v5504, %v3060
        %v5534 = vmul.f32 %v5508, %v3063
        %v5535 = vmul.f32 %v5512, %v3066
        %v5536 = vmul.f32 %v5516, %v3069
        %v5537 = vmul.f32 %v5520, %v3072
        %v5538 = vmul.f32 %v5524, %v3075
        %v5539 = vmul.f32 %v5528, %v3078
        %v5540 = vadd.f32 %v5480, %v5530
        %v5541 = vadd.f32 %v5481, %v5531
        %v5542 = vadd.f32 %v5482, %v5532
        %v5543 = vadd.f32 %v5483, %v5533
        %v5544 = vadd.f32 %v5484, %v5534
        %v5545 = vadd.f32 %v5485, %v5535
        %v5546 = vadd.f32 %v5486, %v5536
        %v5547 = vadd.f32 %v5487, %v5537
        %v5548 = vadd.f32 %v5488, %v5538
        %v5549 = vadd.f32 %v5489, %v5539
        %5550 = vset.pattern.permute.xlu0 49
        %5551 = vperm.xlu0 %5550, %v2341
        %v5552 = vpop.permute.xlu0 %5551
        %5554 = vset.pattern.permute.xlu0 49
        %5555 = vperm.xlu0 %5554, %v2342
        %v5556 = vpop.permute.xlu0 %5555
        %5558 = vset.pattern.permute.xlu0 49
        %5559 = vperm.xlu0 %5558, %v2343
        %v5560 = vpop.permute.xlu0 %5559
        %5562 = vset.pattern.permute.xlu0 49
        %5563 = vperm.xlu0 %5562, %v2344
        %v5564 = vpop.permute.xlu0 %5563
        %5566 = vset.pattern.permute.xlu0 49
        %5567 = vperm.xlu0 %5566, %v2345
        %v5568 = vpop.permute.xlu0 %5567
        %5570 = vset.pattern.permute.xlu0 49
        %5571 = vperm.xlu0 %5570, %v2346
        %v5572 = vpop.permute.xlu0 %5571
        %5574 = vset.pattern.permute.xlu0 49
        %5575 = vperm.xlu0 %5574, %v2347
        %v5576 = vpop.permute.xlu0 %5575
        %5578 = vset.pattern.permute.xlu0 49
        %5579 = vperm.xlu0 %5578, %v2348
        %v5580 = vpop.permute.xlu0 %5579
        %5582 = vset.pattern.permute.xlu0 49
        %5583 = vperm.xlu0 %5582, %v2349
        %v5584 = vpop.permute.xlu0 %5583
        %5586 = vset.pattern.permute.xlu0 49
        %5587 = vperm.xlu0 %5586, %v2350
        %v5588 = vpop.permute.xlu0 %5587
        %v5590 = vmul.f32 %v5552, %v3161
        %v5591 = vmul.f32 %v5556, %v3164
        %v5592 = vmul.f32 %v5560, %v3167
        %v5593 = vmul.f32 %v5564, %v3170
        %v5594 = vmul.f32 %v5568, %v3173
        %v5595 = vmul.f32 %v5572, %v3176
        %v5596 = vmul.f32 %v5576, %v3179
        %v5597 = vmul.f32 %v5580, %v3182
        %v5598 = vmul.f32 %v5584, %v3185
        %v5599 = vmul.f32 %v5588, %v3188
        %v5600 = vadd.f32 %v5540, %v5590
        %v5601 = vadd.f32 %v5541, %v5591
        %v5602 = vadd.f32 %v5542, %v5592
        %v5603 = vadd.f32 %v5543, %v5593
        %v5604 = vadd.f32 %v5544, %v5594
        %v5605 = vadd.f32 %v5545, %v5595
        %v5606 = vadd.f32 %v5546, %v5596
        %v5607 = vadd.f32 %v5547, %v5597
        %v5608 = vadd.f32 %v5548, %v5598
        %v5609 = vadd.f32 %v5549, %v5599
        %5610 = vset.pattern.permute.xlu0 58
        %5611 = vperm.xlu0 %5610, %v2381
        %v5612 = vpop.permute.xlu0 %5611
        %5614 = vset.pattern.permute.xlu0 58
        %5615 = vperm.xlu0 %5614, %v2382
        %v5616 = vpop.permute.xlu0 %5615
        %5618 = vset.pattern.permute.xlu0 58
        %5619 = vperm.xlu0 %5618, %v2383
        %v5620 = vpop.permute.xlu0 %5619
        %5622 = vset.pattern.permute.xlu0 58
        %5623 = vperm.xlu0 %5622, %v2384
        %v5624 = vpop.permute.xlu0 %5623
        %5626 = vset.pattern.permute.xlu0 58
        %5627 = vperm.xlu0 %5626, %v2385
        %v5628 = vpop.permute.xlu0 %5627
        %5630 = vset.pattern.permute.xlu0 58
        %5631 = vperm.xlu0 %5630, %v2386
        %v5632 = vpop.permute.xlu0 %5631
        %5634 = vset.pattern.permute.xlu0 58
        %5635 = vperm.xlu0 %5634, %v2387
        %v5636 = vpop.permute.xlu0 %5635
        %5638 = vset.pattern.permute.xlu0 58
        %5639 = vperm.xlu0 %5638, %v2388
        %v5640 = vpop.permute.xlu0 %5639
        %5642 = vset.pattern.permute.xlu0 58
        %5643 = vperm.xlu0 %5642, %v2389
        %v5644 = vpop.permute.xlu0 %5643
        %5646 = vset.pattern.permute.xlu0 58
        %5647 = vperm.xlu0 %5646, %v2390
        %v5648 = vpop.permute.xlu0 %5647
        %v5650 = vmul.f32 %v5612, %v3219
        %v5651 = vmul.f32 %v5616, %v3220
        %v5652 = vmul.f32 %v5620, %v3221
        %v5653 = vmul.f32 %v5624, %v3222
        %v5654 = vmul.f32 %v5628, %v3223
        %v5655 = vmul.f32 %v5632, %v3224
        %v5656 = vmul.f32 %v5636, %v3225
        %v5657 = vmul.f32 %v5640, %v3226
        %v5658 = vmul.f32 %v5644, %v3227
        %v5659 = vmul.f32 %v5648, %v3228
        %v5660 = vadd.f32 %v5600, %v5650
        %v5661 = vadd.f32 %v5601, %v5651
        %v5662 = vadd.f32 %v5602, %v5652
        %v5663 = vadd.f32 %v5603, %v5653
        %v5664 = vadd.f32 %v5604, %v5654
        %v5665 = vadd.f32 %v5605, %v5655
        %v5666 = vadd.f32 %v5606, %v5656
        %v5667 = vadd.f32 %v5607, %v5657
        %v5668 = vadd.f32 %v5608, %v5658
        %v5669 = vadd.f32 %v5609, %v5659
        %5670 = vset.pattern.permute.xlu0 67
        %5671 = vperm.xlu0 %5670, %v2421
        %v5672 = vpop.permute.xlu0 %5671
        %5674 = vset.pattern.permute.xlu0 67
        %5675 = vperm.xlu0 %5674, %v2422
        %v5676 = vpop.permute.xlu0 %5675
        %5678 = vset.pattern.permute.xlu0 67
        %5679 = vperm.xlu0 %5678, %v2423
        %v5680 = vpop.permute.xlu0 %5679
        %5682 = vset.pattern.permute.xlu0 67
        %5683 = vperm.xlu0 %5682, %v2424
        %v5684 = vpop.permute.xlu0 %5683
        %5686 = vset.pattern.permute.xlu0 67
        %5687 = vperm.xlu0 %5686, %v2425
        %v5688 = vpop.permute.xlu0 %5687
        %5690 = vset.pattern.permute.xlu0 67
        %5691 = vperm.xlu0 %5690, %v2426
        %v5692 = vpop.permute.xlu0 %5691
        %5694 = vset.pattern.permute.xlu0 67
        %5695 = vperm.xlu0 %5694, %v2427
        %v5696 = vpop.permute.xlu0 %5695
        %5698 = vset.pattern.permute.xlu0 67
        %5699 = vperm.xlu0 %5698, %v2428
        %v5700 = vpop.permute.xlu0 %5699
        %5702 = vset.pattern.permute.xlu0 67
        %5703 = vperm.xlu0 %5702, %v2429
        %v5704 = vpop.permute.xlu0 %5703
        %5706 = vset.pattern.permute.xlu0 67
        %5707 = vperm.xlu0 %5706, %v2430
        %v5708 = vpop.permute.xlu0 %5707
        %v5710 = vmul.f32 %v5672, %v3381
        %v5711 = vmul.f32 %v5676, %v3384
        %v5712 = vmul.f32 %v5680, %v3387
        %v5713 = vmul.f32 %v5684, %v3390
        %v5714 = vmul.f32 %v5688, %v3393
        %v5715 = vmul.f32 %v5692, %v3396
        %v5716 = vmul.f32 %v5696, %v3399
        %v5717 = vmul.f32 %v5700, %v3402
        %v5718 = vmul.f32 %v5704, %v3405
        %v5719 = vmul.f32 %v5708, %v3408
        %v5720 = vadd.f32 %v5660, %v5710
        %v5721 = vadd.f32 %v5661, %v5711
        %v5722 = vadd.f32 %v5662, %v5712
        %v5723 = vadd.f32 %v5663, %v5713
        %v5724 = vadd.f32 %v5664, %v5714
        %v5725 = vadd.f32 %v5665, %v5715
        %v5726 = vadd.f32 %v5666, %v5716
        %v5727 = vadd.f32 %v5667, %v5717
        %v5728 = vadd.f32 %v5668, %v5718
        %v5729 = vadd.f32 %v5669, %v5719
        %5730 = vset.pattern.permute.xlu0 76
        %5731 = vperm.xlu0 %5730, %v2461
        %v5732 = vpop.permute.xlu0 %5731
        %5734 = vset.pattern.permute.xlu0 76
        %5735 = vperm.xlu0 %5734, %v2462
        %v5736 = vpop.permute.xlu0 %5735
        %5738 = vset.pattern.permute.xlu0 76
        %5739 = vperm.xlu0 %5738, %v2463
        %v5740 = vpop.permute.xlu0 %5739
        %5742 = vset.pattern.permute.xlu0 76
        %5743 = vperm.xlu0 %5742, %v2464
        %v5744 = vpop.permute.xlu0 %5743
        %5746 = vset.pattern.permute.xlu0 76
        %5747 = vperm.xlu0 %5746, %v2465
        %v5748 = vpop.permute.xlu0 %5747
        %5750 = vset.pattern.permute.xlu0 76
        %5751 = vperm.xlu0 %5750, %v2466
        %v5752 = vpop.permute.xlu0 %5751
        %5754 = vset.pattern.permute.xlu0 76
        %5755 = vperm.xlu0 %5754, %v2467
        %v5756 = vpop.permute.xlu0 %5755
        %5758 = vset.pattern.permute.xlu0 76
        %5759 = vperm.xlu0 %5758, %v2468
        %v5760 = vpop.permute.xlu0 %5759
        %5762 = vset.pattern.permute.xlu0 76
        %5763 = vperm.xlu0 %5762, %v2469
        %v5764 = vpop.permute.xlu0 %5763
        %5766 = vset.pattern.permute.xlu0 76
        %5767 = vperm.xlu0 %5766, %v2470
        %v5768 = vpop.permute.xlu0 %5767
        %v5770 = vmul.f32 %v5732, %v3491
        %v5771 = vmul.f32 %v5736, %v3494
        %v5772 = vmul.f32 %v5740, %v3497
        %v5773 = vmul.f32 %v5744, %v3500
        %v5774 = vmul.f32 %v5748, %v3503
        %v5775 = vmul.f32 %v5752, %v3506
        %v5776 = vmul.f32 %v5756, %v3509
        %v5777 = vmul.f32 %v5760, %v3512
        %v5778 = vmul.f32 %v5764, %v3515
        %v5779 = vmul.f32 %v5768, %v3518
        %v5780 = vadd.f32 %v5720, %v5770
        %v5781 = vadd.f32 %v5721, %v5771
        %v5782 = vadd.f32 %v5722, %v5772
        %v5783 = vadd.f32 %v5723, %v5773
        %v5784 = vadd.f32 %v5724, %v5774
        %v5785 = vadd.f32 %v5725, %v5775
        %v5786 = vadd.f32 %v5726, %v5776
        %v5787 = vadd.f32 %v5727, %v5777
        %v5788 = vadd.f32 %v5728, %v5778
        %v5789 = vadd.f32 %v5729, %v5779
        %v5790 = vld [vmem:[%s5229 + $0x1] sm:$0xff]
        %v5791 = vld [vmem:[%s5229 + $0x11] sm:$0xff]
        %v5792 = vld [vmem:[%s5229 + $0x21] sm:$0xff]
        %v5793 = vld [vmem:[%s5229 + $0x31] sm:$0xff]
        %v5794 = vld [vmem:[%s5229 + $0x41] sm:$0xff]
        %v5795 = vld [vmem:[%s5229 + $0x51] sm:$0xff]
        %v5796 = vld [vmem:[%s5229 + $0x61] sm:$0xff]
        %v5797 = vld [vmem:[%s5229 + $0x71] sm:$0xff]
        %v5798 = vld [vmem:[%s5229 + $0x81] sm:$0xff]
        %v5799 = vld [vmem:[%s5229 + $0x91] sm:$0xff]
        %v5800 = vadd.f32 %v5790, %v5780
        %v5801 = vadd.f32 %v5791, %v5781
        %v5802 = vadd.f32 %v5792, %v5782
        %v5803 = vadd.f32 %v5793, %v5783
        %v5804 = vadd.f32 %v5794, %v5784
        %v5805 = vadd.f32 %v5795, %v5785
        %v5806 = vadd.f32 %v5796, %v5786
        %v5807 = vadd.f32 %v5797, %v5787
        %v5808 = vadd.f32 %v5798, %v5788
        %v5809 = vadd.f32 %v5799, %v5789
        %5810 = vst.msk [vmem:[%s5229 + $0x1] sm:$0xff] %vm740, %v5800
        %5811 = vst.msk [vmem:[%s5229 + $0x11] sm:$0xff] %vm740, %v5801
        %5812 = vst.msk [vmem:[%s5229 + $0x21] sm:$0xff] %vm740, %v5802
        %5813 = vst.msk [vmem:[%s5229 + $0x31] sm:$0xff] %vm740, %v5803
        %5814 = vst.msk [vmem:[%s5229 + $0x41] sm:$0xff] %vm740, %v5804
        %5815 = vst.msk [vmem:[%s5229 + $0x51] sm:$0xff] %vm740, %v5805
        %5816 = vst.msk [vmem:[%s5229 + $0x61] sm:$0xff] %vm740, %v5806
        %5817 = vst.msk [vmem:[%s5229 + $0x71] sm:$0xff] %vm740, %v5807
        %5818 = vst.msk [vmem:[%s5229 + $0x81] sm:$0xff] %vm740, %v5808
        %5819 = vst.msk [vmem:[%s5229 + $0x91] sm:$0xff] %vm740, %v5809
        %5820 = vset.pattern.permute.xlu0 5
        %5821 = vperm.xlu0 %5820, %v2131
        %v5822 = vpop.permute.xlu0 %5821
        %5824 = vset.pattern.permute.xlu0 5
        %5825 = vperm.xlu0 %5824, %v2132
        %v5826 = vpop.permute.xlu0 %5825
        %5828 = vset.pattern.permute.xlu0 5
        %5829 = vperm.xlu0 %5828, %v2133
        %v5830 = vpop.permute.xlu0 %5829
        %5832 = vset.pattern.permute.xlu0 5
        %5833 = vperm.xlu0 %5832, %v2134
        %v5834 = vpop.permute.xlu0 %5833
        %5836 = vset.pattern.permute.xlu0 5
        %5837 = vperm.xlu0 %5836, %v2135
        %v5838 = vpop.permute.xlu0 %5837
        %5840 = vset.pattern.permute.xlu0 5
        %5841 = vperm.xlu0 %5840, %v2136
        %v5842 = vpop.permute.xlu0 %5841
        %5844 = vset.pattern.permute.xlu0 5
        %5845 = vperm.xlu0 %5844, %v2137
        %v5846 = vpop.permute.xlu0 %5845
        %5848 = vset.pattern.permute.xlu0 5
        %5849 = vperm.xlu0 %5848, %v2138
        %v5850 = vpop.permute.xlu0 %5849
        %5852 = vset.pattern.permute.xlu0 5
        %5853 = vperm.xlu0 %5852, %v2139
        %v5854 = vpop.permute.xlu0 %5853
        %5856 = vset.pattern.permute.xlu0 5
        %5857 = vperm.xlu0 %5856, %v2140
        %v5858 = vpop.permute.xlu0 %5857
        %v5860 = vmul.f32 %v5822, %v2567
        %v5861 = vmul.f32 %v5826, %v2568
        %v5862 = vmul.f32 %v5830, %v2569
        %v5863 = vmul.f32 %v5834, %v2570
        %v5864 = vmul.f32 %v5838, %v2571
        %v5865 = vmul.f32 %v5842, %v2572
        %v5866 = vmul.f32 %v5846, %v2573
        %v5867 = vmul.f32 %v5850, %v2574
        %v5868 = vmul.f32 %v5854, %v2575
        %v5869 = vmul.f32 %v5858, %v2576
        %5870 = vset.pattern.permute.xlu0 14
        %5871 = vperm.xlu0 %5870, %v2181
        %v5872 = vpop.permute.xlu0 %5871
        %5874 = vset.pattern.permute.xlu0 14
        %5875 = vperm.xlu0 %5874, %v2182
        %v5876 = vpop.permute.xlu0 %5875
        %5878 = vset.pattern.permute.xlu0 14
        %5879 = vperm.xlu0 %5878, %v2183
        %v5880 = vpop.permute.xlu0 %5879
        %5882 = vset.pattern.permute.xlu0 14
        %5883 = vperm.xlu0 %5882, %v2184
        %v5884 = vpop.permute.xlu0 %5883
        %5886 = vset.pattern.permute.xlu0 14
        %5887 = vperm.xlu0 %5886, %v2185
        %v5888 = vpop.permute.xlu0 %5887
        %5890 = vset.pattern.permute.xlu0 14
        %5891 = vperm.xlu0 %5890, %v2186
        %v5892 = vpop.permute.xlu0 %5891
        %5894 = vset.pattern.permute.xlu0 14
        %5895 = vperm.xlu0 %5894, %v2187
        %v5896 = vpop.permute.xlu0 %5895
        %5898 = vset.pattern.permute.xlu0 14
        %5899 = vperm.xlu0 %5898, %v2188
        %v5900 = vpop.permute.xlu0 %5899
        %5902 = vset.pattern.permute.xlu0 14
        %5903 = vperm.xlu0 %5902, %v2189
        %v5904 = vpop.permute.xlu0 %5903
        %5906 = vset.pattern.permute.xlu0 14
        %5907 = vperm.xlu0 %5906, %v2190
        %v5908 = vpop.permute.xlu0 %5907
        %v5910 = vmul.f32 %v5872, %v2720
        %v5911 = vmul.f32 %v5876, %v2723
        %v5912 = vmul.f32 %v5880, %v2726
        %v5913 = vmul.f32 %v5884, %v2729
        %v5914 = vmul.f32 %v5888, %v2732
        %v5915 = vmul.f32 %v5892, %v2735
        %v5916 = vmul.f32 %v5896, %v2738
        %v5917 = vmul.f32 %v5900, %v2741
        %v5918 = vmul.f32 %v5904, %v2744
        %v5919 = vmul.f32 %v5908, %v2747
        %v5920 = vadd.f32 %v5860, %v5910
        %v5921 = vadd.f32 %v5861, %v5911
        %v5922 = vadd.f32 %v5862, %v5912
        %v5923 = vadd.f32 %v5863, %v5913
        %v5924 = vadd.f32 %v5864, %v5914
        %v5925 = vadd.f32 %v5865, %v5915
        %v5926 = vadd.f32 %v5866, %v5916
        %v5927 = vadd.f32 %v5867, %v5917
        %v5928 = vadd.f32 %v5868, %v5918
        %v5929 = vadd.f32 %v5869, %v5919
        %5930 = vset.pattern.permute.xlu0 23
        %5931 = vperm.xlu0 %5930, %v2221
        %v5932 = vpop.permute.xlu0 %5931
        %5934 = vset.pattern.permute.xlu0 23
        %5935 = vperm.xlu0 %5934, %v2222
        %v5936 = vpop.permute.xlu0 %5935
        %5938 = vset.pattern.permute.xlu0 23
        %5939 = vperm.xlu0 %5938, %v2223
        %v5940 = vpop.permute.xlu0 %5939
        %5942 = vset.pattern.permute.xlu0 23
        %5943 = vperm.xlu0 %5942, %v2224
        %v5944 = vpop.permute.xlu0 %5943
        %5946 = vset.pattern.permute.xlu0 23
        %5947 = vperm.xlu0 %5946, %v2225
        %v5948 = vpop.permute.xlu0 %5947
        %5950 = vset.pattern.permute.xlu0 23
        %5951 = vperm.xlu0 %5950, %v2226
        %v5952 = vpop.permute.xlu0 %5951
        %5954 = vset.pattern.permute.xlu0 23
        %5955 = vperm.xlu0 %5954, %v2227
        %v5956 = vpop.permute.xlu0 %5955
        %5958 = vset.pattern.permute.xlu0 23
        %5959 = vperm.xlu0 %5958, %v2228
        %v5960 = vpop.permute.xlu0 %5959
        %5962 = vset.pattern.permute.xlu0 23
        %5963 = vperm.xlu0 %5962, %v2229
        %v5964 = vpop.permute.xlu0 %5963
        %5966 = vset.pattern.permute.xlu0 23
        %5967 = vperm.xlu0 %5966, %v2230
        %v5968 = vpop.permute.xlu0 %5967
        %v5970 = vmul.f32 %v5932, %v2831
        %v5971 = vmul.f32 %v5936, %v2834
        %v5972 = vmul.f32 %v5940, %v2837
        %v5973 = vmul.f32 %v5944, %v2840
        %v5974 = vmul.f32 %v5948, %v2843
        %v5975 = vmul.f32 %v5952, %v2846
        %v5976 = vmul.f32 %v5956, %v2849
        %v5977 = vmul.f32 %v5960, %v2852
        %v5978 = vmul.f32 %v5964, %v2855
        %v5979 = vmul.f32 %v5968, %v2858
        %v5980 = vadd.f32 %v5920, %v5970
        %v5981 = vadd.f32 %v5921, %v5971
        %v5982 = vadd.f32 %v5922, %v5972
        %v5983 = vadd.f32 %v5923, %v5973
        %v5984 = vadd.f32 %v5924, %v5974
        %v5985 = vadd.f32 %v5925, %v5975
        %v5986 = vadd.f32 %v5926, %v5976
        %v5987 = vadd.f32 %v5927, %v5977
        %v5988 = vadd.f32 %v5928, %v5978
        %v5989 = vadd.f32 %v5929, %v5979
        %5990 = vset.pattern.permute.xlu0 32
        %5991 = vperm.xlu0 %5990, %v2261
        %v5992 = vpop.permute.xlu0 %5991
        %5994 = vset.pattern.permute.xlu0 32
        %5995 = vperm.xlu0 %5994, %v2262
        %v5996 = vpop.permute.xlu0 %5995
        %5998 = vset.pattern.permute.xlu0 32
        %5999 = vperm.xlu0 %5998, %v2263
        %v6000 = vpop.permute.xlu0 %5999
        %6002 = vset.pattern.permute.xlu0 32
        %6003 = vperm.xlu0 %6002, %v2264
        %v6004 = vpop.permute.xlu0 %6003
        %6006 = vset.pattern.permute.xlu0 32
        %6007 = vperm.xlu0 %6006, %v2265
        %v6008 = vpop.permute.xlu0 %6007
        %6010 = vset.pattern.permute.xlu0 32
        %6011 = vperm.xlu0 %6010, %v2266
        %v6012 = vpop.permute.xlu0 %6011
        %6014 = vset.pattern.permute.xlu0 32
        %6015 = vperm.xlu0 %6014, %v2267
        %v6016 = vpop.permute.xlu0 %6015
        %6018 = vset.pattern.permute.xlu0 32
        %6019 = vperm.xlu0 %6018, %v2268
        %v6020 = vpop.permute.xlu0 %6019
        %6022 = vset.pattern.permute.xlu0 32
        %6023 = vperm.xlu0 %6022, %v2269
        %v6024 = vpop.permute.xlu0 %6023
        %6026 = vset.pattern.permute.xlu0 32
        %6027 = vperm.xlu0 %6026, %v2270
        %v6028 = vpop.permute.xlu0 %6027
        %v6030 = vmul.f32 %v5992, %v2889
        %v6031 = vmul.f32 %v5996, %v2890
        %v6032 = vmul.f32 %v6000, %v2891
        %v6033 = vmul.f32 %v6004, %v2892
        %v6034 = vmul.f32 %v6008, %v2893
        %v6035 = vmul.f32 %v6012, %v2894
        %v6036 = vmul.f32 %v6016, %v2895
        %v6037 = vmul.f32 %v6020, %v2896
        %v6038 = vmul.f32 %v6024, %v2897
        %v6039 = vmul.f32 %v6028, %v2898
        %v6040 = vadd.f32 %v5980, %v6030
        %v6041 = vadd.f32 %v5981, %v6031
        %v6042 = vadd.f32 %v5982, %v6032
        %v6043 = vadd.f32 %v5983, %v6033
        %v6044 = vadd.f32 %v5984, %v6034
        %v6045 = vadd.f32 %v5985, %v6035
        %v6046 = vadd.f32 %v5986, %v6036
        %v6047 = vadd.f32 %v5987, %v6037
        %v6048 = vadd.f32 %v5988, %v6038
        %v6049 = vadd.f32 %v5989, %v6039
        %6050 = vset.pattern.permute.xlu0 41
        %6051 = vperm.xlu0 %6050, %v2301
        %v6052 = vpop.permute.xlu0 %6051
        %6054 = vset.pattern.permute.xlu0 41
        %6055 = vperm.xlu0 %6054, %v2302
        %v6056 = vpop.permute.xlu0 %6055
        %6058 = vset.pattern.permute.xlu0 41
        %6059 = vperm.xlu0 %6058, %v2303
        %v6060 = vpop.permute.xlu0 %6059
        %6062 = vset.pattern.permute.xlu0 41
        %6063 = vperm.xlu0 %6062, %v2304
        %v6064 = vpop.permute.xlu0 %6063
        %6066 = vset.pattern.permute.xlu0 41
        %6067 = vperm.xlu0 %6066, %v2305
        %v6068 = vpop.permute.xlu0 %6067
        %6070 = vset.pattern.permute.xlu0 41
        %6071 = vperm.xlu0 %6070, %v2306
        %v6072 = vpop.permute.xlu0 %6071
        %6074 = vset.pattern.permute.xlu0 41
        %6075 = vperm.xlu0 %6074, %v2307
        %v6076 = vpop.permute.xlu0 %6075
        %6078 = vset.pattern.permute.xlu0 41
        %6079 = vperm.xlu0 %6078, %v2308
        %v6080 = vpop.permute.xlu0 %6079
        %6082 = vset.pattern.permute.xlu0 41
        %6083 = vperm.xlu0 %6082, %v2309
        %v6084 = vpop.permute.xlu0 %6083
        %6086 = vset.pattern.permute.xlu0 41
        %6087 = vperm.xlu0 %6086, %v2310
        %v6088 = vpop.permute.xlu0 %6087
        %v6090 = vmul.f32 %v6052, %v3051
        %v6091 = vmul.f32 %v6056, %v3054
        %v6092 = vmul.f32 %v6060, %v3057
        %v6093 = vmul.f32 %v6064, %v3060
        %v6094 = vmul.f32 %v6068, %v3063
        %v6095 = vmul.f32 %v6072, %v3066
        %v6096 = vmul.f32 %v6076, %v3069
        %v6097 = vmul.f32 %v6080, %v3072
        %v6098 = vmul.f32 %v6084, %v3075
        %v6099 = vmul.f32 %v6088, %v3078
        %v6100 = vadd.f32 %v6040, %v6090
        %v6101 = vadd.f32 %v6041, %v6091
        %v6102 = vadd.f32 %v6042, %v6092
        %v6103 = vadd.f32 %v6043, %v6093
        %v6104 = vadd.f32 %v6044, %v6094
        %v6105 = vadd.f32 %v6045, %v6095
        %v6106 = vadd.f32 %v6046, %v6096
        %v6107 = vadd.f32 %v6047, %v6097
        %v6108 = vadd.f32 %v6048, %v6098
        %v6109 = vadd.f32 %v6049, %v6099
        %6110 = vset.pattern.permute.xlu0 50
        %6111 = vperm.xlu0 %6110, %v2341
        %v6112 = vpop.permute.xlu0 %6111
        %6114 = vset.pattern.permute.xlu0 50
        %6115 = vperm.xlu0 %6114, %v2342
        %v6116 = vpop.permute.xlu0 %6115
        %6118 = vset.pattern.permute.xlu0 50
        %6119 = vperm.xlu0 %6118, %v2343
        %v6120 = vpop.permute.xlu0 %6119
        %6122 = vset.pattern.permute.xlu0 50
        %6123 = vperm.xlu0 %6122, %v2344
        %v6124 = vpop.permute.xlu0 %6123
        %6126 = vset.pattern.permute.xlu0 50
        %6127 = vperm.xlu0 %6126, %v2345
        %v6128 = vpop.permute.xlu0 %6127
        %6130 = vset.pattern.permute.xlu0 50
        %6131 = vperm.xlu0 %6130, %v2346
        %v6132 = vpop.permute.xlu0 %6131
        %6134 = vset.pattern.permute.xlu0 50
        %6135 = vperm.xlu0 %6134, %v2347
        %v6136 = vpop.permute.xlu0 %6135
        %6138 = vset.pattern.permute.xlu0 50
        %6139 = vperm.xlu0 %6138, %v2348
        %v6140 = vpop.permute.xlu0 %6139
        %6142 = vset.pattern.permute.xlu0 50
        %6143 = vperm.xlu0 %6142, %v2349
        %v6144 = vpop.permute.xlu0 %6143
        %6146 = vset.pattern.permute.xlu0 50
        %6147 = vperm.xlu0 %6146, %v2350
        %v6148 = vpop.permute.xlu0 %6147
        %v6150 = vmul.f32 %v6112, %v3161
        %v6151 = vmul.f32 %v6116, %v3164
        %v6152 = vmul.f32 %v6120, %v3167
        %v6153 = vmul.f32 %v6124, %v3170
        %v6154 = vmul.f32 %v6128, %v3173
        %v6155 = vmul.f32 %v6132, %v3176
        %v6156 = vmul.f32 %v6136, %v3179
        %v6157 = vmul.f32 %v6140, %v3182
        %v6158 = vmul.f32 %v6144, %v3185
        %v6159 = vmul.f32 %v6148, %v3188
        %v6160 = vadd.f32 %v6100, %v6150
        %v6161 = vadd.f32 %v6101, %v6151
        %v6162 = vadd.f32 %v6102, %v6152
        %v6163 = vadd.f32 %v6103, %v6153
        %v6164 = vadd.f32 %v6104, %v6154
        %v6165 = vadd.f32 %v6105, %v6155
        %v6166 = vadd.f32 %v6106, %v6156
        %v6167 = vadd.f32 %v6107, %v6157
        %v6168 = vadd.f32 %v6108, %v6158
        %v6169 = vadd.f32 %v6109, %v6159
        %6170 = vset.pattern.permute.xlu0 59
        %6171 = vperm.xlu0 %6170, %v2381
        %v6172 = vpop.permute.xlu0 %6171
        %6174 = vset.pattern.permute.xlu0 59
        %6175 = vperm.xlu0 %6174, %v2382
        %v6176 = vpop.permute.xlu0 %6175
        %6178 = vset.pattern.permute.xlu0 59
        %6179 = vperm.xlu0 %6178, %v2383
        %v6180 = vpop.permute.xlu0 %6179
        %6182 = vset.pattern.permute.xlu0 59
        %6183 = vperm.xlu0 %6182, %v2384
        %v6184 = vpop.permute.xlu0 %6183
        %6186 = vset.pattern.permute.xlu0 59
        %6187 = vperm.xlu0 %6186, %v2385
        %v6188 = vpop.permute.xlu0 %6187
        %6190 = vset.pattern.permute.xlu0 59
        %6191 = vperm.xlu0 %6190, %v2386
        %v6192 = vpop.permute.xlu0 %6191
        %6194 = vset.pattern.permute.xlu0 59
        %6195 = vperm.xlu0 %6194, %v2387
        %v6196 = vpop.permute.xlu0 %6195
        %6198 = vset.pattern.permute.xlu0 59
        %6199 = vperm.xlu0 %6198, %v2388
        %v6200 = vpop.permute.xlu0 %6199
        %6202 = vset.pattern.permute.xlu0 59
        %6203 = vperm.xlu0 %6202, %v2389
        %v6204 = vpop.permute.xlu0 %6203
        %6206 = vset.pattern.permute.xlu0 59
        %6207 = vperm.xlu0 %6206, %v2390
        %v6208 = vpop.permute.xlu0 %6207
        %v6210 = vmul.f32 %v6172, %v3219
        %v6211 = vmul.f32 %v6176, %v3220
        %v6212 = vmul.f32 %v6180, %v3221
        %v6213 = vmul.f32 %v6184, %v3222
        %v6214 = vmul.f32 %v6188, %v3223
        %v6215 = vmul.f32 %v6192, %v3224
        %v6216 = vmul.f32 %v6196, %v3225
        %v6217 = vmul.f32 %v6200, %v3226
        %v6218 = vmul.f32 %v6204, %v3227
        %v6219 = vmul.f32 %v6208, %v3228
        %v6220 = vadd.f32 %v6160, %v6210
        %v6221 = vadd.f32 %v6161, %v6211
        %v6222 = vadd.f32 %v6162, %v6212
        %v6223 = vadd.f32 %v6163, %v6213
        %v6224 = vadd.f32 %v6164, %v6214
        %v6225 = vadd.f32 %v6165, %v6215
        %v6226 = vadd.f32 %v6166, %v6216
        %v6227 = vadd.f32 %v6167, %v6217
        %v6228 = vadd.f32 %v6168, %v6218
        %v6229 = vadd.f32 %v6169, %v6219
        %6230 = vset.pattern.permute.xlu0 68
        %6231 = vperm.xlu0 %6230, %v2421
        %v6232 = vpop.permute.xlu0 %6231
        %6234 = vset.pattern.permute.xlu0 68
        %6235 = vperm.xlu0 %6234, %v2422
        %v6236 = vpop.permute.xlu0 %6235
        %6238 = vset.pattern.permute.xlu0 68
        %6239 = vperm.xlu0 %6238, %v2423
        %v6240 = vpop.permute.xlu0 %6239
        %6242 = vset.pattern.permute.xlu0 68
        %6243 = vperm.xlu0 %6242, %v2424
        %v6244 = vpop.permute.xlu0 %6243
        %6246 = vset.pattern.permute.xlu0 68
        %6247 = vperm.xlu0 %6246, %v2425
        %v6248 = vpop.permute.xlu0 %6247
        %6250 = vset.pattern.permute.xlu0 68
        %6251 = vperm.xlu0 %6250, %v2426
        %v6252 = vpop.permute.xlu0 %6251
        %6254 = vset.pattern.permute.xlu0 68
        %6255 = vperm.xlu0 %6254, %v2427
        %v6256 = vpop.permute.xlu0 %6255
        %6258 = vset.pattern.permute.xlu0 68
        %6259 = vperm.xlu0 %6258, %v2428
        %v6260 = vpop.permute.xlu0 %6259
        %6262 = vset.pattern.permute.xlu0 68
        %6263 = vperm.xlu0 %6262, %v2429
        %v6264 = vpop.permute.xlu0 %6263
        %6266 = vset.pattern.permute.xlu0 68
        %6267 = vperm.xlu0 %6266, %v2430
        %v6268 = vpop.permute.xlu0 %6267
        %v6270 = vmul.f32 %v6232, %v3381
        %v6271 = vmul.f32 %v6236, %v3384
        %v6272 = vmul.f32 %v6240, %v3387
        %v6273 = vmul.f32 %v6244, %v3390
        %v6274 = vmul.f32 %v6248, %v3393
        %v6275 = vmul.f32 %v6252, %v3396
        %v6276 = vmul.f32 %v6256, %v3399
        %v6277 = vmul.f32 %v6260, %v3402
        %v6278 = vmul.f32 %v6264, %v3405
        %v6279 = vmul.f32 %v6268, %v3408
        %v6280 = vadd.f32 %v6220, %v6270
        %v6281 = vadd.f32 %v6221, %v6271
        %v6282 = vadd.f32 %v6222, %v6272
        %v6283 = vadd.f32 %v6223, %v6273
        %v6284 = vadd.f32 %v6224, %v6274
        %v6285 = vadd.f32 %v6225, %v6275
        %v6286 = vadd.f32 %v6226, %v6276
        %v6287 = vadd.f32 %v6227, %v6277
        %v6288 = vadd.f32 %v6228, %v6278
        %v6289 = vadd.f32 %v6229, %v6279
        %6290 = vset.pattern.permute.xlu0 77
        %6291 = vperm.xlu0 %6290, %v2461
        %v6292 = vpop.permute.xlu0 %6291
        %6294 = vset.pattern.permute.xlu0 77
        %6295 = vperm.xlu0 %6294, %v2462
        %v6296 = vpop.permute.xlu0 %6295
        %6298 = vset.pattern.permute.xlu0 77
        %6299 = vperm.xlu0 %6298, %v2463
        %v6300 = vpop.permute.xlu0 %6299
        %6302 = vset.pattern.permute.xlu0 77
        %6303 = vperm.xlu0 %6302, %v2464
        %v6304 = vpop.permute.xlu0 %6303
        %6306 = vset.pattern.permute.xlu0 77
        %6307 = vperm.xlu0 %6306, %v2465
        %v6308 = vpop.permute.xlu0 %6307
        %6310 = vset.pattern.permute.xlu0 77
        %6311 = vperm.xlu0 %6310, %v2466
        %v6312 = vpop.permute.xlu0 %6311
        %6314 = vset.pattern.permute.xlu0 77
        %6315 = vperm.xlu0 %6314, %v2467
        %v6316 = vpop.permute.xlu0 %6315
        %6318 = vset.pattern.permute.xlu0 77
        %6319 = vperm.xlu0 %6318, %v2468
        %v6320 = vpop.permute.xlu0 %6319
        %6322 = vset.pattern.permute.xlu0 77
        %6323 = vperm.xlu0 %6322, %v2469
        %v6324 = vpop.permute.xlu0 %6323
        %6326 = vset.pattern.permute.xlu0 77
        %6327 = vperm.xlu0 %6326, %v2470
        %v6328 = vpop.permute.xlu0 %6327
        %v6330 = vmul.f32 %v6292, %v3491
        %v6331 = vmul.f32 %v6296, %v3494
        %v6332 = vmul.f32 %v6300, %v3497
        %v6333 = vmul.f32 %v6304, %v3500
        %v6334 = vmul.f32 %v6308, %v3503
        %v6335 = vmul.f32 %v6312, %v3506
        %v6336 = vmul.f32 %v6316, %v3509
        %v6337 = vmul.f32 %v6320, %v3512
        %v6338 = vmul.f32 %v6324, %v3515
        %v6339 = vmul.f32 %v6328, %v3518
        %v6340 = vadd.f32 %v6280, %v6330
        %v6341 = vadd.f32 %v6281, %v6331
        %v6342 = vadd.f32 %v6282, %v6332
        %v6343 = vadd.f32 %v6283, %v6333
        %v6344 = vadd.f32 %v6284, %v6334
        %v6345 = vadd.f32 %v6285, %v6335
        %v6346 = vadd.f32 %v6286, %v6336
        %v6347 = vadd.f32 %v6287, %v6337
        %v6348 = vadd.f32 %v6288, %v6338
        %v6349 = vadd.f32 %v6289, %v6339
        %v6350 = vld [vmem:[%s5229 + $0x2] sm:$0xff]
        %v6351 = vld [vmem:[%s5229 + $0x12] sm:$0xff]
        %v6352 = vld [vmem:[%s5229 + $0x22] sm:$0xff]
        %v6353 = vld [vmem:[%s5229 + $0x32] sm:$0xff]
        %v6354 = vld [vmem:[%s5229 + $0x42] sm:$0xff]
        %v6355 = vld [vmem:[%s5229 + $0x52] sm:$0xff]
        %v6356 = vld [vmem:[%s5229 + $0x62] sm:$0xff]
        %v6357 = vld [vmem:[%s5229 + $0x72] sm:$0xff]
        %v6358 = vld [vmem:[%s5229 + $0x82] sm:$0xff]
        %v6359 = vld [vmem:[%s5229 + $0x92] sm:$0xff]
        %v6360 = vadd.f32 %v6350, %v6340
        %v6361 = vadd.f32 %v6351, %v6341
        %v6362 = vadd.f32 %v6352, %v6342
        %v6363 = vadd.f32 %v6353, %v6343
        %v6364 = vadd.f32 %v6354, %v6344
        %v6365 = vadd.f32 %v6355, %v6345
        %v6366 = vadd.f32 %v6356, %v6346
        %v6367 = vadd.f32 %v6357, %v6347
        %v6368 = vadd.f32 %v6358, %v6348
        %v6369 = vadd.f32 %v6359, %v6349
        %6370 = vst.msk [vmem:[%s5229 + $0x2] sm:$0xff] %vm740, %v6360
        %6371 = vst.msk [vmem:[%s5229 + $0x12] sm:$0xff] %vm740, %v6361
        %6372 = vst.msk [vmem:[%s5229 + $0x22] sm:$0xff] %vm740, %v6362
        %6373 = vst.msk [vmem:[%s5229 + $0x32] sm:$0xff] %vm740, %v6363
        %6374 = vst.msk [vmem:[%s5229 + $0x42] sm:$0xff] %vm740, %v6364
        %6375 = vst.msk [vmem:[%s5229 + $0x52] sm:$0xff] %vm740, %v6365
        %6376 = vst.msk [vmem:[%s5229 + $0x62] sm:$0xff] %vm740, %v6366
        %6377 = vst.msk [vmem:[%s5229 + $0x72] sm:$0xff] %vm740, %v6367
        %6378 = vst.msk [vmem:[%s5229 + $0x82] sm:$0xff] %vm740, %v6368
        %6379 = vst.msk [vmem:[%s5229 + $0x92] sm:$0xff] %vm740, %v6369
        %6380 = vset.pattern.permute.xlu0 6
        %6381 = vperm.xlu0 %6380, %v2131
        %v6382 = vpop.permute.xlu0 %6381
        %6384 = vset.pattern.permute.xlu0 6
        %6385 = vperm.xlu0 %6384, %v2132
        %v6386 = vpop.permute.xlu0 %6385
        %6388 = vset.pattern.permute.xlu0 6
        %6389 = vperm.xlu0 %6388, %v2133
        %v6390 = vpop.permute.xlu0 %6389
        %6392 = vset.pattern.permute.xlu0 6
        %6393 = vperm.xlu0 %6392, %v2134
        %v6394 = vpop.permute.xlu0 %6393
        %6396 = vset.pattern.permute.xlu0 6
        %6397 = vperm.xlu0 %6396, %v2135
        %v6398 = vpop.permute.xlu0 %6397
        %6400 = vset.pattern.permute.xlu0 6
        %6401 = vperm.xlu0 %6400, %v2136
        %v6402 = vpop.permute.xlu0 %6401
        %6404 = vset.pattern.permute.xlu0 6
        %6405 = vperm.xlu0 %6404, %v2137
        %v6406 = vpop.permute.xlu0 %6405
        %6408 = vset.pattern.permute.xlu0 6
        %6409 = vperm.xlu0 %6408, %v2138
        %v6410 = vpop.permute.xlu0 %6409
        %6412 = vset.pattern.permute.xlu0 6
        %6413 = vperm.xlu0 %6412, %v2139
        %v6414 = vpop.permute.xlu0 %6413
        %6416 = vset.pattern.permute.xlu0 6
        %6417 = vperm.xlu0 %6416, %v2140
        %v6418 = vpop.permute.xlu0 %6417
        %v6420 = vmul.f32 %v6382, %v2567
        %v6421 = vmul.f32 %v6386, %v2568
        %v6422 = vmul.f32 %v6390, %v2569
        %v6423 = vmul.f32 %v6394, %v2570
        %v6424 = vmul.f32 %v6398, %v2571
        %v6425 = vmul.f32 %v6402, %v2572
        %v6426 = vmul.f32 %v6406, %v2573
        %v6427 = vmul.f32 %v6410, %v2574
        %v6428 = vmul.f32 %v6414, %v2575
        %v6429 = vmul.f32 %v6418, %v2576
        %6430 = vset.pattern.permute.xlu0 15
        %6431 = vperm.xlu0 %6430, %v2181
        %v6432 = vpop.permute.xlu0 %6431
        %6434 = vset.pattern.permute.xlu0 15
        %6435 = vperm.xlu0 %6434, %v2182
        %v6436 = vpop.permute.xlu0 %6435
        %6438 = vset.pattern.permute.xlu0 15
        %6439 = vperm.xlu0 %6438, %v2183
        %v6440 = vpop.permute.xlu0 %6439
        %6442 = vset.pattern.permute.xlu0 15
        %6443 = vperm.xlu0 %6442, %v2184
        %v6444 = vpop.permute.xlu0 %6443
        %6446 = vset.pattern.permute.xlu0 15
        %6447 = vperm.xlu0 %6446, %v2185
        %v6448 = vpop.permute.xlu0 %6447
        %6450 = vset.pattern.permute.xlu0 15
        %6451 = vperm.xlu0 %6450, %v2186
        %v6452 = vpop.permute.xlu0 %6451
        %6454 = vset.pattern.permute.xlu0 15
        %6455 = vperm.xlu0 %6454, %v2187
        %v6456 = vpop.permute.xlu0 %6455
        %6458 = vset.pattern.permute.xlu0 15
        %6459 = vperm.xlu0 %6458, %v2188
        %v6460 = vpop.permute.xlu0 %6459
        %6462 = vset.pattern.permute.xlu0 15
        %6463 = vperm.xlu0 %6462, %v2189
        %v6464 = vpop.permute.xlu0 %6463
        %6466 = vset.pattern.permute.xlu0 15
        %6467 = vperm.xlu0 %6466, %v2190
        %v6468 = vpop.permute.xlu0 %6467
        %v6470 = vmul.f32 %v6432, %v2720
        %v6471 = vmul.f32 %v6436, %v2723
        %v6472 = vmul.f32 %v6440, %v2726
        %v6473 = vmul.f32 %v6444, %v2729
        %v6474 = vmul.f32 %v6448, %v2732
        %v6475 = vmul.f32 %v6452, %v2735
        %v6476 = vmul.f32 %v6456, %v2738
        %v6477 = vmul.f32 %v6460, %v2741
        %v6478 = vmul.f32 %v6464, %v2744
        %v6479 = vmul.f32 %v6468, %v2747
        %v6480 = vadd.f32 %v6420, %v6470
        %v6481 = vadd.f32 %v6421, %v6471
        %v6482 = vadd.f32 %v6422, %v6472
        %v6483 = vadd.f32 %v6423, %v6473
        %v6484 = vadd.f32 %v6424, %v6474
        %v6485 = vadd.f32 %v6425, %v6475
        %v6486 = vadd.f32 %v6426, %v6476
        %v6487 = vadd.f32 %v6427, %v6477
        %v6488 = vadd.f32 %v6428, %v6478
        %v6489 = vadd.f32 %v6429, %v6479
        %6490 = vset.pattern.permute.xlu0 24
        %6491 = vperm.xlu0 %6490, %v2221
        %v6492 = vpop.permute.xlu0 %6491
        %6494 = vset.pattern.permute.xlu0 24
        %6495 = vperm.xlu0 %6494, %v2222
        %v6496 = vpop.permute.xlu0 %6495
        %6498 = vset.pattern.permute.xlu0 24
        %6499 = vperm.xlu0 %6498, %v2223
        %v6500 = vpop.permute.xlu0 %6499
        %6502 = vset.pattern.permute.xlu0 24
        %6503 = vperm.xlu0 %6502, %v2224
        %v6504 = vpop.permute.xlu0 %6503
        %6506 = vset.pattern.permute.xlu0 24
        %6507 = vperm.xlu0 %6506, %v2225
        %v6508 = vpop.permute.xlu0 %6507
        %6510 = vset.pattern.permute.xlu0 24
        %6511 = vperm.xlu0 %6510, %v2226
        %v6512 = vpop.permute.xlu0 %6511
        %6514 = vset.pattern.permute.xlu0 24
        %6515 = vperm.xlu0 %6514, %v2227
        %v6516 = vpop.permute.xlu0 %6515
        %6518 = vset.pattern.permute.xlu0 24
        %6519 = vperm.xlu0 %6518, %v2228
        %v6520 = vpop.permute.xlu0 %6519
        %6522 = vset.pattern.permute.xlu0 24
        %6523 = vperm.xlu0 %6522, %v2229
        %v6524 = vpop.permute.xlu0 %6523
        %6526 = vset.pattern.permute.xlu0 24
        %6527 = vperm.xlu0 %6526, %v2230
        %v6528 = vpop.permute.xlu0 %6527
        %v6530 = vmul.f32 %v6492, %v2831
        %v6531 = vmul.f32 %v6496, %v2834
        %v6532 = vmul.f32 %v6500, %v2837
        %v6533 = vmul.f32 %v6504, %v2840
        %v6534 = vmul.f32 %v6508, %v2843
        %v6535 = vmul.f32 %v6512, %v2846
        %v6536 = vmul.f32 %v6516, %v2849
        %v6537 = vmul.f32 %v6520, %v2852
        %v6538 = vmul.f32 %v6524, %v2855
        %v6539 = vmul.f32 %v6528, %v2858
        %v6540 = vadd.f32 %v6480, %v6530
        %v6541 = vadd.f32 %v6481, %v6531
        %v6542 = vadd.f32 %v6482, %v6532
        %v6543 = vadd.f32 %v6483, %v6533
        %v6544 = vadd.f32 %v6484, %v6534
        %v6545 = vadd.f32 %v6485, %v6535
        %v6546 = vadd.f32 %v6486, %v6536
        %v6547 = vadd.f32 %v6487, %v6537
        %v6548 = vadd.f32 %v6488, %v6538
        %v6549 = vadd.f32 %v6489, %v6539
        %6550 = vset.pattern.permute.xlu0 33
        %6551 = vperm.xlu0 %6550, %v2261
        %v6552 = vpop.permute.xlu0 %6551
        %6554 = vset.pattern.permute.xlu0 33
        %6555 = vperm.xlu0 %6554, %v2262
        %v6556 = vpop.permute.xlu0 %6555
        %6558 = vset.pattern.permute.xlu0 33
        %6559 = vperm.xlu0 %6558, %v2263
        %v6560 = vpop.permute.xlu0 %6559
        %6562 = vset.pattern.permute.xlu0 33
        %6563 = vperm.xlu0 %6562, %v2264
        %v6564 = vpop.permute.xlu0 %6563
        %6566 = vset.pattern.permute.xlu0 33
        %6567 = vperm.xlu0 %6566, %v2265
        %v6568 = vpop.permute.xlu0 %6567
        %6570 = vset.pattern.permute.xlu0 33
        %6571 = vperm.xlu0 %6570, %v2266
        %v6572 = vpop.permute.xlu0 %6571
        %6574 = vset.pattern.permute.xlu0 33
        %6575 = vperm.xlu0 %6574, %v2267
        %v6576 = vpop.permute.xlu0 %6575
        %6578 = vset.pattern.permute.xlu0 33
        %6579 = vperm.xlu0 %6578, %v2268
        %v6580 = vpop.permute.xlu0 %6579
        %6582 = vset.pattern.permute.xlu0 33
        %6583 = vperm.xlu0 %6582, %v2269
        %v6584 = vpop.permute.xlu0 %6583
        %6586 = vset.pattern.permute.xlu0 33
        %6587 = vperm.xlu0 %6586, %v2270
        %v6588 = vpop.permute.xlu0 %6587
        %v6590 = vmul.f32 %v6552, %v2889
        %v6591 = vmul.f32 %v6556, %v2890
        %v6592 = vmul.f32 %v6560, %v2891
        %v6593 = vmul.f32 %v6564, %v2892
        %v6594 = vmul.f32 %v6568, %v2893
        %v6595 = vmul.f32 %v6572, %v2894
        %v6596 = vmul.f32 %v6576, %v2895
        %v6597 = vmul.f32 %v6580, %v2896
        %v6598 = vmul.f32 %v6584, %v2897
        %v6599 = vmul.f32 %v6588, %v2898
        %v6600 = vadd.f32 %v6540, %v6590
        %v6601 = vadd.f32 %v6541, %v6591
        %v6602 = vadd.f32 %v6542, %v6592
        %v6603 = vadd.f32 %v6543, %v6593
        %v6604 = vadd.f32 %v6544, %v6594
        %v6605 = vadd.f32 %v6545, %v6595
        %v6606 = vadd.f32 %v6546, %v6596
        %v6607 = vadd.f32 %v6547, %v6597
        %v6608 = vadd.f32 %v6548, %v6598
        %v6609 = vadd.f32 %v6549, %v6599
        %6610 = vset.pattern.permute.xlu0 42
        %6611 = vperm.xlu0 %6610, %v2301
        %v6612 = vpop.permute.xlu0 %6611
        %6614 = vset.pattern.permute.xlu0 42
        %6615 = vperm.xlu0 %6614, %v2302
        %v6616 = vpop.permute.xlu0 %6615
        %6618 = vset.pattern.permute.xlu0 42
        %6619 = vperm.xlu0 %6618, %v2303
        %v6620 = vpop.permute.xlu0 %6619
        %6622 = vset.pattern.permute.xlu0 42
        %6623 = vperm.xlu0 %6622, %v2304
        %v6624 = vpop.permute.xlu0 %6623
        %6626 = vset.pattern.permute.xlu0 42
        %6627 = vperm.xlu0 %6626, %v2305
        %v6628 = vpop.permute.xlu0 %6627
        %6630 = vset.pattern.permute.xlu0 42
        %6631 = vperm.xlu0 %6630, %v2306
        %v6632 = vpop.permute.xlu0 %6631
        %6634 = vset.pattern.permute.xlu0 42
        %6635 = vperm.xlu0 %6634, %v2307
        %v6636 = vpop.permute.xlu0 %6635
        %6638 = vset.pattern.permute.xlu0 42
        %6639 = vperm.xlu0 %6638, %v2308
        %v6640 = vpop.permute.xlu0 %6639
        %6642 = vset.pattern.permute.xlu0 42
        %6643 = vperm.xlu0 %6642, %v2309
        %v6644 = vpop.permute.xlu0 %6643
        %6646 = vset.pattern.permute.xlu0 42
        %6647 = vperm.xlu0 %6646, %v2310
        %v6648 = vpop.permute.xlu0 %6647
        %v6650 = vmul.f32 %v6612, %v3051
        %v6651 = vmul.f32 %v6616, %v3054
        %v6652 = vmul.f32 %v6620, %v3057
        %v6653 = vmul.f32 %v6624, %v3060
        %v6654 = vmul.f32 %v6628, %v3063
        %v6655 = vmul.f32 %v6632, %v3066
        %v6656 = vmul.f32 %v6636, %v3069
        %v6657 = vmul.f32 %v6640, %v3072
        %v6658 = vmul.f32 %v6644, %v3075
        %v6659 = vmul.f32 %v6648, %v3078
        %v6660 = vadd.f32 %v6600, %v6650
        %v6661 = vadd.f32 %v6601, %v6651
        %v6662 = vadd.f32 %v6602, %v6652
        %v6663 = vadd.f32 %v6603, %v6653
        %v6664 = vadd.f32 %v6604, %v6654
        %v6665 = vadd.f32 %v6605, %v6655
        %v6666 = vadd.f32 %v6606, %v6656
        %v6667 = vadd.f32 %v6607, %v6657
        %v6668 = vadd.f32 %v6608, %v6658
        %v6669 = vadd.f32 %v6609, %v6659
        %6670 = vset.pattern.permute.xlu0 51
        %6671 = vperm.xlu0 %6670, %v2341
        %v6672 = vpop.permute.xlu0 %6671
        %6674 = vset.pattern.permute.xlu0 51
        %6675 = vperm.xlu0 %6674, %v2342
        %v6676 = vpop.permute.xlu0 %6675
        %6678 = vset.pattern.permute.xlu0 51
        %6679 = vperm.xlu0 %6678, %v2343
        %v6680 = vpop.permute.xlu0 %6679
        %6682 = vset.pattern.permute.xlu0 51
        %6683 = vperm.xlu0 %6682, %v2344
        %v6684 = vpop.permute.xlu0 %6683
        %6686 = vset.pattern.permute.xlu0 51
        %6687 = vperm.xlu0 %6686, %v2345
        %v6688 = vpop.permute.xlu0 %6687
        %6690 = vset.pattern.permute.xlu0 51
        %6691 = vperm.xlu0 %6690, %v2346
        %v6692 = vpop.permute.xlu0 %6691
        %6694 = vset.pattern.permute.xlu0 51
        %6695 = vperm.xlu0 %6694, %v2347
        %v6696 = vpop.permute.xlu0 %6695
        %6698 = vset.pattern.permute.xlu0 51
        %6699 = vperm.xlu0 %6698, %v2348
        %v6700 = vpop.permute.xlu0 %6699
        %6702 = vset.pattern.permute.xlu0 51
        %6703 = vperm.xlu0 %6702, %v2349
        %v6704 = vpop.permute.xlu0 %6703
        %6706 = vset.pattern.permute.xlu0 51
        %6707 = vperm.xlu0 %6706, %v2350
        %v6708 = vpop.permute.xlu0 %6707
        %v6710 = vmul.f32 %v6672, %v3161
        %v6711 = vmul.f32 %v6676, %v3164
        %v6712 = vmul.f32 %v6680, %v3167
        %v6713 = vmul.f32 %v6684, %v3170
        %v6714 = vmul.f32 %v6688, %v3173
        %v6715 = vmul.f32 %v6692, %v3176
        %v6716 = vmul.f32 %v6696, %v3179
        %v6717 = vmul.f32 %v6700, %v3182
        %v6718 = vmul.f32 %v6704, %v3185
        %v6719 = vmul.f32 %v6708, %v3188
        %v6720 = vadd.f32 %v6660, %v6710
        %v6721 = vadd.f32 %v6661, %v6711
        %v6722 = vadd.f32 %v6662, %v6712
        %v6723 = vadd.f32 %v6663, %v6713
        %v6724 = vadd.f32 %v6664, %v6714
        %v6725 = vadd.f32 %v6665, %v6715
        %v6726 = vadd.f32 %v6666, %v6716
        %v6727 = vadd.f32 %v6667, %v6717
        %v6728 = vadd.f32 %v6668, %v6718
        %v6729 = vadd.f32 %v6669, %v6719
        %6730 = vset.pattern.permute.xlu0 60
        %6731 = vperm.xlu0 %6730, %v2381
        %v6732 = vpop.permute.xlu0 %6731
        %6734 = vset.pattern.permute.xlu0 60
        %6735 = vperm.xlu0 %6734, %v2382
        %v6736 = vpop.permute.xlu0 %6735
        %6738 = vset.pattern.permute.xlu0 60
        %6739 = vperm.xlu0 %6738, %v2383
        %v6740 = vpop.permute.xlu0 %6739
        %6742 = vset.pattern.permute.xlu0 60
        %6743 = vperm.xlu0 %6742, %v2384
        %v6744 = vpop.permute.xlu0 %6743
        %6746 = vset.pattern.permute.xlu0 60
        %6747 = vperm.xlu0 %6746, %v2385
        %v6748 = vpop.permute.xlu0 %6747
        %6750 = vset.pattern.permute.xlu0 60
        %6751 = vperm.xlu0 %6750, %v2386
        %v6752 = vpop.permute.xlu0 %6751
        %6754 = vset.pattern.permute.xlu0 60
        %6755 = vperm.xlu0 %6754, %v2387
        %v6756 = vpop.permute.xlu0 %6755
        %6758 = vset.pattern.permute.xlu0 60
        %6759 = vperm.xlu0 %6758, %v2388
        %v6760 = vpop.permute.xlu0 %6759
        %6762 = vset.pattern.permute.xlu0 60
        %6763 = vperm.xlu0 %6762, %v2389
        %v6764 = vpop.permute.xlu0 %6763
        %6766 = vset.pattern.permute.xlu0 60
        %6767 = vperm.xlu0 %6766, %v2390
        %v6768 = vpop.permute.xlu0 %6767
        %v6770 = vmul.f32 %v6732, %v3219
        %v6771 = vmul.f32 %v6736, %v3220
        %v6772 = vmul.f32 %v6740, %v3221
        %v6773 = vmul.f32 %v6744, %v3222
        %v6774 = vmul.f32 %v6748, %v3223
        %v6775 = vmul.f32 %v6752, %v3224
        %v6776 = vmul.f32 %v6756, %v3225
        %v6777 = vmul.f32 %v6760, %v3226
        %v6778 = vmul.f32 %v6764, %v3227
        %v6779 = vmul.f32 %v6768, %v3228
        %v6780 = vadd.f32 %v6720, %v6770
        %v6781 = vadd.f32 %v6721, %v6771
        %v6782 = vadd.f32 %v6722, %v6772
        %v6783 = vadd.f32 %v6723, %v6773
        %v6784 = vadd.f32 %v6724, %v6774
        %v6785 = vadd.f32 %v6725, %v6775
        %v6786 = vadd.f32 %v6726, %v6776
        %v6787 = vadd.f32 %v6727, %v6777
        %v6788 = vadd.f32 %v6728, %v6778
        %v6789 = vadd.f32 %v6729, %v6779
        %6790 = vset.pattern.permute.xlu0 69
        %6791 = vperm.xlu0 %6790, %v2421
        %v6792 = vpop.permute.xlu0 %6791
        %6794 = vset.pattern.permute.xlu0 69
        %6795 = vperm.xlu0 %6794, %v2422
        %v6796 = vpop.permute.xlu0 %6795
        %6798 = vset.pattern.permute.xlu0 69
        %6799 = vperm.xlu0 %6798, %v2423
        %v6800 = vpop.permute.xlu0 %6799
        %6802 = vset.pattern.permute.xlu0 69
        %6803 = vperm.xlu0 %6802, %v2424
        %v6804 = vpop.permute.xlu0 %6803
        %6806 = vset.pattern.permute.xlu0 69
        %6807 = vperm.xlu0 %6806, %v2425
        %v6808 = vpop.permute.xlu0 %6807
        %6810 = vset.pattern.permute.xlu0 69
        %6811 = vperm.xlu0 %6810, %v2426
        %v6812 = vpop.permute.xlu0 %6811
        %6814 = vset.pattern.permute.xlu0 69
        %6815 = vperm.xlu0 %6814, %v2427
        %v6816 = vpop.permute.xlu0 %6815
        %6818 = vset.pattern.permute.xlu0 69
        %6819 = vperm.xlu0 %6818, %v2428
        %v6820 = vpop.permute.xlu0 %6819
        %6822 = vset.pattern.permute.xlu0 69
        %6823 = vperm.xlu0 %6822, %v2429
        %v6824 = vpop.permute.xlu0 %6823
        %6826 = vset.pattern.permute.xlu0 69
        %6827 = vperm.xlu0 %6826, %v2430
        %v6828 = vpop.permute.xlu0 %6827
        %v6830 = vmul.f32 %v6792, %v3381
        %v6831 = vmul.f32 %v6796, %v3384
        %v6832 = vmul.f32 %v6800, %v3387
        %v6833 = vmul.f32 %v6804, %v3390
        %v6834 = vmul.f32 %v6808, %v3393
        %v6835 = vmul.f32 %v6812, %v3396
        %v6836 = vmul.f32 %v6816, %v3399
        %v6837 = vmul.f32 %v6820, %v3402
        %v6838 = vmul.f32 %v6824, %v3405
        %v6839 = vmul.f32 %v6828, %v3408
        %v6840 = vadd.f32 %v6780, %v6830
        %v6841 = vadd.f32 %v6781, %v6831
        %v6842 = vadd.f32 %v6782, %v6832
        %v6843 = vadd.f32 %v6783, %v6833
        %v6844 = vadd.f32 %v6784, %v6834
        %v6845 = vadd.f32 %v6785, %v6835
        %v6846 = vadd.f32 %v6786, %v6836
        %v6847 = vadd.f32 %v6787, %v6837
        %v6848 = vadd.f32 %v6788, %v6838
        %v6849 = vadd.f32 %v6789, %v6839
        %6850 = vset.pattern.permute.xlu0 78
        %6851 = vperm.xlu0 %6850, %v2461
        %v6852 = vpop.permute.xlu0 %6851
        %6854 = vset.pattern.permute.xlu0 78
        %6855 = vperm.xlu0 %6854, %v2462
        %v6856 = vpop.permute.xlu0 %6855
        %6858 = vset.pattern.permute.xlu0 78
        %6859 = vperm.xlu0 %6858, %v2463
        %v6860 = vpop.permute.xlu0 %6859
        %6862 = vset.pattern.permute.xlu0 78
        %6863 = vperm.xlu0 %6862, %v2464
        %v6864 = vpop.permute.xlu0 %6863
        %6866 = vset.pattern.permute.xlu0 78
        %6867 = vperm.xlu0 %6866, %v2465
        %v6868 = vpop.permute.xlu0 %6867
        %6870 = vset.pattern.permute.xlu0 78
        %6871 = vperm.xlu0 %6870, %v2466
        %v6872 = vpop.permute.xlu0 %6871
        %6874 = vset.pattern.permute.xlu0 78
        %6875 = vperm.xlu0 %6874, %v2467
        %v6876 = vpop.permute.xlu0 %6875
        %6878 = vset.pattern.permute.xlu0 78
        %6879 = vperm.xlu0 %6878, %v2468
        %v6880 = vpop.permute.xlu0 %6879
        %6882 = vset.pattern.permute.xlu0 78
        %6883 = vperm.xlu0 %6882, %v2469
        %v6884 = vpop.permute.xlu0 %6883
        %6886 = vset.pattern.permute.xlu0 78
        %6887 = vperm.xlu0 %6886, %v2470
        %v6888 = vpop.permute.xlu0 %6887
        %v6890 = vmul.f32 %v6852, %v3491
        %v6891 = vmul.f32 %v6856, %v3494
        %v6892 = vmul.f32 %v6860, %v3497
        %v6893 = vmul.f32 %v6864, %v3500
        %v6894 = vmul.f32 %v6868, %v3503
        %v6895 = vmul.f32 %v6872, %v3506
        %v6896 = vmul.f32 %v6876, %v3509
        %v6897 = vmul.f32 %v6880, %v3512
        %v6898 = vmul.f32 %v6884, %v3515
        %v6899 = vmul.f32 %v6888, %v3518
        %v6900 = vadd.f32 %v6840, %v6890
        %v6901 = vadd.f32 %v6841, %v6891
        %v6902 = vadd.f32 %v6842, %v6892
        %v6903 = vadd.f32 %v6843, %v6893
        %v6904 = vadd.f32 %v6844, %v6894
        %v6905 = vadd.f32 %v6845, %v6895
        %v6906 = vadd.f32 %v6846, %v6896
        %v6907 = vadd.f32 %v6847, %v6897
        %v6908 = vadd.f32 %v6848, %v6898
        %v6909 = vadd.f32 %v6849, %v6899
        %s6910 = scalar_lea.vmem [#allocation4], 32
        %v6911 = vld [vmem:[%s6910] sm:$0xff]
        %v6912 = vld [vmem:[%s6910 + $0x10] sm:$0xff]
        %v6913 = vld [vmem:[%s6910 + $0x20] sm:$0xff]
        %v6914 = vld [vmem:[%s6910 + $0x30] sm:$0xff]
        %v6915 = vld [vmem:[%s6910 + $0x40] sm:$0xff]
        %v6916 = vld [vmem:[%s6910 + $0x50] sm:$0xff]
        %v6917 = vld [vmem:[%s6910 + $0x60] sm:$0xff]
        %v6918 = vld [vmem:[%s6910 + $0x70] sm:$0xff]
        %v6919 = vld [vmem:[%s6910 + $0x80] sm:$0xff]
        %v6920 = vld [vmem:[%s6910 + $0x90] sm:$0xff]
        %v6921 = vadd.f32 %v6911, %v6900
        %v6922 = vadd.f32 %v6912, %v6901
        %v6923 = vadd.f32 %v6913, %v6902
        %v6924 = vadd.f32 %v6914, %v6903
        %v6925 = vadd.f32 %v6915, %v6904
        %v6926 = vadd.f32 %v6916, %v6905
        %v6927 = vadd.f32 %v6917, %v6906
        %v6928 = vadd.f32 %v6918, %v6907
        %v6929 = vadd.f32 %v6919, %v6908
        %v6930 = vadd.f32 %v6920, %v6909
        %6931 = vst.msk [vmem:[%s6910] sm:$0xff] %vm740, %v6921
        %6932 = vst.msk [vmem:[%s6910 + $0x10] sm:$0xff] %vm740, %v6922
        %6933 = vst.msk [vmem:[%s6910 + $0x20] sm:$0xff] %vm740, %v6923
        %6934 = vst.msk [vmem:[%s6910 + $0x30] sm:$0xff] %vm740, %v6924
        %6935 = vst.msk [vmem:[%s6910 + $0x40] sm:$0xff] %vm740, %v6925
        %6936 = vst.msk [vmem:[%s6910 + $0x50] sm:$0xff] %vm740, %v6926
        %6937 = vst.msk [vmem:[%s6910 + $0x60] sm:$0xff] %vm740, %v6927
        %6938 = vst.msk [vmem:[%s6910 + $0x70] sm:$0xff] %vm740, %v6928
        %6939 = vst.msk [vmem:[%s6910 + $0x80] sm:$0xff] %vm740, %v6929
        %6940 = vst.msk [vmem:[%s6910 + $0x90] sm:$0xff] %vm740, %v6930
        %6941 = vset.pattern.permute.xlu0 7
        %6942 = vperm.xlu0 %6941, %v2131
        %v6943 = vpop.permute.xlu0 %6942
        %6945 = vset.pattern.permute.xlu0 7
        %6946 = vperm.xlu0 %6945, %v2132
        %v6947 = vpop.permute.xlu0 %6946
        %6949 = vset.pattern.permute.xlu0 7
        %6950 = vperm.xlu0 %6949, %v2133
        %v6951 = vpop.permute.xlu0 %6950
        %6953 = vset.pattern.permute.xlu0 7
        %6954 = vperm.xlu0 %6953, %v2134
        %v6955 = vpop.permute.xlu0 %6954
        %6957 = vset.pattern.permute.xlu0 7
        %6958 = vperm.xlu0 %6957, %v2135
        %v6959 = vpop.permute.xlu0 %6958
        %6961 = vset.pattern.permute.xlu0 7
        %6962 = vperm.xlu0 %6961, %v2136
        %v6963 = vpop.permute.xlu0 %6962
        %6965 = vset.pattern.permute.xlu0 7
        %6966 = vperm.xlu0 %6965, %v2137
        %v6967 = vpop.permute.xlu0 %6966
        %6969 = vset.pattern.permute.xlu0 7
        %6970 = vperm.xlu0 %6969, %v2138
        %v6971 = vpop.permute.xlu0 %6970
        %6973 = vset.pattern.permute.xlu0 7
        %6974 = vperm.xlu0 %6973, %v2139
        %v6975 = vpop.permute.xlu0 %6974
        %6977 = vset.pattern.permute.xlu0 7
        %6978 = vperm.xlu0 %6977, %v2140
        %v6979 = vpop.permute.xlu0 %6978
        %v6981 = vmul.f32 %v6943, %v2567
        %v6982 = vmul.f32 %v6947, %v2568
        %v6983 = vmul.f32 %v6951, %v2569
        %v6984 = vmul.f32 %v6955, %v2570
        %v6985 = vmul.f32 %v6959, %v2571
        %v6986 = vmul.f32 %v6963, %v2572
        %v6987 = vmul.f32 %v6967, %v2573
        %v6988 = vmul.f32 %v6971, %v2574
        %v6989 = vmul.f32 %v6975, %v2575
        %v6990 = vmul.f32 %v6979, %v2576
        %6991 = vset.pattern.permute.xlu0 16
        %6992 = vperm.xlu0 %6991, %v2181
        %v6993 = vpop.permute.xlu0 %6992
        %6995 = vset.pattern.permute.xlu0 16
        %6996 = vperm.xlu0 %6995, %v2182
        %v6997 = vpop.permute.xlu0 %6996
        %6999 = vset.pattern.permute.xlu0 16
        %7000 = vperm.xlu0 %6999, %v2183
        %v7001 = vpop.permute.xlu0 %7000
        %7003 = vset.pattern.permute.xlu0 16
        %7004 = vperm.xlu0 %7003, %v2184
        %v7005 = vpop.permute.xlu0 %7004
        %7007 = vset.pattern.permute.xlu0 16
        %7008 = vperm.xlu0 %7007, %v2185
        %v7009 = vpop.permute.xlu0 %7008
        %7011 = vset.pattern.permute.xlu0 16
        %7012 = vperm.xlu0 %7011, %v2186
        %v7013 = vpop.permute.xlu0 %7012
        %7015 = vset.pattern.permute.xlu0 16
        %7016 = vperm.xlu0 %7015, %v2187
        %v7017 = vpop.permute.xlu0 %7016
        %7019 = vset.pattern.permute.xlu0 16
        %7020 = vperm.xlu0 %7019, %v2188
        %v7021 = vpop.permute.xlu0 %7020
        %7023 = vset.pattern.permute.xlu0 16
        %7024 = vperm.xlu0 %7023, %v2189
        %v7025 = vpop.permute.xlu0 %7024
        %7027 = vset.pattern.permute.xlu0 16
        %7028 = vperm.xlu0 %7027, %v2190
        %v7029 = vpop.permute.xlu0 %7028
        %v7031 = vmul.f32 %v6993, %v2720
        %v7032 = vmul.f32 %v6997, %v2723
        %v7033 = vmul.f32 %v7001, %v2726
        %v7034 = vmul.f32 %v7005, %v2729
        %v7035 = vmul.f32 %v7009, %v2732
        %v7036 = vmul.f32 %v7013, %v2735
        %v7037 = vmul.f32 %v7017, %v2738
        %v7038 = vmul.f32 %v7021, %v2741
        %v7039 = vmul.f32 %v7025, %v2744
        %v7040 = vmul.f32 %v7029, %v2747
        %v7041 = vadd.f32 %v6981, %v7031
        %v7042 = vadd.f32 %v6982, %v7032
        %v7043 = vadd.f32 %v6983, %v7033
        %v7044 = vadd.f32 %v6984, %v7034
        %v7045 = vadd.f32 %v6985, %v7035
        %v7046 = vadd.f32 %v6986, %v7036
        %v7047 = vadd.f32 %v6987, %v7037
        %v7048 = vadd.f32 %v6988, %v7038
        %v7049 = vadd.f32 %v6989, %v7039
        %v7050 = vadd.f32 %v6990, %v7040
        %7051 = vset.pattern.permute.xlu0 25
        %7052 = vperm.xlu0 %7051, %v2221
        %v7053 = vpop.permute.xlu0 %7052
        %7055 = vset.pattern.permute.xlu0 25
        %7056 = vperm.xlu0 %7055, %v2222
        %v7057 = vpop.permute.xlu0 %7056
        %7059 = vset.pattern.permute.xlu0 25
        %7060 = vperm.xlu0 %7059, %v2223
        %v7061 = vpop.permute.xlu0 %7060
        %7063 = vset.pattern.permute.xlu0 25
        %7064 = vperm.xlu0 %7063, %v2224
        %v7065 = vpop.permute.xlu0 %7064
        %7067 = vset.pattern.permute.xlu0 25
        %7068 = vperm.xlu0 %7067, %v2225
        %v7069 = vpop.permute.xlu0 %7068
        %7071 = vset.pattern.permute.xlu0 25
        %7072 = vperm.xlu0 %7071, %v2226
        %v7073 = vpop.permute.xlu0 %7072
        %7075 = vset.pattern.permute.xlu0 25
        %7076 = vperm.xlu0 %7075, %v2227
        %v7077 = vpop.permute.xlu0 %7076
        %7079 = vset.pattern.permute.xlu0 25
        %7080 = vperm.xlu0 %7079, %v2228
        %v7081 = vpop.permute.xlu0 %7080
        %7083 = vset.pattern.permute.xlu0 25
        %7084 = vperm.xlu0 %7083, %v2229
        %v7085 = vpop.permute.xlu0 %7084
        %7087 = vset.pattern.permute.xlu0 25
        %7088 = vperm.xlu0 %7087, %v2230
        %v7089 = vpop.permute.xlu0 %7088
        %v7091 = vmul.f32 %v7053, %v2831
        %v7092 = vmul.f32 %v7057, %v2834
        %v7093 = vmul.f32 %v7061, %v2837
        %v7094 = vmul.f32 %v7065, %v2840
        %v7095 = vmul.f32 %v7069, %v2843
        %v7096 = vmul.f32 %v7073, %v2846
        %v7097 = vmul.f32 %v7077, %v2849
        %v7098 = vmul.f32 %v7081, %v2852
        %v7099 = vmul.f32 %v7085, %v2855
        %v7100 = vmul.f32 %v7089, %v2858
        %v7101 = vadd.f32 %v7041, %v7091
        %v7102 = vadd.f32 %v7042, %v7092
        %v7103 = vadd.f32 %v7043, %v7093
        %v7104 = vadd.f32 %v7044, %v7094
        %v7105 = vadd.f32 %v7045, %v7095
        %v7106 = vadd.f32 %v7046, %v7096
        %v7107 = vadd.f32 %v7047, %v7097
        %v7108 = vadd.f32 %v7048, %v7098
        %v7109 = vadd.f32 %v7049, %v7099
        %v7110 = vadd.f32 %v7050, %v7100
        %7111 = vset.pattern.permute.xlu0 34
        %7112 = vperm.xlu0 %7111, %v2261
        %v7113 = vpop.permute.xlu0 %7112
        %7115 = vset.pattern.permute.xlu0 34
        %7116 = vperm.xlu0 %7115, %v2262
        %v7117 = vpop.permute.xlu0 %7116
        %7119 = vset.pattern.permute.xlu0 34
        %7120 = vperm.xlu0 %7119, %v2263
        %v7121 = vpop.permute.xlu0 %7120
        %7123 = vset.pattern.permute.xlu0 34
        %7124 = vperm.xlu0 %7123, %v2264
        %v7125 = vpop.permute.xlu0 %7124
        %7127 = vset.pattern.permute.xlu0 34
        %7128 = vperm.xlu0 %7127, %v2265
        %v7129 = vpop.permute.xlu0 %7128
        %7131 = vset.pattern.permute.xlu0 34
        %7132 = vperm.xlu0 %7131, %v2266
        %v7133 = vpop.permute.xlu0 %7132
        %7135 = vset.pattern.permute.xlu0 34
        %7136 = vperm.xlu0 %7135, %v2267
        %v7137 = vpop.permute.xlu0 %7136
        %7139 = vset.pattern.permute.xlu0 34
        %7140 = vperm.xlu0 %7139, %v2268
        %v7141 = vpop.permute.xlu0 %7140
        %7143 = vset.pattern.permute.xlu0 34
        %7144 = vperm.xlu0 %7143, %v2269
        %v7145 = vpop.permute.xlu0 %7144
        %7147 = vset.pattern.permute.xlu0 34
        %7148 = vperm.xlu0 %7147, %v2270
        %v7149 = vpop.permute.xlu0 %7148
        %v7151 = vmul.f32 %v7113, %v2889
        %v7152 = vmul.f32 %v7117, %v2890
        %v7153 = vmul.f32 %v7121, %v2891
        %v7154 = vmul.f32 %v7125, %v2892
        %v7155 = vmul.f32 %v7129, %v2893
        %v7156 = vmul.f32 %v7133, %v2894
        %v7157 = vmul.f32 %v7137, %v2895
        %v7158 = vmul.f32 %v7141, %v2896
        %v7159 = vmul.f32 %v7145, %v2897
        %v7160 = vmul.f32 %v7149, %v2898
        %v7161 = vadd.f32 %v7101, %v7151
        %v7162 = vadd.f32 %v7102, %v7152
        %v7163 = vadd.f32 %v7103, %v7153
        %v7164 = vadd.f32 %v7104, %v7154
        %v7165 = vadd.f32 %v7105, %v7155
        %v7166 = vadd.f32 %v7106, %v7156
        %v7167 = vadd.f32 %v7107, %v7157
        %v7168 = vadd.f32 %v7108, %v7158
        %v7169 = vadd.f32 %v7109, %v7159
        %v7170 = vadd.f32 %v7110, %v7160
        %7171 = vset.pattern.permute.xlu0 43
        %7172 = vperm.xlu0 %7171, %v2301
        %v7173 = vpop.permute.xlu0 %7172
        %7175 = vset.pattern.permute.xlu0 43
        %7176 = vperm.xlu0 %7175, %v2302
        %v7177 = vpop.permute.xlu0 %7176
        %7179 = vset.pattern.permute.xlu0 43
        %7180 = vperm.xlu0 %7179, %v2303
        %v7181 = vpop.permute.xlu0 %7180
        %7183 = vset.pattern.permute.xlu0 43
        %7184 = vperm.xlu0 %7183, %v2304
        %v7185 = vpop.permute.xlu0 %7184
        %7187 = vset.pattern.permute.xlu0 43
        %7188 = vperm.xlu0 %7187, %v2305
        %v7189 = vpop.permute.xlu0 %7188
        %7191 = vset.pattern.permute.xlu0 43
        %7192 = vperm.xlu0 %7191, %v2306
        %v7193 = vpop.permute.xlu0 %7192
        %7195 = vset.pattern.permute.xlu0 43
        %7196 = vperm.xlu0 %7195, %v2307
        %v7197 = vpop.permute.xlu0 %7196
        %7199 = vset.pattern.permute.xlu0 43
        %7200 = vperm.xlu0 %7199, %v2308
        %v7201 = vpop.permute.xlu0 %7200
        %7203 = vset.pattern.permute.xlu0 43
        %7204 = vperm.xlu0 %7203, %v2309
        %v7205 = vpop.permute.xlu0 %7204
        %7207 = vset.pattern.permute.xlu0 43
        %7208 = vperm.xlu0 %7207, %v2310
        %v7209 = vpop.permute.xlu0 %7208
        %v7211 = vmul.f32 %v7173, %v3051
        %v7212 = vmul.f32 %v7177, %v3054
        %v7213 = vmul.f32 %v7181, %v3057
        %v7214 = vmul.f32 %v7185, %v3060
        %v7215 = vmul.f32 %v7189, %v3063
        %v7216 = vmul.f32 %v7193, %v3066
        %v7217 = vmul.f32 %v7197, %v3069
        %v7218 = vmul.f32 %v7201, %v3072
        %v7219 = vmul.f32 %v7205, %v3075
        %v7220 = vmul.f32 %v7209, %v3078
        %v7221 = vadd.f32 %v7161, %v7211
        %v7222 = vadd.f32 %v7162, %v7212
        %v7223 = vadd.f32 %v7163, %v7213
        %v7224 = vadd.f32 %v7164, %v7214
        %v7225 = vadd.f32 %v7165, %v7215
        %v7226 = vadd.f32 %v7166, %v7216
        %v7227 = vadd.f32 %v7167, %v7217
        %v7228 = vadd.f32 %v7168, %v7218
        %v7229 = vadd.f32 %v7169, %v7219
        %v7230 = vadd.f32 %v7170, %v7220
        %7231 = vset.pattern.permute.xlu0 52
        %7232 = vperm.xlu0 %7231, %v2341
        %v7233 = vpop.permute.xlu0 %7232
        %7235 = vset.pattern.permute.xlu0 52
        %7236 = vperm.xlu0 %7235, %v2342
        %v7237 = vpop.permute.xlu0 %7236
        %7239 = vset.pattern.permute.xlu0 52
        %7240 = vperm.xlu0 %7239, %v2343
        %v7241 = vpop.permute.xlu0 %7240
        %7243 = vset.pattern.permute.xlu0 52
        %7244 = vperm.xlu0 %7243, %v2344
        %v7245 = vpop.permute.xlu0 %7244
        %7247 = vset.pattern.permute.xlu0 52
        %7248 = vperm.xlu0 %7247, %v2345
        %v7249 = vpop.permute.xlu0 %7248
        %7251 = vset.pattern.permute.xlu0 52
        %7252 = vperm.xlu0 %7251, %v2346
        %v7253 = vpop.permute.xlu0 %7252
        %7255 = vset.pattern.permute.xlu0 52
        %7256 = vperm.xlu0 %7255, %v2347
        %v7257 = vpop.permute.xlu0 %7256
        %7259 = vset.pattern.permute.xlu0 52
        %7260 = vperm.xlu0 %7259, %v2348
        %v7261 = vpop.permute.xlu0 %7260
        %7263 = vset.pattern.permute.xlu0 52
        %7264 = vperm.xlu0 %7263, %v2349
        %v7265 = vpop.permute.xlu0 %7264
        %7267 = vset.pattern.permute.xlu0 52
        %7268 = vperm.xlu0 %7267, %v2350
        %v7269 = vpop.permute.xlu0 %7268
        %v7271 = vmul.f32 %v7233, %v3161
        %v7272 = vmul.f32 %v7237, %v3164
        %v7273 = vmul.f32 %v7241, %v3167
        %v7274 = vmul.f32 %v7245, %v3170
        %v7275 = vmul.f32 %v7249, %v3173
        %v7276 = vmul.f32 %v7253, %v3176
        %v7277 = vmul.f32 %v7257, %v3179
        %v7278 = vmul.f32 %v7261, %v3182
        %v7279 = vmul.f32 %v7265, %v3185
        %v7280 = vmul.f32 %v7269, %v3188
        %v7281 = vadd.f32 %v7221, %v7271
        %v7282 = vadd.f32 %v7222, %v7272
        %v7283 = vadd.f32 %v7223, %v7273
        %v7284 = vadd.f32 %v7224, %v7274
        %v7285 = vadd.f32 %v7225, %v7275
        %v7286 = vadd.f32 %v7226, %v7276
        %v7287 = vadd.f32 %v7227, %v7277
        %v7288 = vadd.f32 %v7228, %v7278
        %v7289 = vadd.f32 %v7229, %v7279
        %v7290 = vadd.f32 %v7230, %v7280
        %7291 = vset.pattern.permute.xlu0 61
        %7292 = vperm.xlu0 %7291, %v2381
        %v7293 = vpop.permute.xlu0 %7292
        %7295 = vset.pattern.permute.xlu0 61
        %7296 = vperm.xlu0 %7295, %v2382
        %v7297 = vpop.permute.xlu0 %7296
        %7299 = vset.pattern.permute.xlu0 61
        %7300 = vperm.xlu0 %7299, %v2383
        %v7301 = vpop.permute.xlu0 %7300
        %7303 = vset.pattern.permute.xlu0 61
        %7304 = vperm.xlu0 %7303, %v2384
        %v7305 = vpop.permute.xlu0 %7304
        %7307 = vset.pattern.permute.xlu0 61
        %7308 = vperm.xlu0 %7307, %v2385
        %v7309 = vpop.permute.xlu0 %7308
        %7311 = vset.pattern.permute.xlu0 61
        %7312 = vperm.xlu0 %7311, %v2386
        %v7313 = vpop.permute.xlu0 %7312
        %7315 = vset.pattern.permute.xlu0 61
        %7316 = vperm.xlu0 %7315, %v2387
        %v7317 = vpop.permute.xlu0 %7316
        %7319 = vset.pattern.permute.xlu0 61
        %7320 = vperm.xlu0 %7319, %v2388
        %v7321 = vpop.permute.xlu0 %7320
        %7323 = vset.pattern.permute.xlu0 61
        %7324 = vperm.xlu0 %7323, %v2389
        %v7325 = vpop.permute.xlu0 %7324
        %7327 = vset.pattern.permute.xlu0 61
        %7328 = vperm.xlu0 %7327, %v2390
        %v7329 = vpop.permute.xlu0 %7328
        %v7331 = vmul.f32 %v7293, %v3219
        %v7332 = vmul.f32 %v7297, %v3220
        %v7333 = vmul.f32 %v7301, %v3221
        %v7334 = vmul.f32 %v7305, %v3222
        %v7335 = vmul.f32 %v7309, %v3223
        %v7336 = vmul.f32 %v7313, %v3224
        %v7337 = vmul.f32 %v7317, %v3225
        %v7338 = vmul.f32 %v7321, %v3226
        %v7339 = vmul.f32 %v7325, %v3227
        %v7340 = vmul.f32 %v7329, %v3228
        %v7341 = vadd.f32 %v7281, %v7331
        %v7342 = vadd.f32 %v7282, %v7332
        %v7343 = vadd.f32 %v7283, %v7333
        %v7344 = vadd.f32 %v7284, %v7334
        %v7345 = vadd.f32 %v7285, %v7335
        %v7346 = vadd.f32 %v7286, %v7336
        %v7347 = vadd.f32 %v7287, %v7337
        %v7348 = vadd.f32 %v7288, %v7338
        %v7349 = vadd.f32 %v7289, %v7339
        %v7350 = vadd.f32 %v7290, %v7340
        %7351 = vset.pattern.permute.xlu0 70
        %7352 = vperm.xlu0 %7351, %v2421
        %v7353 = vpop.permute.xlu0 %7352
        %7355 = vset.pattern.permute.xlu0 70
        %7356 = vperm.xlu0 %7355, %v2422
        %v7357 = vpop.permute.xlu0 %7356
        %7359 = vset.pattern.permute.xlu0 70
        %7360 = vperm.xlu0 %7359, %v2423
        %v7361 = vpop.permute.xlu0 %7360
        %7363 = vset.pattern.permute.xlu0 70
        %7364 = vperm.xlu0 %7363, %v2424
        %v7365 = vpop.permute.xlu0 %7364
        %7367 = vset.pattern.permute.xlu0 70
        %7368 = vperm.xlu0 %7367, %v2425
        %v7369 = vpop.permute.xlu0 %7368
        %7371 = vset.pattern.permute.xlu0 70
        %7372 = vperm.xlu0 %7371, %v2426
        %v7373 = vpop.permute.xlu0 %7372
        %7375 = vset.pattern.permute.xlu0 70
        %7376 = vperm.xlu0 %7375, %v2427
        %v7377 = vpop.permute.xlu0 %7376
        %7379 = vset.pattern.permute.xlu0 70
        %7380 = vperm.xlu0 %7379, %v2428
        %v7381 = vpop.permute.xlu0 %7380
        %7383 = vset.pattern.permute.xlu0 70
        %7384 = vperm.xlu0 %7383, %v2429
        %v7385 = vpop.permute.xlu0 %7384
        %7387 = vset.pattern.permute.xlu0 70
        %7388 = vperm.xlu0 %7387, %v2430
        %v7389 = vpop.permute.xlu0 %7388
        %v7391 = vmul.f32 %v7353, %v3381
        %v7392 = vmul.f32 %v7357, %v3384
        %v7393 = vmul.f32 %v7361, %v3387
        %v7394 = vmul.f32 %v7365, %v3390
        %v7395 = vmul.f32 %v7369, %v3393
        %v7396 = vmul.f32 %v7373, %v3396
        %v7397 = vmul.f32 %v7377, %v3399
        %v7398 = vmul.f32 %v7381, %v3402
        %v7399 = vmul.f32 %v7385, %v3405
        %v7400 = vmul.f32 %v7389, %v3408
        %v7401 = vadd.f32 %v7341, %v7391
        %v7402 = vadd.f32 %v7342, %v7392
        %v7403 = vadd.f32 %v7343, %v7393
        %v7404 = vadd.f32 %v7344, %v7394
        %v7405 = vadd.f32 %v7345, %v7395
        %v7406 = vadd.f32 %v7346, %v7396
        %v7407 = vadd.f32 %v7347, %v7397
        %v7408 = vadd.f32 %v7348, %v7398
        %v7409 = vadd.f32 %v7349, %v7399
        %v7410 = vadd.f32 %v7350, %v7400
        %7411 = vset.pattern.permute.xlu0 79
        %7412 = vperm.xlu0 %7411, %v2461
        %v7413 = vpop.permute.xlu0 %7412
        %7415 = vset.pattern.permute.xlu0 79
        %7416 = vperm.xlu0 %7415, %v2462
        %v7417 = vpop.permute.xlu0 %7416
        %7419 = vset.pattern.permute.xlu0 79
        %7420 = vperm.xlu0 %7419, %v2463
        %v7421 = vpop.permute.xlu0 %7420
        %7423 = vset.pattern.permute.xlu0 79
        %7424 = vperm.xlu0 %7423, %v2464
        %v7425 = vpop.permute.xlu0 %7424
        %7427 = vset.pattern.permute.xlu0 79
        %7428 = vperm.xlu0 %7427, %v2465
        %v7429 = vpop.permute.xlu0 %7428
        %7431 = vset.pattern.permute.xlu0 79
        %7432 = vperm.xlu0 %7431, %v2466
        %v7433 = vpop.permute.xlu0 %7432
        %7435 = vset.pattern.permute.xlu0 79
        %7436 = vperm.xlu0 %7435, %v2467
        %v7437 = vpop.permute.xlu0 %7436
        %7439 = vset.pattern.permute.xlu0 79
        %7440 = vperm.xlu0 %7439, %v2468
        %v7441 = vpop.permute.xlu0 %7440
        %7443 = vset.pattern.permute.xlu0 79
        %7444 = vperm.xlu0 %7443, %v2469
        %v7445 = vpop.permute.xlu0 %7444
        %7447 = vset.pattern.permute.xlu0 79
        %7448 = vperm.xlu0 %7447, %v2470
        %v7449 = vpop.permute.xlu0 %7448
        %v7451 = vmul.f32 %v7413, %v3491
        %v7452 = vmul.f32 %v7417, %v3494
        %v7453 = vmul.f32 %v7421, %v3497
        %v7454 = vmul.f32 %v7425, %v3500
        %v7455 = vmul.f32 %v7429, %v3503
        %v7456 = vmul.f32 %v7433, %v3506
        %v7457 = vmul.f32 %v7437, %v3509
        %v7458 = vmul.f32 %v7441, %v3512
        %v7459 = vmul.f32 %v7445, %v3515
        %v7460 = vmul.f32 %v7449, %v3518
        %v7461 = vadd.f32 %v7401, %v7451
        %v7462 = vadd.f32 %v7402, %v7452
        %v7463 = vadd.f32 %v7403, %v7453
        %v7464 = vadd.f32 %v7404, %v7454
        %v7465 = vadd.f32 %v7405, %v7455
        %v7466 = vadd.f32 %v7406, %v7456
        %v7467 = vadd.f32 %v7407, %v7457
        %v7468 = vadd.f32 %v7408, %v7458
        %v7469 = vadd.f32 %v7409, %v7459
        %v7470 = vadd.f32 %v7410, %v7460
        %v7471 = vld [vmem:[%s6910 + $0x1] sm:$0xff]
        %v7472 = vld [vmem:[%s6910 + $0x11] sm:$0xff]
        %v7473 = vld [vmem:[%s6910 + $0x21] sm:$0xff]
        %v7474 = vld [vmem:[%s6910 + $0x31] sm:$0xff]
        %v7475 = vld [vmem:[%s6910 + $0x41] sm:$0xff]
        %v7476 = vld [vmem:[%s6910 + $0x51] sm:$0xff]
        %v7477 = vld [vmem:[%s6910 + $0x61] sm:$0xff]
        %v7478 = vld [vmem:[%s6910 + $0x71] sm:$0xff]
        %v7479 = vld [vmem:[%s6910 + $0x81] sm:$0xff]
        %v7480 = vld [vmem:[%s6910 + $0x91] sm:$0xff]
        %v7481 = vadd.f32 %v7471, %v7461
        %v7482 = vadd.f32 %v7472, %v7462
        %v7483 = vadd.f32 %v7473, %v7463
        %v7484 = vadd.f32 %v7474, %v7464
        %v7485 = vadd.f32 %v7475, %v7465
        %v7486 = vadd.f32 %v7476, %v7466
        %v7487 = vadd.f32 %v7477, %v7467
        %v7488 = vadd.f32 %v7478, %v7468
        %v7489 = vadd.f32 %v7479, %v7469
        %v7490 = vadd.f32 %v7480, %v7470
        %7491 = vst.msk [vmem:[%s6910 + $0x1] sm:$0xff] %vm740, %v7481
        %7492 = vst.msk [vmem:[%s6910 + $0x11] sm:$0xff] %vm740, %v7482
        %7493 = vst.msk [vmem:[%s6910 + $0x21] sm:$0xff] %vm740, %v7483
        %7494 = vst.msk [vmem:[%s6910 + $0x31] sm:$0xff] %vm740, %v7484
        %7495 = vst.msk [vmem:[%s6910 + $0x41] sm:$0xff] %vm740, %v7485
        %7496 = vst.msk [vmem:[%s6910 + $0x51] sm:$0xff] %vm740, %v7486
        %7497 = vst.msk [vmem:[%s6910 + $0x61] sm:$0xff] %vm740, %v7487
        %7498 = vst.msk [vmem:[%s6910 + $0x71] sm:$0xff] %vm740, %v7488
        %7499 = vst.msk [vmem:[%s6910 + $0x81] sm:$0xff] %vm740, %v7489
        %7500 = vst.msk [vmem:[%s6910 + $0x91] sm:$0xff] %vm740, %v7490
        %7501 = vset.pattern.permute.xlu0 8
        %7502 = vperm.xlu0 %7501, %v2131
        %v7503 = vpop.permute.xlu0 %7502
        %7505 = vset.pattern.permute.xlu0 8
        %7506 = vperm.xlu0 %7505, %v2132
        %v7507 = vpop.permute.xlu0 %7506
        %7509 = vset.pattern.permute.xlu0 8
        %7510 = vperm.xlu0 %7509, %v2133
        %v7511 = vpop.permute.xlu0 %7510
        %7513 = vset.pattern.permute.xlu0 8
        %7514 = vperm.xlu0 %7513, %v2134
        %v7515 = vpop.permute.xlu0 %7514
        %7517 = vset.pattern.permute.xlu0 8
        %7518 = vperm.xlu0 %7517, %v2135
        %v7519 = vpop.permute.xlu0 %7518
        %7521 = vset.pattern.permute.xlu0 8
        %7522 = vperm.xlu0 %7521, %v2136
        %v7523 = vpop.permute.xlu0 %7522
        %7525 = vset.pattern.permute.xlu0 8
        %7526 = vperm.xlu0 %7525, %v2137
        %v7527 = vpop.permute.xlu0 %7526
        %7529 = vset.pattern.permute.xlu0 8
        %7530 = vperm.xlu0 %7529, %v2138
        %v7531 = vpop.permute.xlu0 %7530
        %7533 = vset.pattern.permute.xlu0 8
        %7534 = vperm.xlu0 %7533, %v2139
        %v7535 = vpop.permute.xlu0 %7534
        %7537 = vset.pattern.permute.xlu0 8
        %7538 = vperm.xlu0 %7537, %v2140
        %v7539 = vpop.permute.xlu0 %7538
        %v7541 = vmul.f32 %v7503, %v2567
        %v7542 = vmul.f32 %v7507, %v2568
        %v7543 = vmul.f32 %v7511, %v2569
        %v7544 = vmul.f32 %v7515, %v2570
        %v7545 = vmul.f32 %v7519, %v2571
        %v7546 = vmul.f32 %v7523, %v2572
        %v7547 = vmul.f32 %v7527, %v2573
        %v7548 = vmul.f32 %v7531, %v2574
        %v7549 = vmul.f32 %v7535, %v2575
        %v7550 = vmul.f32 %v7539, %v2576
        %7551 = vset.pattern.permute.xlu0 17
        %7552 = vperm.xlu0 %7551, %v2181
        %v7553 = vpop.permute.xlu0 %7552
        %7555 = vset.pattern.permute.xlu0 17
        %7556 = vperm.xlu0 %7555, %v2182
        %v7557 = vpop.permute.xlu0 %7556
        %7559 = vset.pattern.permute.xlu0 17
        %7560 = vperm.xlu0 %7559, %v2183
        %v7561 = vpop.permute.xlu0 %7560
        %7563 = vset.pattern.permute.xlu0 17
        %7564 = vperm.xlu0 %7563, %v2184
        %v7565 = vpop.permute.xlu0 %7564
        %7567 = vset.pattern.permute.xlu0 17
        %7568 = vperm.xlu0 %7567, %v2185
        %v7569 = vpop.permute.xlu0 %7568
        %7571 = vset.pattern.permute.xlu0 17
        %7572 = vperm.xlu0 %7571, %v2186
        %v7573 = vpop.permute.xlu0 %7572
        %7575 = vset.pattern.permute.xlu0 17
        %7576 = vperm.xlu0 %7575, %v2187
        %v7577 = vpop.permute.xlu0 %7576
        %7579 = vset.pattern.permute.xlu0 17
        %7580 = vperm.xlu0 %7579, %v2188
        %v7581 = vpop.permute.xlu0 %7580
        %7583 = vset.pattern.permute.xlu0 17
        %7584 = vperm.xlu0 %7583, %v2189
        %v7585 = vpop.permute.xlu0 %7584
        %7587 = vset.pattern.permute.xlu0 17
        %7588 = vperm.xlu0 %7587, %v2190
        %v7589 = vpop.permute.xlu0 %7588
        %v7591 = vmul.f32 %v7553, %v2720
        %v7592 = vmul.f32 %v7557, %v2723
        %v7593 = vmul.f32 %v7561, %v2726
        %v7594 = vmul.f32 %v7565, %v2729
        %v7595 = vmul.f32 %v7569, %v2732
        %v7596 = vmul.f32 %v7573, %v2735
        %v7597 = vmul.f32 %v7577, %v2738
        %v7598 = vmul.f32 %v7581, %v2741
        %v7599 = vmul.f32 %v7585, %v2744
        %v7600 = vmul.f32 %v7589, %v2747
        %v7601 = vadd.f32 %v7541, %v7591
        %v7602 = vadd.f32 %v7542, %v7592
        %v7603 = vadd.f32 %v7543, %v7593
        %v7604 = vadd.f32 %v7544, %v7594
        %v7605 = vadd.f32 %v7545, %v7595
        %v7606 = vadd.f32 %v7546, %v7596
        %v7607 = vadd.f32 %v7547, %v7597
        %v7608 = vadd.f32 %v7548, %v7598
        %v7609 = vadd.f32 %v7549, %v7599
        %v7610 = vadd.f32 %v7550, %v7600
        %7611 = vset.pattern.permute.xlu0 26
        %7612 = vperm.xlu0 %7611, %v2221
        %v7613 = vpop.permute.xlu0 %7612
        %7615 = vset.pattern.permute.xlu0 26
        %7616 = vperm.xlu0 %7615, %v2222
        %v7617 = vpop.permute.xlu0 %7616
        %7619 = vset.pattern.permute.xlu0 26
        %7620 = vperm.xlu0 %7619, %v2223
        %v7621 = vpop.permute.xlu0 %7620
        %7623 = vset.pattern.permute.xlu0 26
        %7624 = vperm.xlu0 %7623, %v2224
        %v7625 = vpop.permute.xlu0 %7624
        %7627 = vset.pattern.permute.xlu0 26
        %7628 = vperm.xlu0 %7627, %v2225
        %v7629 = vpop.permute.xlu0 %7628
        %7631 = vset.pattern.permute.xlu0 26
        %7632 = vperm.xlu0 %7631, %v2226
        %v7633 = vpop.permute.xlu0 %7632
        %7635 = vset.pattern.permute.xlu0 26
        %7636 = vperm.xlu0 %7635, %v2227
        %v7637 = vpop.permute.xlu0 %7636
        %7639 = vset.pattern.permute.xlu0 26
        %7640 = vperm.xlu0 %7639, %v2228
        %v7641 = vpop.permute.xlu0 %7640
        %7643 = vset.pattern.permute.xlu0 26
        %7644 = vperm.xlu0 %7643, %v2229
        %v7645 = vpop.permute.xlu0 %7644
        %7647 = vset.pattern.permute.xlu0 26
        %7648 = vperm.xlu0 %7647, %v2230
        %v7649 = vpop.permute.xlu0 %7648
        %v7651 = vmul.f32 %v7613, %v2831
        %v7652 = vmul.f32 %v7617, %v2834
        %v7653 = vmul.f32 %v7621, %v2837
        %v7654 = vmul.f32 %v7625, %v2840
        %v7655 = vmul.f32 %v7629, %v2843
        %v7656 = vmul.f32 %v7633, %v2846
        %v7657 = vmul.f32 %v7637, %v2849
        %v7658 = vmul.f32 %v7641, %v2852
        %v7659 = vmul.f32 %v7645, %v2855
        %v7660 = vmul.f32 %v7649, %v2858
        %v7661 = vadd.f32 %v7601, %v7651
        %v7662 = vadd.f32 %v7602, %v7652
        %v7663 = vadd.f32 %v7603, %v7653
        %v7664 = vadd.f32 %v7604, %v7654
        %v7665 = vadd.f32 %v7605, %v7655
        %v7666 = vadd.f32 %v7606, %v7656
        %v7667 = vadd.f32 %v7607, %v7657
        %v7668 = vadd.f32 %v7608, %v7658
        %v7669 = vadd.f32 %v7609, %v7659
        %v7670 = vadd.f32 %v7610, %v7660
        %7671 = vset.pattern.permute.xlu0 35
        %7672 = vperm.xlu0 %7671, %v2261
        %v7673 = vpop.permute.xlu0 %7672
        %7675 = vset.pattern.permute.xlu0 35
        %7676 = vperm.xlu0 %7675, %v2262
        %v7677 = vpop.permute.xlu0 %7676
        %7679 = vset.pattern.permute.xlu0 35
        %7680 = vperm.xlu0 %7679, %v2263
        %v7681 = vpop.permute.xlu0 %7680
        %7683 = vset.pattern.permute.xlu0 35
        %7684 = vperm.xlu0 %7683, %v2264
        %v7685 = vpop.permute.xlu0 %7684
        %7687 = vset.pattern.permute.xlu0 35
        %7688 = vperm.xlu0 %7687, %v2265
        %v7689 = vpop.permute.xlu0 %7688
        %7691 = vset.pattern.permute.xlu0 35
        %7692 = vperm.xlu0 %7691, %v2266
        %v7693 = vpop.permute.xlu0 %7692
        %7695 = vset.pattern.permute.xlu0 35
        %7696 = vperm.xlu0 %7695, %v2267
        %v7697 = vpop.permute.xlu0 %7696
        %7699 = vset.pattern.permute.xlu0 35
        %7700 = vperm.xlu0 %7699, %v2268
        %v7701 = vpop.permute.xlu0 %7700
        %7703 = vset.pattern.permute.xlu0 35
        %7704 = vperm.xlu0 %7703, %v2269
        %v7705 = vpop.permute.xlu0 %7704
        %7707 = vset.pattern.permute.xlu0 35
        %7708 = vperm.xlu0 %7707, %v2270
        %v7709 = vpop.permute.xlu0 %7708
        %v7711 = vmul.f32 %v7673, %v2889
        %v7712 = vmul.f32 %v7677, %v2890
        %v7713 = vmul.f32 %v7681, %v2891
        %v7714 = vmul.f32 %v7685, %v2892
        %v7715 = vmul.f32 %v7689, %v2893
        %v7716 = vmul.f32 %v7693, %v2894
        %v7717 = vmul.f32 %v7697, %v2895
        %v7718 = vmul.f32 %v7701, %v2896
        %v7719 = vmul.f32 %v7705, %v2897
        %v7720 = vmul.f32 %v7709, %v2898
        %v7721 = vadd.f32 %v7661, %v7711
        %v7722 = vadd.f32 %v7662, %v7712
        %v7723 = vadd.f32 %v7663, %v7713
        %v7724 = vadd.f32 %v7664, %v7714
        %v7725 = vadd.f32 %v7665, %v7715
        %v7726 = vadd.f32 %v7666, %v7716
        %v7727 = vadd.f32 %v7667, %v7717
        %v7728 = vadd.f32 %v7668, %v7718
        %v7729 = vadd.f32 %v7669, %v7719
        %v7730 = vadd.f32 %v7670, %v7720
        %7731 = vset.pattern.permute.xlu0 44
        %7732 = vperm.xlu0 %7731, %v2301
        %v7733 = vpop.permute.xlu0 %7732
        %7735 = vset.pattern.permute.xlu0 44
        %7736 = vperm.xlu0 %7735, %v2302
        %v7737 = vpop.permute.xlu0 %7736
        %7739 = vset.pattern.permute.xlu0 44
        %7740 = vperm.xlu0 %7739, %v2303
        %v7741 = vpop.permute.xlu0 %7740
        %7743 = vset.pattern.permute.xlu0 44
        %7744 = vperm.xlu0 %7743, %v2304
        %v7745 = vpop.permute.xlu0 %7744
        %7747 = vset.pattern.permute.xlu0 44
        %7748 = vperm.xlu0 %7747, %v2305
        %v7749 = vpop.permute.xlu0 %7748
        %7751 = vset.pattern.permute.xlu0 44
        %7752 = vperm.xlu0 %7751, %v2306
        %v7753 = vpop.permute.xlu0 %7752
        %7755 = vset.pattern.permute.xlu0 44
        %7756 = vperm.xlu0 %7755, %v2307
        %v7757 = vpop.permute.xlu0 %7756
        %7759 = vset.pattern.permute.xlu0 44
        %7760 = vperm.xlu0 %7759, %v2308
        %v7761 = vpop.permute.xlu0 %7760
        %7763 = vset.pattern.permute.xlu0 44
        %7764 = vperm.xlu0 %7763, %v2309
        %v7765 = vpop.permute.xlu0 %7764
        %7767 = vset.pattern.permute.xlu0 44
        %7768 = vperm.xlu0 %7767, %v2310
        %v7769 = vpop.permute.xlu0 %7768
        %v7771 = vmul.f32 %v7733, %v3051
        %v7772 = vmul.f32 %v7737, %v3054
        %v7773 = vmul.f32 %v7741, %v3057
        %v7774 = vmul.f32 %v7745, %v3060
        %v7775 = vmul.f32 %v7749, %v3063
        %v7776 = vmul.f32 %v7753, %v3066
        %v7777 = vmul.f32 %v7757, %v3069
        %v7778 = vmul.f32 %v7761, %v3072
        %v7779 = vmul.f32 %v7765, %v3075
        %v7780 = vmul.f32 %v7769, %v3078
        %v7781 = vadd.f32 %v7721, %v7771
        %v7782 = vadd.f32 %v7722, %v7772
        %v7783 = vadd.f32 %v7723, %v7773
        %v7784 = vadd.f32 %v7724, %v7774
        %v7785 = vadd.f32 %v7725, %v7775
        %v7786 = vadd.f32 %v7726, %v7776
        %v7787 = vadd.f32 %v7727, %v7777
        %v7788 = vadd.f32 %v7728, %v7778
        %v7789 = vadd.f32 %v7729, %v7779
        %v7790 = vadd.f32 %v7730, %v7780
        %7791 = vset.pattern.permute.xlu0 53
        %7792 = vperm.xlu0 %7791, %v2341
        %v7793 = vpop.permute.xlu0 %7792
        %7795 = vset.pattern.permute.xlu0 53
        %7796 = vperm.xlu0 %7795, %v2342
        %v7797 = vpop.permute.xlu0 %7796
        %7799 = vset.pattern.permute.xlu0 53
        %7800 = vperm.xlu0 %7799, %v2343
        %v7801 = vpop.permute.xlu0 %7800
        %7803 = vset.pattern.permute.xlu0 53
        %7804 = vperm.xlu0 %7803, %v2344
        %v7805 = vpop.permute.xlu0 %7804
        %7807 = vset.pattern.permute.xlu0 53
        %7808 = vperm.xlu0 %7807, %v2345
        %v7809 = vpop.permute.xlu0 %7808
        %7811 = vset.pattern.permute.xlu0 53
        %7812 = vperm.xlu0 %7811, %v2346
        %v7813 = vpop.permute.xlu0 %7812
        %7815 = vset.pattern.permute.xlu0 53
        %7816 = vperm.xlu0 %7815, %v2347
        %v7817 = vpop.permute.xlu0 %7816
        %7819 = vset.pattern.permute.xlu0 53
        %7820 = vperm.xlu0 %7819, %v2348
        %v7821 = vpop.permute.xlu0 %7820
        %7823 = vset.pattern.permute.xlu0 53
        %7824 = vperm.xlu0 %7823, %v2349
        %v7825 = vpop.permute.xlu0 %7824
        %7827 = vset.pattern.permute.xlu0 53
        %7828 = vperm.xlu0 %7827, %v2350
        %v7829 = vpop.permute.xlu0 %7828
        %v7831 = vmul.f32 %v7793, %v3161
        %v7832 = vmul.f32 %v7797, %v3164
        %v7833 = vmul.f32 %v7801, %v3167
        %v7834 = vmul.f32 %v7805, %v3170
        %v7835 = vmul.f32 %v7809, %v3173
        %v7836 = vmul.f32 %v7813, %v3176
        %v7837 = vmul.f32 %v7817, %v3179
        %v7838 = vmul.f32 %v7821, %v3182
        %v7839 = vmul.f32 %v7825, %v3185
        %v7840 = vmul.f32 %v7829, %v3188
        %v7841 = vadd.f32 %v7781, %v7831
        %v7842 = vadd.f32 %v7782, %v7832
        %v7843 = vadd.f32 %v7783, %v7833
        %v7844 = vadd.f32 %v7784, %v7834
        %v7845 = vadd.f32 %v7785, %v7835
        %v7846 = vadd.f32 %v7786, %v7836
        %v7847 = vadd.f32 %v7787, %v7837
        %v7848 = vadd.f32 %v7788, %v7838
        %v7849 = vadd.f32 %v7789, %v7839
        %v7850 = vadd.f32 %v7790, %v7840
        %7851 = vset.pattern.permute.xlu0 62
        %7852 = vperm.xlu0 %7851, %v2381
        %v7853 = vpop.permute.xlu0 %7852
        %7855 = vset.pattern.permute.xlu0 62
        %7856 = vperm.xlu0 %7855, %v2382
        %v7857 = vpop.permute.xlu0 %7856
        %7859 = vset.pattern.permute.xlu0 62
        %7860 = vperm.xlu0 %7859, %v2383
        %v7861 = vpop.permute.xlu0 %7860
        %7863 = vset.pattern.permute.xlu0 62
        %7864 = vperm.xlu0 %7863, %v2384
        %v7865 = vpop.permute.xlu0 %7864
        %7867 = vset.pattern.permute.xlu0 62
        %7868 = vperm.xlu0 %7867, %v2385
        %v7869 = vpop.permute.xlu0 %7868
        %7871 = vset.pattern.permute.xlu0 62
        %7872 = vperm.xlu0 %7871, %v2386
        %v7873 = vpop.permute.xlu0 %7872
        %7875 = vset.pattern.permute.xlu0 62
        %7876 = vperm.xlu0 %7875, %v2387
        %v7877 = vpop.permute.xlu0 %7876
        %7879 = vset.pattern.permute.xlu0 62
        %7880 = vperm.xlu0 %7879, %v2388
        %v7881 = vpop.permute.xlu0 %7880
        %7883 = vset.pattern.permute.xlu0 62
        %7884 = vperm.xlu0 %7883, %v2389
        %v7885 = vpop.permute.xlu0 %7884
        %7887 = vset.pattern.permute.xlu0 62
        %7888 = vperm.xlu0 %7887, %v2390
        %v7889 = vpop.permute.xlu0 %7888
        %v7891 = vmul.f32 %v7853, %v3219
        %v7892 = vmul.f32 %v7857, %v3220
        %v7893 = vmul.f32 %v7861, %v3221
        %v7894 = vmul.f32 %v7865, %v3222
        %v7895 = vmul.f32 %v7869, %v3223
        %v7896 = vmul.f32 %v7873, %v3224
        %v7897 = vmul.f32 %v7877, %v3225
        %v7898 = vmul.f32 %v7881, %v3226
        %v7899 = vmul.f32 %v7885, %v3227
        %v7900 = vmul.f32 %v7889, %v3228
        %v7901 = vadd.f32 %v7841, %v7891
        %v7902 = vadd.f32 %v7842, %v7892
        %v7903 = vadd.f32 %v7843, %v7893
        %v7904 = vadd.f32 %v7844, %v7894
        %v7905 = vadd.f32 %v7845, %v7895
        %v7906 = vadd.f32 %v7846, %v7896
        %v7907 = vadd.f32 %v7847, %v7897
        %v7908 = vadd.f32 %v7848, %v7898
        %v7909 = vadd.f32 %v7849, %v7899
        %v7910 = vadd.f32 %v7850, %v7900
        %7911 = vset.pattern.permute.xlu0 71
        %7912 = vperm.xlu0 %7911, %v2421
        %v7913 = vpop.permute.xlu0 %7912
        %7915 = vset.pattern.permute.xlu0 71
        %7916 = vperm.xlu0 %7915, %v2422
        %v7917 = vpop.permute.xlu0 %7916
        %7919 = vset.pattern.permute.xlu0 71
        %7920 = vperm.xlu0 %7919, %v2423
        %v7921 = vpop.permute.xlu0 %7920
        %7923 = vset.pattern.permute.xlu0 71
        %7924 = vperm.xlu0 %7923, %v2424
        %v7925 = vpop.permute.xlu0 %7924
        %7927 = vset.pattern.permute.xlu0 71
        %7928 = vperm.xlu0 %7927, %v2425
        %v7929 = vpop.permute.xlu0 %7928
        %7931 = vset.pattern.permute.xlu0 71
        %7932 = vperm.xlu0 %7931, %v2426
        %v7933 = vpop.permute.xlu0 %7932
        %7935 = vset.pattern.permute.xlu0 71
        %7936 = vperm.xlu0 %7935, %v2427
        %v7937 = vpop.permute.xlu0 %7936
        %7939 = vset.pattern.permute.xlu0 71
        %7940 = vperm.xlu0 %7939, %v2428
        %v7941 = vpop.permute.xlu0 %7940
        %7943 = vset.pattern.permute.xlu0 71
        %7944 = vperm.xlu0 %7943, %v2429
        %v7945 = vpop.permute.xlu0 %7944
        %7947 = vset.pattern.permute.xlu0 71
        %7948 = vperm.xlu0 %7947, %v2430
        %v7949 = vpop.permute.xlu0 %7948
        %v7951 = vmul.f32 %v7913, %v3381
        %v7952 = vmul.f32 %v7917, %v3384
        %v7953 = vmul.f32 %v7921, %v3387
        %v7954 = vmul.f32 %v7925, %v3390
        %v7955 = vmul.f32 %v7929, %v3393
        %v7956 = vmul.f32 %v7933, %v3396
        %v7957 = vmul.f32 %v7937, %v3399
        %v7958 = vmul.f32 %v7941, %v3402
        %v7959 = vmul.f32 %v7945, %v3405
        %v7960 = vmul.f32 %v7949, %v3408
        %v7961 = vadd.f32 %v7901, %v7951
        %v7962 = vadd.f32 %v7902, %v7952
        %v7963 = vadd.f32 %v7903, %v7953
        %v7964 = vadd.f32 %v7904, %v7954
        %v7965 = vadd.f32 %v7905, %v7955
        %v7966 = vadd.f32 %v7906, %v7956
        %v7967 = vadd.f32 %v7907, %v7957
        %v7968 = vadd.f32 %v7908, %v7958
        %v7969 = vadd.f32 %v7909, %v7959
        %v7970 = vadd.f32 %v7910, %v7960
        %7971 = vset.pattern.permute.xlu0 80
        %7972 = vperm.xlu0 %7971, %v2461
        %v7973 = vpop.permute.xlu0 %7972
        %7975 = vset.pattern.permute.xlu0 80
        %7976 = vperm.xlu0 %7975, %v2462
        %v7977 = vpop.permute.xlu0 %7976
        %7979 = vset.pattern.permute.xlu0 80
        %7980 = vperm.xlu0 %7979, %v2463
        %v7981 = vpop.permute.xlu0 %7980
        %7983 = vset.pattern.permute.xlu0 80
        %7984 = vperm.xlu0 %7983, %v2464
        %v7985 = vpop.permute.xlu0 %7984
        %7987 = vset.pattern.permute.xlu0 80
        %7988 = vperm.xlu0 %7987, %v2465
        %v7989 = vpop.permute.xlu0 %7988
        %7991 = vset.pattern.permute.xlu0 80
        %7992 = vperm.xlu0 %7991, %v2466
        %v7993 = vpop.permute.xlu0 %7992
        %7995 = vset.pattern.permute.xlu0 80
        %7996 = vperm.xlu0 %7995, %v2467
        %v7997 = vpop.permute.xlu0 %7996
        %7999 = vset.pattern.permute.xlu0 80
        %8000 = vperm.xlu0 %7999, %v2468
        %v8001 = vpop.permute.xlu0 %8000
        %8003 = vset.pattern.permute.xlu0 80
        %8004 = vperm.xlu0 %8003, %v2469
        %v8005 = vpop.permute.xlu0 %8004
        %8007 = vset.pattern.permute.xlu0 80
        %8008 = vperm.xlu0 %8007, %v2470
        %v8009 = vpop.permute.xlu0 %8008
        %v8011 = vmul.f32 %v7973, %v3491
        %v8012 = vmul.f32 %v7977, %v3494
        %v8013 = vmul.f32 %v7981, %v3497
        %v8014 = vmul.f32 %v7985, %v3500
        %v8015 = vmul.f32 %v7989, %v3503
        %v8016 = vmul.f32 %v7993, %v3506
        %v8017 = vmul.f32 %v7997, %v3509
        %v8018 = vmul.f32 %v8001, %v3512
        %v8019 = vmul.f32 %v8005, %v3515
        %v8020 = vmul.f32 %v8009, %v3518
        %v8021 = vadd.f32 %v7961, %v8011
        %v8022 = vadd.f32 %v7962, %v8012
        %v8023 = vadd.f32 %v7963, %v8013
        %v8024 = vadd.f32 %v7964, %v8014
        %v8025 = vadd.f32 %v7965, %v8015
        %v8026 = vadd.f32 %v7966, %v8016
        %v8027 = vadd.f32 %v7967, %v8017
        %v8028 = vadd.f32 %v7968, %v8018
        %v8029 = vadd.f32 %v7969, %v8019
        %v8030 = vadd.f32 %v7970, %v8020
        %v8031 = vld [vmem:[%s6910 + $0x2] sm:$0xff]
        %v8032 = vld [vmem:[%s6910 + $0x12] sm:$0xff]
        %v8033 = vld [vmem:[%s6910 + $0x22] sm:$0xff]
        %v8034 = vld [vmem:[%s6910 + $0x32] sm:$0xff]
        %v8035 = vld [vmem:[%s6910 + $0x42] sm:$0xff]
        %v8036 = vld [vmem:[%s6910 + $0x52] sm:$0xff]
        %v8037 = vld [vmem:[%s6910 + $0x62] sm:$0xff]
        %v8038 = vld [vmem:[%s6910 + $0x72] sm:$0xff]
        %v8039 = vld [vmem:[%s6910 + $0x82] sm:$0xff]
        %v8040 = vld [vmem:[%s6910 + $0x92] sm:$0xff]
        %v8041 = vadd.f32 %v8031, %v8021
        %v8042 = vadd.f32 %v8032, %v8022
        %v8043 = vadd.f32 %v8033, %v8023
        %v8044 = vadd.f32 %v8034, %v8024
        %v8045 = vadd.f32 %v8035, %v8025
        %v8046 = vadd.f32 %v8036, %v8026
        %v8047 = vadd.f32 %v8037, %v8027
        %v8048 = vadd.f32 %v8038, %v8028
        %v8049 = vadd.f32 %v8039, %v8029
        %v8050 = vadd.f32 %v8040, %v8030
        %8051 = vst.msk [vmem:[%s6910 + $0x2] sm:$0xff] %vm740, %v8041
        %8052 = vst.msk [vmem:[%s6910 + $0x12] sm:$0xff] %vm740, %v8042
        %8053 = vst.msk [vmem:[%s6910 + $0x22] sm:$0xff] %vm740, %v8043
        %8054 = vst.msk [vmem:[%s6910 + $0x32] sm:$0xff] %vm740, %v8044
        %8055 = vst.msk [vmem:[%s6910 + $0x42] sm:$0xff] %vm740, %v8045
        %8056 = vst.msk [vmem:[%s6910 + $0x52] sm:$0xff] %vm740, %v8046
        %8057 = vst.msk [vmem:[%s6910 + $0x62] sm:$0xff] %vm740, %v8047
        %8058 = vst.msk [vmem:[%s6910 + $0x72] sm:$0xff] %vm740, %v8048
        %8059 = vst.msk [vmem:[%s6910 + $0x82] sm:$0xff] %vm740, %v8049
        %8060 = vst.msk [vmem:[%s6910 + $0x92] sm:$0xff] %vm740, %v8050
        %v8061 = vld [vmem:[%s6910 + $0x1] sm:$0xff]
        %v8062 = vld [vmem:[%s6910 + $0x11] sm:$0xff]
        %v8063 = vld [vmem:[%s6910 + $0x21] sm:$0xff]
        %v8064 = vld [vmem:[%s6910 + $0x31] sm:$0xff]
        %v8065 = vld [vmem:[%s6910 + $0x41] sm:$0xff]
        %v8066 = vld [vmem:[%s6910 + $0x51] sm:$0xff]
        %v8067 = vld [vmem:[%s6910 + $0x61] sm:$0xff]
        %v8068 = vld [vmem:[%s6910 + $0x71] sm:$0xff]
        %v8069 = vpack.c.bf16 %v8062, %v8061
        %v8070 = vpack.c.bf16 %v8064, %v8063
        %v8071 = vpack.c.bf16 %v8066, %v8065
        %v8072 = vpack.c.bf16 %v8068, %v8067
        %v8073 = vld [vmem:[#allocation11] sm:$0xf]
        %v8074 = vld [vmem:[#allocation11 + $0x4] sm:$0xf]
        %v8075 = vld [vmem:[#allocation11 + $0x8] sm:$0xf]
        %v8076 = vld [vmem:[#allocation11 + $0xc] sm:$0xf]
        %v8077 = vld [vmem:[%s6] sm:$0x1]
        %v8079 = vperm.slane %v8077, 0
        %v8085 = vunpack.c.l.b16 %v8073
        %v8086 = vunpack.c.l.b16 %v8074
        %v8087 = vunpack.c.l.b16 %v8075
        %v8088 = vunpack.c.l.b16 %v8076
        %v8089 = vpack.c.b16 %v8086, %v8085
        %v8090 = vpack.c.b16 %v8088, %v8087
        %v8094 = vsel %vm740, %v8069, 0
        %v8097 = vsel %vm740, %v8070, 0
        %v8100 = vsel %vm740, %v8071, 0
        %v8103 = vsel %vm740, %v8072, 0
        %8105 = vmatpush.bf16.msra.mxu0 0
        %8106 = vmatpush.bf16.msra.mxu0 0
        %8107 = vmatpush.bf16.msra.mxu0 0
        %8108 = vmatpush.bf16.msra.mxu0 0
        %8109 = vmatpush.bf16.msra.mxu0 0
        %8110 = vmatpush.bf16.msra.mxu0 0
        %8111 = vmatpush.bf16.msra.mxu0 %v8090
        %8112 = vmatpush.bf16.msra.mxu0 %v8089
        %8113 = vmatmul.bf16.gmra.mxu0 %v8094
        %v8114 = vpop.f32.mrf.mxu0
        %v8115 = vadd.f32 %v8079, %v8114
        %v8116 = vpop.f32.mrf.mxu0
        %v8117 = vadd.f32 %v8079, %v8116
        %8118 = vmatmul.bf16.gmra.mxu0 %v8097
        %v8119 = vpop.f32.mrf.mxu0
        %v8120 = vadd.f32 %v8079, %v8119
        %v8121 = vpop.f32.mrf.mxu0
        %v8122 = vadd.f32 %v8079, %v8121
        %8123 = vmatmul.bf16.gmra.mxu0 %v8100
        %v8124 = vpop.f32.mrf.mxu0
        %v8125 = vadd.f32 %v8079, %v8124
        %v8126 = vpop.f32.mrf.mxu0
        %v8127 = vadd.f32 %v8079, %v8126
        %8128 = vmatmul.bf16.gmra.mxu0 %v8103
        %v8129 = vpop.f32.mrf.mxu0
        %v8130 = vadd.f32 %v8079, %v8129
        %v8131 = vpop.f32.mrf.mxu0
        %v8132 = vadd.f32 %v8079, %v8131
        %8133 = vdwg.mxu0
        %8134 = vst.msk [vmem:[%s362] sm:$0xff] %vm740, %v8115
        %8135 = vst.msk [vmem:[%s362 + $0x8] sm:$0xff] %vm740, %v8117
        %8136 = vst.msk [vmem:[%s362 + $0x10] sm:$0xff] %vm740, %v8120
        %8137 = vst.msk [vmem:[%s362 + $0x18] sm:$0xff] %vm740, %v8122
        %8138 = vst.msk [vmem:[%s362 + $0x20] sm:$0xff] %vm740, %v8125
        %8139 = vst.msk [vmem:[%s362 + $0x28] sm:$0xff] %vm740, %v8127
        %8140 = vst.msk [vmem:[%s362 + $0x30] sm:$0xff] %vm740, %v8130
        %8141 = vst.msk [vmem:[%s362 + $0x38] sm:$0xff] %vm740, %v8132
        %s8142 = sand.u32 %s200, 1
        %s8143 = scalar_lea.sflag [#allocation7], %s8142
        %s8144 = sand.u32 %s200, 1
        %s8145 = smul.addr %s8144, 64
        %s8146 = scalar_lea.vmem [#allocation13], %s8145
        // Predicated region
        $region69: #{tpu_custom_call.1} parent=47 // pred_check
          %p8147 = pneg %p210
        $region70: #{tpu_custom_call.1} parent=47 // pred_check_branch
          %8149 = sbr.rel (%p8147) target = $region72
        $region71: #{tpu_custom_call.1} parent=47 // pred_region
          %s8150 = smul.u32 8, %s31
          %8152 = vsyncadd %s8143, 0
          %s8153 = smul.addr %s30, 8
          %s8154 = sadd.s32 %s8150, %s8153
          %s8155 = smul.addr %s8154, 8
          %s8156 = scalar_lea.hbm %s7, %s8155
          %s8157 = sshll.u32 %s8146, 4
          %s8158 = int_to_ptr.vmem [resolvable:$true] %s8157
          %s8159 = sshll.u32 %s8156, 4
          %s8160 = int_to_ptr.hbm [resolvable:$true] %s8159
          %8165 = dma.vmem_to_hbm [thread:$0]  %s8158, 1024, %s8160, %s8143, 128, 128, 8
        $region72: #{tpu_custom_call.1} parent=47 // pred_fallthru
          _
      $region48: #{tpu_custom_call.1} parent=5 // pred_fallthru
        _
      %p8166 = scmp.le.s32.totalorder 2, %s21
      // Predicated region
      $region73: #{tpu_custom_call.1} parent=5 // pred_check
        %p8167 = pneg %p8166
      $region74: #{tpu_custom_call.1} parent=5 // pred_check_branch
        %8169 = sbr.rel (%p8167) target = $region76
      $region75: #{tpu_custom_call.1} parent=5 // pred_region
        %s8170 = ssub.s32 %s21, 2
        // Predicated region
        $region77: #{tpu_custom_call.1} parent=75 // pred_check
          %p8171 = pneg %p216
        $region78: #{tpu_custom_call.1} parent=75 // pred_check_branch
          %8173 = sbr.rel (%p8171) target = $region80
        $region79: #{tpu_custom_call.1} parent=75 // pred_region
          %s8174 = sand.u32 %s201, 1
          %s8175 = scalar_lea.sflag [#allocation7], %s8174
          %s8176 = sand.u32 %s201, 1
          %s8177 = smul.addr %s8176, 64
          %s8178 = scalar_lea.vmem [#allocation13], %s8177
          %8180 = dma.done %s8175, 1024
        $region80: #{tpu_custom_call.1} parent=75 // pred_fallthru
          _
      $region76: #{tpu_custom_call.1} parent=5 // pred_fallthru
        _
    $region6: #{tpu_custom_call.1} parent=1 // loop_footer
      %s25 = sadd.s32 1, %s21
    $region7: #{tpu_custom_call.1} parent=1 // loop_footer_branch
      %20 = sbr.rel target = $region3
    $region8: #{tpu_custom_call.1} parent=1 // loop_exit
      _
    %8181 = vsyncpa [#allocation6], 1
    %s8182 = scalar_lea.sflag [#allocation6], 1
    %8183 = vsyncpa %s8182, 1
    %8184 = vsyncpa [#allocation9], 1
    %8185 = vsyncpa [#allocation12], 1
    %8186 = vsyncpa [#allocation7], 1
    %s8187 = scalar_lea.sflag [#allocation7], 1
    %8188 = vsyncpa %s8187, 1

</llo_original>
